<compile_context>
chip_gen: v5e
topology: v5e:2x2
jax: 0.10.0
libtpu: 0.0.40
codegen_flags: <defaults>
</compile_context>

<pallas_src>
import functools

import jax
import jax.numpy as jnp
from jax.experimental import pallas as pl
from jax.experimental.pallas import tpu as pltpu


def _attention_kernel(num_heads, scale,
                      x_ref, wqkv_ref, bqkv_ref, wp_ref, bp_ref, o_ref):
    """One grid step == one batch element; all activations resident in VMEM."""
    x = x_ref[0]                                                   # (N, C)
    N, C = x.shape
    hd = C // num_heads

    # ---- fused q/k/v projection: one (N, C) @ (C, 3C) MXU matmul ----
    qkv = jnp.dot(x, wqkv_ref[...],
                  preferred_element_type=jnp.float32) + bqkv_ref[...]
    q = qkv[:, :C] * scale              # fold the attention scale into q
    k = qkv[:, C:2 * C]
    v = qkv[:, 2 * C:]

    # ---- per-head attention, accumulated straight through the proj rows ----
    # concat_h(o_h) @ Wp == sum_h o_h @ Wp[h*hd:(h+1)*hd, :]
    acc = jnp.zeros((N, C), jnp.float32)
    for h in range(num_heads):                                     # static unroll
        lo, hi = h * hd, (h + 1) * hd
        qh = q[:, lo:hi]                                           # (N, hd)
        kh = k[:, lo:hi]                                           # (N, hd)
        vh = v[:, lo:hi]                                           # (N, hd)

        # scores: contract head dims of q and k -> (N, N)
        s = jax.lax.dot_general(qh, kh, (((1,), (1,)), ((), ())),
                                preferred_element_type=jnp.float32)

        # numerically-stable softmax (exp on EUP, reductions on XLU)
        s = s - jnp.max(s, axis=-1, keepdims=True)
        p = jnp.exp(s)
        inv = 1.0 / jnp.sum(p, axis=-1, keepdims=True)             # (N, 1)
        p = p * inv

        oh = jnp.dot(p, vh, preferred_element_type=jnp.float32)    # (N, hd)
        acc = acc + jnp.dot(oh, wp_ref[lo:hi, :],
                            preferred_element_type=jnp.float32)    # (N, C)

    o_ref[0] = (acc + bp_ref[...]).astype(o_ref.dtype)


def attention_pallas(x, params, num_heads, H=None, W=None):
    """x: (B, N, C) float32.  H, W accepted for API parity with the PyTorch
    forward signature; this Attention variant (no spatial reduction) ignores them."""
    B, N, C = x.shape
    wq, bq, wkv, bkv, wp, bp = params
    hd = C // num_heads
    scale = hd ** (-0.5)

    # Fuse q and kv projections into a single (C, 3C) weight / (3C,) bias.
    # (torch kv Linear: output channels [0, C) -> k, [C, 2C) -> v)
    wqkv = jnp.concatenate([wq, wkv], axis=1)          # (C, 3C)
    bqkv = jnp.concatenate([bq, bkv]).reshape(1, 3 * C)
    bp2 = bp.reshape(1, C)

    kernel = functools.partial(_attention_kernel, num_heads, scale)
    rep = lambda b: (0, 0)   # weights/biases: same block every grid step

    return pl.pallas_call(
        kernel,
        out_shape=jax.ShapeDtypeStruct((B, N, C), x.dtype),
        grid_spec=pltpu.PrefetchScalarGridSpec(
            num_scalar_prefetch=0,
            grid=(B,),
            in_specs=[
                pl.BlockSpec((1, N, C), lambda b: (b, 0, 0)),   # x
                pl.BlockSpec((C, 3 * C), rep),                  # Wqkv (fused)
                pl.BlockSpec((1, 3 * C), rep),                  # bqkv (fused)
                pl.BlockSpec((C, C), rep),                      # Wp (proj)
                pl.BlockSpec((1, C), rep),                      # bp (proj bias)
            ],
            out_specs=pl.BlockSpec((1, N, C), lambda b: (b, 0, 0)),
        ),
        compiler_params=pltpu.CompilerParams(
            dimension_semantics=("parallel",),
        ),
    )(x, wqkv, bqkv, wp, bp2)


def make_params(key, dim):
    """Synthetic params mirroring the module (std=0.02 linear weights)."""
    k1, k2, k3, k4, k5, k6 = jax.random.split(key, 6)
    # torch Linear stores (out, in); we keep (in, out) so the math is x @ W.
    wq = jax.random.normal(k1, (dim, dim), jnp.float32) * 0.02
    bq = jax.random.normal(k4, (dim,), jnp.float32) * 0.02
    wkv = jax.random.normal(k2, (dim, 2 * dim), jnp.float32) * 0.02
    bkv = jax.random.normal(k5, (2 * dim,), jnp.float32) * 0.02
    wp = jax.random.normal(k3, (dim, dim), jnp.float32) * 0.02
    bp = jax.random.normal(k6, (dim,), jnp.float32) * 0.02
    return (wq, bq, wkv, bkv, wp, bp)


def ref_forward(x, params, num_heads):
    """Pure-JAX reference reproducing the PyTorch forward exactly."""
    wq, bq, wkv, bkv, wp, bp = params
    B, N, C = x.shape
    hd = C // num_heads
    scale = hd ** (-0.5)
    q = (x @ wq + bq).reshape(B, N, num_heads, hd).transpose(0, 2, 1, 3)
    kv = (x @ wkv + bkv).reshape(B, N, 2, num_heads, hd).transpose(2, 0, 3, 1, 4)
    k, v = kv[0], kv[1]
    attn = jnp.einsum('bhqd,bhkd->bhqk', q, k) * scale
    attn = jax.nn.softmax(attn, axis=-1)
    o = jnp.einsum('bhqk,bhkd->bhqd', attn, v).transpose(0, 2, 1, 3).reshape(B, N, C)
    return o @ wp + bp


if __name__ == "__main__":
    B, H, W = 2, 16, 16
    dim, num_heads = 128, 4            # lane-dense C (multiple of 128)
    N = H * W

    key = jax.random.PRNGKey(0)
    kx, kp = jax.random.split(key)
    x = jax.random.normal(kx, (B, N, dim), jnp.float32)
    params = make_params(kp, dim)

    out = attention_pallas(x, params, num_heads, H, W)
    out = jax.block_until_ready(out)

    ref = jax.block_until_ready(ref_forward(x, params, num_heads))
    assert out.shape == (B, N, dim)
    assert jnp.max(jnp.abs(out - ref)) < 1e-4, "mismatch vs reference"

    print("KERNEL_OK")
</pallas_src>

<mosaic_0001>
module attributes {stable_mosaic.version = 11 : i64} {
  func.func @_attention_kernel(%arg0: i32, %arg1: memref<1x256x128xf32, #tpu.memory_space<vmem>>, %arg2: memref<128x384xf32, #tpu.memory_space<vmem>>, %arg3: memref<1x384xf32, #tpu.memory_space<vmem>>, %arg4: memref<128x128xf32, #tpu.memory_space<vmem>>, %arg5: memref<1x128xf32, #tpu.memory_space<vmem>>, %arg6: memref<1x256x128xf32, #tpu.memory_space<vmem>>) attributes {dimension_semantics = [#tpu.dimension_semantics<parallel>], iteration_bounds = array<i64: 2>, scalar_prefetch = 0 : i64, scratch_operands = 0 : i64, tpu.core_type = #tpu.core_type<tc>, window_params = [{transform_indices = @transform_0, window_bounds = array<i64: 1, 256, 128>}, {pipeline_mode = #tpu.pipeline_mode<synchronous>, transform_indices = @transform_1, window_bounds = array<i64: 128, 384>}, {pipeline_mode = #tpu.pipeline_mode<synchronous>, transform_indices = @transform_2, window_bounds = array<i64: 1, 384>}, {pipeline_mode = #tpu.pipeline_mode<synchronous>, transform_indices = @transform_3, window_bounds = array<i64: 128, 128>}, {pipeline_mode = #tpu.pipeline_mode<synchronous>, transform_indices = @transform_4, window_bounds = array<i64: 1, 128>}, {transform_indices = @transform_5, window_bounds = array<i64: 1, 256, 128>}]} {
    %c0 = arith.constant 0 : index
    %c0_0 = arith.constant 0 : index
    %c0_1 = arith.constant 0 : index
    %0 = vector.load %arg1[%c0, %c0_0, %c0_1] : memref<1x256x128xf32, #tpu.memory_space<vmem>>, vector<1x256x128xf32>
    %1 = vector.shape_cast %0 : vector<1x256x128xf32> to vector<256x128xf32>
    %c0_2 = arith.constant 0 : index
    %c0_3 = arith.constant 0 : index
    %2 = vector.load %arg2[%c0_2, %c0_3] : memref<128x384xf32, #tpu.memory_space<vmem>>, vector<128x384xf32>
    %cst = arith.constant dense<0.000000e+00> : vector<256x384xf32>
    %3 = tpu.matmul %1, %2, %cst {dimension_numbers = #tpu.dot_dimension_numbers<[1], [0], [0], [1], [0, 0, 1, 1], [], []>} : vector<256x128xf32>, vector<128x384xf32>, vector<256x384xf32> -> vector<256x384xf32>
    %c0_4 = arith.constant 0 : index
    %c0_5 = arith.constant 0 : index
    %4 = vector.load %arg3[%c0_4, %c0_5] : memref<1x384xf32, #tpu.memory_space<vmem>>, vector<1x384xf32>
    %5 = vector.broadcast %4 : vector<1x384xf32> to vector<256x384xf32>
    %6 = arith.addf %3, %5 : vector<256x384xf32>
    %7 = vector.extract_strided_slice %6 {offsets = [0, 0], sizes = [256, 128], strides = [1, 1]} : vector<256x384xf32> to vector<256x128xf32>
    %cst_6 = arith.constant 0.176776692 : f32
    %8 = vector.broadcast %cst_6 : f32 to vector<256x128xf32>
    %9 = arith.mulf %7, %8 : vector<256x128xf32>
    %10 = vector.extract_strided_slice %6 {offsets = [0, 128], sizes = [256, 128], strides = [1, 1]} : vector<256x384xf32> to vector<256x128xf32>
    %11 = vector.extract_strided_slice %6 {offsets = [0, 256], sizes = [256, 128], strides = [1, 1]} : vector<256x384xf32> to vector<256x128xf32>
    %cst_7 = arith.constant 0.000000e+00 : f32
    %12 = vector.broadcast %cst_7 : f32 to vector<256x128xf32>
    %13 = vector.extract_strided_slice %9 {offsets = [0, 0], sizes = [256, 32], strides = [1, 1]} : vector<256x128xf32> to vector<256x32xf32>
    %14 = vector.extract_strided_slice %10 {offsets = [0, 0], sizes = [256, 32], strides = [1, 1]} : vector<256x128xf32> to vector<256x32xf32>
    %15 = vector.extract_strided_slice %11 {offsets = [0, 0], sizes = [256, 32], strides = [1, 1]} : vector<256x128xf32> to vector<256x32xf32>
    %cst_8 = arith.constant dense<0.000000e+00> : vector<256x256xf32>
    %16 = tpu.matmul %13, %14, %cst_8 {dimension_numbers = #tpu.dot_dimension_numbers<[1], [1], [0], [0], [0, 0, 1, 0], [], []>} : vector<256x32xf32>, vector<256x32xf32>, vector<256x256xf32> -> vector<256x256xf32>
    %cst_9 = arith.constant dense<0xFF800000> : vector<256xf32>
    %17 = vector.multi_reduction <maximumf>, %16, %cst_9 [1] : vector<256x256xf32> to vector<256xf32>
    %18 = vector.shape_cast %17 : vector<256xf32> to vector<256x1xf32>
    %19 = vector.broadcast %18 : vector<256x1xf32> to vector<256x256xf32>
    %20 = arith.subf %16, %19 : vector<256x256xf32>
    %21 = math.exp %20 : vector<256x256xf32>
    %cst_10 = arith.constant dense<0.000000e+00> : vector<256xf32>
    %22 = vector.multi_reduction <add>, %21, %cst_10 [1] : vector<256x256xf32> to vector<256xf32>
    %23 = vector.shape_cast %22 : vector<256xf32> to vector<256x1xf32>
    %cst_11 = arith.constant 1.000000e+00 : f32
    %24 = vector.broadcast %cst_11 : f32 to vector<256x1xf32>
    %25 = arith.divf %24, %23 : vector<256x1xf32>
    %26 = vector.broadcast %25 : vector<256x1xf32> to vector<256x256xf32>
    %27 = arith.mulf %21, %26 : vector<256x256xf32>
    %cst_12 = arith.constant dense<0.000000e+00> : vector<256x32xf32>
    %28 = tpu.matmul %27, %15, %cst_12 {dimension_numbers = #tpu.dot_dimension_numbers<[1], [0], [0], [1], [0, 0, 1, 1], [], []>} : vector<256x256xf32>, vector<256x32xf32>, vector<256x32xf32> -> vector<256x32xf32>
    %c0_13 = arith.constant 0 : index
    %c0_14 = arith.constant 0 : index
    %29 = vector.load %arg4[%c0_13, %c0_14] : memref<128x128xf32, #tpu.memory_space<vmem>>, vector<32x128xf32>
    %cst_15 = arith.constant dense<0.000000e+00> : vector<256x128xf32>
    %30 = tpu.matmul %28, %29, %cst_15 {dimension_numbers = #tpu.dot_dimension_numbers<[1], [0], [0], [1], [0, 0, 1, 1], [], []>} : vector<256x32xf32>, vector<32x128xf32>, vector<256x128xf32> -> vector<256x128xf32>
    %31 = arith.addf %12, %30 : vector<256x128xf32>
    %32 = vector.extract_strided_slice %9 {offsets = [0, 32], sizes = [256, 32], strides = [1, 1]} : vector<256x128xf32> to vector<256x32xf32>
    %33 = vector.extract_strided_slice %10 {offsets = [0, 32], sizes = [256, 32], strides = [1, 1]} : vector<256x128xf32> to vector<256x32xf32>
    %34 = vector.extract_strided_slice %11 {offsets = [0, 32], sizes = [256, 32], strides = [1, 1]} : vector<256x128xf32> to vector<256x32xf32>
    %cst_16 = arith.constant dense<0.000000e+00> : vector<256x256xf32>
    %35 = tpu.matmul %32, %33, %cst_16 {dimension_numbers = #tpu.dot_dimension_numbers<[1], [1], [0], [0], [0, 0, 1, 0], [], []>} : vector<256x32xf32>, vector<256x32xf32>, vector<256x256xf32> -> vector<256x256xf32>
    %cst_17 = arith.constant dense<0xFF800000> : vector<256xf32>
    %36 = vector.multi_reduction <maximumf>, %35, %cst_17 [1] : vector<256x256xf32> to vector<256xf32>
    %37 = vector.shape_cast %36 : vector<256xf32> to vector<256x1xf32>
    %38 = vector.broadcast %37 : vector<256x1xf32> to vector<256x256xf32>
    %39 = arith.subf %35, %38 : vector<256x256xf32>
    %40 = math.exp %39 : vector<256x256xf32>
    %cst_18 = arith.constant dense<0.000000e+00> : vector<256xf32>
    %41 = vector.multi_reduction <add>, %40, %cst_18 [1] : vector<256x256xf32> to vector<256xf32>
    %42 = vector.shape_cast %41 : vector<256xf32> to vector<256x1xf32>
    %cst_19 = arith.constant 1.000000e+00 : f32
    %43 = vector.broadcast %cst_19 : f32 to vector<256x1xf32>
    %44 = arith.divf %43, %42 : vector<256x1xf32>
    %45 = vector.broadcast %44 : vector<256x1xf32> to vector<256x256xf32>
    %46 = arith.mulf %40, %45 : vector<256x256xf32>
    %cst_20 = arith.constant dense<0.000000e+00> : vector<256x32xf32>
    %47 = tpu.matmul %46, %34, %cst_20 {dimension_numbers = #tpu.dot_dimension_numbers<[1], [0], [0], [1], [0, 0, 1, 1], [], []>} : vector<256x256xf32>, vector<256x32xf32>, vector<256x32xf32> -> vector<256x32xf32>
    %c32 = arith.constant 32 : index
    %c0_21 = arith.constant 0 : index
    %48 = vector.load %arg4[%c32, %c0_21] : memref<128x128xf32, #tpu.memory_space<vmem>>, vector<32x128xf32>
    %cst_22 = arith.constant dense<0.000000e+00> : vector<256x128xf32>
    %49 = tpu.matmul %47, %48, %cst_22 {dimension_numbers = #tpu.dot_dimension_numbers<[1], [0], [0], [1], [0, 0, 1, 1], [], []>} : vector<256x32xf32>, vector<32x128xf32>, vector<256x128xf32> -> vector<256x128xf32>
    %50 = arith.addf %31, %49 : vector<256x128xf32>
    %51 = vector.extract_strided_slice %9 {offsets = [0, 64], sizes = [256, 32], strides = [1, 1]} : vector<256x128xf32> to vector<256x32xf32>
    %52 = vector.extract_strided_slice %10 {offsets = [0, 64], sizes = [256, 32], strides = [1, 1]} : vector<256x128xf32> to vector<256x32xf32>
    %53 = vector.extract_strided_slice %11 {offsets = [0, 64], sizes = [256, 32], strides = [1, 1]} : vector<256x128xf32> to vector<256x32xf32>
    %cst_23 = arith.constant dense<0.000000e+00> : vector<256x256xf32>
    %54 = tpu.matmul %51, %52, %cst_23 {dimension_numbers = #tpu.dot_dimension_numbers<[1], [1], [0], [0], [0, 0, 1, 0], [], []>} : vector<256x32xf32>, vector<256x32xf32>, vector<256x256xf32> -> vector<256x256xf32>
    %cst_24 = arith.constant dense<0xFF800000> : vector<256xf32>
    %55 = vector.multi_reduction <maximumf>, %54, %cst_24 [1] : vector<256x256xf32> to vector<256xf32>
    %56 = vector.shape_cast %55 : vector<256xf32> to vector<256x1xf32>
    %57 = vector.broadcast %56 : vector<256x1xf32> to vector<256x256xf32>
    %58 = arith.subf %54, %57 : vector<256x256xf32>
    %59 = math.exp %58 : vector<256x256xf32>
    %cst_25 = arith.constant dense<0.000000e+00> : vector<256xf32>
    %60 = vector.multi_reduction <add>, %59, %cst_25 [1] : vector<256x256xf32> to vector<256xf32>
    %61 = vector.shape_cast %60 : vector<256xf32> to vector<256x1xf32>
    %cst_26 = arith.constant 1.000000e+00 : f32
    %62 = vector.broadcast %cst_26 : f32 to vector<256x1xf32>
    %63 = arith.divf %62, %61 : vector<256x1xf32>
    %64 = vector.broadcast %63 : vector<256x1xf32> to vector<256x256xf32>
    %65 = arith.mulf %59, %64 : vector<256x256xf32>
    %cst_27 = arith.constant dense<0.000000e+00> : vector<256x32xf32>
    %66 = tpu.matmul %65, %53, %cst_27 {dimension_numbers = #tpu.dot_dimension_numbers<[1], [0], [0], [1], [0, 0, 1, 1], [], []>} : vector<256x256xf32>, vector<256x32xf32>, vector<256x32xf32> -> vector<256x32xf32>
    %c64 = arith.constant 64 : index
    %c0_28 = arith.constant 0 : index
    %67 = vector.load %arg4[%c64, %c0_28] : memref<128x128xf32, #tpu.memory_space<vmem>>, vector<32x128xf32>
    %cst_29 = arith.constant dense<0.000000e+00> : vector<256x128xf32>
    %68 = tpu.matmul %66, %67, %cst_29 {dimension_numbers = #tpu.dot_dimension_numbers<[1], [0], [0], [1], [0, 0, 1, 1], [], []>} : vector<256x32xf32>, vector<32x128xf32>, vector<256x128xf32> -> vector<256x128xf32>
    %69 = arith.addf %50, %68 : vector<256x128xf32>
    %70 = vector.extract_strided_slice %9 {offsets = [0, 96], sizes = [256, 32], strides = [1, 1]} : vector<256x128xf32> to vector<256x32xf32>
    %71 = vector.extract_strided_slice %10 {offsets = [0, 96], sizes = [256, 32], strides = [1, 1]} : vector<256x128xf32> to vector<256x32xf32>
    %72 = vector.extract_strided_slice %11 {offsets = [0, 96], sizes = [256, 32], strides = [1, 1]} : vector<256x128xf32> to vector<256x32xf32>
    %cst_30 = arith.constant dense<0.000000e+00> : vector<256x256xf32>
    %73 = tpu.matmul %70, %71, %cst_30 {dimension_numbers = #tpu.dot_dimension_numbers<[1], [1], [0], [0], [0, 0, 1, 0], [], []>} : vector<256x32xf32>, vector<256x32xf32>, vector<256x256xf32> -> vector<256x256xf32>
    %cst_31 = arith.constant dense<0xFF800000> : vector<256xf32>
    %74 = vector.multi_reduction <maximumf>, %73, %cst_31 [1] : vector<256x256xf32> to vector<256xf32>
    %75 = vector.shape_cast %74 : vector<256xf32> to vector<256x1xf32>
    %76 = vector.broadcast %75 : vector<256x1xf32> to vector<256x256xf32>
    %77 = arith.subf %73, %76 : vector<256x256xf32>
    %78 = math.exp %77 : vector<256x256xf32>
    %cst_32 = arith.constant dense<0.000000e+00> : vector<256xf32>
    %79 = vector.multi_reduction <add>, %78, %cst_32 [1] : vector<256x256xf32> to vector<256xf32>
    %80 = vector.shape_cast %79 : vector<256xf32> to vector<256x1xf32>
    %cst_33 = arith.constant 1.000000e+00 : f32
    %81 = vector.broadcast %cst_33 : f32 to vector<256x1xf32>
    %82 = arith.divf %81, %80 : vector<256x1xf32>
    %83 = vector.broadcast %82 : vector<256x1xf32> to vector<256x256xf32>
    %84 = arith.mulf %78, %83 : vector<256x256xf32>
    %cst_34 = arith.constant dense<0.000000e+00> : vector<256x32xf32>
    %85 = tpu.matmul %84, %72, %cst_34 {dimension_numbers = #tpu.dot_dimension_numbers<[1], [0], [0], [1], [0, 0, 1, 1], [], []>} : vector<256x256xf32>, vector<256x32xf32>, vector<256x32xf32> -> vector<256x32xf32>
    %c96 = arith.constant 96 : index
    %c0_35 = arith.constant 0 : index
    %86 = vector.load %arg4[%c96, %c0_35] : memref<128x128xf32, #tpu.memory_space<vmem>>, vector<32x128xf32>
    %cst_36 = arith.constant dense<0.000000e+00> : vector<256x128xf32>
    %87 = tpu.matmul %85, %86, %cst_36 {dimension_numbers = #tpu.dot_dimension_numbers<[1], [0], [0], [1], [0, 0, 1, 1], [], []>} : vector<256x32xf32>, vector<32x128xf32>, vector<256x128xf32> -> vector<256x128xf32>
    %88 = arith.addf %69, %87 : vector<256x128xf32>
    %c0_37 = arith.constant 0 : index
    %c0_38 = arith.constant 0 : index
    %89 = vector.load %arg5[%c0_37, %c0_38] : memref<1x128xf32, #tpu.memory_space<vmem>>, vector<1x128xf32>
    %90 = vector.broadcast %89 : vector<1x128xf32> to vector<256x128xf32>
    %91 = arith.addf %88, %90 : vector<256x128xf32>
    %c0_39 = arith.constant 0 : index
    %c0_40 = arith.constant 0 : index
    %c0_41 = arith.constant 0 : index
    %92 = vector.load %arg6[%c0_39, %c0_40, %c0_41] : memref<1x256x128xf32, #tpu.memory_space<vmem>>, vector<1x256x128xf32>
    %93 = vector.shape_cast %92 : vector<1x256x128xf32> to vector<256x128xf32>
    %94 = vector.shape_cast %91 : vector<256x128xf32> to vector<1x256x128xf32>
    tpu.vector_store %arg6[%c0_39, %c0_40, %c0_41], %94 {strides = array<i32>} : memref<1x256x128xf32, #tpu.memory_space<vmem>>, vector<1x256x128xf32>,
    return
  }
  func.func @transform_0(%arg0: i32) -> (i32, i32, i32) {
    %c0_i32 = arith.constant 0 : i32
    %c0_i32_0 = arith.constant 0 : i32
    %c0_i32_1 = arith.constant 0 : i32
    return %arg0, %c0_i32, %c0_i32_0 : i32, i32, i32
  }
  func.func @transform_1(%arg0: i32) -> (i32, i32) {
    %c0_i32 = arith.constant 0 : i32
    %c0_i32_0 = arith.constant 0 : i32
    %c0_i32_1 = arith.constant 0 : i32
    return %c0_i32, %c0_i32_0 : i32, i32
  }
  func.func @transform_2(%arg0: i32) -> (i32, i32) {
    %c0_i32 = arith.constant 0 : i32
    %c0_i32_0 = arith.constant 0 : i32
    %c0_i32_1 = arith.constant 0 : i32
    return %c0_i32, %c0_i32_0 : i32, i32
  }
  func.func @transform_3(%arg0: i32) -> (i32, i32) {
    %c0_i32 = arith.constant 0 : i32
    %c0_i32_0 = arith.constant 0 : i32
    %c0_i32_1 = arith.constant 0 : i32
    return %c0_i32, %c0_i32_0 : i32, i32
  }
  func.func @transform_4(%arg0: i32) -> (i32, i32) {
    %c0_i32 = arith.constant 0 : i32
    %c0_i32_0 = arith.constant 0 : i32
    %c0_i32_1 = arith.constant 0 : i32
    return %c0_i32, %c0_i32_0 : i32, i32
  }
  func.func @transform_5(%arg0: i32) -> (i32, i32, i32) {
    %c0_i32 = arith.constant 0 : i32
    %c0_i32_0 = arith.constant 0 : i32
    %c0_i32_1 = arith.constant 0 : i32
    return %arg0, %c0_i32, %c0_i32_0 : i32, i32, i32
  }
}

</mosaic_0001>

<llo_original>
// kernel: tpu_custom_call.1
$region0: #{tpu_custom_call.1}
  #allocation0 [shape = 'u32[]', space=smem, size = 0x4, offset = 0x4, fixed_abs, tag = 'smem constant byte address 0x4 - core index']
  #allocation1 [shape = 'u32[72,128]{1,0:T(1,128)}', space=vmem, size = 0x9000, scoped, tag = 'internal scratch']
  %s0 = inlined_call_operand.hbm [shape: f32[2,256,128], index: 0, kind: input, shape index: {}]
  %s1 = inlined_call_operand.hbm [shape: f32[128,384], index: 1, kind: input, shape index: {}]
  %s2 = inlined_call_operand.hbm [shape: f32[1,384], index: 2, kind: input, shape index: {}]
  %s3 = inlined_call_operand.hbm [shape: f32[128,128], index: 3, kind: input, shape index: {}]
  %s4 = inlined_call_operand.vmem [shape: f32[1,128], index: 4, kind: input, shape index: {}]
  %s5 = inlined_call_operand.hbm [shape: f32[2,256,128], index: 5, kind: output, shape index: {}]
  %s6 = sld [smem:[#allocation0]]
  $region69: #{tpu_custom_call.1} parent=0
    _
  %s8 = ssub.s32 1, %s6
  %s9 = scalar_select 0, %s8, %s6
  $region1: #{tpu_custom_call.1} parent=0
    #allocation2 [shape = 'u8[262144]{0}', space=vmem, size = 0x40000, scoped, tag = 'input window, operand 0']
    #allocation3 [shape = 's32[2]{0}', space=sflag, size = 0x8, scoped, tag = 'scoped memory for tpu_custom_call.1']
    #allocation4 [shape = 's32[2]{0}', space=sflag, size = 0x8, scoped, tag = 'scoped memory for tpu_custom_call.1']
    #allocation5 [shape = 'u8[196608]{0}', space=vmem, size = 0x30000, scoped, tag = 'input window, operand 1, single buffered']
    #allocation6 [shape = 's32[1]{0}', space=sflag, size = 0x4, scoped, tag = 'scoped memory for tpu_custom_call.1']
    #allocation7 [shape = 'u8[1536]{0}', space=vmem, size = 0x800, scoped, tag = 'input window, operand 2, single buffered']
    #allocation8 [shape = 'u8[65536]{0}', space=vmem, size = 0x10000, scoped, tag = 'input window, operand 3, single buffered']
    #allocation9 [shape = 's32[1]{0}', space=sflag, size = 0x4, scoped, tag = 'scoped memory for tpu_custom_call.1']
    #allocation10 [shape = 'u8[262144]{0}', space=vmem, size = 0x40000, scoped, tag = 'output window, operand 0']
    %10 = vsyncpa [#allocation3], 0
    %s11 = scalar_lea.sflag [#allocation3], 1
    %12 = vsyncpa %s11, 0
    %13 = vsyncpa [#allocation6], 0
    %14 = vsyncpa [#allocation9], 0
    %15 = vsyncpa [#allocation4], 0
    %s16 = scalar_lea.sflag [#allocation4], 1
    %17 = vsyncpa %s16, 0
    loop: start=0, step=1, limit=4
    $region2: #{tpu_custom_call.1} parent=1 // loop_pre_header
      _
    $region3: #{tpu_custom_call.1} parent=1 // loop_header
      %s19 = sphi 0, %s23
      %p20 = scmp.ge.s32.totalorder %s19, 4
      %s29 = sphi 0, %s31
      %s32 = sphi 0, %s29
      %s33 = sphi 0, %s32
      %s49 = sphi 0, %s33
      %s53 = sphi 0, %s53
      %s55 = sphi 0, %s53
      %s56 = sphi 0, %s55
      %s70 = sphi 0, %s56
      %s74 = sphi 0, %s74
      %s76 = sphi 0, %s74
      %s77 = sphi 0, %s76
      %s91 = sphi 0, %s77
      %s95 = sphi 0, %s95
      %s97 = sphi 0, %s95
      %s98 = sphi 0, %s97
      %s112 = sphi 0, %s98
      %s116 = sphi 0, %s116
      %s118 = sphi 0, %s116
      %s119 = sphi 0, %s118
      %s133 = sphi 0, %s119
      %s139 = sphi 0, %s141
      %s142 = sphi 0, %s139
      %s143 = sphi 0, %s142
      %s159 = sphi 0, %s143
    $region4: #{tpu_custom_call.1} parent=1 // loop_header_branch
      %22 = sbr.rel (%p20) target = $region8
    $region5: #{tpu_custom_call.1} parent=1 // loop_body
      %s24 = ssub.s32 %s19, 1
      %s25 = ssub.s32 %s19, 2
      %s26 = sadd.s32 %s19, 1
      %s27 = ssub.s32 %s19, %s26
      %p28 = scmp.eq.s32.totalorder %s27, 0
      %s30 = sadd.s32 %s29, 1
      %s31 = scalar_select %p28, %s29, %s30
      %p34 = pneg %p28
      %p35 = scmp.eq.s32.totalorder %s19, 1
      %p36 = por %p34, %p35
      %p37 = scmp.ne.s32.totalorder %s29, %s32
      %p38 = scmp.eq.s32.totalorder %s19, 0
      %p39 = por %p37, %p38
      %p40 = scmp.ne.s32.totalorder %s29, %s32
      %p41 = scmp.eq.s32.totalorder %s24, 1
      %p42 = por %p40, %p41
      %p43 = scmp.ne.s32.totalorder %s32, %s33
      %p44 = scmp.eq.s32.totalorder %s24, 0
      %p45 = por %p43, %p44
      %p46 = scmp.ne.s32.totalorder %s32, %s33
      %p47 = scmp.eq.s32.totalorder %s25, 1
      %p48 = por %p46, %p47
      %p50 = scmp.ne.s32.totalorder %s33, %s49
      %p51 = scmp.eq.s32.totalorder %s25, 0
      %p52 = por %p50, %p51
      %s54 = sadd.s32 %s53, 1
      %p57 = scmp.eq.s32.totalorder %s19, 1
      %p58 = scmp.ne.s32.totalorder %s53, %s55
      %p59 = scmp.eq.s32.totalorder %s19, 0
      %p60 = por %p58, %p59
      %p61 = scmp.ne.s32.totalorder %s53, %s55
      %p62 = scmp.eq.s32.totalorder %s24, 1
      %p63 = por %p61, %p62
      %p64 = scmp.ne.s32.totalorder %s55, %s56
      %p65 = scmp.eq.s32.totalorder %s24, 0
      %p66 = por %p64, %p65
      %p67 = scmp.ne.s32.totalorder %s55, %s56
      %p68 = scmp.eq.s32.totalorder %s25, 1
      %p69 = por %p67, %p68
      %p71 = scmp.ne.s32.totalorder %s56, %s70
      %p72 = scmp.eq.s32.totalorder %s25, 0
      %p73 = por %p71, %p72
      %s75 = sadd.s32 %s74, 1
      %p78 = scmp.eq.s32.totalorder %s19, 1
      %p79 = scmp.ne.s32.totalorder %s74, %s76
      %p80 = scmp.eq.s32.totalorder %s19, 0
      %p81 = por %p79, %p80
      %p82 = scmp.ne.s32.totalorder %s74, %s76
      %p83 = scmp.eq.s32.totalorder %s24, 1
      %p84 = por %p82, %p83
      %p85 = scmp.ne.s32.totalorder %s76, %s77
      %p86 = scmp.eq.s32.totalorder %s24, 0
      %p87 = por %p85, %p86
      %p88 = scmp.ne.s32.totalorder %s76, %s77
      %p89 = scmp.eq.s32.totalorder %s25, 1
      %p90 = por %p88, %p89
      %p92 = scmp.ne.s32.totalorder %s77, %s91
      %p93 = scmp.eq.s32.totalorder %s25, 0
      %p94 = por %p92, %p93
      %s96 = sadd.s32 %s95, 1
      %p99 = scmp.eq.s32.totalorder %s19, 1
      %p100 = scmp.ne.s32.totalorder %s95, %s97
      %p101 = scmp.eq.s32.totalorder %s19, 0
      %p102 = por %p100, %p101
      %p103 = scmp.ne.s32.totalorder %s95, %s97
      %p104 = scmp.eq.s32.totalorder %s24, 1
      %p105 = por %p103, %p104
      %p106 = scmp.ne.s32.totalorder %s97, %s98
      %p107 = scmp.eq.s32.totalorder %s24, 0
      %p108 = por %p106, %p107
      %p109 = scmp.ne.s32.totalorder %s97, %s98
      %p110 = scmp.eq.s32.totalorder %s25, 1
      %p111 = por %p109, %p110
      %p113 = scmp.ne.s32.totalorder %s98, %s112
      %p114 = scmp.eq.s32.totalorder %s25, 0
      %p115 = por %p113, %p114
      %s117 = sadd.s32 %s116, 1
      %p120 = scmp.eq.s32.totalorder %s19, 1
      %p121 = scmp.ne.s32.totalorder %s116, %s118
      %p122 = scmp.eq.s32.totalorder %s19, 0
      %p123 = por %p121, %p122
      %p124 = scmp.ne.s32.totalorder %s116, %s118
      %p125 = scmp.eq.s32.totalorder %s24, 1
      %p126 = por %p124, %p125
      %p127 = scmp.ne.s32.totalorder %s118, %s119
      %p128 = scmp.eq.s32.totalorder %s24, 0
      %p129 = por %p127, %p128
      %p130 = scmp.ne.s32.totalorder %s118, %s119
      %p131 = scmp.eq.s32.totalorder %s25, 1
      %p132 = por %p130, %p131
      %p134 = scmp.ne.s32.totalorder %s119, %s133
      %p135 = scmp.eq.s32.totalorder %s25, 0
      %p136 = por %p134, %p135
      %s137 = ssub.s32 %s19, %s26
      %p138 = scmp.eq.s32.totalorder %s137, 0
      %s140 = sadd.s32 %s139, 1
      %s141 = scalar_select %p138, %s139, %s140
      %p144 = pneg %p138
      %p145 = scmp.eq.s32.totalorder %s19, 1
      %p146 = por %p144, %p145
      %p147 = scmp.ne.s32.totalorder %s139, %s142
      %p148 = scmp.eq.s32.totalorder %s19, 0
      %p149 = por %p147, %p148
      %p150 = scmp.ne.s32.totalorder %s139, %s142
      %p151 = scmp.eq.s32.totalorder %s24, 1
      %p152 = por %p150, %p151
      %p153 = scmp.ne.s32.totalorder %s142, %s143
      %p154 = scmp.eq.s32.totalorder %s24, 0
      %p155 = por %p153, %p154
      %p156 = scmp.ne.s32.totalorder %s142, %s143
      %p157 = scmp.eq.s32.totalorder %s25, 1
      %p158 = por %p156, %p157
      %p160 = scmp.ne.s32.totalorder %s143, %s159
      %p161 = scmp.eq.s32.totalorder %s25, 0
      %p162 = por %p160, %p161
      %p163 = scmp.le.s32.totalorder 1, %s19
      %p164 = scmp.lt.s32.totalorder %s19, 3
      %p165 = pnand %p163, %p164
      %p166 = pneg %p165
      // Predicated region
      $region9: #{tpu_custom_call.1} parent=5 // pred_check
        _
      $region10: #{tpu_custom_call.1} parent=5 // pred_check_branch
        %168 = sbr.rel (%p165) target = $region12
      $region11: #{tpu_custom_call.1} parent=5 // pred_region
        %s169 = ssub.s32 %s19, 1
        // Predicated region
        $region13: #{tpu_custom_call.1} parent=11 // pred_check
          %p170 = pneg %p66
        $region14: #{tpu_custom_call.1} parent=11 // pred_check_branch
          %172 = sbr.rel (%p170) target = $region16
        $region15: #{tpu_custom_call.1} parent=11 // pred_region
          %174 = vsyncadd [#allocation6], 0
          %s175 = sshll.u32 %s1, 4
          %s176 = int_to_ptr.hbm [resolvable:$true] %s175
          %s177 = sshll.u32 [#allocation5], 4
          %s178 = int_to_ptr.vmem [resolvable:$true] %s177
          %183 = dma.hbm_to_vmem [thread:$0]  %s176, 6144, %s178, [#allocation6], 384, 384, 24
        $region16: #{tpu_custom_call.1} parent=11 // pred_fallthru
          _
        // Predicated region
        $region17: #{tpu_custom_call.1} parent=11 // pred_check
          %p184 = pneg %p87
        $region18: #{tpu_custom_call.1} parent=11 // pred_check_branch
          %186 = sbr.rel (%p184) target = $region20
        $region19: #{tpu_custom_call.1} parent=11 // pred_region
          %188 = vsyncadd [#allocation6], 0
          %s190 = sshll.u32 %s2, 4
          %s191 = int_to_ptr.hbm [resolvable:$true] %s190
          %s192 = sshll.u32 [#allocation7], 4
          %s193 = int_to_ptr.vmem [resolvable:$true] %s192
          %195 = dma.hbm_to_vmem [thread:$0]  %s191, 48, %s193, [#allocation6]
        $region20: #{tpu_custom_call.1} parent=11 // pred_fallthru
          _
        // Predicated region
        $region21: #{tpu_custom_call.1} parent=11 // pred_check
          %p196 = pneg %p108
        $region22: #{tpu_custom_call.1} parent=11 // pred_check_branch
          %198 = sbr.rel (%p196) target = $region24
        $region23: #{tpu_custom_call.1} parent=11 // pred_region
          %200 = vsyncadd [#allocation9], 0
          %s201 = sshll.u32 %s3, 4
          %s202 = int_to_ptr.hbm [resolvable:$true] %s201
          %s203 = sshll.u32 [#allocation8], 4
          %s204 = int_to_ptr.vmem [resolvable:$true] %s203
          %209 = dma.hbm_to_vmem [thread:$0]  %s202, 2048, %s204, [#allocation9], 128, 128, 8
        $region24: #{tpu_custom_call.1} parent=11 // pred_fallthru
          _
        // Predicated region
        $region25: #{tpu_custom_call.1} parent=11 // pred_check
          %p210 = pneg %p129
        $region26: #{tpu_custom_call.1} parent=11 // pred_check_branch
          %212 = sbr.rel (%p210) target = $region28
        $region27: #{tpu_custom_call.1} parent=11 // pred_region
          _
        $region28: #{tpu_custom_call.1} parent=11 // pred_fallthru
          _
      $region12: #{tpu_custom_call.1} parent=5 // pred_fallthru
        _
      %p213 = scmp.lt.s32.totalorder %s19, 2
      // Predicated region
      $region29: #{tpu_custom_call.1} parent=5 // pred_check
        %p214 = pneg %p213
      $region30: #{tpu_custom_call.1} parent=5 // pred_check_branch
        %216 = sbr.rel (%p214) target = $region32
      $region31: #{tpu_custom_call.1} parent=5 // pred_region
        // Predicated region
        $region33: #{tpu_custom_call.1} parent=31 // pred_check
          %p217 = pneg %p39
        $region34: #{tpu_custom_call.1} parent=31 // pred_check_branch
          %219 = sbr.rel (%p217) target = $region36
        $region35: #{tpu_custom_call.1} parent=31 // pred_region
          %s220 = sand.u32 %s29, 1
          %s221 = scalar_lea.sflag [#allocation3], %s220
          %s222 = sand.u32 %s29, 1
          %s223 = smul.addr %s222, 256
          %s224 = scalar_lea.vmem [#allocation2], %s223
          %226 = vsyncadd %s221, 0
          %s227 = smul.addr %s19, 32
          %s228 = smul.addr %s227, 8
          %s229 = scalar_lea.hbm %s0, %s228
          %s230 = sshll.u32 %s229, 4
          %s231 = int_to_ptr.hbm [resolvable:$true] %s230
          %s232 = sshll.u32 %s224, 4
          %s233 = int_to_ptr.vmem [resolvable:$true] %s232
          %238 = dma.hbm_to_vmem [thread:$0]  %s231, 4096, %s233, %s221, 128, 128, 8
        $region36: #{tpu_custom_call.1} parent=31 // pred_fallthru
          _
      $region32: #{tpu_custom_call.1} parent=5 // pred_fallthru
        _
      %p239 = scmp.le.s32.totalorder 1, %s19
      %p240 = scmp.lt.s32.totalorder %s19, 3
      %p241 = pnand %p239, %p240
      %p242 = pneg %p241
      // Predicated region
      $region37: #{tpu_custom_call.1} parent=5 // pred_check
        _
      $region38: #{tpu_custom_call.1} parent=5 // pred_check_branch
        %244 = sbr.rel (%p241) target = $region40
      $region39: #{tpu_custom_call.1} parent=5 // pred_region
        %s245 = ssub.s32 %s19, 1
        %s246 = sand.u32 %s32, 1
        %s247 = scalar_lea.sflag [#allocation3], %s246
        %s248 = sand.u32 %s32, 1
        %s249 = smul.addr %s248, 256
        %s250 = scalar_lea.vmem [#allocation2], %s249
        // Predicated region
        $region41: #{tpu_custom_call.1} parent=39 // pred_check
          %p251 = pneg %p45
        $region42: #{tpu_custom_call.1} parent=39 // pred_check_branch
          %253 = sbr.rel (%p251) target = $region44
        $region43: #{tpu_custom_call.1} parent=39 // pred_region
          %255 = dma.done %s247, 4096
        $region44: #{tpu_custom_call.1} parent=39 // pred_fallthru
          _
        // Predicated region
        $region45: #{tpu_custom_call.1} parent=39 // pred_check
          %p256 = pneg %p66
        $region46: #{tpu_custom_call.1} parent=39 // pred_check_branch
          %258 = sbr.rel (%p256) target = $region48
        $region47: #{tpu_custom_call.1} parent=39 // pred_region
          %260 = dma.done [#allocation6], 6144
        $region48: #{tpu_custom_call.1} parent=39 // pred_fallthru
          _
        // Predicated region
        $region49: #{tpu_custom_call.1} parent=39 // pred_check
          %p261 = pneg %p87
        $region50: #{tpu_custom_call.1} parent=39 // pred_check_branch
          %263 = sbr.rel (%p261) target = $region52
        $region51: #{tpu_custom_call.1} parent=39 // pred_region
          %265 = dma.done [#allocation6], 48
        $region52: #{tpu_custom_call.1} parent=39 // pred_fallthru
          _
        // Predicated region
        $region53: #{tpu_custom_call.1} parent=39 // pred_check
          %p266 = pneg %p108
        $region54: #{tpu_custom_call.1} parent=39 // pred_check_branch
          %268 = sbr.rel (%p266) target = $region56
        $region55: #{tpu_custom_call.1} parent=39 // pred_region
          %270 = dma.done [#allocation9], 2048
        $region56: #{tpu_custom_call.1} parent=39 // pred_fallthru
          _
        %s271 = sand.u32 %s32, 1
        %s272 = scalar_lea.sflag [#allocation3], %s271
        %s273 = sand.u32 %s32, 1
        %s274 = smul.addr %s273, 256
        %s275 = scalar_lea.vmem [#allocation2], %s274
        %p276 = pneg %p45
        %p277 = pneg %p42
        %p278 = pneg %p66
        %p279 = pneg %p63
        %p280 = pneg %p87
        %p281 = pneg %p84
        %p282 = pneg %p108
        %p283 = pneg %p105
        %p284 = pneg %p129
        %p285 = pneg %p126
        %p286 = pneg %p155
        %p287 = pneg %p152
        %s288 = sand.u32 %s142, 1
        %s289 = scalar_lea.sflag [#allocation4], %s288
        %s290 = sand.u32 %s142, 1
        %s291 = smul.addr %s290, 256
        %s292 = scalar_lea.vmem [#allocation10], %s291
        %v293 = vld [vmem:[%s250] sm:$0xff]
        %v294 = vld [vmem:[%s250 + $0x8] sm:$0xff]
        %v295 = vld [vmem:[%s250 + $0x10] sm:$0xff]
        %v296 = vld [vmem:[%s250 + $0x18] sm:$0xff]
        %v297 = vld [vmem:[%s250 + $0x20] sm:$0xff]
        %v298 = vld [vmem:[%s250 + $0x28] sm:$0xff]
        %v299 = vld [vmem:[%s250 + $0x30] sm:$0xff]
        %v300 = vld [vmem:[%s250 + $0x38] sm:$0xff]
        %v301 = vld [vmem:[%s250 + $0x40] sm:$0xff]
        %v302 = vld [vmem:[%s250 + $0x48] sm:$0xff]
        %v303 = vld [vmem:[%s250 + $0x50] sm:$0xff]
        %v304 = vld [vmem:[%s250 + $0x58] sm:$0xff]
        %v305 = vld [vmem:[%s250 + $0x60] sm:$0xff]
        %v306 = vld [vmem:[%s250 + $0x68] sm:$0xff]
        %v307 = vld [vmem:[%s250 + $0x70] sm:$0xff]
        %v308 = vld [vmem:[%s250 + $0x78] sm:$0xff]
        %v309 = vld [vmem:[%s250 + $0x80] sm:$0xff]
        %v310 = vld [vmem:[%s250 + $0x88] sm:$0xff]
        %v311 = vld [vmem:[%s250 + $0x90] sm:$0xff]
        %v312 = vld [vmem:[%s250 + $0x98] sm:$0xff]
        %v313 = vld [vmem:[%s250 + $0xa0] sm:$0xff]
        %v314 = vld [vmem:[%s250 + $0xa8] sm:$0xff]
        %v315 = vld [vmem:[%s250 + $0xb0] sm:$0xff]
        %v316 = vld [vmem:[%s250 + $0xb8] sm:$0xff]
        %v317 = vld [vmem:[%s250 + $0xc0] sm:$0xff]
        %v318 = vld [vmem:[%s250 + $0xc8] sm:$0xff]
        %v319 = vld [vmem:[%s250 + $0xd0] sm:$0xff]
        %v320 = vld [vmem:[%s250 + $0xd8] sm:$0xff]
        %v321 = vld [vmem:[%s250 + $0xe0] sm:$0xff]
        %v322 = vld [vmem:[%s250 + $0xe8] sm:$0xff]
        %v323 = vld [vmem:[%s250 + $0xf0] sm:$0xff]
        %v324 = vld [vmem:[%s250 + $0xf8] sm:$0xff]
        %v325 = vld [vmem:[#allocation5] sm:$0xff]
        %v326 = vld [vmem:[#allocation5 + $0x8] sm:$0xff]
        %v327 = vld [vmem:[#allocation5 + $0x10] sm:$0xff]
        %v328 = vld [vmem:[#allocation5 + $0x18] sm:$0xff]
        %v329 = vld [vmem:[#allocation5 + $0x20] sm:$0xff]
        %v330 = vld [vmem:[#allocation5 + $0x28] sm:$0xff]
        %v331 = vld [vmem:[#allocation5 + $0x30] sm:$0xff]
        %v332 = vld [vmem:[#allocation5 + $0x38] sm:$0xff]
        %v333 = vld [vmem:[#allocation5 + $0x40] sm:$0xff]
        %v334 = vld [vmem:[#allocation5 + $0x48] sm:$0xff]
        %v335 = vld [vmem:[#allocation5 + $0x50] sm:$0xff]
        %v336 = vld [vmem:[#allocation5 + $0x58] sm:$0xff]
        %v337 = vld [vmem:[#allocation5 + $0x60] sm:$0xff]
        %v338 = vld [vmem:[#allocation5 + $0x68] sm:$0xff]
        %v339 = vld [vmem:[#allocation5 + $0x70] sm:$0xff]
        %v340 = vld [vmem:[#allocation5 + $0x78] sm:$0xff]
        %v341 = vld [vmem:[#allocation5 + $0x80] sm:$0xff]
        %v342 = vld [vmem:[#allocation5 + $0x88] sm:$0xff]
        %v343 = vld [vmem:[#allocation5 + $0x90] sm:$0xff]
        %v344 = vld [vmem:[#allocation5 + $0x98] sm:$0xff]
        %v345 = vld [vmem:[#allocation5 + $0xa0] sm:$0xff]
        %v346 = vld [vmem:[#allocation5 + $0xa8] sm:$0xff]
        %v347 = vld [vmem:[#allocation5 + $0xb0] sm:$0xff]
        %v348 = vld [vmem:[#allocation5 + $0xb8] sm:$0xff]
        %v349 = vld [vmem:[#allocation5 + $0xc0] sm:$0xff]
        %v350 = vld [vmem:[#allocation5 + $0xc8] sm:$0xff]
        %v351 = vld [vmem:[#allocation5 + $0xd0] sm:$0xff]
        %v352 = vld [vmem:[#allocation5 + $0xd8] sm:$0xff]
        %v353 = vld [vmem:[#allocation5 + $0xe0] sm:$0xff]
        %v354 = vld [vmem:[#allocation5 + $0xe8] sm:$0xff]
        %v355 = vld [vmem:[#allocation5 + $0xf0] sm:$0xff]
        %v356 = vld [vmem:[#allocation5 + $0xf8] sm:$0xff]
        %v357 = vld [vmem:[#allocation5 + $0x100] sm:$0xff]
        %v358 = vld [vmem:[#allocation5 + $0x108] sm:$0xff]
        %v359 = vld [vmem:[#allocation5 + $0x110] sm:$0xff]
        %v360 = vld [vmem:[#allocation5 + $0x118] sm:$0xff]
        %v361 = vld [vmem:[#allocation5 + $0x120] sm:$0xff]
        %v362 = vld [vmem:[#allocation5 + $0x128] sm:$0xff]
        %v363 = vld [vmem:[#allocation5 + $0x130] sm:$0xff]
        %v364 = vld [vmem:[#allocation5 + $0x138] sm:$0xff]
        %v365 = vld [vmem:[#allocation5 + $0x140] sm:$0xff]
        %v366 = vld [vmem:[#allocation5 + $0x148] sm:$0xff]
        %v367 = vld [vmem:[#allocation5 + $0x150] sm:$0xff]
        %v368 = vld [vmem:[#allocation5 + $0x158] sm:$0xff]
        %v369 = vld [vmem:[#allocation5 + $0x160] sm:$0xff]
        %v370 = vld [vmem:[#allocation5 + $0x168] sm:$0xff]
        %v371 = vld [vmem:[#allocation5 + $0x170] sm:$0xff]
        %v372 = vld [vmem:[#allocation5 + $0x178] sm:$0xff]
        %v373 = vld [vmem:[#allocation7] sm:$0x7]
        %v375 = vperm.slane %v373, 0
        %v376 = vperm.slane %v373, 1
        %v377 = vperm.slane %v373, 2
        %381 = vmatpush.msra.mxu0 %v370
        %382 = vmatpush.msra.mxu0 %v367
        %383 = vmatpush.msra.mxu0 %v364
        %384 = vmatpush.msra.mxu0 %v361
        %385 = vmatpush.msra.mxu0 %v358
        %386 = vmatpush.msra.mxu0 %v355
        %387 = vmatpush.msra.mxu0 %v352
        %388 = vmatpush.msra.mxu0 %v349
        %389 = vmatpush.msra.mxu0 %v346
        %390 = vmatpush.msra.mxu0 %v343
        %391 = vmatpush.msra.mxu0 %v340
        %392 = vmatpush.msra.mxu0 %v337
        %393 = vmatpush.msra.mxu0 %v334
        %394 = vmatpush.msra.mxu0 %v331
        %395 = vmatpush.msra.mxu0 %v328
        %396 = vmatpush.msra.mxu0 %v325
        %397 = vmatmul.f32.gmra.mxu0 %v293
        %v398 = vpop.f32.mrf.mxu0
        %v399 = vadd.f32 %v375, %v398
        %400 = vmatmul.f32.gmra.mxu0 %v294
        %v401 = vpop.f32.mrf.mxu0
        %v402 = vadd.f32 %v375, %v401
        %403 = vmatmul.f32.gmra.mxu0 %v295
        %v404 = vpop.f32.mrf.mxu0
        %v405 = vadd.f32 %v375, %v404
        %406 = vmatmul.f32.gmra.mxu0 %v296
        %v407 = vpop.f32.mrf.mxu0
        %v408 = vadd.f32 %v375, %v407
        %409 = vmatmul.f32.gmra.mxu0 %v297
        %v410 = vpop.f32.mrf.mxu0
        %v411 = vadd.f32 %v375, %v410
        %412 = vmatmul.f32.gmra.mxu0 %v298
        %v413 = vpop.f32.mrf.mxu0
        %v414 = vadd.f32 %v375, %v413
        %415 = vmatmul.f32.gmra.mxu0 %v299
        %v416 = vpop.f32.mrf.mxu0
        %v417 = vadd.f32 %v375, %v416
        %418 = vmatmul.f32.gmra.mxu0 %v300
        %v419 = vpop.f32.mrf.mxu0
        %v420 = vadd.f32 %v375, %v419
        %421 = vmatmul.f32.gmra.mxu0 %v301
        %v422 = vpop.f32.mrf.mxu0
        %v423 = vadd.f32 %v375, %v422
        %424 = vmatmul.f32.gmra.mxu0 %v302
        %v425 = vpop.f32.mrf.mxu0
        %v426 = vadd.f32 %v375, %v425
        %427 = vmatmul.f32.gmra.mxu0 %v303
        %v428 = vpop.f32.mrf.mxu0
        %v429 = vadd.f32 %v375, %v428
        %430 = vmatmul.f32.gmra.mxu0 %v304
        %v431 = vpop.f32.mrf.mxu0
        %v432 = vadd.f32 %v375, %v431
        %433 = vmatmul.f32.gmra.mxu0 %v305
        %v434 = vpop.f32.mrf.mxu0
        %v435 = vadd.f32 %v375, %v434
        %436 = vmatmul.f32.gmra.mxu0 %v306
        %v437 = vpop.f32.mrf.mxu0
        %v438 = vadd.f32 %v375, %v437
        %439 = vmatmul.f32.gmra.mxu0 %v307
        %v440 = vpop.f32.mrf.mxu0
        %v441 = vadd.f32 %v375, %v440
        %442 = vmatmul.f32.gmra.mxu0 %v308
        %v443 = vpop.f32.mrf.mxu0
        %v444 = vadd.f32 %v375, %v443
        %445 = vmatmul.f32.gmra.mxu0 %v309
        %v446 = vpop.f32.mrf.mxu0
        %v447 = vadd.f32 %v375, %v446
        %448 = vmatmul.f32.gmra.mxu0 %v310
        %v449 = vpop.f32.mrf.mxu0
        %v450 = vadd.f32 %v375, %v449
        %451 = vmatmul.f32.gmra.mxu0 %v311
        %v452 = vpop.f32.mrf.mxu0
        %v453 = vadd.f32 %v375, %v452
        %454 = vmatmul.f32.gmra.mxu0 %v312
        %v455 = vpop.f32.mrf.mxu0
        %v456 = vadd.f32 %v375, %v455
        %457 = vmatmul.f32.gmra.mxu0 %v313
        %v458 = vpop.f32.mrf.mxu0
        %v459 = vadd.f32 %v375, %v458
        %460 = vmatmul.f32.gmra.mxu0 %v314
        %v461 = vpop.f32.mrf.mxu0
        %v462 = vadd.f32 %v375, %v461
        %463 = vmatmul.f32.gmra.mxu0 %v315
        %v464 = vpop.f32.mrf.mxu0
        %v465 = vadd.f32 %v375, %v464
        %466 = vmatmul.f32.gmra.mxu0 %v316
        %v467 = vpop.f32.mrf.mxu0
        %v468 = vadd.f32 %v375, %v467
        %469 = vmatmul.f32.gmra.mxu0 %v317
        %v470 = vpop.f32.mrf.mxu0
        %v471 = vadd.f32 %v375, %v470
        %472 = vmatmul.f32.gmra.mxu0 %v318
        %v473 = vpop.f32.mrf.mxu0
        %v474 = vadd.f32 %v375, %v473
        %475 = vmatmul.f32.gmra.mxu0 %v319
        %v476 = vpop.f32.mrf.mxu0
        %v477 = vadd.f32 %v375, %v476
        %478 = vmatmul.f32.gmra.mxu0 %v320
        %v479 = vpop.f32.mrf.mxu0
        %v480 = vadd.f32 %v375, %v479
        %481 = vmatmul.f32.gmra.mxu0 %v321
        %v482 = vpop.f32.mrf.mxu0
        %v483 = vadd.f32 %v375, %v482
        %484 = vmatmul.f32.gmra.mxu0 %v322
        %v485 = vpop.f32.mrf.mxu0
        %v486 = vadd.f32 %v375, %v485
        %487 = vmatmul.f32.gmra.mxu0 %v323
        %v488 = vpop.f32.mrf.mxu0
        %v489 = vadd.f32 %v375, %v488
        %490 = vmatmul.f32.gmra.mxu0 %v324
        %v491 = vpop.f32.mrf.mxu0
        %v492 = vadd.f32 %v375, %v491
        %493 = vdwg.mxu0
        %494 = vmatpush.msra.mxu0 %v371
        %495 = vmatpush.msra.mxu0 %v368
        %496 = vmatpush.msra.mxu0 %v365
        %497 = vmatpush.msra.mxu0 %v362
        %498 = vmatpush.msra.mxu0 %v359
        %499 = vmatpush.msra.mxu0 %v356
        %500 = vmatpush.msra.mxu0 %v353
        %501 = vmatpush.msra.mxu0 %v350
        %502 = vmatpush.msra.mxu0 %v347
        %503 = vmatpush.msra.mxu0 %v344
        %504 = vmatpush.msra.mxu0 %v341
        %505 = vmatpush.msra.mxu0 %v338
        %506 = vmatpush.msra.mxu0 %v335
        %507 = vmatpush.msra.mxu0 %v332
        %508 = vmatpush.msra.mxu0 %v329
        %509 = vmatpush.msra.mxu0 %v326
        %510 = vmatmul.f32.gmra.mxu0 %v293
        %v511 = vpop.f32.mrf.mxu0
        %v512 = vadd.f32 %v376, %v511
        %513 = vmatmul.f32.gmra.mxu0 %v294
        %v514 = vpop.f32.mrf.mxu0
        %v515 = vadd.f32 %v376, %v514
        %516 = vmatmul.f32.gmra.mxu0 %v295
        %v517 = vpop.f32.mrf.mxu0
        %v518 = vadd.f32 %v376, %v517
        %519 = vmatmul.f32.gmra.mxu0 %v296
        %v520 = vpop.f32.mrf.mxu0
        %v521 = vadd.f32 %v376, %v520
        %522 = vmatmul.f32.gmra.mxu0 %v297
        %v523 = vpop.f32.mrf.mxu0
        %v524 = vadd.f32 %v376, %v523
        %525 = vmatmul.f32.gmra.mxu0 %v298
        %v526 = vpop.f32.mrf.mxu0
        %v527 = vadd.f32 %v376, %v526
        %528 = vmatmul.f32.gmra.mxu0 %v299
        %v529 = vpop.f32.mrf.mxu0
        %v530 = vadd.f32 %v376, %v529
        %531 = vmatmul.f32.gmra.mxu0 %v300
        %v532 = vpop.f32.mrf.mxu0
        %v533 = vadd.f32 %v376, %v532
        %534 = vmatmul.f32.gmra.mxu0 %v301
        %v535 = vpop.f32.mrf.mxu0
        %v536 = vadd.f32 %v376, %v535
        %537 = vmatmul.f32.gmra.mxu0 %v302
        %v538 = vpop.f32.mrf.mxu0
        %v539 = vadd.f32 %v376, %v538
        %540 = vmatmul.f32.gmra.mxu0 %v303
        %v541 = vpop.f32.mrf.mxu0
        %v542 = vadd.f32 %v376, %v541
        %543 = vmatmul.f32.gmra.mxu0 %v304
        %v544 = vpop.f32.mrf.mxu0
        %v545 = vadd.f32 %v376, %v544
        %546 = vmatmul.f32.gmra.mxu0 %v305
        %v547 = vpop.f32.mrf.mxu0
        %v548 = vadd.f32 %v376, %v547
        %549 = vmatmul.f32.gmra.mxu0 %v306
        %v550 = vpop.f32.mrf.mxu0
        %v551 = vadd.f32 %v376, %v550
        %552 = vmatmul.f32.gmra.mxu0 %v307
        %v553 = vpop.f32.mrf.mxu0
        %v554 = vadd.f32 %v376, %v553
        %555 = vmatmul.f32.gmra.mxu0 %v308
        %v556 = vpop.f32.mrf.mxu0
        %v557 = vadd.f32 %v376, %v556
        %558 = vmatmul.f32.gmra.mxu0 %v309
        %v559 = vpop.f32.mrf.mxu0
        %v560 = vadd.f32 %v376, %v559
        %561 = vmatmul.f32.gmra.mxu0 %v310
        %v562 = vpop.f32.mrf.mxu0
        %v563 = vadd.f32 %v376, %v562
        %564 = vmatmul.f32.gmra.mxu0 %v311
        %v565 = vpop.f32.mrf.mxu0
        %v566 = vadd.f32 %v376, %v565
        %567 = vmatmul.f32.gmra.mxu0 %v312
        %v568 = vpop.f32.mrf.mxu0
        %v569 = vadd.f32 %v376, %v568
        %570 = vmatmul.f32.gmra.mxu0 %v313
        %v571 = vpop.f32.mrf.mxu0
        %v572 = vadd.f32 %v376, %v571
        %573 = vmatmul.f32.gmra.mxu0 %v314
        %v574 = vpop.f32.mrf.mxu0
        %v575 = vadd.f32 %v376, %v574
        %576 = vmatmul.f32.gmra.mxu0 %v315
        %v577 = vpop.f32.mrf.mxu0
        %v578 = vadd.f32 %v376, %v577
        %579 = vmatmul.f32.gmra.mxu0 %v316
        %v580 = vpop.f32.mrf.mxu0
        %v581 = vadd.f32 %v376, %v580
        %582 = vmatmul.f32.gmra.mxu0 %v317
        %v583 = vpop.f32.mrf.mxu0
        %v584 = vadd.f32 %v376, %v583
        %585 = vmatmul.f32.gmra.mxu0 %v318
        %v586 = vpop.f32.mrf.mxu0
        %v587 = vadd.f32 %v376, %v586
        %588 = vmatmul.f32.gmra.mxu0 %v319
        %v589 = vpop.f32.mrf.mxu0
        %v590 = vadd.f32 %v376, %v589
        %591 = vmatmul.f32.gmra.mxu0 %v320
        %v592 = vpop.f32.mrf.mxu0
        %v593 = vadd.f32 %v376, %v592
        %594 = vmatmul.f32.gmra.mxu0 %v321
        %v595 = vpop.f32.mrf.mxu0
        %v596 = vadd.f32 %v376, %v595
        %597 = vmatmul.f32.gmra.mxu0 %v322
        %v598 = vpop.f32.mrf.mxu0
        %v599 = vadd.f32 %v376, %v598
        %600 = vmatmul.f32.gmra.mxu0 %v323
        %v601 = vpop.f32.mrf.mxu0
        %v602 = vadd.f32 %v376, %v601
        %603 = vmatmul.f32.gmra.mxu0 %v324
        %v604 = vpop.f32.mrf.mxu0
        %v605 = vadd.f32 %v376, %v604
        %606 = vdwg.mxu0
        %607 = vmatpush.msra.mxu0 %v372
        %608 = vmatpush.msra.mxu0 %v369
        %609 = vmatpush.msra.mxu0 %v366
        %610 = vmatpush.msra.mxu0 %v363
        %611 = vmatpush.msra.mxu0 %v360
        %612 = vmatpush.msra.mxu0 %v357
        %613 = vmatpush.msra.mxu0 %v354
        %614 = vmatpush.msra.mxu0 %v351
        %615 = vmatpush.msra.mxu0 %v348
        %616 = vmatpush.msra.mxu0 %v345
        %617 = vmatpush.msra.mxu0 %v342
        %618 = vmatpush.msra.mxu0 %v339
        %619 = vmatpush.msra.mxu0 %v336
        %620 = vmatpush.msra.mxu0 %v333
        %621 = vmatpush.msra.mxu0 %v330
        %622 = vmatpush.msra.mxu0 %v327
        %623 = vmatmul.f32.gmra.mxu0 %v293
        %v624 = vpop.f32.mrf.mxu0
        %v625 = vadd.f32 %v377, %v624
        %626 = vmatmul.f32.gmra.mxu0 %v294
        %v627 = vpop.f32.mrf.mxu0
        %v628 = vadd.f32 %v377, %v627
        %629 = vmatmul.f32.gmra.mxu0 %v295
        %v630 = vpop.f32.mrf.mxu0
        %v631 = vadd.f32 %v377, %v630
        %632 = vmatmul.f32.gmra.mxu0 %v296
        %v633 = vpop.f32.mrf.mxu0
        %v634 = vadd.f32 %v377, %v633
        %635 = vmatmul.f32.gmra.mxu0 %v297
        %v636 = vpop.f32.mrf.mxu0
        %v637 = vadd.f32 %v377, %v636
        %638 = vmatmul.f32.gmra.mxu0 %v298
        %v639 = vpop.f32.mrf.mxu0
        %v640 = vadd.f32 %v377, %v639
        %641 = vmatmul.f32.gmra.mxu0 %v299
        %v642 = vpop.f32.mrf.mxu0
        %v643 = vadd.f32 %v377, %v642
        %644 = vmatmul.f32.gmra.mxu0 %v300
        %v645 = vpop.f32.mrf.mxu0
        %v646 = vadd.f32 %v377, %v645
        %647 = vmatmul.f32.gmra.mxu0 %v301
        %v648 = vpop.f32.mrf.mxu0
        %v649 = vadd.f32 %v377, %v648
        %650 = vmatmul.f32.gmra.mxu0 %v302
        %v651 = vpop.f32.mrf.mxu0
        %v652 = vadd.f32 %v377, %v651
        %653 = vmatmul.f32.gmra.mxu0 %v303
        %v654 = vpop.f32.mrf.mxu0
        %v655 = vadd.f32 %v377, %v654
        %656 = vmatmul.f32.gmra.mxu0 %v304
        %v657 = vpop.f32.mrf.mxu0
        %v658 = vadd.f32 %v377, %v657
        %659 = vmatmul.f32.gmra.mxu0 %v305
        %v660 = vpop.f32.mrf.mxu0
        %v661 = vadd.f32 %v377, %v660
        %662 = vmatmul.f32.gmra.mxu0 %v306
        %v663 = vpop.f32.mrf.mxu0
        %v664 = vadd.f32 %v377, %v663
        %665 = vmatmul.f32.gmra.mxu0 %v307
        %v666 = vpop.f32.mrf.mxu0
        %v667 = vadd.f32 %v377, %v666
        %668 = vmatmul.f32.gmra.mxu0 %v308
        %v669 = vpop.f32.mrf.mxu0
        %v670 = vadd.f32 %v377, %v669
        %671 = vmatmul.f32.gmra.mxu0 %v309
        %v672 = vpop.f32.mrf.mxu0
        %v673 = vadd.f32 %v377, %v672
        %674 = vmatmul.f32.gmra.mxu0 %v310
        %v675 = vpop.f32.mrf.mxu0
        %v676 = vadd.f32 %v377, %v675
        %677 = vmatmul.f32.gmra.mxu0 %v311
        %v678 = vpop.f32.mrf.mxu0
        %v679 = vadd.f32 %v377, %v678
        %680 = vmatmul.f32.gmra.mxu0 %v312
        %v681 = vpop.f32.mrf.mxu0
        %v682 = vadd.f32 %v377, %v681
        %683 = vmatmul.f32.gmra.mxu0 %v313
        %v684 = vpop.f32.mrf.mxu0
        %v685 = vadd.f32 %v377, %v684
        %686 = vmatmul.f32.gmra.mxu0 %v314
        %v687 = vpop.f32.mrf.mxu0
        %v688 = vadd.f32 %v377, %v687
        %689 = vmatmul.f32.gmra.mxu0 %v315
        %v690 = vpop.f32.mrf.mxu0
        %v691 = vadd.f32 %v377, %v690
        %692 = vmatmul.f32.gmra.mxu0 %v316
        %v693 = vpop.f32.mrf.mxu0
        %v694 = vadd.f32 %v377, %v693
        %695 = vmatmul.f32.gmra.mxu0 %v317
        %v696 = vpop.f32.mrf.mxu0
        %v697 = vadd.f32 %v377, %v696
        %698 = vmatmul.f32.gmra.mxu0 %v318
        %v699 = vpop.f32.mrf.mxu0
        %v700 = vadd.f32 %v377, %v699
        %701 = vmatmul.f32.gmra.mxu0 %v319
        %v702 = vpop.f32.mrf.mxu0
        %v703 = vadd.f32 %v377, %v702
        %704 = vmatmul.f32.gmra.mxu0 %v320
        %v705 = vpop.f32.mrf.mxu0
        %v706 = vadd.f32 %v377, %v705
        %707 = vmatmul.f32.gmra.mxu0 %v321
        %v708 = vpop.f32.mrf.mxu0
        %v709 = vadd.f32 %v377, %v708
        %710 = vmatmul.f32.gmra.mxu0 %v322
        %v711 = vpop.f32.mrf.mxu0
        %v712 = vadd.f32 %v377, %v711
        %713 = vmatmul.f32.gmra.mxu0 %v323
        %v714 = vpop.f32.mrf.mxu0
        %v715 = vadd.f32 %v377, %v714
        %716 = vmatmul.f32.gmra.mxu0 %v324
        %v717 = vpop.f32.mrf.mxu0
        %v718 = vadd.f32 %v377, %v717
        %719 = vdwg.mxu0
        %v720 = vmul.f32 %v399, 0.17677669
        %v721 = vmul.f32 %v402, 0.17677669
        %v722 = vmul.f32 %v405, 0.17677669
        %v723 = vmul.f32 %v408, 0.17677669
        %v724 = vmul.f32 %v411, 0.17677669
        %v725 = vmul.f32 %v414, 0.17677669
        %v726 = vmul.f32 %v417, 0.17677669
        %v727 = vmul.f32 %v420, 0.17677669
        %v728 = vmul.f32 %v423, 0.17677669
        %v729 = vmul.f32 %v426, 0.17677669
        %v730 = vmul.f32 %v429, 0.17677669
        %v731 = vmul.f32 %v432, 0.17677669
        %v732 = vmul.f32 %v435, 0.17677669
        %v733 = vmul.f32 %v438, 0.17677669
        %v734 = vmul.f32 %v441, 0.17677669
        %v735 = vmul.f32 %v444, 0.17677669
        %v736 = vmul.f32 %v447, 0.17677669
        %v737 = vmul.f32 %v450, 0.17677669
        %v738 = vmul.f32 %v453, 0.17677669
        %v739 = vmul.f32 %v456, 0.17677669
        %v740 = vmul.f32 %v459, 0.17677669
        %v741 = vmul.f32 %v462, 0.17677669
        %v742 = vmul.f32 %v465, 0.17677669
        %v743 = vmul.f32 %v468, 0.17677669
        %v744 = vmul.f32 %v471, 0.17677669
        %v745 = vmul.f32 %v474, 0.17677669
        %v746 = vmul.f32 %v477, 0.17677669
        %v747 = vmul.f32 %v480, 0.17677669
        %v748 = vmul.f32 %v483, 0.17677669
        %v749 = vmul.f32 %v486, 0.17677669
        %v750 = vmul.f32 %v489, 0.17677669
        %v751 = vmul.f32 %v492, 0.17677669
        %vm752 = vcmask 261120
        %v754 = vsel %vm752, %v720, 0
        %v757 = vsel %vm752, %v721, 0
        %v760 = vsel %vm752, %v722, 0
        %v763 = vsel %vm752, %v723, 0
        %v766 = vsel %vm752, %v724, 0
        %v769 = vsel %vm752, %v725, 0
        %v772 = vsel %vm752, %v726, 0
        %v775 = vsel %vm752, %v727, 0
        %v778 = vsel %vm752, %v728, 0
        %v781 = vsel %vm752, %v729, 0
        %v784 = vsel %vm752, %v730, 0
        %v787 = vsel %vm752, %v731, 0
        %v790 = vsel %vm752, %v732, 0
        %v793 = vsel %vm752, %v733, 0
        %v796 = vsel %vm752, %v734, 0
        %v799 = vsel %vm752, %v735, 0
        %v802 = vsel %vm752, %v736, 0
        %v805 = vsel %vm752, %v737, 0
        %v808 = vsel %vm752, %v738, 0
        %v811 = vsel %vm752, %v739, 0
        %v814 = vsel %vm752, %v740, 0
        %v817 = vsel %vm752, %v741, 0
        %v820 = vsel %vm752, %v742, 0
        %v823 = vsel %vm752, %v743, 0
        %v826 = vsel %vm752, %v744, 0
        %v829 = vsel %vm752, %v745, 0
        %v832 = vsel %vm752, %v746, 0
        %v835 = vsel %vm752, %v747, 0
        %v838 = vsel %vm752, %v748, 0
        %v841 = vsel %vm752, %v749, 0
        %v844 = vsel %vm752, %v750, 0
        %v847 = vsel %vm752, %v751, 0
        %v850 = vsel %vm752, %v512, 0
        %v853 = vsel %vm752, %v515, 0
        %v856 = vsel %vm752, %v518, 0
        %v859 = vsel %vm752, %v521, 0
        %v862 = vsel %vm752, %v524, 0
        %v865 = vsel %vm752, %v527, 0
        %v868 = vsel %vm752, %v530, 0
        %v871 = vsel %vm752, %v533, 0
        %v874 = vsel %vm752, %v536, 0
        %v877 = vsel %vm752, %v539, 0
        %v880 = vsel %vm752, %v542, 0
        %v883 = vsel %vm752, %v545, 0
        %v886 = vsel %vm752, %v548, 0
        %v889 = vsel %vm752, %v551, 0
        %v892 = vsel %vm752, %v554, 0
        %v895 = vsel %vm752, %v557, 0
        %v898 = vsel %vm752, %v560, 0
        %v901 = vsel %vm752, %v563, 0
        %v904 = vsel %vm752, %v566, 0
        %v907 = vsel %vm752, %v569, 0
        %v910 = vsel %vm752, %v572, 0
        %v913 = vsel %vm752, %v575, 0
        %v916 = vsel %vm752, %v578, 0
        %v919 = vsel %vm752, %v581, 0
        %v922 = vsel %vm752, %v584, 0
        %v925 = vsel %vm752, %v587, 0
        %v928 = vsel %vm752, %v590, 0
        %v931 = vsel %vm752, %v593, 0
        %v934 = vsel %vm752, %v596, 0
        %v937 = vsel %vm752, %v599, 0
        %v940 = vsel %vm752, %v602, 0
        %v943 = vsel %vm752, %v605, 0
        %945 = vmatpush.xpose.msra.mxu0 %v895
        %946 = vmatpush.xpose.msra.mxu0 %v892
        %947 = vmatpush.xpose.msra.mxu0 %v889
        %948 = vmatpush.xpose.msra.mxu0 %v886
        %949 = vmatpush.xpose.msra.mxu0 %v883
        %950 = vmatpush.xpose.msra.mxu0 %v880
        %951 = vmatpush.xpose.msra.mxu0 %v877
        %952 = vmatpush.xpose.msra.mxu0 %v874
        %953 = vmatpush.xpose.msra.mxu0 %v871
        %954 = vmatpush.xpose.msra.mxu0 %v868
        %955 = vmatpush.xpose.msra.mxu0 %v865
        %956 = vmatpush.xpose.msra.mxu0 %v862
        %957 = vmatpush.xpose.msra.mxu0 %v859
        %958 = vmatpush.xpose.msra.mxu0 %v856
        %959 = vmatpush.xpose.msra.mxu0 %v853
        %960 = vmatpush.xpose.msra.mxu0 %v850
        %961 = vmatmul.f32.gmra.mxu0 %v754
        %v962 = vpop.f32.mrf.mxu0
        %v963 = vadd.f32 0.0, %v962
        %964 = vmatmul.f32.gmra.mxu0 %v757
        %v965 = vpop.f32.mrf.mxu0
        %v966 = vadd.f32 0.0, %v965
        %967 = vmatmul.f32.gmra.mxu0 %v760
        %v968 = vpop.f32.mrf.mxu0
        %v969 = vadd.f32 0.0, %v968
        %970 = vmatmul.f32.gmra.mxu0 %v763
        %v971 = vpop.f32.mrf.mxu0
        %v972 = vadd.f32 0.0, %v971
        %973 = vmatmul.f32.gmra.mxu0 %v766
        %v974 = vpop.f32.mrf.mxu0
        %v975 = vadd.f32 0.0, %v974
        %976 = vmatmul.f32.gmra.mxu0 %v769
        %v977 = vpop.f32.mrf.mxu0
        %v978 = vadd.f32 0.0, %v977
        %979 = vmatmul.f32.gmra.mxu0 %v772
        %v980 = vpop.f32.mrf.mxu0
        %v981 = vadd.f32 0.0, %v980
        %982 = vmatmul.f32.gmra.mxu0 %v775
        %v983 = vpop.f32.mrf.mxu0
        %v984 = vadd.f32 0.0, %v983
        %985 = vmatmul.f32.gmra.mxu0 %v778
        %v986 = vpop.f32.mrf.mxu0
        %v987 = vadd.f32 0.0, %v986
        %988 = vmatmul.f32.gmra.mxu0 %v781
        %v989 = vpop.f32.mrf.mxu0
        %v990 = vadd.f32 0.0, %v989
        %991 = vmatmul.f32.gmra.mxu0 %v784
        %v992 = vpop.f32.mrf.mxu0
        %v993 = vadd.f32 0.0, %v992
        %994 = vmatmul.f32.gmra.mxu0 %v787
        %v995 = vpop.f32.mrf.mxu0
        %v996 = vadd.f32 0.0, %v995
        %997 = vmatmul.f32.gmra.mxu0 %v790
        %v998 = vpop.f32.mrf.mxu0
        %v999 = vadd.f32 0.0, %v998
        %1000 = vmatmul.f32.gmra.mxu0 %v793
        %v1001 = vpop.f32.mrf.mxu0
        %v1002 = vadd.f32 0.0, %v1001
        %1003 = vmatmul.f32.gmra.mxu0 %v796
        %v1004 = vpop.f32.mrf.mxu0
        %v1005 = vadd.f32 0.0, %v1004
        %1006 = vmatmul.f32.gmra.mxu0 %v799
        %v1007 = vpop.f32.mrf.mxu0
        %v1008 = vadd.f32 0.0, %v1007
        %1009 = vmatmul.f32.gmra.mxu0 %v802
        %v1010 = vpop.f32.mrf.mxu0
        %v1011 = vadd.f32 0.0, %v1010
        %1012 = vmatmul.f32.gmra.mxu0 %v805
        %v1013 = vpop.f32.mrf.mxu0
        %v1014 = vadd.f32 0.0, %v1013
        %1015 = vmatmul.f32.gmra.mxu0 %v808
        %v1016 = vpop.f32.mrf.mxu0
        %v1017 = vadd.f32 0.0, %v1016
        %1018 = vmatmul.f32.gmra.mxu0 %v811
        %v1019 = vpop.f32.mrf.mxu0
        %v1020 = vadd.f32 0.0, %v1019
        %1021 = vmatmul.f32.gmra.mxu0 %v814
        %v1022 = vpop.f32.mrf.mxu0
        %v1023 = vadd.f32 0.0, %v1022
        %1024 = vmatmul.f32.gmra.mxu0 %v817
        %v1025 = vpop.f32.mrf.mxu0
        %v1026 = vadd.f32 0.0, %v1025
        %1027 = vmatmul.f32.gmra.mxu0 %v820
        %v1028 = vpop.f32.mrf.mxu0
        %v1029 = vadd.f32 0.0, %v1028
        %1030 = vmatmul.f32.gmra.mxu0 %v823
        %v1031 = vpop.f32.mrf.mxu0
        %v1032 = vadd.f32 0.0, %v1031
        %1033 = vmatmul.f32.gmra.mxu0 %v826
        %v1034 = vpop.f32.mrf.mxu0
        %v1035 = vadd.f32 0.0, %v1034
        %1036 = vmatmul.f32.gmra.mxu0 %v829
        %v1037 = vpop.f32.mrf.mxu0
        %v1038 = vadd.f32 0.0, %v1037
        %1039 = vmatmul.f32.gmra.mxu0 %v832
        %v1040 = vpop.f32.mrf.mxu0
        %v1041 = vadd.f32 0.0, %v1040
        %1042 = vmatmul.f32.gmra.mxu0 %v835
        %v1043 = vpop.f32.mrf.mxu0
        %v1044 = vadd.f32 0.0, %v1043
        %1045 = vmatmul.f32.gmra.mxu0 %v838
        %v1046 = vpop.f32.mrf.mxu0
        %v1047 = vadd.f32 0.0, %v1046
        %1048 = vmatmul.f32.gmra.mxu0 %v841
        %v1049 = vpop.f32.mrf.mxu0
        %v1050 = vadd.f32 0.0, %v1049
        %1051 = vmatmul.f32.gmra.mxu0 %v844
        %v1052 = vpop.f32.mrf.mxu0
        %v1053 = vadd.f32 0.0, %v1052
        %1054 = vmatmul.f32.gmra.mxu0 %v847
        %v1055 = vpop.f32.mrf.mxu0
        %v1056 = vadd.f32 0.0, %v1055
        %1057 = vdwg.mxu0
        %1058 = vmatpush.xpose.msra.mxu0 %v943
        %1059 = vmatpush.xpose.msra.mxu0 %v940
        %1060 = vmatpush.xpose.msra.mxu0 %v937
        %1061 = vmatpush.xpose.msra.mxu0 %v934
        %1062 = vmatpush.xpose.msra.mxu0 %v931
        %1063 = vmatpush.xpose.msra.mxu0 %v928
        %1064 = vmatpush.xpose.msra.mxu0 %v925
        %1065 = vmatpush.xpose.msra.mxu0 %v922
        %1066 = vmatpush.xpose.msra.mxu0 %v919
        %1067 = vmatpush.xpose.msra.mxu0 %v916
        %1068 = vmatpush.xpose.msra.mxu0 %v913
        %1069 = vmatpush.xpose.msra.mxu0 %v910
        %1070 = vmatpush.xpose.msra.mxu0 %v907
        %1071 = vmatpush.xpose.msra.mxu0 %v904
        %1072 = vmatpush.xpose.msra.mxu0 %v901
        %1073 = vmatpush.xpose.msra.mxu0 %v898
        %1074 = vmatmul.f32.gmra.mxu0 %v754
        %v1075 = vpop.f32.mrf.mxu0
        %v1076 = vadd.f32 0.0, %v1075
        %1077 = vmatmul.f32.gmra.mxu0 %v757
        %v1078 = vpop.f32.mrf.mxu0
        %v1079 = vadd.f32 0.0, %v1078
        %1080 = vmatmul.f32.gmra.mxu0 %v760
        %v1081 = vpop.f32.mrf.mxu0
        %v1082 = vadd.f32 0.0, %v1081
        %1083 = vmatmul.f32.gmra.mxu0 %v763
        %v1084 = vpop.f32.mrf.mxu0
        %v1085 = vadd.f32 0.0, %v1084
        %1086 = vmatmul.f32.gmra.mxu0 %v766
        %v1087 = vpop.f32.mrf.mxu0
        %v1088 = vadd.f32 0.0, %v1087
        %1089 = vmatmul.f32.gmra.mxu0 %v769
        %v1090 = vpop.f32.mrf.mxu0
        %v1091 = vadd.f32 0.0, %v1090
        %1092 = vmatmul.f32.gmra.mxu0 %v772
        %v1093 = vpop.f32.mrf.mxu0
        %v1094 = vadd.f32 0.0, %v1093
        %1095 = vmatmul.f32.gmra.mxu0 %v775
        %v1096 = vpop.f32.mrf.mxu0
        %v1097 = vadd.f32 0.0, %v1096
        %1098 = vmatmul.f32.gmra.mxu0 %v778
        %v1099 = vpop.f32.mrf.mxu0
        %v1100 = vadd.f32 0.0, %v1099
        %1101 = vmatmul.f32.gmra.mxu0 %v781
        %v1102 = vpop.f32.mrf.mxu0
        %v1103 = vadd.f32 0.0, %v1102
        %1104 = vmatmul.f32.gmra.mxu0 %v784
        %v1105 = vpop.f32.mrf.mxu0
        %v1106 = vadd.f32 0.0, %v1105
        %1107 = vmatmul.f32.gmra.mxu0 %v787
        %v1108 = vpop.f32.mrf.mxu0
        %v1109 = vadd.f32 0.0, %v1108
        %1110 = vmatmul.f32.gmra.mxu0 %v790
        %v1111 = vpop.f32.mrf.mxu0
        %v1112 = vadd.f32 0.0, %v1111
        %1113 = vmatmul.f32.gmra.mxu0 %v793
        %v1114 = vpop.f32.mrf.mxu0
        %v1115 = vadd.f32 0.0, %v1114
        %1116 = vmatmul.f32.gmra.mxu0 %v796
        %v1117 = vpop.f32.mrf.mxu0
        %v1118 = vadd.f32 0.0, %v1117
        %1119 = vmatmul.f32.gmra.mxu0 %v799
        %v1120 = vpop.f32.mrf.mxu0
        %v1121 = vadd.f32 0.0, %v1120
        %1122 = vmatmul.f32.gmra.mxu0 %v802
        %v1123 = vpop.f32.mrf.mxu0
        %v1124 = vadd.f32 0.0, %v1123
        %1125 = vmatmul.f32.gmra.mxu0 %v805
        %v1126 = vpop.f32.mrf.mxu0
        %v1127 = vadd.f32 0.0, %v1126
        %1128 = vmatmul.f32.gmra.mxu0 %v808
        %v1129 = vpop.f32.mrf.mxu0
        %v1130 = vadd.f32 0.0, %v1129
        %1131 = vmatmul.f32.gmra.mxu0 %v811
        %v1132 = vpop.f32.mrf.mxu0
        %v1133 = vadd.f32 0.0, %v1132
        %1134 = vmatmul.f32.gmra.mxu0 %v814
        %v1135 = vpop.f32.mrf.mxu0
        %v1136 = vadd.f32 0.0, %v1135
        %1137 = vmatmul.f32.gmra.mxu0 %v817
        %v1138 = vpop.f32.mrf.mxu0
        %v1139 = vadd.f32 0.0, %v1138
        %1140 = vmatmul.f32.gmra.mxu0 %v820
        %v1141 = vpop.f32.mrf.mxu0
        %v1142 = vadd.f32 0.0, %v1141
        %1143 = vmatmul.f32.gmra.mxu0 %v823
        %v1144 = vpop.f32.mrf.mxu0
        %v1145 = vadd.f32 0.0, %v1144
        %1146 = vmatmul.f32.gmra.mxu0 %v826
        %v1147 = vpop.f32.mrf.mxu0
        %v1148 = vadd.f32 0.0, %v1147
        %1149 = vmatmul.f32.gmra.mxu0 %v829
        %v1150 = vpop.f32.mrf.mxu0
        %v1151 = vadd.f32 0.0, %v1150
        %1152 = vmatmul.f32.gmra.mxu0 %v832
        %v1153 = vpop.f32.mrf.mxu0
        %v1154 = vadd.f32 0.0, %v1153
        %1155 = vmatmul.f32.gmra.mxu0 %v835
        %v1156 = vpop.f32.mrf.mxu0
        %v1157 = vadd.f32 0.0, %v1156
        %1158 = vmatmul.f32.gmra.mxu0 %v838
        %v1159 = vpop.f32.mrf.mxu0
        %v1160 = vadd.f32 0.0, %v1159
        %1161 = vmatmul.f32.gmra.mxu0 %v841
        %v1162 = vpop.f32.mrf.mxu0
        %v1163 = vadd.f32 0.0, %v1162
        %1164 = vmatmul.f32.gmra.mxu0 %v844
        %v1165 = vpop.f32.mrf.mxu0
        %v1166 = vadd.f32 0.0, %v1165
        %1167 = vmatmul.f32.gmra.mxu0 %v847
        %v1168 = vpop.f32.mrf.mxu0
        %v1169 = vadd.f32 0.0, %v1168
        %1170 = vdwg.mxu0
        %v1171 = vmax.f32 %v963, %v1076
        %1172 = vmax.xlane.f32.xlu0 %v1171
        %v1173 = vpop.xlane.xlu0 %1172
        %v1174 = vmax.f32 %v966, %v1079
        %1175 = vmax.xlane.f32.xlu0 %v1174
        %v1176 = vpop.xlane.xlu0 %1175
        %v1177 = vmax.f32 %v969, %v1082
        %1178 = vmax.xlane.f32.xlu0 %v1177
        %v1179 = vpop.xlane.xlu0 %1178
        %v1180 = vmax.f32 %v972, %v1085
        %1181 = vmax.xlane.f32.xlu0 %v1180
        %v1182 = vpop.xlane.xlu0 %1181
        %v1183 = vmax.f32 %v975, %v1088
        %1184 = vmax.xlane.f32.xlu0 %v1183
        %v1185 = vpop.xlane.xlu0 %1184
        %v1186 = vmax.f32 %v978, %v1091
        %1187 = vmax.xlane.f32.xlu0 %v1186
        %v1188 = vpop.xlane.xlu0 %1187
        %v1189 = vmax.f32 %v981, %v1094
        %1190 = vmax.xlane.f32.xlu0 %v1189
        %v1191 = vpop.xlane.xlu0 %1190
        %v1192 = vmax.f32 %v984, %v1097
        %1193 = vmax.xlane.f32.xlu0 %v1192
        %v1194 = vpop.xlane.xlu0 %1193
        %v1195 = vmax.f32 %v987, %v1100
        %1196 = vmax.xlane.f32.xlu0 %v1195
        %v1197 = vpop.xlane.xlu0 %1196
        %v1198 = vmax.f32 %v990, %v1103
        %1199 = vmax.xlane.f32.xlu0 %v1198
        %v1200 = vpop.xlane.xlu0 %1199
        %v1201 = vmax.f32 %v993, %v1106
        %1202 = vmax.xlane.f32.xlu0 %v1201
        %v1203 = vpop.xlane.xlu0 %1202
        %v1204 = vmax.f32 %v996, %v1109
        %1205 = vmax.xlane.f32.xlu0 %v1204
        %v1206 = vpop.xlane.xlu0 %1205
        %v1207 = vmax.f32 %v999, %v1112
        %1208 = vmax.xlane.f32.xlu0 %v1207
        %v1209 = vpop.xlane.xlu0 %1208
        %v1210 = vmax.f32 %v1002, %v1115
        %1211 = vmax.xlane.f32.xlu0 %v1210
        %v1212 = vpop.xlane.xlu0 %1211
        %v1213 = vmax.f32 %v1005, %v1118
        %1214 = vmax.xlane.f32.xlu0 %v1213
        %v1215 = vpop.xlane.xlu0 %1214
        %v1216 = vmax.f32 %v1008, %v1121
        %1217 = vmax.xlane.f32.xlu0 %v1216
        %v1218 = vpop.xlane.xlu0 %1217
        %v1219 = vmax.f32 %v1011, %v1124
        %1220 = vmax.xlane.f32.xlu0 %v1219
        %v1221 = vpop.xlane.xlu0 %1220
        %v1222 = vmax.f32 %v1014, %v1127
        %1223 = vmax.xlane.f32.xlu0 %v1222
        %v1224 = vpop.xlane.xlu0 %1223
        %v1225 = vmax.f32 %v1017, %v1130
        %1226 = vmax.xlane.f32.xlu0 %v1225
        %v1227 = vpop.xlane.xlu0 %1226
        %v1228 = vmax.f32 %v1020, %v1133
        %1229 = vmax.xlane.f32.xlu0 %v1228
        %v1230 = vpop.xlane.xlu0 %1229
        %v1231 = vmax.f32 %v1023, %v1136
        %1232 = vmax.xlane.f32.xlu0 %v1231
        %v1233 = vpop.xlane.xlu0 %1232
        %v1234 = vmax.f32 %v1026, %v1139
        %1235 = vmax.xlane.f32.xlu0 %v1234
        %v1236 = vpop.xlane.xlu0 %1235
        %v1237 = vmax.f32 %v1029, %v1142
        %1238 = vmax.xlane.f32.xlu0 %v1237
        %v1239 = vpop.xlane.xlu0 %1238
        %v1240 = vmax.f32 %v1032, %v1145
        %1241 = vmax.xlane.f32.xlu0 %v1240
        %v1242 = vpop.xlane.xlu0 %1241
        %v1243 = vmax.f32 %v1035, %v1148
        %1244 = vmax.xlane.f32.xlu0 %v1243
        %v1245 = vpop.xlane.xlu0 %1244
        %v1246 = vmax.f32 %v1038, %v1151
        %1247 = vmax.xlane.f32.xlu0 %v1246
        %v1248 = vpop.xlane.xlu0 %1247
        %v1249 = vmax.f32 %v1041, %v1154
        %1250 = vmax.xlane.f32.xlu0 %v1249
        %v1251 = vpop.xlane.xlu0 %1250
        %v1252 = vmax.f32 %v1044, %v1157
        %1253 = vmax.xlane.f32.xlu0 %v1252
        %v1254 = vpop.xlane.xlu0 %1253
        %v1255 = vmax.f32 %v1047, %v1160
        %1256 = vmax.xlane.f32.xlu0 %v1255
        %v1257 = vpop.xlane.xlu0 %1256
        %v1258 = vmax.f32 %v1050, %v1163
        %1259 = vmax.xlane.f32.xlu0 %v1258
        %v1260 = vpop.xlane.xlu0 %1259
        %v1261 = vmax.f32 %v1053, %v1166
        %1262 = vmax.xlane.f32.xlu0 %v1261
        %v1263 = vpop.xlane.xlu0 %1262
        %v1264 = vmax.f32 %v1056, %v1169
        %1265 = vmax.xlane.f32.xlu0 %v1264
        %v1266 = vpop.xlane.xlu0 %1265
        %v1267 = vsub.f32 %v963, %v1173
        %v1268 = vsub.f32 %v1076, %v1173
        %v1269 = vsub.f32 %v966, %v1176
        %v1270 = vsub.f32 %v1079, %v1176
        %v1271 = vsub.f32 %v969, %v1179
        %v1272 = vsub.f32 %v1082, %v1179
        %v1273 = vsub.f32 %v972, %v1182
        %v1274 = vsub.f32 %v1085, %v1182
        %v1275 = vsub.f32 %v975, %v1185
        %v1276 = vsub.f32 %v1088, %v1185
        %v1277 = vsub.f32 %v978, %v1188
        %v1278 = vsub.f32 %v1091, %v1188
        %v1279 = vsub.f32 %v981, %v1191
        %v1280 = vsub.f32 %v1094, %v1191
        %v1281 = vsub.f32 %v984, %v1194
        %v1282 = vsub.f32 %v1097, %v1194
        %v1283 = vsub.f32 %v987, %v1197
        %v1284 = vsub.f32 %v1100, %v1197
        %v1285 = vsub.f32 %v990, %v1200
        %v1286 = vsub.f32 %v1103, %v1200
        %v1287 = vsub.f32 %v993, %v1203
        %v1288 = vsub.f32 %v1106, %v1203
        %v1289 = vsub.f32 %v996, %v1206
        %v1290 = vsub.f32 %v1109, %v1206
        %v1291 = vsub.f32 %v999, %v1209
        %v1292 = vsub.f32 %v1112, %v1209
        %v1293 = vsub.f32 %v1002, %v1212
        %v1294 = vsub.f32 %v1115, %v1212
        %v1295 = vsub.f32 %v1005, %v1215
        %v1296 = vsub.f32 %v1118, %v1215
        %v1297 = vsub.f32 %v1008, %v1218
        %v1298 = vsub.f32 %v1121, %v1218
        %v1299 = vsub.f32 %v1011, %v1221
        %v1300 = vsub.f32 %v1124, %v1221
        %v1301 = vsub.f32 %v1014, %v1224
        %v1302 = vsub.f32 %v1127, %v1224
        %v1303 = vsub.f32 %v1017, %v1227
        %v1304 = vsub.f32 %v1130, %v1227
        %v1305 = vsub.f32 %v1020, %v1230
        %v1306 = vsub.f32 %v1133, %v1230
        %v1307 = vsub.f32 %v1023, %v1233
        %v1308 = vsub.f32 %v1136, %v1233
        %v1309 = vsub.f32 %v1026, %v1236
        %v1310 = vsub.f32 %v1139, %v1236
        %v1311 = vsub.f32 %v1029, %v1239
        %v1312 = vsub.f32 %v1142, %v1239
        %v1313 = vsub.f32 %v1032, %v1242
        %v1314 = vsub.f32 %v1145, %v1242
        %v1315 = vsub.f32 %v1035, %v1245
        %v1316 = vsub.f32 %v1148, %v1245
        %v1317 = vsub.f32 %v1038, %v1248
        %v1318 = vsub.f32 %v1151, %v1248
        %v1319 = vsub.f32 %v1041, %v1251
        %v1320 = vsub.f32 %v1154, %v1251
        %v1321 = vsub.f32 %v1044, %v1254
        %v1322 = vsub.f32 %v1157, %v1254
        %v1323 = vsub.f32 %v1047, %v1257
        %v1324 = vsub.f32 %v1160, %v1257
        %v1325 = vsub.f32 %v1050, %v1260
        %v1326 = vsub.f32 %v1163, %v1260
        %v1327 = vsub.f32 %v1053, %v1263
        %v1328 = vsub.f32 %v1166, %v1263
        %v1329 = vsub.f32 %v1056, %v1266
        %v1330 = vsub.f32 %v1169, %v1266
        %v1331 = vmul.f32 %v1267, 1.442695
        %v1332 = vpow.pop %v1331
        %v1333 = vmul.f32 %v1268, 1.442695
        %v1334 = vpow.pop %v1333
        %v1335 = vmul.f32 %v1269, 1.442695
        %v1336 = vpow.pop %v1335
        %v1337 = vmul.f32 %v1270, 1.442695
        %v1338 = vpow.pop %v1337
        %v1339 = vmul.f32 %v1271, 1.442695
        %v1340 = vpow.pop %v1339
        %v1341 = vmul.f32 %v1272, 1.442695
        %v1342 = vpow.pop %v1341
        %v1343 = vmul.f32 %v1273, 1.442695
        %v1344 = vpow.pop %v1343
        %v1345 = vmul.f32 %v1274, 1.442695
        %v1346 = vpow.pop %v1345
        %v1347 = vmul.f32 %v1275, 1.442695
        %v1348 = vpow.pop %v1347
        %v1349 = vmul.f32 %v1276, 1.442695
        %v1350 = vpow.pop %v1349
        %v1351 = vmul.f32 %v1277, 1.442695
        %v1352 = vpow.pop %v1351
        %v1353 = vmul.f32 %v1278, 1.442695
        %v1354 = vpow.pop %v1353
        %v1355 = vmul.f32 %v1279, 1.442695
        %v1356 = vpow.pop %v1355
        %v1357 = vmul.f32 %v1280, 1.442695
        %v1358 = vpow.pop %v1357
        %v1359 = vmul.f32 %v1281, 1.442695
        %v1360 = vpow.pop %v1359
        %v1361 = vmul.f32 %v1282, 1.442695
        %v1362 = vpow.pop %v1361
        %v1363 = vmul.f32 %v1283, 1.442695
        %v1364 = vpow.pop %v1363
        %v1365 = vmul.f32 %v1284, 1.442695
        %v1366 = vpow.pop %v1365
        %v1367 = vmul.f32 %v1285, 1.442695
        %v1368 = vpow.pop %v1367
        %v1369 = vmul.f32 %v1286, 1.442695
        %v1370 = vpow.pop %v1369
        %v1371 = vmul.f32 %v1287, 1.442695
        %v1372 = vpow.pop %v1371
        %v1373 = vmul.f32 %v1288, 1.442695
        %v1374 = vpow.pop %v1373
        %v1375 = vmul.f32 %v1289, 1.442695
        %v1376 = vpow.pop %v1375
        %v1377 = vmul.f32 %v1290, 1.442695
        %v1378 = vpow.pop %v1377
        %v1379 = vmul.f32 %v1291, 1.442695
        %v1380 = vpow.pop %v1379
        %v1381 = vmul.f32 %v1292, 1.442695
        %v1382 = vpow.pop %v1381
        %v1383 = vmul.f32 %v1293, 1.442695
        %v1384 = vpow.pop %v1383
        %v1385 = vmul.f32 %v1294, 1.442695
        %v1386 = vpow.pop %v1385
        %v1387 = vmul.f32 %v1295, 1.442695
        %v1388 = vpow.pop %v1387
        %v1389 = vmul.f32 %v1296, 1.442695
        %v1390 = vpow.pop %v1389
        %v1391 = vmul.f32 %v1297, 1.442695
        %v1392 = vpow.pop %v1391
        %v1393 = vmul.f32 %v1298, 1.442695
        %v1394 = vpow.pop %v1393
        %v1395 = vmul.f32 %v1299, 1.442695
        %v1396 = vpow.pop %v1395
        %v1397 = vmul.f32 %v1300, 1.442695
        %v1398 = vpow.pop %v1397
        %v1399 = vmul.f32 %v1301, 1.442695
        %v1400 = vpow.pop %v1399
        %v1401 = vmul.f32 %v1302, 1.442695
        %v1402 = vpow.pop %v1401
        %v1403 = vmul.f32 %v1303, 1.442695
        %v1404 = vpow.pop %v1403
        %v1405 = vmul.f32 %v1304, 1.442695
        %v1406 = vpow.pop %v1405
        %v1407 = vmul.f32 %v1305, 1.442695
        %v1408 = vpow.pop %v1407
        %v1409 = vmul.f32 %v1306, 1.442695
        %v1410 = vpow.pop %v1409
        %v1411 = vmul.f32 %v1307, 1.442695
        %v1412 = vpow.pop %v1411
        %v1413 = vmul.f32 %v1308, 1.442695
        %v1414 = vpow.pop %v1413
        %v1415 = vmul.f32 %v1309, 1.442695
        %v1416 = vpow.pop %v1415
        %v1417 = vmul.f32 %v1310, 1.442695
        %v1418 = vpow.pop %v1417
        %v1419 = vmul.f32 %v1311, 1.442695
        %v1420 = vpow.pop %v1419
        %v1421 = vmul.f32 %v1312, 1.442695
        %v1422 = vpow.pop %v1421
        %v1423 = vmul.f32 %v1313, 1.442695
        %v1424 = vpow.pop %v1423
        %v1425 = vmul.f32 %v1314, 1.442695
        %v1426 = vpow.pop %v1425
        %v1427 = vmul.f32 %v1315, 1.442695
        %v1428 = vpow.pop %v1427
        %v1429 = vmul.f32 %v1316, 1.442695
        %v1430 = vpow.pop %v1429
        %v1431 = vmul.f32 %v1317, 1.442695
        %v1432 = vpow.pop %v1431
        %v1433 = vmul.f32 %v1318, 1.442695
        %v1434 = vpow.pop %v1433
        %v1435 = vmul.f32 %v1319, 1.442695
        %v1436 = vpow.pop %v1435
        %v1437 = vmul.f32 %v1320, 1.442695
        %v1438 = vpow.pop %v1437
        %v1439 = vmul.f32 %v1321, 1.442695
        %v1440 = vpow.pop %v1439
        %v1441 = vmul.f32 %v1322, 1.442695
        %v1442 = vpow.pop %v1441
        %v1443 = vmul.f32 %v1323, 1.442695
        %v1444 = vpow.pop %v1443
        %v1445 = vmul.f32 %v1324, 1.442695
        %v1446 = vpow.pop %v1445
        %v1447 = vmul.f32 %v1325, 1.442695
        %v1448 = vpow.pop %v1447
        %v1449 = vmul.f32 %v1326, 1.442695
        %v1450 = vpow.pop %v1449
        %v1451 = vmul.f32 %v1327, 1.442695
        %v1452 = vpow.pop %v1451
        %v1453 = vmul.f32 %v1328, 1.442695
        %v1454 = vpow.pop %v1453
        %v1455 = vmul.f32 %v1329, 1.442695
        %v1456 = vpow.pop %v1455
        %v1457 = vmul.f32 %v1330, 1.442695
        %v1458 = vpow.pop %v1457
        %v1459 = vadd.f32 %v1332, %v1334
        %1460 = vadd.xlane.f32.xlu0 %v1459
        %v1461 = vpop.xlane.xlu0 %1460
        %v1462 = vadd.f32 %v1336, %v1338
        %1463 = vadd.xlane.f32.xlu0 %v1462
        %v1464 = vpop.xlane.xlu0 %1463
        %v1465 = vadd.f32 %v1340, %v1342
        %1466 = vadd.xlane.f32.xlu0 %v1465
        %v1467 = vpop.xlane.xlu0 %1466
        %v1468 = vadd.f32 %v1344, %v1346
        %1469 = vadd.xlane.f32.xlu0 %v1468
        %v1470 = vpop.xlane.xlu0 %1469
        %v1471 = vadd.f32 %v1348, %v1350
        %1472 = vadd.xlane.f32.xlu0 %v1471
        %v1473 = vpop.xlane.xlu0 %1472
        %v1474 = vadd.f32 %v1352, %v1354
        %1475 = vadd.xlane.f32.xlu0 %v1474
        %v1476 = vpop.xlane.xlu0 %1475
        %v1477 = vadd.f32 %v1356, %v1358
        %1478 = vadd.xlane.f32.xlu0 %v1477
        %v1479 = vpop.xlane.xlu0 %1478
        %v1480 = vadd.f32 %v1360, %v1362
        %1481 = vadd.xlane.f32.xlu0 %v1480
        %v1482 = vpop.xlane.xlu0 %1481
        %v1483 = vadd.f32 %v1364, %v1366
        %1484 = vadd.xlane.f32.xlu0 %v1483
        %v1485 = vpop.xlane.xlu0 %1484
        %v1486 = vadd.f32 %v1368, %v1370
        %1487 = vadd.xlane.f32.xlu0 %v1486
        %v1488 = vpop.xlane.xlu0 %1487
        %v1489 = vadd.f32 %v1372, %v1374
        %1490 = vadd.xlane.f32.xlu0 %v1489
        %v1491 = vpop.xlane.xlu0 %1490
        %v1492 = vadd.f32 %v1376, %v1378
        %1493 = vadd.xlane.f32.xlu0 %v1492
        %v1494 = vpop.xlane.xlu0 %1493
        %v1495 = vadd.f32 %v1380, %v1382
        %1496 = vadd.xlane.f32.xlu0 %v1495
        %v1497 = vpop.xlane.xlu0 %1496
        %v1498 = vadd.f32 %v1384, %v1386
        %1499 = vadd.xlane.f32.xlu0 %v1498
        %v1500 = vpop.xlane.xlu0 %1499
        %v1501 = vadd.f32 %v1388, %v1390
        %1502 = vadd.xlane.f32.xlu0 %v1501
        %v1503 = vpop.xlane.xlu0 %1502
        %v1504 = vadd.f32 %v1392, %v1394
        %1505 = vadd.xlane.f32.xlu0 %v1504
        %v1506 = vpop.xlane.xlu0 %1505
        %v1507 = vadd.f32 %v1396, %v1398
        %1508 = vadd.xlane.f32.xlu0 %v1507
        %v1509 = vpop.xlane.xlu0 %1508
        %v1510 = vadd.f32 %v1400, %v1402
        %1511 = vadd.xlane.f32.xlu0 %v1510
        %v1512 = vpop.xlane.xlu0 %1511
        %v1513 = vadd.f32 %v1404, %v1406
        %1514 = vadd.xlane.f32.xlu0 %v1513
        %v1515 = vpop.xlane.xlu0 %1514
        %v1516 = vadd.f32 %v1408, %v1410
        %1517 = vadd.xlane.f32.xlu0 %v1516
        %v1518 = vpop.xlane.xlu0 %1517
        %v1519 = vadd.f32 %v1412, %v1414
        %1520 = vadd.xlane.f32.xlu0 %v1519
        %v1521 = vpop.xlane.xlu0 %1520
        %v1522 = vadd.f32 %v1416, %v1418
        %1523 = vadd.xlane.f32.xlu0 %v1522
        %v1524 = vpop.xlane.xlu0 %1523
        %v1525 = vadd.f32 %v1420, %v1422
        %1526 = vadd.xlane.f32.xlu0 %v1525
        %v1527 = vpop.xlane.xlu0 %1526
        %v1528 = vadd.f32 %v1424, %v1426
        %1529 = vadd.xlane.f32.xlu0 %v1528
        %v1530 = vpop.xlane.xlu0 %1529
        %v1531 = vadd.f32 %v1428, %v1430
        %1532 = vadd.xlane.f32.xlu0 %v1531
        %v1533 = vpop.xlane.xlu0 %1532
        %v1534 = vadd.f32 %v1432, %v1434
        %1535 = vadd.xlane.f32.xlu0 %v1534
        %v1536 = vpop.xlane.xlu0 %1535
        %v1537 = vadd.f32 %v1436, %v1438
        %1538 = vadd.xlane.f32.xlu0 %v1537
        %v1539 = vpop.xlane.xlu0 %1538
        %v1540 = vadd.f32 %v1440, %v1442
        %1541 = vadd.xlane.f32.xlu0 %v1540
        %v1542 = vpop.xlane.xlu0 %1541
        %v1543 = vadd.f32 %v1444, %v1446
        %1544 = vadd.xlane.f32.xlu0 %v1543
        %v1545 = vpop.xlane.xlu0 %1544
        %v1546 = vadd.f32 %v1448, %v1450
        %1547 = vadd.xlane.f32.xlu0 %v1546
        %v1548 = vpop.xlane.xlu0 %1547
        %v1549 = vadd.f32 %v1452, %v1454
        %1550 = vadd.xlane.f32.xlu0 %v1549
        %v1551 = vpop.xlane.xlu0 %1550
        %v1552 = vadd.f32 %v1456, %v1458
        %1553 = vadd.xlane.f32.xlu0 %v1552
        %v1554 = vpop.xlane.xlu0 %1553
        %v1555 = vrcp.pop %v1461
        %v1556 = vmul.f32 %v1461, %v1555
        %v1557 = vsub.f32 1.0, %v1556
        %v1558 = vmul.f32 %v1555, %v1557
        %v1559 = vadd.f32 %v1555, %v1558
        %vm1560 = vweird.f32 %v1461
        %vm1561 = vweird.f32 %v1555
        %vm1562 = vmor %vm1560, %vm1561
        %v1563 = vsel %vm1562, %v1555, %v1559
        %v1564 = vand.u32 2147483647, %v1461
        %vm1565 = vcmp.eq.f32.partialorder %v1564, 8.507059e+37
        %v1566 = vand.u32 %v1461, 2147483648
        %v1567 = vor.u32 1.1754944e-38, %v1566
        %v1568 = vsel %vm1565, %v1567, %v1563
        %v1569 = vmul.f32 1.0, %v1568
        %v1570 = vrcp.pop %v1464
        %v1571 = vmul.f32 %v1464, %v1570
        %v1572 = vsub.f32 1.0, %v1571
        %v1573 = vmul.f32 %v1570, %v1572
        %v1574 = vadd.f32 %v1570, %v1573
        %vm1575 = vweird.f32 %v1464
        %vm1576 = vweird.f32 %v1570
        %vm1577 = vmor %vm1575, %vm1576
        %v1578 = vsel %vm1577, %v1570, %v1574
        %v1579 = vand.u32 2147483647, %v1464
        %vm1580 = vcmp.eq.f32.partialorder %v1579, 8.507059e+37
        %v1581 = vand.u32 %v1464, 2147483648
        %v1582 = vor.u32 1.1754944e-38, %v1581
        %v1583 = vsel %vm1580, %v1582, %v1578
        %v1584 = vmul.f32 1.0, %v1583
        %v1585 = vrcp.pop %v1467
        %v1586 = vmul.f32 %v1467, %v1585
        %v1587 = vsub.f32 1.0, %v1586
        %v1588 = vmul.f32 %v1585, %v1587
        %v1589 = vadd.f32 %v1585, %v1588
        %vm1590 = vweird.f32 %v1467
        %vm1591 = vweird.f32 %v1585
        %vm1592 = vmor %vm1590, %vm1591
        %v1593 = vsel %vm1592, %v1585, %v1589
        %v1594 = vand.u32 2147483647, %v1467
        %vm1595 = vcmp.eq.f32.partialorder %v1594, 8.507059e+37
        %v1596 = vand.u32 %v1467, 2147483648
        %v1597 = vor.u32 1.1754944e-38, %v1596
        %v1598 = vsel %vm1595, %v1597, %v1593
        %v1599 = vmul.f32 1.0, %v1598
        %v1600 = vrcp.pop %v1470
        %v1601 = vmul.f32 %v1470, %v1600
        %v1602 = vsub.f32 1.0, %v1601
        %v1603 = vmul.f32 %v1600, %v1602
        %v1604 = vadd.f32 %v1600, %v1603
        %vm1605 = vweird.f32 %v1470
        %vm1606 = vweird.f32 %v1600
        %vm1607 = vmor %vm1605, %vm1606
        %v1608 = vsel %vm1607, %v1600, %v1604
        %v1609 = vand.u32 2147483647, %v1470
        %vm1610 = vcmp.eq.f32.partialorder %v1609, 8.507059e+37
        %v1611 = vand.u32 %v1470, 2147483648
        %v1612 = vor.u32 1.1754944e-38, %v1611
        %v1613 = vsel %vm1610, %v1612, %v1608
        %v1614 = vmul.f32 1.0, %v1613
        %v1615 = vrcp.pop %v1473
        %v1616 = vmul.f32 %v1473, %v1615
        %v1617 = vsub.f32 1.0, %v1616
        %v1618 = vmul.f32 %v1615, %v1617
        %v1619 = vadd.f32 %v1615, %v1618
        %vm1620 = vweird.f32 %v1473
        %vm1621 = vweird.f32 %v1615
        %vm1622 = vmor %vm1620, %vm1621
        %v1623 = vsel %vm1622, %v1615, %v1619
        %v1624 = vand.u32 2147483647, %v1473
        %vm1625 = vcmp.eq.f32.partialorder %v1624, 8.507059e+37
        %v1626 = vand.u32 %v1473, 2147483648
        %v1627 = vor.u32 1.1754944e-38, %v1626
        %v1628 = vsel %vm1625, %v1627, %v1623
        %v1629 = vmul.f32 1.0, %v1628
        %v1630 = vrcp.pop %v1476
        %v1631 = vmul.f32 %v1476, %v1630
        %v1632 = vsub.f32 1.0, %v1631
        %v1633 = vmul.f32 %v1630, %v1632
        %v1634 = vadd.f32 %v1630, %v1633
        %vm1635 = vweird.f32 %v1476
        %vm1636 = vweird.f32 %v1630
        %vm1637 = vmor %vm1635, %vm1636
        %v1638 = vsel %vm1637, %v1630, %v1634
        %v1639 = vand.u32 2147483647, %v1476
        %vm1640 = vcmp.eq.f32.partialorder %v1639, 8.507059e+37
        %v1641 = vand.u32 %v1476, 2147483648
        %v1642 = vor.u32 1.1754944e-38, %v1641
        %v1643 = vsel %vm1640, %v1642, %v1638
        %v1644 = vmul.f32 1.0, %v1643
        %v1645 = vrcp.pop %v1479
        %v1646 = vmul.f32 %v1479, %v1645
        %v1647 = vsub.f32 1.0, %v1646
        %v1648 = vmul.f32 %v1645, %v1647
        %v1649 = vadd.f32 %v1645, %v1648
        %vm1650 = vweird.f32 %v1479
        %vm1651 = vweird.f32 %v1645
        %vm1652 = vmor %vm1650, %vm1651
        %v1653 = vsel %vm1652, %v1645, %v1649
        %v1654 = vand.u32 2147483647, %v1479
        %vm1655 = vcmp.eq.f32.partialorder %v1654, 8.507059e+37
        %v1656 = vand.u32 %v1479, 2147483648
        %v1657 = vor.u32 1.1754944e-38, %v1656
        %v1658 = vsel %vm1655, %v1657, %v1653
        %v1659 = vmul.f32 1.0, %v1658
        %v1660 = vrcp.pop %v1482
        %v1661 = vmul.f32 %v1482, %v1660
        %v1662 = vsub.f32 1.0, %v1661
        %v1663 = vmul.f32 %v1660, %v1662
        %v1664 = vadd.f32 %v1660, %v1663
        %vm1665 = vweird.f32 %v1482
        %vm1666 = vweird.f32 %v1660
        %vm1667 = vmor %vm1665, %vm1666
        %v1668 = vsel %vm1667, %v1660, %v1664
        %v1669 = vand.u32 2147483647, %v1482
        %vm1670 = vcmp.eq.f32.partialorder %v1669, 8.507059e+37
        %v1671 = vand.u32 %v1482, 2147483648
        %v1672 = vor.u32 1.1754944e-38, %v1671
        %v1673 = vsel %vm1670, %v1672, %v1668
        %v1674 = vmul.f32 1.0, %v1673
        %v1675 = vrcp.pop %v1485
        %v1676 = vmul.f32 %v1485, %v1675
        %v1677 = vsub.f32 1.0, %v1676
        %v1678 = vmul.f32 %v1675, %v1677
        %v1679 = vadd.f32 %v1675, %v1678
        %vm1680 = vweird.f32 %v1485
        %vm1681 = vweird.f32 %v1675
        %vm1682 = vmor %vm1680, %vm1681
        %v1683 = vsel %vm1682, %v1675, %v1679
        %v1684 = vand.u32 2147483647, %v1485
        %vm1685 = vcmp.eq.f32.partialorder %v1684, 8.507059e+37
        %v1686 = vand.u32 %v1485, 2147483648
        %v1687 = vor.u32 1.1754944e-38, %v1686
        %v1688 = vsel %vm1685, %v1687, %v1683
        %v1689 = vmul.f32 1.0, %v1688
        %v1690 = vrcp.pop %v1488
        %v1691 = vmul.f32 %v1488, %v1690
        %v1692 = vsub.f32 1.0, %v1691
        %v1693 = vmul.f32 %v1690, %v1692
        %v1694 = vadd.f32 %v1690, %v1693
        %vm1695 = vweird.f32 %v1488
        %vm1696 = vweird.f32 %v1690
        %vm1697 = vmor %vm1695, %vm1696
        %v1698 = vsel %vm1697, %v1690, %v1694
        %v1699 = vand.u32 2147483647, %v1488
        %vm1700 = vcmp.eq.f32.partialorder %v1699, 8.507059e+37
        %v1701 = vand.u32 %v1488, 2147483648
        %v1702 = vor.u32 1.1754944e-38, %v1701
        %v1703 = vsel %vm1700, %v1702, %v1698
        %v1704 = vmul.f32 1.0, %v1703
        %v1705 = vrcp.pop %v1491
        %v1706 = vmul.f32 %v1491, %v1705
        %v1707 = vsub.f32 1.0, %v1706
        %v1708 = vmul.f32 %v1705, %v1707
        %v1709 = vadd.f32 %v1705, %v1708
        %vm1710 = vweird.f32 %v1491
        %vm1711 = vweird.f32 %v1705
        %vm1712 = vmor %vm1710, %vm1711
        %v1713 = vsel %vm1712, %v1705, %v1709
        %v1714 = vand.u32 2147483647, %v1491
        %vm1715 = vcmp.eq.f32.partialorder %v1714, 8.507059e+37
        %v1716 = vand.u32 %v1491, 2147483648
        %v1717 = vor.u32 1.1754944e-38, %v1716
        %v1718 = vsel %vm1715, %v1717, %v1713
        %v1719 = vmul.f32 1.0, %v1718
        %v1720 = vrcp.pop %v1494
        %v1721 = vmul.f32 %v1494, %v1720
        %v1722 = vsub.f32 1.0, %v1721
        %v1723 = vmul.f32 %v1720, %v1722
        %v1724 = vadd.f32 %v1720, %v1723
        %vm1725 = vweird.f32 %v1494
        %vm1726 = vweird.f32 %v1720
        %vm1727 = vmor %vm1725, %vm1726
        %v1728 = vsel %vm1727, %v1720, %v1724
        %v1729 = vand.u32 2147483647, %v1494
        %vm1730 = vcmp.eq.f32.partialorder %v1729, 8.507059e+37
        %v1731 = vand.u32 %v1494, 2147483648
        %v1732 = vor.u32 1.1754944e-38, %v1731
        %v1733 = vsel %vm1730, %v1732, %v1728
        %v1734 = vmul.f32 1.0, %v1733
        %v1735 = vrcp.pop %v1497
        %v1736 = vmul.f32 %v1497, %v1735
        %v1737 = vsub.f32 1.0, %v1736
        %v1738 = vmul.f32 %v1735, %v1737
        %v1739 = vadd.f32 %v1735, %v1738
        %vm1740 = vweird.f32 %v1497
        %vm1741 = vweird.f32 %v1735
        %vm1742 = vmor %vm1740, %vm1741
        %v1743 = vsel %vm1742, %v1735, %v1739
        %v1744 = vand.u32 2147483647, %v1497
        %vm1745 = vcmp.eq.f32.partialorder %v1744, 8.507059e+37
        %v1746 = vand.u32 %v1497, 2147483648
        %v1747 = vor.u32 1.1754944e-38, %v1746
        %v1748 = vsel %vm1745, %v1747, %v1743
        %v1749 = vmul.f32 1.0, %v1748
        %v1750 = vrcp.pop %v1500
        %v1751 = vmul.f32 %v1500, %v1750
        %v1752 = vsub.f32 1.0, %v1751
        %v1753 = vmul.f32 %v1750, %v1752
        %v1754 = vadd.f32 %v1750, %v1753
        %vm1755 = vweird.f32 %v1500
        %vm1756 = vweird.f32 %v1750
        %vm1757 = vmor %vm1755, %vm1756
        %v1758 = vsel %vm1757, %v1750, %v1754
        %v1759 = vand.u32 2147483647, %v1500
        %vm1760 = vcmp.eq.f32.partialorder %v1759, 8.507059e+37
        %v1761 = vand.u32 %v1500, 2147483648
        %v1762 = vor.u32 1.1754944e-38, %v1761
        %v1763 = vsel %vm1760, %v1762, %v1758
        %v1764 = vmul.f32 1.0, %v1763
        %v1765 = vrcp.pop %v1503
        %v1766 = vmul.f32 %v1503, %v1765
        %v1767 = vsub.f32 1.0, %v1766
        %v1768 = vmul.f32 %v1765, %v1767
        %v1769 = vadd.f32 %v1765, %v1768
        %vm1770 = vweird.f32 %v1503
        %vm1771 = vweird.f32 %v1765
        %vm1772 = vmor %vm1770, %vm1771
        %v1773 = vsel %vm1772, %v1765, %v1769
        %v1774 = vand.u32 2147483647, %v1503
        %vm1775 = vcmp.eq.f32.partialorder %v1774, 8.507059e+37
        %v1776 = vand.u32 %v1503, 2147483648
        %v1777 = vor.u32 1.1754944e-38, %v1776
        %v1778 = vsel %vm1775, %v1777, %v1773
        %v1779 = vmul.f32 1.0, %v1778
        %v1780 = vrcp.pop %v1506
        %v1781 = vmul.f32 %v1506, %v1780
        %v1782 = vsub.f32 1.0, %v1781
        %v1783 = vmul.f32 %v1780, %v1782
        %v1784 = vadd.f32 %v1780, %v1783
        %vm1785 = vweird.f32 %v1506
        %vm1786 = vweird.f32 %v1780
        %vm1787 = vmor %vm1785, %vm1786
        %v1788 = vsel %vm1787, %v1780, %v1784
        %v1789 = vand.u32 2147483647, %v1506
        %vm1790 = vcmp.eq.f32.partialorder %v1789, 8.507059e+37
        %v1791 = vand.u32 %v1506, 2147483648
        %v1792 = vor.u32 1.1754944e-38, %v1791
        %v1793 = vsel %vm1790, %v1792, %v1788
        %v1794 = vmul.f32 1.0, %v1793
        %v1795 = vrcp.pop %v1509
        %v1796 = vmul.f32 %v1509, %v1795
        %v1797 = vsub.f32 1.0, %v1796
        %v1798 = vmul.f32 %v1795, %v1797
        %v1799 = vadd.f32 %v1795, %v1798
        %vm1800 = vweird.f32 %v1509
        %vm1801 = vweird.f32 %v1795
        %vm1802 = vmor %vm1800, %vm1801
        %v1803 = vsel %vm1802, %v1795, %v1799
        %v1804 = vand.u32 2147483647, %v1509
        %vm1805 = vcmp.eq.f32.partialorder %v1804, 8.507059e+37
        %v1806 = vand.u32 %v1509, 2147483648
        %v1807 = vor.u32 1.1754944e-38, %v1806
        %v1808 = vsel %vm1805, %v1807, %v1803
        %v1809 = vmul.f32 1.0, %v1808
        %v1810 = vrcp.pop %v1512
        %v1811 = vmul.f32 %v1512, %v1810
        %v1812 = vsub.f32 1.0, %v1811
        %v1813 = vmul.f32 %v1810, %v1812
        %v1814 = vadd.f32 %v1810, %v1813
        %vm1815 = vweird.f32 %v1512
        %vm1816 = vweird.f32 %v1810
        %vm1817 = vmor %vm1815, %vm1816
        %v1818 = vsel %vm1817, %v1810, %v1814
        %v1819 = vand.u32 2147483647, %v1512
        %vm1820 = vcmp.eq.f32.partialorder %v1819, 8.507059e+37
        %v1821 = vand.u32 %v1512, 2147483648
        %v1822 = vor.u32 1.1754944e-38, %v1821
        %v1823 = vsel %vm1820, %v1822, %v1818
        %v1824 = vmul.f32 1.0, %v1823
        %v1825 = vrcp.pop %v1515
        %v1826 = vmul.f32 %v1515, %v1825
        %v1827 = vsub.f32 1.0, %v1826
        %v1828 = vmul.f32 %v1825, %v1827
        %v1829 = vadd.f32 %v1825, %v1828
        %vm1830 = vweird.f32 %v1515
        %vm1831 = vweird.f32 %v1825
        %vm1832 = vmor %vm1830, %vm1831
        %v1833 = vsel %vm1832, %v1825, %v1829
        %v1834 = vand.u32 2147483647, %v1515
        %vm1835 = vcmp.eq.f32.partialorder %v1834, 8.507059e+37
        %v1836 = vand.u32 %v1515, 2147483648
        %v1837 = vor.u32 1.1754944e-38, %v1836
        %v1838 = vsel %vm1835, %v1837, %v1833
        %v1839 = vmul.f32 1.0, %v1838
        %v1840 = vrcp.pop %v1518
        %v1841 = vmul.f32 %v1518, %v1840
        %v1842 = vsub.f32 1.0, %v1841
        %v1843 = vmul.f32 %v1840, %v1842
        %v1844 = vadd.f32 %v1840, %v1843
        %vm1845 = vweird.f32 %v1518
        %vm1846 = vweird.f32 %v1840
        %vm1847 = vmor %vm1845, %vm1846
        %v1848 = vsel %vm1847, %v1840, %v1844
        %v1849 = vand.u32 2147483647, %v1518
        %vm1850 = vcmp.eq.f32.partialorder %v1849, 8.507059e+37
        %v1851 = vand.u32 %v1518, 2147483648
        %v1852 = vor.u32 1.1754944e-38, %v1851
        %v1853 = vsel %vm1850, %v1852, %v1848
        %v1854 = vmul.f32 1.0, %v1853
        %v1855 = vrcp.pop %v1521
        %v1856 = vmul.f32 %v1521, %v1855
        %v1857 = vsub.f32 1.0, %v1856
        %v1858 = vmul.f32 %v1855, %v1857
        %v1859 = vadd.f32 %v1855, %v1858
        %vm1860 = vweird.f32 %v1521
        %vm1861 = vweird.f32 %v1855
        %vm1862 = vmor %vm1860, %vm1861
        %v1863 = vsel %vm1862, %v1855, %v1859
        %v1864 = vand.u32 2147483647, %v1521
        %vm1865 = vcmp.eq.f32.partialorder %v1864, 8.507059e+37
        %v1866 = vand.u32 %v1521, 2147483648
        %v1867 = vor.u32 1.1754944e-38, %v1866
        %v1868 = vsel %vm1865, %v1867, %v1863
        %v1869 = vmul.f32 1.0, %v1868
        %v1870 = vrcp.pop %v1524
        %v1871 = vmul.f32 %v1524, %v1870
        %v1872 = vsub.f32 1.0, %v1871
        %v1873 = vmul.f32 %v1870, %v1872
        %v1874 = vadd.f32 %v1870, %v1873
        %vm1875 = vweird.f32 %v1524
        %vm1876 = vweird.f32 %v1870
        %vm1877 = vmor %vm1875, %vm1876
        %v1878 = vsel %vm1877, %v1870, %v1874
        %v1879 = vand.u32 2147483647, %v1524
        %vm1880 = vcmp.eq.f32.partialorder %v1879, 8.507059e+37
        %v1881 = vand.u32 %v1524, 2147483648
        %v1882 = vor.u32 1.1754944e-38, %v1881
        %v1883 = vsel %vm1880, %v1882, %v1878
        %v1884 = vmul.f32 1.0, %v1883
        %v1885 = vrcp.pop %v1527
        %v1886 = vmul.f32 %v1527, %v1885
        %v1887 = vsub.f32 1.0, %v1886
        %v1888 = vmul.f32 %v1885, %v1887
        %v1889 = vadd.f32 %v1885, %v1888
        %vm1890 = vweird.f32 %v1527
        %vm1891 = vweird.f32 %v1885
        %vm1892 = vmor %vm1890, %vm1891
        %v1893 = vsel %vm1892, %v1885, %v1889
        %v1894 = vand.u32 2147483647, %v1527
        %vm1895 = vcmp.eq.f32.partialorder %v1894, 8.507059e+37
        %v1896 = vand.u32 %v1527, 2147483648
        %v1897 = vor.u32 1.1754944e-38, %v1896
        %v1898 = vsel %vm1895, %v1897, %v1893
        %v1899 = vmul.f32 1.0, %v1898
        %v1900 = vrcp.pop %v1530
        %v1901 = vmul.f32 %v1530, %v1900
        %v1902 = vsub.f32 1.0, %v1901
        %v1903 = vmul.f32 %v1900, %v1902
        %v1904 = vadd.f32 %v1900, %v1903
        %vm1905 = vweird.f32 %v1530
        %vm1906 = vweird.f32 %v1900
        %vm1907 = vmor %vm1905, %vm1906
        %v1908 = vsel %vm1907, %v1900, %v1904
        %v1909 = vand.u32 2147483647, %v1530
        %vm1910 = vcmp.eq.f32.partialorder %v1909, 8.507059e+37
        %v1911 = vand.u32 %v1530, 2147483648
        %v1912 = vor.u32 1.1754944e-38, %v1911
        %v1913 = vsel %vm1910, %v1912, %v1908
        %v1914 = vmul.f32 1.0, %v1913
        %v1915 = vrcp.pop %v1533
        %v1916 = vmul.f32 %v1533, %v1915
        %v1917 = vsub.f32 1.0, %v1916
        %v1918 = vmul.f32 %v1915, %v1917
        %v1919 = vadd.f32 %v1915, %v1918
        %vm1920 = vweird.f32 %v1533
        %vm1921 = vweird.f32 %v1915
        %vm1922 = vmor %vm1920, %vm1921
        %v1923 = vsel %vm1922, %v1915, %v1919
        %v1924 = vand.u32 2147483647, %v1533
        %vm1925 = vcmp.eq.f32.partialorder %v1924, 8.507059e+37
        %v1926 = vand.u32 %v1533, 2147483648
        %v1927 = vor.u32 1.1754944e-38, %v1926
        %v1928 = vsel %vm1925, %v1927, %v1923
        %v1929 = vmul.f32 1.0, %v1928
        %v1930 = vrcp.pop %v1536
        %v1931 = vmul.f32 %v1536, %v1930
        %v1932 = vsub.f32 1.0, %v1931
        %v1933 = vmul.f32 %v1930, %v1932
        %v1934 = vadd.f32 %v1930, %v1933
        %vm1935 = vweird.f32 %v1536
        %vm1936 = vweird.f32 %v1930
        %vm1937 = vmor %vm1935, %vm1936
        %v1938 = vsel %vm1937, %v1930, %v1934
        %v1939 = vand.u32 2147483647, %v1536
        %vm1940 = vcmp.eq.f32.partialorder %v1939, 8.507059e+37
        %v1941 = vand.u32 %v1536, 2147483648
        %v1942 = vor.u32 1.1754944e-38, %v1941
        %v1943 = vsel %vm1940, %v1942, %v1938
        %v1944 = vmul.f32 1.0, %v1943
        %v1945 = vrcp.pop %v1539
        %v1946 = vmul.f32 %v1539, %v1945
        %v1947 = vsub.f32 1.0, %v1946
        %v1948 = vmul.f32 %v1945, %v1947
        %v1949 = vadd.f32 %v1945, %v1948
        %vm1950 = vweird.f32 %v1539
        %vm1951 = vweird.f32 %v1945
        %vm1952 = vmor %vm1950, %vm1951
        %v1953 = vsel %vm1952, %v1945, %v1949
        %v1954 = vand.u32 2147483647, %v1539
        %vm1955 = vcmp.eq.f32.partialorder %v1954, 8.507059e+37
        %v1956 = vand.u32 %v1539, 2147483648
        %v1957 = vor.u32 1.1754944e-38, %v1956
        %v1958 = vsel %vm1955, %v1957, %v1953
        %v1959 = vmul.f32 1.0, %v1958
        %v1960 = vrcp.pop %v1542
        %v1961 = vmul.f32 %v1542, %v1960
        %v1962 = vsub.f32 1.0, %v1961
        %v1963 = vmul.f32 %v1960, %v1962
        %v1964 = vadd.f32 %v1960, %v1963
        %vm1965 = vweird.f32 %v1542
        %vm1966 = vweird.f32 %v1960
        %vm1967 = vmor %vm1965, %vm1966
        %v1968 = vsel %vm1967, %v1960, %v1964
        %v1969 = vand.u32 2147483647, %v1542
        %vm1970 = vcmp.eq.f32.partialorder %v1969, 8.507059e+37
        %v1971 = vand.u32 %v1542, 2147483648
        %v1972 = vor.u32 1.1754944e-38, %v1971
        %v1973 = vsel %vm1970, %v1972, %v1968
        %v1974 = vmul.f32 1.0, %v1973
        %v1975 = vrcp.pop %v1545
        %v1976 = vmul.f32 %v1545, %v1975
        %v1977 = vsub.f32 1.0, %v1976
        %v1978 = vmul.f32 %v1975, %v1977
        %v1979 = vadd.f32 %v1975, %v1978
        %vm1980 = vweird.f32 %v1545
        %vm1981 = vweird.f32 %v1975
        %vm1982 = vmor %vm1980, %vm1981
        %v1983 = vsel %vm1982, %v1975, %v1979
        %v1984 = vand.u32 2147483647, %v1545
        %vm1985 = vcmp.eq.f32.partialorder %v1984, 8.507059e+37
        %v1986 = vand.u32 %v1545, 2147483648
        %v1987 = vor.u32 1.1754944e-38, %v1986
        %v1988 = vsel %vm1985, %v1987, %v1983
        %v1989 = vmul.f32 1.0, %v1988
        %v1990 = vrcp.pop %v1548
        %v1991 = vmul.f32 %v1548, %v1990
        %v1992 = vsub.f32 1.0, %v1991
        %v1993 = vmul.f32 %v1990, %v1992
        %v1994 = vadd.f32 %v1990, %v1993
        %vm1995 = vweird.f32 %v1548
        %vm1996 = vweird.f32 %v1990
        %vm1997 = vmor %vm1995, %vm1996
        %v1998 = vsel %vm1997, %v1990, %v1994
        %v1999 = vand.u32 2147483647, %v1548
        %vm2000 = vcmp.eq.f32.partialorder %v1999, 8.507059e+37
        %v2001 = vand.u32 %v1548, 2147483648
        %v2002 = vor.u32 1.1754944e-38, %v2001
        %v2003 = vsel %vm2000, %v2002, %v1998
        %v2004 = vmul.f32 1.0, %v2003
        %v2005 = vrcp.pop %v1551
        %v2006 = vmul.f32 %v1551, %v2005
        %v2007 = vsub.f32 1.0, %v2006
        %v2008 = vmul.f32 %v2005, %v2007
        %v2009 = vadd.f32 %v2005, %v2008
        %vm2010 = vweird.f32 %v1551
        %vm2011 = vweird.f32 %v2005
        %vm2012 = vmor %vm2010, %vm2011
        %v2013 = vsel %vm2012, %v2005, %v2009
        %v2014 = vand.u32 2147483647, %v1551
        %vm2015 = vcmp.eq.f32.partialorder %v2014, 8.507059e+37
        %v2016 = vand.u32 %v1551, 2147483648
        %v2017 = vor.u32 1.1754944e-38, %v2016
        %v2018 = vsel %vm2015, %v2017, %v2013
        %v2019 = vmul.f32 1.0, %v2018
        %v2020 = vrcp.pop %v1554
        %v2021 = vmul.f32 %v1554, %v2020
        %v2022 = vsub.f32 1.0, %v2021
        %v2023 = vmul.f32 %v2020, %v2022
        %v2024 = vadd.f32 %v2020, %v2023
        %vm2025 = vweird.f32 %v1554
        %vm2026 = vweird.f32 %v2020
        %vm2027 = vmor %vm2025, %vm2026
        %v2028 = vsel %vm2027, %v2020, %v2024
        %v2029 = vand.u32 2147483647, %v1554
        %vm2030 = vcmp.eq.f32.partialorder %v2029, 8.507059e+37
        %v2031 = vand.u32 %v1554, 2147483648
        %v2032 = vor.u32 1.1754944e-38, %v2031
        %v2033 = vsel %vm2030, %v2032, %v2028
        %v2034 = vmul.f32 1.0, %v2033
        %v2035 = vmul.f32 %v1332, %v1569
        %v2036 = vmul.f32 %v1334, %v1569
        %v2037 = vmul.f32 %v1336, %v1584
        %v2038 = vmul.f32 %v1338, %v1584
        %v2039 = vmul.f32 %v1340, %v1599
        %v2040 = vmul.f32 %v1342, %v1599
        %v2041 = vmul.f32 %v1344, %v1614
        %v2042 = vmul.f32 %v1346, %v1614
        %v2043 = vmul.f32 %v1348, %v1629
        %v2044 = vmul.f32 %v1350, %v1629
        %v2045 = vmul.f32 %v1352, %v1644
        %v2046 = vmul.f32 %v1354, %v1644
        %v2047 = vmul.f32 %v1356, %v1659
        %v2048 = vmul.f32 %v1358, %v1659
        %v2049 = vmul.f32 %v1360, %v1674
        %v2050 = vmul.f32 %v1362, %v1674
        %v2051 = vmul.f32 %v1364, %v1689
        %v2052 = vmul.f32 %v1366, %v1689
        %v2053 = vmul.f32 %v1368, %v1704
        %v2054 = vmul.f32 %v1370, %v1704
        %v2055 = vmul.f32 %v1372, %v1719
        %v2056 = vmul.f32 %v1374, %v1719
        %v2057 = vmul.f32 %v1376, %v1734
        %v2058 = vmul.f32 %v1378, %v1734
        %v2059 = vmul.f32 %v1380, %v1749
        %v2060 = vmul.f32 %v1382, %v1749
        %v2061 = vmul.f32 %v1384, %v1764
        %v2062 = vmul.f32 %v1386, %v1764
        %v2063 = vmul.f32 %v1388, %v1779
        %v2064 = vmul.f32 %v1390, %v1779
        %v2065 = vmul.f32 %v1392, %v1794
        %v2066 = vmul.f32 %v1394, %v1794
        %v2067 = vmul.f32 %v1396, %v1809
        %v2068 = vmul.f32 %v1398, %v1809
        %v2069 = vmul.f32 %v1400, %v1824
        %v2070 = vmul.f32 %v1402, %v1824
        %v2071 = vmul.f32 %v1404, %v1839
        %v2072 = vmul.f32 %v1406, %v1839
        %v2073 = vmul.f32 %v1408, %v1854
        %v2074 = vmul.f32 %v1410, %v1854
        %v2075 = vmul.f32 %v1412, %v1869
        %v2076 = vmul.f32 %v1414, %v1869
        %v2077 = vmul.f32 %v1416, %v1884
        %v2078 = vmul.f32 %v1418, %v1884
        %v2079 = vmul.f32 %v1420, %v1899
        %v2080 = vmul.f32 %v1422, %v1899
        %v2081 = vmul.f32 %v1424, %v1914
        %v2082 = vmul.f32 %v1426, %v1914
        %v2083 = vmul.f32 %v1428, %v1929
        %v2084 = vmul.f32 %v1430, %v1929
        %v2085 = vmul.f32 %v1432, %v1944
        %v2086 = vmul.f32 %v1434, %v1944
        %v2087 = vmul.f32 %v1436, %v1959
        %v2088 = vmul.f32 %v1438, %v1959
        %v2089 = vmul.f32 %v1440, %v1974
        %v2090 = vmul.f32 %v1442, %v1974
        %v2091 = vmul.f32 %v1444, %v1989
        %v2092 = vmul.f32 %v1446, %v1989
        %v2093 = vmul.f32 %v1448, %v2004
        %v2094 = vmul.f32 %v1450, %v2004
        %v2095 = vmul.f32 %v1452, %v2019
        %v2096 = vmul.f32 %v1454, %v2019
        %v2097 = vmul.f32 %v1456, %v2034
        %v2098 = vmul.f32 %v1458, %v2034
        %2099 = vmatpush.msra.mxu0 %v670
        %2100 = vmatpush.msra.mxu0 %v667
        %2101 = vmatpush.msra.mxu0 %v664
        %2102 = vmatpush.msra.mxu0 %v661
        %2103 = vmatpush.msra.mxu0 %v658
        %2104 = vmatpush.msra.mxu0 %v655
        %2105 = vmatpush.msra.mxu0 %v652
        %2106 = vmatpush.msra.mxu0 %v649
        %2107 = vmatpush.msra.mxu0 %v646
        %2108 = vmatpush.msra.mxu0 %v643
        %2109 = vmatpush.msra.mxu0 %v640
        %2110 = vmatpush.msra.mxu0 %v637
        %2111 = vmatpush.msra.mxu0 %v634
        %2112 = vmatpush.msra.mxu0 %v631
        %2113 = vmatpush.msra.mxu0 %v628
        %2114 = vmatpush.msra.mxu0 %v625
        %2115 = vmatmul.f32.gmra.mxu0 %v2035
        %v2116 = vpop.f32.mrf.mxu0
        %v2117 = vadd.f32 0.0, %v2116
        %2118 = vmatmul.f32.gmra.mxu0 %v2037
        %v2119 = vpop.f32.mrf.mxu0
        %v2120 = vadd.f32 0.0, %v2119
        %2121 = vmatmul.f32.gmra.mxu0 %v2039
        %v2122 = vpop.f32.mrf.mxu0
        %v2123 = vadd.f32 0.0, %v2122
        %2124 = vmatmul.f32.gmra.mxu0 %v2041
        %v2125 = vpop.f32.mrf.mxu0
        %v2126 = vadd.f32 0.0, %v2125
        %2127 = vmatmul.f32.gmra.mxu0 %v2043
        %v2128 = vpop.f32.mrf.mxu0
        %v2129 = vadd.f32 0.0, %v2128
        %2130 = vmatmul.f32.gmra.mxu0 %v2045
        %v2131 = vpop.f32.mrf.mxu0
        %v2132 = vadd.f32 0.0, %v2131
        %2133 = vmatmul.f32.gmra.mxu0 %v2047
        %v2134 = vpop.f32.mrf.mxu0
        %v2135 = vadd.f32 0.0, %v2134
        %2136 = vmatmul.f32.gmra.mxu0 %v2049
        %v2137 = vpop.f32.mrf.mxu0
        %v2138 = vadd.f32 0.0, %v2137
        %2139 = vmatmul.f32.gmra.mxu0 %v2051
        %v2140 = vpop.f32.mrf.mxu0
        %v2141 = vadd.f32 0.0, %v2140
        %2142 = vmatmul.f32.gmra.mxu0 %v2053
        %v2143 = vpop.f32.mrf.mxu0
        %v2144 = vadd.f32 0.0, %v2143
        %2145 = vmatmul.f32.gmra.mxu0 %v2055
        %v2146 = vpop.f32.mrf.mxu0
        %v2147 = vadd.f32 0.0, %v2146
        %2148 = vmatmul.f32.gmra.mxu0 %v2057
        %v2149 = vpop.f32.mrf.mxu0
        %v2150 = vadd.f32 0.0, %v2149
        %2151 = vmatmul.f32.gmra.mxu0 %v2059
        %v2152 = vpop.f32.mrf.mxu0
        %v2153 = vadd.f32 0.0, %v2152
        %2154 = vmatmul.f32.gmra.mxu0 %v2061
        %v2155 = vpop.f32.mrf.mxu0
        %v2156 = vadd.f32 0.0, %v2155
        %2157 = vmatmul.f32.gmra.mxu0 %v2063
        %v2158 = vpop.f32.mrf.mxu0
        %v2159 = vadd.f32 0.0, %v2158
        %2160 = vmatmul.f32.gmra.mxu0 %v2065
        %v2161 = vpop.f32.mrf.mxu0
        %v2162 = vadd.f32 0.0, %v2161
        %2163 = vmatmul.f32.gmra.mxu0 %v2067
        %v2164 = vpop.f32.mrf.mxu0
        %v2165 = vadd.f32 0.0, %v2164
        %2166 = vmatmul.f32.gmra.mxu0 %v2069
        %v2167 = vpop.f32.mrf.mxu0
        %v2168 = vadd.f32 0.0, %v2167
        %2169 = vmatmul.f32.gmra.mxu0 %v2071
        %v2170 = vpop.f32.mrf.mxu0
        %v2171 = vadd.f32 0.0, %v2170
        %2172 = vmatmul.f32.gmra.mxu0 %v2073
        %v2173 = vpop.f32.mrf.mxu0
        %v2174 = vadd.f32 0.0, %v2173
        %2175 = vmatmul.f32.gmra.mxu0 %v2075
        %v2176 = vpop.f32.mrf.mxu0
        %v2177 = vadd.f32 0.0, %v2176
        %2178 = vmatmul.f32.gmra.mxu0 %v2077
        %v2179 = vpop.f32.mrf.mxu0
        %v2180 = vadd.f32 0.0, %v2179
        %2181 = vmatmul.f32.gmra.mxu0 %v2079
        %v2182 = vpop.f32.mrf.mxu0
        %v2183 = vadd.f32 0.0, %v2182
        %2184 = vmatmul.f32.gmra.mxu0 %v2081
        %v2185 = vpop.f32.mrf.mxu0
        %v2186 = vadd.f32 0.0, %v2185
        %2187 = vmatmul.f32.gmra.mxu0 %v2083
        %v2188 = vpop.f32.mrf.mxu0
        %v2189 = vadd.f32 0.0, %v2188
        %2190 = vmatmul.f32.gmra.mxu0 %v2085
        %v2191 = vpop.f32.mrf.mxu0
        %v2192 = vadd.f32 0.0, %v2191
        %2193 = vmatmul.f32.gmra.mxu0 %v2087
        %v2194 = vpop.f32.mrf.mxu0
        %v2195 = vadd.f32 0.0, %v2194
        %2196 = vmatmul.f32.gmra.mxu0 %v2089
        %v2197 = vpop.f32.mrf.mxu0
        %v2198 = vadd.f32 0.0, %v2197
        %2199 = vmatmul.f32.gmra.mxu0 %v2091
        %v2200 = vpop.f32.mrf.mxu0
        %v2201 = vadd.f32 0.0, %v2200
        %2202 = vmatmul.f32.gmra.mxu0 %v2093
        %v2203 = vpop.f32.mrf.mxu0
        %v2204 = vadd.f32 0.0, %v2203
        %2205 = vmatmul.f32.gmra.mxu0 %v2095
        %v2206 = vpop.f32.mrf.mxu0
        %v2207 = vadd.f32 0.0, %v2206
        %2208 = vmatmul.f32.gmra.mxu0 %v2097
        %v2209 = vpop.f32.mrf.mxu0
        %v2210 = vadd.f32 0.0, %v2209
        %2211 = vdwg.mxu0
        %2212 = vmatpush.msra.mxu0 %v718
        %2213 = vmatpush.msra.mxu0 %v715
        %2214 = vmatpush.msra.mxu0 %v712
        %2215 = vmatpush.msra.mxu0 %v709
        %2216 = vmatpush.msra.mxu0 %v706
        %2217 = vmatpush.msra.mxu0 %v703
        %2218 = vmatpush.msra.mxu0 %v700
        %2219 = vmatpush.msra.mxu0 %v697
        %2220 = vmatpush.msra.mxu0 %v694
        %2221 = vmatpush.msra.mxu0 %v691
        %2222 = vmatpush.msra.mxu0 %v688
        %2223 = vmatpush.msra.mxu0 %v685
        %2224 = vmatpush.msra.mxu0 %v682
        %2225 = vmatpush.msra.mxu0 %v679
        %2226 = vmatpush.msra.mxu0 %v676
        %2227 = vmatpush.msra.mxu0 %v673
        %2228 = vmatmul.f32.gmra.mxu0 %v2036
        %v2229 = vpop.f32.mrf.mxu0
        %v2230 = vadd.f32 %v2117, %v2229
        %2231 = vmatmul.f32.gmra.mxu0 %v2038
        %v2232 = vpop.f32.mrf.mxu0
        %v2233 = vadd.f32 %v2120, %v2232
        %2234 = vmatmul.f32.gmra.mxu0 %v2040
        %v2235 = vpop.f32.mrf.mxu0
        %v2236 = vadd.f32 %v2123, %v2235
        %2237 = vmatmul.f32.gmra.mxu0 %v2042
        %v2238 = vpop.f32.mrf.mxu0
        %v2239 = vadd.f32 %v2126, %v2238
        %2240 = vmatmul.f32.gmra.mxu0 %v2044
        %v2241 = vpop.f32.mrf.mxu0
        %v2242 = vadd.f32 %v2129, %v2241
        %2243 = vmatmul.f32.gmra.mxu0 %v2046
        %v2244 = vpop.f32.mrf.mxu0
        %v2245 = vadd.f32 %v2132, %v2244
        %2246 = vmatmul.f32.gmra.mxu0 %v2048
        %v2247 = vpop.f32.mrf.mxu0
        %v2248 = vadd.f32 %v2135, %v2247
        %2249 = vmatmul.f32.gmra.mxu0 %v2050
        %v2250 = vpop.f32.mrf.mxu0
        %v2251 = vadd.f32 %v2138, %v2250
        %2252 = vmatmul.f32.gmra.mxu0 %v2052
        %v2253 = vpop.f32.mrf.mxu0
        %v2254 = vadd.f32 %v2141, %v2253
        %2255 = vmatmul.f32.gmra.mxu0 %v2054
        %v2256 = vpop.f32.mrf.mxu0
        %v2257 = vadd.f32 %v2144, %v2256
        %2258 = vmatmul.f32.gmra.mxu0 %v2056
        %v2259 = vpop.f32.mrf.mxu0
        %v2260 = vadd.f32 %v2147, %v2259
        %2261 = vmatmul.f32.gmra.mxu0 %v2058
        %v2262 = vpop.f32.mrf.mxu0
        %v2263 = vadd.f32 %v2150, %v2262
        %2264 = vmatmul.f32.gmra.mxu0 %v2060
        %v2265 = vpop.f32.mrf.mxu0
        %v2266 = vadd.f32 %v2153, %v2265
        %2267 = vmatmul.f32.gmra.mxu0 %v2062
        %v2268 = vpop.f32.mrf.mxu0
        %v2269 = vadd.f32 %v2156, %v2268
        %2270 = vmatmul.f32.gmra.mxu0 %v2064
        %v2271 = vpop.f32.mrf.mxu0
        %v2272 = vadd.f32 %v2159, %v2271
        %2273 = vmatmul.f32.gmra.mxu0 %v2066
        %v2274 = vpop.f32.mrf.mxu0
        %v2275 = vadd.f32 %v2162, %v2274
        %2276 = vmatmul.f32.gmra.mxu0 %v2068
        %v2277 = vpop.f32.mrf.mxu0
        %v2278 = vadd.f32 %v2165, %v2277
        %2279 = vmatmul.f32.gmra.mxu0 %v2070
        %v2280 = vpop.f32.mrf.mxu0
        %v2281 = vadd.f32 %v2168, %v2280
        %2282 = vmatmul.f32.gmra.mxu0 %v2072
        %v2283 = vpop.f32.mrf.mxu0
        %v2284 = vadd.f32 %v2171, %v2283
        %2285 = vmatmul.f32.gmra.mxu0 %v2074
        %v2286 = vpop.f32.mrf.mxu0
        %v2287 = vadd.f32 %v2174, %v2286
        %2288 = vmatmul.f32.gmra.mxu0 %v2076
        %v2289 = vpop.f32.mrf.mxu0
        %v2290 = vadd.f32 %v2177, %v2289
        %2291 = vmatmul.f32.gmra.mxu0 %v2078
        %v2292 = vpop.f32.mrf.mxu0
        %v2293 = vadd.f32 %v2180, %v2292
        %2294 = vmatmul.f32.gmra.mxu0 %v2080
        %v2295 = vpop.f32.mrf.mxu0
        %v2296 = vadd.f32 %v2183, %v2295
        %2297 = vmatmul.f32.gmra.mxu0 %v2082
        %v2298 = vpop.f32.mrf.mxu0
        %v2299 = vadd.f32 %v2186, %v2298
        %2300 = vmatmul.f32.gmra.mxu0 %v2084
        %v2301 = vpop.f32.mrf.mxu0
        %v2302 = vadd.f32 %v2189, %v2301
        %2303 = vmatmul.f32.gmra.mxu0 %v2086
        %v2304 = vpop.f32.mrf.mxu0
        %v2305 = vadd.f32 %v2192, %v2304
        %2306 = vmatmul.f32.gmra.mxu0 %v2088
        %v2307 = vpop.f32.mrf.mxu0
        %v2308 = vadd.f32 %v2195, %v2307
        %2309 = vmatmul.f32.gmra.mxu0 %v2090
        %v2310 = vpop.f32.mrf.mxu0
        %v2311 = vadd.f32 %v2198, %v2310
        %2312 = vmatmul.f32.gmra.mxu0 %v2092
        %v2313 = vpop.f32.mrf.mxu0
        %v2314 = vadd.f32 %v2201, %v2313
        %2315 = vmatmul.f32.gmra.mxu0 %v2094
        %v2316 = vpop.f32.mrf.mxu0
        %v2317 = vadd.f32 %v2204, %v2316
        %2318 = vmatmul.f32.gmra.mxu0 %v2096
        %v2319 = vpop.f32.mrf.mxu0
        %v2320 = vadd.f32 %v2207, %v2319
        %2321 = vmatmul.f32.gmra.mxu0 %v2098
        %v2322 = vpop.f32.mrf.mxu0
        %v2323 = vadd.f32 %v2210, %v2322
        %2324 = vdwg.mxu0
        %v2325 = vld [vmem:[#allocation8] sm:$0xff]
        %v2326 = vld [vmem:[#allocation8 + $0x8] sm:$0xff]
        %v2327 = vld [vmem:[#allocation8 + $0x10] sm:$0xff]
        %v2328 = vld [vmem:[#allocation8 + $0x18] sm:$0xff]
        %2329 = vrot.lane.b32.xlu0 %v720, 96
        %v2330 = vpop.permute.xlu0 %2329
        %2331 = vrot.lane.b32.xlu0 %v721, 96
        %v2332 = vpop.permute.xlu0 %2331
        %2333 = vrot.lane.b32.xlu0 %v722, 96
        %v2334 = vpop.permute.xlu0 %2333
        %2335 = vrot.lane.b32.xlu0 %v723, 96
        %v2336 = vpop.permute.xlu0 %2335
        %2337 = vrot.lane.b32.xlu0 %v724, 96
        %v2338 = vpop.permute.xlu0 %2337
        %2339 = vrot.lane.b32.xlu0 %v725, 96
        %v2340 = vpop.permute.xlu0 %2339
        %2341 = vrot.lane.b32.xlu0 %v726, 96
        %v2342 = vpop.permute.xlu0 %2341
        %2343 = vrot.lane.b32.xlu0 %v727, 96
        %v2344 = vpop.permute.xlu0 %2343
        %2345 = vrot.lane.b32.xlu0 %v728, 96
        %v2346 = vpop.permute.xlu0 %2345
        %2347 = vrot.lane.b32.xlu0 %v729, 96
        %v2348 = vpop.permute.xlu0 %2347
        %2349 = vrot.lane.b32.xlu0 %v730, 96
        %v2350 = vpop.permute.xlu0 %2349
        %2351 = vrot.lane.b32.xlu0 %v731, 96
        %v2352 = vpop.permute.xlu0 %2351
        %2353 = vrot.lane.b32.xlu0 %v732, 96
        %v2354 = vpop.permute.xlu0 %2353
        %2355 = vrot.lane.b32.xlu0 %v733, 96
        %v2356 = vpop.permute.xlu0 %2355
        %2357 = vrot.lane.b32.xlu0 %v734, 96
        %v2358 = vpop.permute.xlu0 %2357
        %2359 = vrot.lane.b32.xlu0 %v735, 96
        %v2360 = vpop.permute.xlu0 %2359
        %2361 = vrot.lane.b32.xlu0 %v736, 96
        %v2362 = vpop.permute.xlu0 %2361
        %2363 = vrot.lane.b32.xlu0 %v737, 96
        %v2364 = vpop.permute.xlu0 %2363
        %2365 = vrot.lane.b32.xlu0 %v738, 96
        %v2366 = vpop.permute.xlu0 %2365
        %2367 = vrot.lane.b32.xlu0 %v739, 96
        %v2368 = vpop.permute.xlu0 %2367
        %2369 = vrot.lane.b32.xlu0 %v740, 96
        %v2370 = vpop.permute.xlu0 %2369
        %2371 = vrot.lane.b32.xlu0 %v741, 96
        %v2372 = vpop.permute.xlu0 %2371
        %2373 = vrot.lane.b32.xlu0 %v742, 96
        %v2374 = vpop.permute.xlu0 %2373
        %2375 = vrot.lane.b32.xlu0 %v743, 96
        %v2376 = vpop.permute.xlu0 %2375
        %2377 = vrot.lane.b32.xlu0 %v744, 96
        %v2378 = vpop.permute.xlu0 %2377
        %2379 = vrot.lane.b32.xlu0 %v745, 96
        %v2380 = vpop.permute.xlu0 %2379
        %2381 = vrot.lane.b32.xlu0 %v746, 96
        %v2382 = vpop.permute.xlu0 %2381
        %2383 = vrot.lane.b32.xlu0 %v747, 96
        %v2384 = vpop.permute.xlu0 %2383
        %2385 = vrot.lane.b32.xlu0 %v748, 96
        %v2386 = vpop.permute.xlu0 %2385
        %2387 = vrot.lane.b32.xlu0 %v749, 96
        %v2388 = vpop.permute.xlu0 %2387
        %2389 = vrot.lane.b32.xlu0 %v750, 96
        %v2390 = vpop.permute.xlu0 %2389
        %2391 = vrot.lane.b32.xlu0 %v751, 96
        %v2392 = vpop.permute.xlu0 %2391
        %2393 = vrot.lane.b32.xlu0 %v512, 96
        %v2394 = vpop.permute.xlu0 %2393
        %2395 = vrot.lane.b32.xlu0 %v515, 96
        %v2396 = vpop.permute.xlu0 %2395
        %2397 = vrot.lane.b32.xlu0 %v518, 96
        %v2398 = vpop.permute.xlu0 %2397
        %2399 = vrot.lane.b32.xlu0 %v521, 96
        %v2400 = vpop.permute.xlu0 %2399
        %2401 = vrot.lane.b32.xlu0 %v524, 96
        %v2402 = vpop.permute.xlu0 %2401
        %2403 = vrot.lane.b32.xlu0 %v527, 96
        %v2404 = vpop.permute.xlu0 %2403
        %2405 = vrot.lane.b32.xlu0 %v530, 96
        %v2406 = vpop.permute.xlu0 %2405
        %2407 = vrot.lane.b32.xlu0 %v533, 96
        %v2408 = vpop.permute.xlu0 %2407
        %2409 = vrot.lane.b32.xlu0 %v536, 96
        %v2410 = vpop.permute.xlu0 %2409
        %2411 = vrot.lane.b32.xlu0 %v539, 96
        %v2412 = vpop.permute.xlu0 %2411
        %2413 = vrot.lane.b32.xlu0 %v542, 96
        %v2414 = vpop.permute.xlu0 %2413
        %2415 = vrot.lane.b32.xlu0 %v545, 96
        %v2416 = vpop.permute.xlu0 %2415
        %2417 = vrot.lane.b32.xlu0 %v548, 96
        %v2418 = vpop.permute.xlu0 %2417
        %2419 = vrot.lane.b32.xlu0 %v551, 96
        %v2420 = vpop.permute.xlu0 %2419
        %2421 = vrot.lane.b32.xlu0 %v554, 96
        %v2422 = vpop.permute.xlu0 %2421
        %2423 = vrot.lane.b32.xlu0 %v557, 96
        %v2424 = vpop.permute.xlu0 %2423
        %2425 = vrot.lane.b32.xlu0 %v560, 96
        %v2426 = vpop.permute.xlu0 %2425
        %2427 = vrot.lane.b32.xlu0 %v563, 96
        %v2428 = vpop.permute.xlu0 %2427
        %2429 = vrot.lane.b32.xlu0 %v566, 96
        %v2430 = vpop.permute.xlu0 %2429
        %2431 = vrot.lane.b32.xlu0 %v569, 96
        %v2432 = vpop.permute.xlu0 %2431
        %2433 = vrot.lane.b32.xlu0 %v572, 96
        %v2434 = vpop.permute.xlu0 %2433
        %2435 = vrot.lane.b32.xlu0 %v575, 96
        %v2436 = vpop.permute.xlu0 %2435
        %2437 = vrot.lane.b32.xlu0 %v578, 96
        %v2438 = vpop.permute.xlu0 %2437
        %2439 = vrot.lane.b32.xlu0 %v581, 96
        %v2440 = vpop.permute.xlu0 %2439
        %2441 = vrot.lane.b32.xlu0 %v584, 96
        %v2442 = vpop.permute.xlu0 %2441
        %2443 = vrot.lane.b32.xlu0 %v587, 96
        %v2444 = vpop.permute.xlu0 %2443
        %2445 = vrot.lane.b32.xlu0 %v590, 96
        %v2446 = vpop.permute.xlu0 %2445
        %2447 = vrot.lane.b32.xlu0 %v593, 96
        %v2448 = vpop.permute.xlu0 %2447
        %2449 = vrot.lane.b32.xlu0 %v596, 96
        %v2450 = vpop.permute.xlu0 %2449
        %2451 = vrot.lane.b32.xlu0 %v599, 96
        %v2452 = vpop.permute.xlu0 %2451
        %2453 = vrot.lane.b32.xlu0 %v602, 96
        %v2454 = vpop.permute.xlu0 %2453
        %2455 = vrot.lane.b32.xlu0 %v605, 96
        %v2456 = vpop.permute.xlu0 %2455
        %v2457 = vsel %vm752, %v2330, 0
        %v2459 = vsel %vm752, %v2332, 0
        %v2461 = vsel %vm752, %v2334, 0
        %v2463 = vsel %vm752, %v2336, 0
        %v2465 = vsel %vm752, %v2338, 0
        %v2467 = vsel %vm752, %v2340, 0
        %v2469 = vsel %vm752, %v2342, 0
        %v2471 = vsel %vm752, %v2344, 0
        %v2473 = vsel %vm752, %v2346, 0
        %v2475 = vsel %vm752, %v2348, 0
        %v2477 = vsel %vm752, %v2350, 0
        %v2479 = vsel %vm752, %v2352, 0
        %v2481 = vsel %vm752, %v2354, 0
        %v2483 = vsel %vm752, %v2356, 0
        %v2485 = vsel %vm752, %v2358, 0
        %v2487 = vsel %vm752, %v2360, 0
        %v2489 = vsel %vm752, %v2362, 0
        %v2491 = vsel %vm752, %v2364, 0
        %v2493 = vsel %vm752, %v2366, 0
        %v2495 = vsel %vm752, %v2368, 0
        %v2497 = vsel %vm752, %v2370, 0
        %v2499 = vsel %vm752, %v2372, 0
        %v2501 = vsel %vm752, %v2374, 0
        %v2503 = vsel %vm752, %v2376, 0
        %v2505 = vsel %vm752, %v2378, 0
        %v2507 = vsel %vm752, %v2380, 0
        %v2509 = vsel %vm752, %v2382, 0
        %v2511 = vsel %vm752, %v2384, 0
        %v2513 = vsel %vm752, %v2386, 0
        %v2515 = vsel %vm752, %v2388, 0
        %v2517 = vsel %vm752, %v2390, 0
        %v2519 = vsel %vm752, %v2392, 0
        %v2521 = vsel %vm752, %v2394, 0
        %v2523 = vsel %vm752, %v2396, 0
        %v2525 = vsel %vm752, %v2398, 0
        %v2527 = vsel %vm752, %v2400, 0
        %v2529 = vsel %vm752, %v2402, 0
        %v2531 = vsel %vm752, %v2404, 0
        %v2533 = vsel %vm752, %v2406, 0
        %v2535 = vsel %vm752, %v2408, 0
        %v2537 = vsel %vm752, %v2410, 0
        %v2539 = vsel %vm752, %v2412, 0
        %v2541 = vsel %vm752, %v2414, 0
        %v2543 = vsel %vm752, %v2416, 0
        %v2545 = vsel %vm752, %v2418, 0
        %v2547 = vsel %vm752, %v2420, 0
        %v2549 = vsel %vm752, %v2422, 0
        %v2551 = vsel %vm752, %v2424, 0
        %v2553 = vsel %vm752, %v2426, 0
        %v2555 = vsel %vm752, %v2428, 0
        %v2557 = vsel %vm752, %v2430, 0
        %v2559 = vsel %vm752, %v2432, 0
        %v2561 = vsel %vm752, %v2434, 0
        %v2563 = vsel %vm752, %v2436, 0
        %v2565 = vsel %vm752, %v2438, 0
        %v2567 = vsel %vm752, %v2440, 0
        %v2569 = vsel %vm752, %v2442, 0
        %v2571 = vsel %vm752, %v2444, 0
        %v2573 = vsel %vm752, %v2446, 0
        %v2575 = vsel %vm752, %v2448, 0
        %v2577 = vsel %vm752, %v2450, 0
        %v2579 = vsel %vm752, %v2452, 0
        %v2581 = vsel %vm752, %v2454, 0
        %v2583 = vsel %vm752, %v2456, 0
        %2585 = vmatpush.xpose.msra.mxu0 %v2551
        %2586 = vmatpush.xpose.msra.mxu0 %v2549
        %2587 = vmatpush.xpose.msra.mxu0 %v2547
        %2588 = vmatpush.xpose.msra.mxu0 %v2545
        %2589 = vmatpush.xpose.msra.mxu0 %v2543
        %2590 = vmatpush.xpose.msra.mxu0 %v2541
        %2591 = vmatpush.xpose.msra.mxu0 %v2539
        %2592 = vmatpush.xpose.msra.mxu0 %v2537
        %2593 = vmatpush.xpose.msra.mxu0 %v2535
        %2594 = vmatpush.xpose.msra.mxu0 %v2533
        %2595 = vmatpush.xpose.msra.mxu0 %v2531
        %2596 = vmatpush.xpose.msra.mxu0 %v2529
        %2597 = vmatpush.xpose.msra.mxu0 %v2527
        %2598 = vmatpush.xpose.msra.mxu0 %v2525
        %2599 = vmatpush.xpose.msra.mxu0 %v2523
        %2600 = vmatpush.xpose.msra.mxu0 %v2521
        %2601 = vmatmul.f32.gmra.mxu0 %v2457
        %v2602 = vpop.f32.mrf.mxu0
        %v2603 = vadd.f32 0.0, %v2602
        %2604 = vmatmul.f32.gmra.mxu0 %v2459
        %v2605 = vpop.f32.mrf.mxu0
        %v2606 = vadd.f32 0.0, %v2605
        %2607 = vmatmul.f32.gmra.mxu0 %v2461
        %v2608 = vpop.f32.mrf.mxu0
        %v2609 = vadd.f32 0.0, %v2608
        %2610 = vmatmul.f32.gmra.mxu0 %v2463
        %v2611 = vpop.f32.mrf.mxu0
        %v2612 = vadd.f32 0.0, %v2611
        %2613 = vmatmul.f32.gmra.mxu0 %v2465
        %v2614 = vpop.f32.mrf.mxu0
        %v2615 = vadd.f32 0.0, %v2614
        %2616 = vmatmul.f32.gmra.mxu0 %v2467
        %v2617 = vpop.f32.mrf.mxu0
        %v2618 = vadd.f32 0.0, %v2617
        %2619 = vmatmul.f32.gmra.mxu0 %v2469
        %v2620 = vpop.f32.mrf.mxu0
        %v2621 = vadd.f32 0.0, %v2620
        %2622 = vmatmul.f32.gmra.mxu0 %v2471
        %v2623 = vpop.f32.mrf.mxu0
        %v2624 = vadd.f32 0.0, %v2623
        %2625 = vmatmul.f32.gmra.mxu0 %v2473
        %v2626 = vpop.f32.mrf.mxu0
        %v2627 = vadd.f32 0.0, %v2626
        %2628 = vmatmul.f32.gmra.mxu0 %v2475
        %v2629 = vpop.f32.mrf.mxu0
        %v2630 = vadd.f32 0.0, %v2629
        %2631 = vmatmul.f32.gmra.mxu0 %v2477
        %v2632 = vpop.f32.mrf.mxu0
        %v2633 = vadd.f32 0.0, %v2632
        %2634 = vmatmul.f32.gmra.mxu0 %v2479
        %v2635 = vpop.f32.mrf.mxu0
        %v2636 = vadd.f32 0.0, %v2635
        %2637 = vmatmul.f32.gmra.mxu0 %v2481
        %v2638 = vpop.f32.mrf.mxu0
        %v2639 = vadd.f32 0.0, %v2638
        %2640 = vmatmul.f32.gmra.mxu0 %v2483
        %v2641 = vpop.f32.mrf.mxu0
        %v2642 = vadd.f32 0.0, %v2641
        %2643 = vmatmul.f32.gmra.mxu0 %v2485
        %v2644 = vpop.f32.mrf.mxu0
        %v2645 = vadd.f32 0.0, %v2644
        %2646 = vmatmul.f32.gmra.mxu0 %v2487
        %v2647 = vpop.f32.mrf.mxu0
        %v2648 = vadd.f32 0.0, %v2647
        %2649 = vmatmul.f32.gmra.mxu0 %v2489
        %v2650 = vpop.f32.mrf.mxu0
        %v2651 = vadd.f32 0.0, %v2650
        %2652 = vmatmul.f32.gmra.mxu0 %v2491
        %v2653 = vpop.f32.mrf.mxu0
        %v2654 = vadd.f32 0.0, %v2653
        %2655 = vmatmul.f32.gmra.mxu0 %v2493
        %v2656 = vpop.f32.mrf.mxu0
        %v2657 = vadd.f32 0.0, %v2656
        %2658 = vmatmul.f32.gmra.mxu0 %v2495
        %v2659 = vpop.f32.mrf.mxu0
        %v2660 = vadd.f32 0.0, %v2659
        %2661 = vmatmul.f32.gmra.mxu0 %v2497
        %v2662 = vpop.f32.mrf.mxu0
        %v2663 = vadd.f32 0.0, %v2662
        %2664 = vmatmul.f32.gmra.mxu0 %v2499
        %v2665 = vpop.f32.mrf.mxu0
        %v2666 = vadd.f32 0.0, %v2665
        %2667 = vmatmul.f32.gmra.mxu0 %v2501
        %v2668 = vpop.f32.mrf.mxu0
        %v2669 = vadd.f32 0.0, %v2668
        %2670 = vmatmul.f32.gmra.mxu0 %v2503
        %v2671 = vpop.f32.mrf.mxu0
        %v2672 = vadd.f32 0.0, %v2671
        %2673 = vmatmul.f32.gmra.mxu0 %v2505
        %v2674 = vpop.f32.mrf.mxu0
        %v2675 = vadd.f32 0.0, %v2674
        %2676 = vmatmul.f32.gmra.mxu0 %v2507
        %v2677 = vpop.f32.mrf.mxu0
        %v2678 = vadd.f32 0.0, %v2677
        %2679 = vmatmul.f32.gmra.mxu0 %v2509
        %v2680 = vpop.f32.mrf.mxu0
        %v2681 = vadd.f32 0.0, %v2680
        %2682 = vmatmul.f32.gmra.mxu0 %v2511
        %v2683 = vpop.f32.mrf.mxu0
        %v2684 = vadd.f32 0.0, %v2683
        %2685 = vmatmul.f32.gmra.mxu0 %v2513
        %v2686 = vpop.f32.mrf.mxu0
        %v2687 = vadd.f32 0.0, %v2686
        %2688 = vmatmul.f32.gmra.mxu0 %v2515
        %v2689 = vpop.f32.mrf.mxu0
        %v2690 = vadd.f32 0.0, %v2689
        %2691 = vmatmul.f32.gmra.mxu0 %v2517
        %v2692 = vpop.f32.mrf.mxu0
        %v2693 = vadd.f32 0.0, %v2692
        %2694 = vmatmul.f32.gmra.mxu0 %v2519
        %v2695 = vpop.f32.mrf.mxu0
        %v2696 = vadd.f32 0.0, %v2695
        %2697 = vdwg.mxu0
        %2698 = vmatpush.xpose.msra.mxu0 %v2583
        %2699 = vmatpush.xpose.msra.mxu0 %v2581
        %2700 = vmatpush.xpose.msra.mxu0 %v2579
        %2701 = vmatpush.xpose.msra.mxu0 %v2577
        %2702 = vmatpush.xpose.msra.mxu0 %v2575
        %2703 = vmatpush.xpose.msra.mxu0 %v2573
        %2704 = vmatpush.xpose.msra.mxu0 %v2571
        %2705 = vmatpush.xpose.msra.mxu0 %v2569
        %2706 = vmatpush.xpose.msra.mxu0 %v2567
        %2707 = vmatpush.xpose.msra.mxu0 %v2565
        %2708 = vmatpush.xpose.msra.mxu0 %v2563
        %2709 = vmatpush.xpose.msra.mxu0 %v2561
        %2710 = vmatpush.xpose.msra.mxu0 %v2559
        %2711 = vmatpush.xpose.msra.mxu0 %v2557
        %2712 = vmatpush.xpose.msra.mxu0 %v2555
        %2713 = vmatpush.xpose.msra.mxu0 %v2553
        %2714 = vmatmul.f32.gmra.mxu0 %v2457
        %v2715 = vpop.f32.mrf.mxu0
        %v2716 = vadd.f32 0.0, %v2715
        %2717 = vmatmul.f32.gmra.mxu0 %v2459
        %v2718 = vpop.f32.mrf.mxu0
        %v2719 = vadd.f32 0.0, %v2718
        %2720 = vmatmul.f32.gmra.mxu0 %v2461
        %v2721 = vpop.f32.mrf.mxu0
        %v2722 = vadd.f32 0.0, %v2721
        %2723 = vmatmul.f32.gmra.mxu0 %v2463
        %v2724 = vpop.f32.mrf.mxu0
        %v2725 = vadd.f32 0.0, %v2724
        %2726 = vmatmul.f32.gmra.mxu0 %v2465
        %v2727 = vpop.f32.mrf.mxu0
        %v2728 = vadd.f32 0.0, %v2727
        %2729 = vmatmul.f32.gmra.mxu0 %v2467
        %v2730 = vpop.f32.mrf.mxu0
        %v2731 = vadd.f32 0.0, %v2730
        %2732 = vmatmul.f32.gmra.mxu0 %v2469
        %v2733 = vpop.f32.mrf.mxu0
        %v2734 = vadd.f32 0.0, %v2733
        %2735 = vmatmul.f32.gmra.mxu0 %v2471
        %v2736 = vpop.f32.mrf.mxu0
        %v2737 = vadd.f32 0.0, %v2736
        %2738 = vmatmul.f32.gmra.mxu0 %v2473
        %v2739 = vpop.f32.mrf.mxu0
        %v2740 = vadd.f32 0.0, %v2739
        %2741 = vmatmul.f32.gmra.mxu0 %v2475
        %v2742 = vpop.f32.mrf.mxu0
        %v2743 = vadd.f32 0.0, %v2742
        %2744 = vmatmul.f32.gmra.mxu0 %v2477
        %v2745 = vpop.f32.mrf.mxu0
        %v2746 = vadd.f32 0.0, %v2745
        %2747 = vmatmul.f32.gmra.mxu0 %v2479
        %v2748 = vpop.f32.mrf.mxu0
        %v2749 = vadd.f32 0.0, %v2748
        %2750 = vmatmul.f32.gmra.mxu0 %v2481
        %v2751 = vpop.f32.mrf.mxu0
        %v2752 = vadd.f32 0.0, %v2751
        %2753 = vmatmul.f32.gmra.mxu0 %v2483
        %v2754 = vpop.f32.mrf.mxu0
        %v2755 = vadd.f32 0.0, %v2754
        %2756 = vmatmul.f32.gmra.mxu0 %v2485
        %v2757 = vpop.f32.mrf.mxu0
        %v2758 = vadd.f32 0.0, %v2757
        %2759 = vmatmul.f32.gmra.mxu0 %v2487
        %v2760 = vpop.f32.mrf.mxu0
        %v2761 = vadd.f32 0.0, %v2760
        %2762 = vmatmul.f32.gmra.mxu0 %v2489
        %v2763 = vpop.f32.mrf.mxu0
        %v2764 = vadd.f32 0.0, %v2763
        %2765 = vmatmul.f32.gmra.mxu0 %v2491
        %v2766 = vpop.f32.mrf.mxu0
        %v2767 = vadd.f32 0.0, %v2766
        %2768 = vmatmul.f32.gmra.mxu0 %v2493
        %v2769 = vpop.f32.mrf.mxu0
        %v2770 = vadd.f32 0.0, %v2769
        %2771 = vmatmul.f32.gmra.mxu0 %v2495
        %v2772 = vpop.f32.mrf.mxu0
        %v2773 = vadd.f32 0.0, %v2772
        %2774 = vmatmul.f32.gmra.mxu0 %v2497
        %v2775 = vpop.f32.mrf.mxu0
        %v2776 = vadd.f32 0.0, %v2775
        %2777 = vmatmul.f32.gmra.mxu0 %v2499
        %v2778 = vpop.f32.mrf.mxu0
        %v2779 = vadd.f32 0.0, %v2778
        %2780 = vmatmul.f32.gmra.mxu0 %v2501
        %v2781 = vpop.f32.mrf.mxu0
        %v2782 = vadd.f32 0.0, %v2781
        %2783 = vmatmul.f32.gmra.mxu0 %v2503
        %v2784 = vpop.f32.mrf.mxu0
        %v2785 = vadd.f32 0.0, %v2784
        %2786 = vmatmul.f32.gmra.mxu0 %v2505
        %v2787 = vpop.f32.mrf.mxu0
        %v2788 = vadd.f32 0.0, %v2787
        %2789 = vmatmul.f32.gmra.mxu0 %v2507
        %v2790 = vpop.f32.mrf.mxu0
        %v2791 = vadd.f32 0.0, %v2790
        %2792 = vmatmul.f32.gmra.mxu0 %v2509
        %v2793 = vpop.f32.mrf.mxu0
        %v2794 = vadd.f32 0.0, %v2793
        %2795 = vmatmul.f32.gmra.mxu0 %v2511
        %v2796 = vpop.f32.mrf.mxu0
        %v2797 = vadd.f32 0.0, %v2796
        %2798 = vmatmul.f32.gmra.mxu0 %v2513
        %v2799 = vpop.f32.mrf.mxu0
        %v2800 = vadd.f32 0.0, %v2799
        %2801 = vmatmul.f32.gmra.mxu0 %v2515
        %v2802 = vpop.f32.mrf.mxu0
        %v2803 = vadd.f32 0.0, %v2802
        %2804 = vmatmul.f32.gmra.mxu0 %v2517
        %v2805 = vpop.f32.mrf.mxu0
        %v2806 = vadd.f32 0.0, %v2805
        %2807 = vmatmul.f32.gmra.mxu0 %v2519
        %v2808 = vpop.f32.mrf.mxu0
        %v2809 = vadd.f32 0.0, %v2808
        %2810 = vdwg.mxu0
        %v2811 = vmax.f32 %v2603, %v2716
        %2812 = vmax.xlane.f32.xlu0 %v2811
        %v2813 = vpop.xlane.xlu0 %2812
        %v2814 = vmax.f32 %v2606, %v2719
        %2815 = vmax.xlane.f32.xlu0 %v2814
        %v2816 = vpop.xlane.xlu0 %2815
        %v2817 = vmax.f32 %v2609, %v2722
        %2818 = vmax.xlane.f32.xlu0 %v2817
        %v2819 = vpop.xlane.xlu0 %2818
        %v2820 = vmax.f32 %v2612, %v2725
        %2821 = vmax.xlane.f32.xlu0 %v2820
        %v2822 = vpop.xlane.xlu0 %2821
        %v2823 = vmax.f32 %v2615, %v2728
        %2824 = vmax.xlane.f32.xlu0 %v2823
        %v2825 = vpop.xlane.xlu0 %2824
        %v2826 = vmax.f32 %v2618, %v2731
        %2827 = vmax.xlane.f32.xlu0 %v2826
        %v2828 = vpop.xlane.xlu0 %2827
        %v2829 = vmax.f32 %v2621, %v2734
        %2830 = vmax.xlane.f32.xlu0 %v2829
        %v2831 = vpop.xlane.xlu0 %2830
        %v2832 = vmax.f32 %v2624, %v2737
        %2833 = vmax.xlane.f32.xlu0 %v2832
        %v2834 = vpop.xlane.xlu0 %2833
        %v2835 = vmax.f32 %v2627, %v2740
        %2836 = vmax.xlane.f32.xlu0 %v2835
        %v2837 = vpop.xlane.xlu0 %2836
        %v2838 = vmax.f32 %v2630, %v2743
        %2839 = vmax.xlane.f32.xlu0 %v2838
        %v2840 = vpop.xlane.xlu0 %2839
        %v2841 = vmax.f32 %v2633, %v2746
        %2842 = vmax.xlane.f32.xlu0 %v2841
        %v2843 = vpop.xlane.xlu0 %2842
        %v2844 = vmax.f32 %v2636, %v2749
        %2845 = vmax.xlane.f32.xlu0 %v2844
        %v2846 = vpop.xlane.xlu0 %2845
        %v2847 = vmax.f32 %v2639, %v2752
        %2848 = vmax.xlane.f32.xlu0 %v2847
        %v2849 = vpop.xlane.xlu0 %2848
        %v2850 = vmax.f32 %v2642, %v2755
        %2851 = vmax.xlane.f32.xlu0 %v2850
        %v2852 = vpop.xlane.xlu0 %2851
        %v2853 = vmax.f32 %v2645, %v2758
        %2854 = vmax.xlane.f32.xlu0 %v2853
        %v2855 = vpop.xlane.xlu0 %2854
        %v2856 = vmax.f32 %v2648, %v2761
        %2857 = vmax.xlane.f32.xlu0 %v2856
        %v2858 = vpop.xlane.xlu0 %2857
        %v2859 = vmax.f32 %v2651, %v2764
        %2860 = vmax.xlane.f32.xlu0 %v2859
        %v2861 = vpop.xlane.xlu0 %2860
        %v2862 = vmax.f32 %v2654, %v2767
        %2863 = vmax.xlane.f32.xlu0 %v2862
        %v2864 = vpop.xlane.xlu0 %2863
        %v2865 = vmax.f32 %v2657, %v2770
        %2866 = vmax.xlane.f32.xlu0 %v2865
        %v2867 = vpop.xlane.xlu0 %2866
        %v2868 = vmax.f32 %v2660, %v2773
        %2869 = vmax.xlane.f32.xlu0 %v2868
        %v2870 = vpop.xlane.xlu0 %2869
        %v2871 = vmax.f32 %v2663, %v2776
        %2872 = vmax.xlane.f32.xlu0 %v2871
        %v2873 = vpop.xlane.xlu0 %2872
        %v2874 = vmax.f32 %v2666, %v2779
        %2875 = vmax.xlane.f32.xlu0 %v2874
        %v2876 = vpop.xlane.xlu0 %2875
        %v2877 = vmax.f32 %v2669, %v2782
        %2878 = vmax.xlane.f32.xlu0 %v2877
        %v2879 = vpop.xlane.xlu0 %2878
        %v2880 = vmax.f32 %v2672, %v2785
        %2881 = vmax.xlane.f32.xlu0 %v2880
        %v2882 = vpop.xlane.xlu0 %2881
        %v2883 = vmax.f32 %v2675, %v2788
        %2884 = vmax.xlane.f32.xlu0 %v2883
        %v2885 = vpop.xlane.xlu0 %2884
        %v2886 = vmax.f32 %v2678, %v2791
        %2887 = vmax.xlane.f32.xlu0 %v2886
        %v2888 = vpop.xlane.xlu0 %2887
        %v2889 = vmax.f32 %v2681, %v2794
        %2890 = vmax.xlane.f32.xlu0 %v2889
        %v2891 = vpop.xlane.xlu0 %2890
        %v2892 = vmax.f32 %v2684, %v2797
        %2893 = vmax.xlane.f32.xlu0 %v2892
        %v2894 = vpop.xlane.xlu0 %2893
        %v2895 = vmax.f32 %v2687, %v2800
        %2896 = vmax.xlane.f32.xlu0 %v2895
        %v2897 = vpop.xlane.xlu0 %2896
        %v2898 = vmax.f32 %v2690, %v2803
        %2899 = vmax.xlane.f32.xlu0 %v2898
        %v2900 = vpop.xlane.xlu0 %2899
        %v2901 = vmax.f32 %v2693, %v2806
        %2902 = vmax.xlane.f32.xlu0 %v2901
        %v2903 = vpop.xlane.xlu0 %2902
        %v2904 = vmax.f32 %v2696, %v2809
        %2905 = vmax.xlane.f32.xlu0 %v2904
        %v2906 = vpop.xlane.xlu0 %2905
        %v2907 = vsub.f32 %v2603, %v2813
        %v2908 = vsub.f32 %v2716, %v2813
        %v2909 = vsub.f32 %v2606, %v2816
        %v2910 = vsub.f32 %v2719, %v2816
        %v2911 = vsub.f32 %v2609, %v2819
        %v2912 = vsub.f32 %v2722, %v2819
        %v2913 = vsub.f32 %v2612, %v2822
        %v2914 = vsub.f32 %v2725, %v2822
        %v2915 = vsub.f32 %v2615, %v2825
        %v2916 = vsub.f32 %v2728, %v2825
        %v2917 = vsub.f32 %v2618, %v2828
        %v2918 = vsub.f32 %v2731, %v2828
        %v2919 = vsub.f32 %v2621, %v2831
        %v2920 = vsub.f32 %v2734, %v2831
        %v2921 = vsub.f32 %v2624, %v2834
        %v2922 = vsub.f32 %v2737, %v2834
        %v2923 = vsub.f32 %v2627, %v2837
        %v2924 = vsub.f32 %v2740, %v2837
        %v2925 = vsub.f32 %v2630, %v2840
        %v2926 = vsub.f32 %v2743, %v2840
        %v2927 = vsub.f32 %v2633, %v2843
        %v2928 = vsub.f32 %v2746, %v2843
        %v2929 = vsub.f32 %v2636, %v2846
        %v2930 = vsub.f32 %v2749, %v2846
        %v2931 = vsub.f32 %v2639, %v2849
        %v2932 = vsub.f32 %v2752, %v2849
        %v2933 = vsub.f32 %v2642, %v2852
        %v2934 = vsub.f32 %v2755, %v2852
        %v2935 = vsub.f32 %v2645, %v2855
        %v2936 = vsub.f32 %v2758, %v2855
        %v2937 = vsub.f32 %v2648, %v2858
        %v2938 = vsub.f32 %v2761, %v2858
        %v2939 = vsub.f32 %v2651, %v2861
        %v2940 = vsub.f32 %v2764, %v2861
        %v2941 = vsub.f32 %v2654, %v2864
        %v2942 = vsub.f32 %v2767, %v2864
        %v2943 = vsub.f32 %v2657, %v2867
        %v2944 = vsub.f32 %v2770, %v2867
        %v2945 = vsub.f32 %v2660, %v2870
        %v2946 = vsub.f32 %v2773, %v2870
        %v2947 = vsub.f32 %v2663, %v2873
        %v2948 = vsub.f32 %v2776, %v2873
        %v2949 = vsub.f32 %v2666, %v2876
        %v2950 = vsub.f32 %v2779, %v2876
        %v2951 = vsub.f32 %v2669, %v2879
        %v2952 = vsub.f32 %v2782, %v2879
        %v2953 = vsub.f32 %v2672, %v2882
        %v2954 = vsub.f32 %v2785, %v2882
        %v2955 = vsub.f32 %v2675, %v2885
        %v2956 = vsub.f32 %v2788, %v2885
        %v2957 = vsub.f32 %v2678, %v2888
        %v2958 = vsub.f32 %v2791, %v2888
        %v2959 = vsub.f32 %v2681, %v2891
        %v2960 = vsub.f32 %v2794, %v2891
        %v2961 = vsub.f32 %v2684, %v2894
        %v2962 = vsub.f32 %v2797, %v2894
        %v2963 = vsub.f32 %v2687, %v2897
        %v2964 = vsub.f32 %v2800, %v2897
        %v2965 = vsub.f32 %v2690, %v2900
        %v2966 = vsub.f32 %v2803, %v2900
        %v2967 = vsub.f32 %v2693, %v2903
        %v2968 = vsub.f32 %v2806, %v2903
        %v2969 = vsub.f32 %v2696, %v2906
        %v2970 = vsub.f32 %v2809, %v2906
        %v2971 = vmul.f32 %v2907, 1.442695
        %v2972 = vpow.pop %v2971
        %v2973 = vmul.f32 %v2908, 1.442695
        %v2974 = vpow.pop %v2973
        %v2975 = vmul.f32 %v2909, 1.442695
        %v2976 = vpow.pop %v2975
        %v2977 = vmul.f32 %v2910, 1.442695
        %v2978 = vpow.pop %v2977
        %v2979 = vmul.f32 %v2911, 1.442695
        %v2980 = vpow.pop %v2979
        %v2981 = vmul.f32 %v2912, 1.442695
        %v2982 = vpow.pop %v2981
        %v2983 = vmul.f32 %v2913, 1.442695
        %v2984 = vpow.pop %v2983
        %v2985 = vmul.f32 %v2914, 1.442695
        %v2986 = vpow.pop %v2985
        %v2987 = vmul.f32 %v2915, 1.442695
        %v2988 = vpow.pop %v2987
        %v2989 = vmul.f32 %v2916, 1.442695
        %v2990 = vpow.pop %v2989
        %v2991 = vmul.f32 %v2917, 1.442695
        %v2992 = vpow.pop %v2991
        %v2993 = vmul.f32 %v2918, 1.442695
        %v2994 = vpow.pop %v2993
        %v2995 = vmul.f32 %v2919, 1.442695
        %v2996 = vpow.pop %v2995
        %v2997 = vmul.f32 %v2920, 1.442695
        %v2998 = vpow.pop %v2997
        %v2999 = vmul.f32 %v2921, 1.442695
        %v3000 = vpow.pop %v2999
        %v3001 = vmul.f32 %v2922, 1.442695
        %v3002 = vpow.pop %v3001
        %v3003 = vmul.f32 %v2923, 1.442695
        %v3004 = vpow.pop %v3003
        %v3005 = vmul.f32 %v2924, 1.442695
        %v3006 = vpow.pop %v3005
        %v3007 = vmul.f32 %v2925, 1.442695
        %v3008 = vpow.pop %v3007
        %v3009 = vmul.f32 %v2926, 1.442695
        %v3010 = vpow.pop %v3009
        %v3011 = vmul.f32 %v2927, 1.442695
        %v3012 = vpow.pop %v3011
        %v3013 = vmul.f32 %v2928, 1.442695
        %v3014 = vpow.pop %v3013
        %v3015 = vmul.f32 %v2929, 1.442695
        %v3016 = vpow.pop %v3015
        %v3017 = vmul.f32 %v2930, 1.442695
        %v3018 = vpow.pop %v3017
        %v3019 = vmul.f32 %v2931, 1.442695
        %v3020 = vpow.pop %v3019
        %v3021 = vmul.f32 %v2932, 1.442695
        %v3022 = vpow.pop %v3021
        %v3023 = vmul.f32 %v2933, 1.442695
        %v3024 = vpow.pop %v3023
        %v3025 = vmul.f32 %v2934, 1.442695
        %v3026 = vpow.pop %v3025
        %v3027 = vmul.f32 %v2935, 1.442695
        %v3028 = vpow.pop %v3027
        %v3029 = vmul.f32 %v2936, 1.442695
        %v3030 = vpow.pop %v3029
        %v3031 = vmul.f32 %v2937, 1.442695
        %v3032 = vpow.pop %v3031
        %v3033 = vmul.f32 %v2938, 1.442695
        %v3034 = vpow.pop %v3033
        %v3035 = vmul.f32 %v2939, 1.442695
        %v3036 = vpow.pop %v3035
        %v3037 = vmul.f32 %v2940, 1.442695
        %v3038 = vpow.pop %v3037
        %v3039 = vmul.f32 %v2941, 1.442695
        %v3040 = vpow.pop %v3039
        %v3041 = vmul.f32 %v2942, 1.442695
        %v3042 = vpow.pop %v3041
        %v3043 = vmul.f32 %v2943, 1.442695
        %v3044 = vpow.pop %v3043
        %v3045 = vmul.f32 %v2944, 1.442695
        %v3046 = vpow.pop %v3045
        %v3047 = vmul.f32 %v2945, 1.442695
        %v3048 = vpow.pop %v3047
        %v3049 = vmul.f32 %v2946, 1.442695
        %v3050 = vpow.pop %v3049
        %v3051 = vmul.f32 %v2947, 1.442695
        %v3052 = vpow.pop %v3051
        %v3053 = vmul.f32 %v2948, 1.442695
        %v3054 = vpow.pop %v3053
        %v3055 = vmul.f32 %v2949, 1.442695
        %v3056 = vpow.pop %v3055
        %v3057 = vmul.f32 %v2950, 1.442695
        %v3058 = vpow.pop %v3057
        %v3059 = vmul.f32 %v2951, 1.442695
        %v3060 = vpow.pop %v3059
        %v3061 = vmul.f32 %v2952, 1.442695
        %v3062 = vpow.pop %v3061
        %v3063 = vmul.f32 %v2953, 1.442695
        %v3064 = vpow.pop %v3063
        %v3065 = vmul.f32 %v2954, 1.442695
        %v3066 = vpow.pop %v3065
        %v3067 = vmul.f32 %v2955, 1.442695
        %v3068 = vpow.pop %v3067
        %v3069 = vmul.f32 %v2956, 1.442695
        %v3070 = vpow.pop %v3069
        %v3071 = vmul.f32 %v2957, 1.442695
        %v3072 = vpow.pop %v3071
        %v3073 = vmul.f32 %v2958, 1.442695
        %v3074 = vpow.pop %v3073
        %v3075 = vmul.f32 %v2959, 1.442695
        %v3076 = vpow.pop %v3075
        %v3077 = vmul.f32 %v2960, 1.442695
        %v3078 = vpow.pop %v3077
        %v3079 = vmul.f32 %v2961, 1.442695
        %v3080 = vpow.pop %v3079
        %v3081 = vmul.f32 %v2962, 1.442695
        %v3082 = vpow.pop %v3081
        %v3083 = vmul.f32 %v2963, 1.442695
        %v3084 = vpow.pop %v3083
        %v3085 = vmul.f32 %v2964, 1.442695
        %v3086 = vpow.pop %v3085
        %v3087 = vmul.f32 %v2965, 1.442695
        %v3088 = vpow.pop %v3087
        %v3089 = vmul.f32 %v2966, 1.442695
        %v3090 = vpow.pop %v3089
        %v3091 = vmul.f32 %v2967, 1.442695
        %v3092 = vpow.pop %v3091
        %v3093 = vmul.f32 %v2968, 1.442695
        %v3094 = vpow.pop %v3093
        %v3095 = vmul.f32 %v2969, 1.442695
        %v3096 = vpow.pop %v3095
        %v3097 = vmul.f32 %v2970, 1.442695
        %v3098 = vpow.pop %v3097
        %v3099 = vadd.f32 %v2972, %v2974
        %3100 = vadd.xlane.f32.xlu0 %v3099
        %v3101 = vpop.xlane.xlu0 %3100
        %v3102 = vadd.f32 %v2976, %v2978
        %3103 = vadd.xlane.f32.xlu0 %v3102
        %v3104 = vpop.xlane.xlu0 %3103
        %v3105 = vadd.f32 %v2980, %v2982
        %3106 = vadd.xlane.f32.xlu0 %v3105
        %v3107 = vpop.xlane.xlu0 %3106
        %v3108 = vadd.f32 %v2984, %v2986
        %3109 = vadd.xlane.f32.xlu0 %v3108
        %v3110 = vpop.xlane.xlu0 %3109
        %v3111 = vadd.f32 %v2988, %v2990
        %3112 = vadd.xlane.f32.xlu0 %v3111
        %v3113 = vpop.xlane.xlu0 %3112
        %v3114 = vadd.f32 %v2992, %v2994
        %3115 = vadd.xlane.f32.xlu0 %v3114
        %v3116 = vpop.xlane.xlu0 %3115
        %v3117 = vadd.f32 %v2996, %v2998
        %3118 = vadd.xlane.f32.xlu0 %v3117
        %v3119 = vpop.xlane.xlu0 %3118
        %v3120 = vadd.f32 %v3000, %v3002
        %3121 = vadd.xlane.f32.xlu0 %v3120
        %v3122 = vpop.xlane.xlu0 %3121
        %v3123 = vadd.f32 %v3004, %v3006
        %3124 = vadd.xlane.f32.xlu0 %v3123
        %v3125 = vpop.xlane.xlu0 %3124
        %v3126 = vadd.f32 %v3008, %v3010
        %3127 = vadd.xlane.f32.xlu0 %v3126
        %v3128 = vpop.xlane.xlu0 %3127
        %v3129 = vadd.f32 %v3012, %v3014
        %3130 = vadd.xlane.f32.xlu0 %v3129
        %v3131 = vpop.xlane.xlu0 %3130
        %v3132 = vadd.f32 %v3016, %v3018
        %3133 = vadd.xlane.f32.xlu0 %v3132
        %v3134 = vpop.xlane.xlu0 %3133
        %v3135 = vadd.f32 %v3020, %v3022
        %3136 = vadd.xlane.f32.xlu0 %v3135
        %v3137 = vpop.xlane.xlu0 %3136
        %v3138 = vadd.f32 %v3024, %v3026
        %3139 = vadd.xlane.f32.xlu0 %v3138
        %v3140 = vpop.xlane.xlu0 %3139
        %v3141 = vadd.f32 %v3028, %v3030
        %3142 = vadd.xlane.f32.xlu0 %v3141
        %v3143 = vpop.xlane.xlu0 %3142
        %v3144 = vadd.f32 %v3032, %v3034
        %3145 = vadd.xlane.f32.xlu0 %v3144
        %v3146 = vpop.xlane.xlu0 %3145
        %v3147 = vadd.f32 %v3036, %v3038
        %3148 = vadd.xlane.f32.xlu0 %v3147
        %v3149 = vpop.xlane.xlu0 %3148
        %v3150 = vadd.f32 %v3040, %v3042
        %3151 = vadd.xlane.f32.xlu0 %v3150
        %v3152 = vpop.xlane.xlu0 %3151
        %v3153 = vadd.f32 %v3044, %v3046
        %3154 = vadd.xlane.f32.xlu0 %v3153
        %v3155 = vpop.xlane.xlu0 %3154
        %v3156 = vadd.f32 %v3048, %v3050
        %3157 = vadd.xlane.f32.xlu0 %v3156
        %v3158 = vpop.xlane.xlu0 %3157
        %v3159 = vadd.f32 %v3052, %v3054
        %3160 = vadd.xlane.f32.xlu0 %v3159
        %v3161 = vpop.xlane.xlu0 %3160
        %v3162 = vadd.f32 %v3056, %v3058
        %3163 = vadd.xlane.f32.xlu0 %v3162
        %v3164 = vpop.xlane.xlu0 %3163
        %v3165 = vadd.f32 %v3060, %v3062
        %3166 = vadd.xlane.f32.xlu0 %v3165
        %v3167 = vpop.xlane.xlu0 %3166
        %v3168 = vadd.f32 %v3064, %v3066
        %3169 = vadd.xlane.f32.xlu0 %v3168
        %v3170 = vpop.xlane.xlu0 %3169
        %v3171 = vadd.f32 %v3068, %v3070
        %3172 = vadd.xlane.f32.xlu0 %v3171
        %v3173 = vpop.xlane.xlu0 %3172
        %v3174 = vadd.f32 %v3072, %v3074
        %3175 = vadd.xlane.f32.xlu0 %v3174
        %v3176 = vpop.xlane.xlu0 %3175
        %v3177 = vadd.f32 %v3076, %v3078
        %3178 = vadd.xlane.f32.xlu0 %v3177
        %v3179 = vpop.xlane.xlu0 %3178
        %v3180 = vadd.f32 %v3080, %v3082
        %3181 = vadd.xlane.f32.xlu0 %v3180
        %v3182 = vpop.xlane.xlu0 %3181
        %v3183 = vadd.f32 %v3084, %v3086
        %3184 = vadd.xlane.f32.xlu0 %v3183
        %v3185 = vpop.xlane.xlu0 %3184
        %v3186 = vadd.f32 %v3088, %v3090
        %3187 = vadd.xlane.f32.xlu0 %v3186
        %v3188 = vpop.xlane.xlu0 %3187
        %v3189 = vadd.f32 %v3092, %v3094
        %3190 = vadd.xlane.f32.xlu0 %v3189
        %v3191 = vpop.xlane.xlu0 %3190
        %v3192 = vadd.f32 %v3096, %v3098
        %3193 = vadd.xlane.f32.xlu0 %v3192
        %v3194 = vpop.xlane.xlu0 %3193
        %v3195 = vrcp.pop %v3101
        %v3196 = vmul.f32 %v3101, %v3195
        %v3197 = vsub.f32 1.0, %v3196
        %v3198 = vmul.f32 %v3195, %v3197
        %v3199 = vadd.f32 %v3195, %v3198
        %vm3200 = vweird.f32 %v3101
        %vm3201 = vweird.f32 %v3195
        %vm3202 = vmor %vm3200, %vm3201
        %v3203 = vsel %vm3202, %v3195, %v3199
        %v3204 = vand.u32 2147483647, %v3101
        %vm3205 = vcmp.eq.f32.partialorder %v3204, 8.507059e+37
        %v3206 = vand.u32 %v3101, 2147483648
        %v3207 = vor.u32 1.1754944e-38, %v3206
        %v3208 = vsel %vm3205, %v3207, %v3203
        %v3209 = vmul.f32 1.0, %v3208
        %v3210 = vrcp.pop %v3104
        %v3211 = vmul.f32 %v3104, %v3210
        %v3212 = vsub.f32 1.0, %v3211
        %v3213 = vmul.f32 %v3210, %v3212
        %v3214 = vadd.f32 %v3210, %v3213
        %vm3215 = vweird.f32 %v3104
        %vm3216 = vweird.f32 %v3210
        %vm3217 = vmor %vm3215, %vm3216
        %v3218 = vsel %vm3217, %v3210, %v3214
        %v3219 = vand.u32 2147483647, %v3104
        %vm3220 = vcmp.eq.f32.partialorder %v3219, 8.507059e+37
        %v3221 = vand.u32 %v3104, 2147483648
        %v3222 = vor.u32 1.1754944e-38, %v3221
        %v3223 = vsel %vm3220, %v3222, %v3218
        %v3224 = vmul.f32 1.0, %v3223
        %v3225 = vrcp.pop %v3107
        %v3226 = vmul.f32 %v3107, %v3225
        %v3227 = vsub.f32 1.0, %v3226
        %v3228 = vmul.f32 %v3225, %v3227
        %v3229 = vadd.f32 %v3225, %v3228
        %vm3230 = vweird.f32 %v3107
        %vm3231 = vweird.f32 %v3225
        %vm3232 = vmor %vm3230, %vm3231
        %v3233 = vsel %vm3232, %v3225, %v3229
        %v3234 = vand.u32 2147483647, %v3107
        %vm3235 = vcmp.eq.f32.partialorder %v3234, 8.507059e+37
        %v3236 = vand.u32 %v3107, 2147483648
        %v3237 = vor.u32 1.1754944e-38, %v3236
        %v3238 = vsel %vm3235, %v3237, %v3233
        %v3239 = vmul.f32 1.0, %v3238
        %v3240 = vrcp.pop %v3110
        %v3241 = vmul.f32 %v3110, %v3240
        %v3242 = vsub.f32 1.0, %v3241
        %v3243 = vmul.f32 %v3240, %v3242
        %v3244 = vadd.f32 %v3240, %v3243
        %vm3245 = vweird.f32 %v3110
        %vm3246 = vweird.f32 %v3240
        %vm3247 = vmor %vm3245, %vm3246
        %v3248 = vsel %vm3247, %v3240, %v3244
        %v3249 = vand.u32 2147483647, %v3110
        %vm3250 = vcmp.eq.f32.partialorder %v3249, 8.507059e+37
        %v3251 = vand.u32 %v3110, 2147483648
        %v3252 = vor.u32 1.1754944e-38, %v3251
        %v3253 = vsel %vm3250, %v3252, %v3248
        %v3254 = vmul.f32 1.0, %v3253
        %v3255 = vrcp.pop %v3113
        %v3256 = vmul.f32 %v3113, %v3255
        %v3257 = vsub.f32 1.0, %v3256
        %v3258 = vmul.f32 %v3255, %v3257
        %v3259 = vadd.f32 %v3255, %v3258
        %vm3260 = vweird.f32 %v3113
        %vm3261 = vweird.f32 %v3255
        %vm3262 = vmor %vm3260, %vm3261
        %v3263 = vsel %vm3262, %v3255, %v3259
        %v3264 = vand.u32 2147483647, %v3113
        %vm3265 = vcmp.eq.f32.partialorder %v3264, 8.507059e+37
        %v3266 = vand.u32 %v3113, 2147483648
        %v3267 = vor.u32 1.1754944e-38, %v3266
        %v3268 = vsel %vm3265, %v3267, %v3263
        %v3269 = vmul.f32 1.0, %v3268
        %v3270 = vrcp.pop %v3116
        %v3271 = vmul.f32 %v3116, %v3270
        %v3272 = vsub.f32 1.0, %v3271
        %v3273 = vmul.f32 %v3270, %v3272
        %v3274 = vadd.f32 %v3270, %v3273
        %vm3275 = vweird.f32 %v3116
        %vm3276 = vweird.f32 %v3270
        %vm3277 = vmor %vm3275, %vm3276
        %v3278 = vsel %vm3277, %v3270, %v3274
        %v3279 = vand.u32 2147483647, %v3116
        %vm3280 = vcmp.eq.f32.partialorder %v3279, 8.507059e+37
        %v3281 = vand.u32 %v3116, 2147483648
        %v3282 = vor.u32 1.1754944e-38, %v3281
        %v3283 = vsel %vm3280, %v3282, %v3278
        %v3284 = vmul.f32 1.0, %v3283
        %v3285 = vrcp.pop %v3119
        %v3286 = vmul.f32 %v3119, %v3285
        %v3287 = vsub.f32 1.0, %v3286
        %v3288 = vmul.f32 %v3285, %v3287
        %v3289 = vadd.f32 %v3285, %v3288
        %vm3290 = vweird.f32 %v3119
        %vm3291 = vweird.f32 %v3285
        %vm3292 = vmor %vm3290, %vm3291
        %v3293 = vsel %vm3292, %v3285, %v3289
        %v3294 = vand.u32 2147483647, %v3119
        %vm3295 = vcmp.eq.f32.partialorder %v3294, 8.507059e+37
        %v3296 = vand.u32 %v3119, 2147483648
        %v3297 = vor.u32 1.1754944e-38, %v3296
        %v3298 = vsel %vm3295, %v3297, %v3293
        %v3299 = vmul.f32 1.0, %v3298
        %v3300 = vrcp.pop %v3122
        %v3301 = vmul.f32 %v3122, %v3300
        %v3302 = vsub.f32 1.0, %v3301
        %v3303 = vmul.f32 %v3300, %v3302
        %v3304 = vadd.f32 %v3300, %v3303
        %vm3305 = vweird.f32 %v3122
        %vm3306 = vweird.f32 %v3300
        %vm3307 = vmor %vm3305, %vm3306
        %v3308 = vsel %vm3307, %v3300, %v3304
        %v3309 = vand.u32 2147483647, %v3122
        %vm3310 = vcmp.eq.f32.partialorder %v3309, 8.507059e+37
        %v3311 = vand.u32 %v3122, 2147483648
        %v3312 = vor.u32 1.1754944e-38, %v3311
        %v3313 = vsel %vm3310, %v3312, %v3308
        %v3314 = vmul.f32 1.0, %v3313
        %v3315 = vrcp.pop %v3125
        %v3316 = vmul.f32 %v3125, %v3315
        %v3317 = vsub.f32 1.0, %v3316
        %v3318 = vmul.f32 %v3315, %v3317
        %v3319 = vadd.f32 %v3315, %v3318
        %vm3320 = vweird.f32 %v3125
        %vm3321 = vweird.f32 %v3315
        %vm3322 = vmor %vm3320, %vm3321
        %v3323 = vsel %vm3322, %v3315, %v3319
        %v3324 = vand.u32 2147483647, %v3125
        %vm3325 = vcmp.eq.f32.partialorder %v3324, 8.507059e+37
        %v3326 = vand.u32 %v3125, 2147483648
        %v3327 = vor.u32 1.1754944e-38, %v3326
        %v3328 = vsel %vm3325, %v3327, %v3323
        %v3329 = vmul.f32 1.0, %v3328
        %v3330 = vrcp.pop %v3128
        %v3331 = vmul.f32 %v3128, %v3330
        %v3332 = vsub.f32 1.0, %v3331
        %v3333 = vmul.f32 %v3330, %v3332
        %v3334 = vadd.f32 %v3330, %v3333
        %vm3335 = vweird.f32 %v3128
        %vm3336 = vweird.f32 %v3330
        %vm3337 = vmor %vm3335, %vm3336
        %v3338 = vsel %vm3337, %v3330, %v3334
        %v3339 = vand.u32 2147483647, %v3128
        %vm3340 = vcmp.eq.f32.partialorder %v3339, 8.507059e+37
        %v3341 = vand.u32 %v3128, 2147483648
        %v3342 = vor.u32 1.1754944e-38, %v3341
        %v3343 = vsel %vm3340, %v3342, %v3338
        %v3344 = vmul.f32 1.0, %v3343
        %v3345 = vrcp.pop %v3131
        %v3346 = vmul.f32 %v3131, %v3345
        %v3347 = vsub.f32 1.0, %v3346
        %v3348 = vmul.f32 %v3345, %v3347
        %v3349 = vadd.f32 %v3345, %v3348
        %vm3350 = vweird.f32 %v3131
        %vm3351 = vweird.f32 %v3345
        %vm3352 = vmor %vm3350, %vm3351
        %v3353 = vsel %vm3352, %v3345, %v3349
        %v3354 = vand.u32 2147483647, %v3131
        %vm3355 = vcmp.eq.f32.partialorder %v3354, 8.507059e+37
        %v3356 = vand.u32 %v3131, 2147483648
        %v3357 = vor.u32 1.1754944e-38, %v3356
        %v3358 = vsel %vm3355, %v3357, %v3353
        %v3359 = vmul.f32 1.0, %v3358
        %v3360 = vrcp.pop %v3134
        %v3361 = vmul.f32 %v3134, %v3360
        %v3362 = vsub.f32 1.0, %v3361
        %v3363 = vmul.f32 %v3360, %v3362
        %v3364 = vadd.f32 %v3360, %v3363
        %vm3365 = vweird.f32 %v3134
        %vm3366 = vweird.f32 %v3360
        %vm3367 = vmor %vm3365, %vm3366
        %v3368 = vsel %vm3367, %v3360, %v3364
        %v3369 = vand.u32 2147483647, %v3134
        %vm3370 = vcmp.eq.f32.partialorder %v3369, 8.507059e+37
        %v3371 = vand.u32 %v3134, 2147483648
        %v3372 = vor.u32 1.1754944e-38, %v3371
        %v3373 = vsel %vm3370, %v3372, %v3368
        %v3374 = vmul.f32 1.0, %v3373
        %v3375 = vrcp.pop %v3137
        %v3376 = vmul.f32 %v3137, %v3375
        %v3377 = vsub.f32 1.0, %v3376
        %v3378 = vmul.f32 %v3375, %v3377
        %v3379 = vadd.f32 %v3375, %v3378
        %vm3380 = vweird.f32 %v3137
        %vm3381 = vweird.f32 %v3375
        %vm3382 = vmor %vm3380, %vm3381
        %v3383 = vsel %vm3382, %v3375, %v3379
        %v3384 = vand.u32 2147483647, %v3137
        %vm3385 = vcmp.eq.f32.partialorder %v3384, 8.507059e+37
        %v3386 = vand.u32 %v3137, 2147483648
        %v3387 = vor.u32 1.1754944e-38, %v3386
        %v3388 = vsel %vm3385, %v3387, %v3383
        %v3389 = vmul.f32 1.0, %v3388
        %v3390 = vrcp.pop %v3140
        %v3391 = vmul.f32 %v3140, %v3390
        %v3392 = vsub.f32 1.0, %v3391
        %v3393 = vmul.f32 %v3390, %v3392
        %v3394 = vadd.f32 %v3390, %v3393
        %vm3395 = vweird.f32 %v3140
        %vm3396 = vweird.f32 %v3390
        %vm3397 = vmor %vm3395, %vm3396
        %v3398 = vsel %vm3397, %v3390, %v3394
        %v3399 = vand.u32 2147483647, %v3140
        %vm3400 = vcmp.eq.f32.partialorder %v3399, 8.507059e+37
        %v3401 = vand.u32 %v3140, 2147483648
        %v3402 = vor.u32 1.1754944e-38, %v3401
        %v3403 = vsel %vm3400, %v3402, %v3398
        %v3404 = vmul.f32 1.0, %v3403
        %v3405 = vrcp.pop %v3143
        %v3406 = vmul.f32 %v3143, %v3405
        %v3407 = vsub.f32 1.0, %v3406
        %v3408 = vmul.f32 %v3405, %v3407
        %v3409 = vadd.f32 %v3405, %v3408
        %vm3410 = vweird.f32 %v3143
        %vm3411 = vweird.f32 %v3405
        %vm3412 = vmor %vm3410, %vm3411
        %v3413 = vsel %vm3412, %v3405, %v3409
        %v3414 = vand.u32 2147483647, %v3143
        %vm3415 = vcmp.eq.f32.partialorder %v3414, 8.507059e+37
        %v3416 = vand.u32 %v3143, 2147483648
        %v3417 = vor.u32 1.1754944e-38, %v3416
        %v3418 = vsel %vm3415, %v3417, %v3413
        %v3419 = vmul.f32 1.0, %v3418
        %v3420 = vrcp.pop %v3146
        %v3421 = vmul.f32 %v3146, %v3420
        %v3422 = vsub.f32 1.0, %v3421
        %v3423 = vmul.f32 %v3420, %v3422
        %v3424 = vadd.f32 %v3420, %v3423
        %vm3425 = vweird.f32 %v3146
        %vm3426 = vweird.f32 %v3420
        %vm3427 = vmor %vm3425, %vm3426
        %v3428 = vsel %vm3427, %v3420, %v3424
        %v3429 = vand.u32 2147483647, %v3146
        %vm3430 = vcmp.eq.f32.partialorder %v3429, 8.507059e+37
        %v3431 = vand.u32 %v3146, 2147483648
        %v3432 = vor.u32 1.1754944e-38, %v3431
        %v3433 = vsel %vm3430, %v3432, %v3428
        %v3434 = vmul.f32 1.0, %v3433
        %v3435 = vrcp.pop %v3149
        %v3436 = vmul.f32 %v3149, %v3435
        %v3437 = vsub.f32 1.0, %v3436
        %v3438 = vmul.f32 %v3435, %v3437
        %v3439 = vadd.f32 %v3435, %v3438
        %vm3440 = vweird.f32 %v3149
        %vm3441 = vweird.f32 %v3435
        %vm3442 = vmor %vm3440, %vm3441
        %v3443 = vsel %vm3442, %v3435, %v3439
        %v3444 = vand.u32 2147483647, %v3149
        %vm3445 = vcmp.eq.f32.partialorder %v3444, 8.507059e+37
        %v3446 = vand.u32 %v3149, 2147483648
        %v3447 = vor.u32 1.1754944e-38, %v3446
        %v3448 = vsel %vm3445, %v3447, %v3443
        %v3449 = vmul.f32 1.0, %v3448
        %v3450 = vrcp.pop %v3152
        %v3451 = vmul.f32 %v3152, %v3450
        %v3452 = vsub.f32 1.0, %v3451
        %v3453 = vmul.f32 %v3450, %v3452
        %v3454 = vadd.f32 %v3450, %v3453
        %vm3455 = vweird.f32 %v3152
        %vm3456 = vweird.f32 %v3450
        %vm3457 = vmor %vm3455, %vm3456
        %v3458 = vsel %vm3457, %v3450, %v3454
        %v3459 = vand.u32 2147483647, %v3152
        %vm3460 = vcmp.eq.f32.partialorder %v3459, 8.507059e+37
        %v3461 = vand.u32 %v3152, 2147483648
        %v3462 = vor.u32 1.1754944e-38, %v3461
        %v3463 = vsel %vm3460, %v3462, %v3458
        %v3464 = vmul.f32 1.0, %v3463
        %v3465 = vrcp.pop %v3155
        %v3466 = vmul.f32 %v3155, %v3465
        %v3467 = vsub.f32 1.0, %v3466
        %v3468 = vmul.f32 %v3465, %v3467
        %v3469 = vadd.f32 %v3465, %v3468
        %vm3470 = vweird.f32 %v3155
        %vm3471 = vweird.f32 %v3465
        %vm3472 = vmor %vm3470, %vm3471
        %v3473 = vsel %vm3472, %v3465, %v3469
        %v3474 = vand.u32 2147483647, %v3155
        %vm3475 = vcmp.eq.f32.partialorder %v3474, 8.507059e+37
        %v3476 = vand.u32 %v3155, 2147483648
        %v3477 = vor.u32 1.1754944e-38, %v3476
        %v3478 = vsel %vm3475, %v3477, %v3473
        %v3479 = vmul.f32 1.0, %v3478
        %v3480 = vrcp.pop %v3158
        %v3481 = vmul.f32 %v3158, %v3480
        %v3482 = vsub.f32 1.0, %v3481
        %v3483 = vmul.f32 %v3480, %v3482
        %v3484 = vadd.f32 %v3480, %v3483
        %vm3485 = vweird.f32 %v3158
        %vm3486 = vweird.f32 %v3480
        %vm3487 = vmor %vm3485, %vm3486
        %v3488 = vsel %vm3487, %v3480, %v3484
        %v3489 = vand.u32 2147483647, %v3158
        %vm3490 = vcmp.eq.f32.partialorder %v3489, 8.507059e+37
        %v3491 = vand.u32 %v3158, 2147483648
        %v3492 = vor.u32 1.1754944e-38, %v3491
        %v3493 = vsel %vm3490, %v3492, %v3488
        %v3494 = vmul.f32 1.0, %v3493
        %v3495 = vrcp.pop %v3161
        %v3496 = vmul.f32 %v3161, %v3495
        %v3497 = vsub.f32 1.0, %v3496
        %v3498 = vmul.f32 %v3495, %v3497
        %v3499 = vadd.f32 %v3495, %v3498
        %vm3500 = vweird.f32 %v3161
        %vm3501 = vweird.f32 %v3495
        %vm3502 = vmor %vm3500, %vm3501
        %v3503 = vsel %vm3502, %v3495, %v3499
        %v3504 = vand.u32 2147483647, %v3161
        %vm3505 = vcmp.eq.f32.partialorder %v3504, 8.507059e+37
        %v3506 = vand.u32 %v3161, 2147483648
        %v3507 = vor.u32 1.1754944e-38, %v3506
        %v3508 = vsel %vm3505, %v3507, %v3503
        %v3509 = vmul.f32 1.0, %v3508
        %v3510 = vrcp.pop %v3164
        %v3511 = vmul.f32 %v3164, %v3510
        %v3512 = vsub.f32 1.0, %v3511
        %v3513 = vmul.f32 %v3510, %v3512
        %v3514 = vadd.f32 %v3510, %v3513
        %vm3515 = vweird.f32 %v3164
        %vm3516 = vweird.f32 %v3510
        %vm3517 = vmor %vm3515, %vm3516
        %v3518 = vsel %vm3517, %v3510, %v3514
        %v3519 = vand.u32 2147483647, %v3164
        %vm3520 = vcmp.eq.f32.partialorder %v3519, 8.507059e+37
        %v3521 = vand.u32 %v3164, 2147483648
        %v3522 = vor.u32 1.1754944e-38, %v3521
        %v3523 = vsel %vm3520, %v3522, %v3518
        %v3524 = vmul.f32 1.0, %v3523
        %v3525 = vrcp.pop %v3167
        %v3526 = vmul.f32 %v3167, %v3525
        %v3527 = vsub.f32 1.0, %v3526
        %v3528 = vmul.f32 %v3525, %v3527
        %v3529 = vadd.f32 %v3525, %v3528
        %vm3530 = vweird.f32 %v3167
        %vm3531 = vweird.f32 %v3525
        %vm3532 = vmor %vm3530, %vm3531
        %v3533 = vsel %vm3532, %v3525, %v3529
        %v3534 = vand.u32 2147483647, %v3167
        %vm3535 = vcmp.eq.f32.partialorder %v3534, 8.507059e+37
        %v3536 = vand.u32 %v3167, 2147483648
        %v3537 = vor.u32 1.1754944e-38, %v3536
        %v3538 = vsel %vm3535, %v3537, %v3533
        %v3539 = vmul.f32 1.0, %v3538
        %v3540 = vrcp.pop %v3170
        %v3541 = vmul.f32 %v3170, %v3540
        %v3542 = vsub.f32 1.0, %v3541
        %v3543 = vmul.f32 %v3540, %v3542
        %v3544 = vadd.f32 %v3540, %v3543
        %vm3545 = vweird.f32 %v3170
        %vm3546 = vweird.f32 %v3540
        %vm3547 = vmor %vm3545, %vm3546
        %v3548 = vsel %vm3547, %v3540, %v3544
        %v3549 = vand.u32 2147483647, %v3170
        %vm3550 = vcmp.eq.f32.partialorder %v3549, 8.507059e+37
        %v3551 = vand.u32 %v3170, 2147483648
        %v3552 = vor.u32 1.1754944e-38, %v3551
        %v3553 = vsel %vm3550, %v3552, %v3548
        %v3554 = vmul.f32 1.0, %v3553
        %v3555 = vrcp.pop %v3173
        %v3556 = vmul.f32 %v3173, %v3555
        %v3557 = vsub.f32 1.0, %v3556
        %v3558 = vmul.f32 %v3555, %v3557
        %v3559 = vadd.f32 %v3555, %v3558
        %vm3560 = vweird.f32 %v3173
        %vm3561 = vweird.f32 %v3555
        %vm3562 = vmor %vm3560, %vm3561
        %v3563 = vsel %vm3562, %v3555, %v3559
        %v3564 = vand.u32 2147483647, %v3173
        %vm3565 = vcmp.eq.f32.partialorder %v3564, 8.507059e+37
        %v3566 = vand.u32 %v3173, 2147483648
        %v3567 = vor.u32 1.1754944e-38, %v3566
        %v3568 = vsel %vm3565, %v3567, %v3563
        %v3569 = vmul.f32 1.0, %v3568
        %v3570 = vrcp.pop %v3176
        %v3571 = vmul.f32 %v3176, %v3570
        %v3572 = vsub.f32 1.0, %v3571
        %v3573 = vmul.f32 %v3570, %v3572
        %v3574 = vadd.f32 %v3570, %v3573
        %vm3575 = vweird.f32 %v3176
        %vm3576 = vweird.f32 %v3570
        %vm3577 = vmor %vm3575, %vm3576
        %v3578 = vsel %vm3577, %v3570, %v3574
        %v3579 = vand.u32 2147483647, %v3176
        %vm3580 = vcmp.eq.f32.partialorder %v3579, 8.507059e+37
        %v3581 = vand.u32 %v3176, 2147483648
        %v3582 = vor.u32 1.1754944e-38, %v3581
        %v3583 = vsel %vm3580, %v3582, %v3578
        %v3584 = vmul.f32 1.0, %v3583
        %v3585 = vrcp.pop %v3179
        %v3586 = vmul.f32 %v3179, %v3585
        %v3587 = vsub.f32 1.0, %v3586
        %v3588 = vmul.f32 %v3585, %v3587
        %v3589 = vadd.f32 %v3585, %v3588
        %vm3590 = vweird.f32 %v3179
        %vm3591 = vweird.f32 %v3585
        %vm3592 = vmor %vm3590, %vm3591
        %v3593 = vsel %vm3592, %v3585, %v3589
        %v3594 = vand.u32 2147483647, %v3179
        %vm3595 = vcmp.eq.f32.partialorder %v3594, 8.507059e+37
        %v3596 = vand.u32 %v3179, 2147483648
        %v3597 = vor.u32 1.1754944e-38, %v3596
        %v3598 = vsel %vm3595, %v3597, %v3593
        %v3599 = vmul.f32 1.0, %v3598
        %v3600 = vrcp.pop %v3182
        %v3601 = vmul.f32 %v3182, %v3600
        %v3602 = vsub.f32 1.0, %v3601
        %v3603 = vmul.f32 %v3600, %v3602
        %v3604 = vadd.f32 %v3600, %v3603
        %vm3605 = vweird.f32 %v3182
        %vm3606 = vweird.f32 %v3600
        %vm3607 = vmor %vm3605, %vm3606
        %v3608 = vsel %vm3607, %v3600, %v3604
        %v3609 = vand.u32 2147483647, %v3182
        %vm3610 = vcmp.eq.f32.partialorder %v3609, 8.507059e+37
        %v3611 = vand.u32 %v3182, 2147483648
        %v3612 = vor.u32 1.1754944e-38, %v3611
        %v3613 = vsel %vm3610, %v3612, %v3608
        %v3614 = vmul.f32 1.0, %v3613
        %v3615 = vrcp.pop %v3185
        %v3616 = vmul.f32 %v3185, %v3615
        %v3617 = vsub.f32 1.0, %v3616
        %v3618 = vmul.f32 %v3615, %v3617
        %v3619 = vadd.f32 %v3615, %v3618
        %vm3620 = vweird.f32 %v3185
        %vm3621 = vweird.f32 %v3615
        %vm3622 = vmor %vm3620, %vm3621
        %v3623 = vsel %vm3622, %v3615, %v3619
        %v3624 = vand.u32 2147483647, %v3185
        %vm3625 = vcmp.eq.f32.partialorder %v3624, 8.507059e+37
        %v3626 = vand.u32 %v3185, 2147483648
        %v3627 = vor.u32 1.1754944e-38, %v3626
        %v3628 = vsel %vm3625, %v3627, %v3623
        %v3629 = vmul.f32 1.0, %v3628
        %v3630 = vrcp.pop %v3188
        %v3631 = vmul.f32 %v3188, %v3630
        %v3632 = vsub.f32 1.0, %v3631
        %v3633 = vmul.f32 %v3630, %v3632
        %v3634 = vadd.f32 %v3630, %v3633
        %vm3635 = vweird.f32 %v3188
        %vm3636 = vweird.f32 %v3630
        %vm3637 = vmor %vm3635, %vm3636
        %v3638 = vsel %vm3637, %v3630, %v3634
        %v3639 = vand.u32 2147483647, %v3188
        %vm3640 = vcmp.eq.f32.partialorder %v3639, 8.507059e+37
        %v3641 = vand.u32 %v3188, 2147483648
        %v3642 = vor.u32 1.1754944e-38, %v3641
        %v3643 = vsel %vm3640, %v3642, %v3638
        %v3644 = vmul.f32 1.0, %v3643
        %v3645 = vrcp.pop %v3191
        %v3646 = vmul.f32 %v3191, %v3645
        %v3647 = vsub.f32 1.0, %v3646
        %v3648 = vmul.f32 %v3645, %v3647
        %v3649 = vadd.f32 %v3645, %v3648
        %vm3650 = vweird.f32 %v3191
        %vm3651 = vweird.f32 %v3645
        %vm3652 = vmor %vm3650, %vm3651
        %v3653 = vsel %vm3652, %v3645, %v3649
        %v3654 = vand.u32 2147483647, %v3191
        %vm3655 = vcmp.eq.f32.partialorder %v3654, 8.507059e+37
        %v3656 = vand.u32 %v3191, 2147483648
        %v3657 = vor.u32 1.1754944e-38, %v3656
        %v3658 = vsel %vm3655, %v3657, %v3653
        %v3659 = vmul.f32 1.0, %v3658
        %v3660 = vrcp.pop %v3194
        %v3661 = vmul.f32 %v3194, %v3660
        %v3662 = vsub.f32 1.0, %v3661
        %v3663 = vmul.f32 %v3660, %v3662
        %v3664 = vadd.f32 %v3660, %v3663
        %vm3665 = vweird.f32 %v3194
        %vm3666 = vweird.f32 %v3660
        %vm3667 = vmor %vm3665, %vm3666
        %v3668 = vsel %vm3667, %v3660, %v3664
        %v3669 = vand.u32 2147483647, %v3194
        %vm3670 = vcmp.eq.f32.partialorder %v3669, 8.507059e+37
        %v3671 = vand.u32 %v3194, 2147483648
        %v3672 = vor.u32 1.1754944e-38, %v3671
        %v3673 = vsel %vm3670, %v3672, %v3668
        %v3674 = vmul.f32 1.0, %v3673
        %v3675 = vmul.f32 %v2972, %v3209
        %v3676 = vmul.f32 %v2974, %v3209
        %v3677 = vmul.f32 %v2976, %v3224
        %v3678 = vmul.f32 %v2978, %v3224
        %v3679 = vmul.f32 %v2980, %v3239
        %v3680 = vmul.f32 %v2982, %v3239
        %v3681 = vmul.f32 %v2984, %v3254
        %v3682 = vmul.f32 %v2986, %v3254
        %v3683 = vmul.f32 %v2988, %v3269
        %v3684 = vmul.f32 %v2990, %v3269
        %v3685 = vmul.f32 %v2992, %v3284
        %v3686 = vmul.f32 %v2994, %v3284
        %v3687 = vmul.f32 %v2996, %v3299
        %v3688 = vmul.f32 %v2998, %v3299
        %v3689 = vmul.f32 %v3000, %v3314
        %v3690 = vmul.f32 %v3002, %v3314
        %v3691 = vmul.f32 %v3004, %v3329
        %v3692 = vmul.f32 %v3006, %v3329
        %v3693 = vmul.f32 %v3008, %v3344
        %v3694 = vmul.f32 %v3010, %v3344
        %v3695 = vmul.f32 %v3012, %v3359
        %v3696 = vmul.f32 %v3014, %v3359
        %v3697 = vmul.f32 %v3016, %v3374
        %v3698 = vmul.f32 %v3018, %v3374
        %v3699 = vmul.f32 %v3020, %v3389
        %v3700 = vmul.f32 %v3022, %v3389
        %v3701 = vmul.f32 %v3024, %v3404
        %v3702 = vmul.f32 %v3026, %v3404
        %v3703 = vmul.f32 %v3028, %v3419
        %v3704 = vmul.f32 %v3030, %v3419
        %v3705 = vmul.f32 %v3032, %v3434
        %v3706 = vmul.f32 %v3034, %v3434
        %v3707 = vmul.f32 %v3036, %v3449
        %v3708 = vmul.f32 %v3038, %v3449
        %v3709 = vmul.f32 %v3040, %v3464
        %v3710 = vmul.f32 %v3042, %v3464
        %v3711 = vmul.f32 %v3044, %v3479
        %v3712 = vmul.f32 %v3046, %v3479
        %v3713 = vmul.f32 %v3048, %v3494
        %v3714 = vmul.f32 %v3050, %v3494
        %v3715 = vmul.f32 %v3052, %v3509
        %v3716 = vmul.f32 %v3054, %v3509
        %v3717 = vmul.f32 %v3056, %v3524
        %v3718 = vmul.f32 %v3058, %v3524
        %v3719 = vmul.f32 %v3060, %v3539
        %v3720 = vmul.f32 %v3062, %v3539
        %v3721 = vmul.f32 %v3064, %v3554
        %v3722 = vmul.f32 %v3066, %v3554
        %v3723 = vmul.f32 %v3068, %v3569
        %v3724 = vmul.f32 %v3070, %v3569
        %v3725 = vmul.f32 %v3072, %v3584
        %v3726 = vmul.f32 %v3074, %v3584
        %v3727 = vmul.f32 %v3076, %v3599
        %v3728 = vmul.f32 %v3078, %v3599
        %v3729 = vmul.f32 %v3080, %v3614
        %v3730 = vmul.f32 %v3082, %v3614
        %v3731 = vmul.f32 %v3084, %v3629
        %v3732 = vmul.f32 %v3086, %v3629
        %v3733 = vmul.f32 %v3088, %v3644
        %v3734 = vmul.f32 %v3090, %v3644
        %v3735 = vmul.f32 %v3092, %v3659
        %v3736 = vmul.f32 %v3094, %v3659
        %v3737 = vmul.f32 %v3096, %v3674
        %v3738 = vmul.f32 %v3098, %v3674
        %3771 = vrot.lane.b32.xlu0 %v625, 96
        %v3772 = vpop.permute.xlu0 %3771
        %3773 = vrot.lane.b32.xlu0 %v628, 96
        %v3774 = vpop.permute.xlu0 %3773
        %3775 = vrot.lane.b32.xlu0 %v631, 96
        %v3776 = vpop.permute.xlu0 %3775
        %3777 = vrot.lane.b32.xlu0 %v634, 96
        %v3778 = vpop.permute.xlu0 %3777
        %3779 = vrot.lane.b32.xlu0 %v637, 96
        %v3780 = vpop.permute.xlu0 %3779
        %3781 = vrot.lane.b32.xlu0 %v640, 96
        %v3782 = vpop.permute.xlu0 %3781
        %3783 = vrot.lane.b32.xlu0 %v643, 96
        %v3784 = vpop.permute.xlu0 %3783
        %3785 = vrot.lane.b32.xlu0 %v646, 96
        %v3786 = vpop.permute.xlu0 %3785
        %3787 = vrot.lane.b32.xlu0 %v649, 96
        %v3788 = vpop.permute.xlu0 %3787
        %3789 = vrot.lane.b32.xlu0 %v652, 96
        %v3790 = vpop.permute.xlu0 %3789
        %3791 = vrot.lane.b32.xlu0 %v655, 96
        %v3792 = vpop.permute.xlu0 %3791
        %3793 = vrot.lane.b32.xlu0 %v658, 96
        %v3794 = vpop.permute.xlu0 %3793
        %3795 = vrot.lane.b32.xlu0 %v661, 96
        %v3796 = vpop.permute.xlu0 %3795
        %3797 = vrot.lane.b32.xlu0 %v664, 96
        %v3798 = vpop.permute.xlu0 %3797
        %3799 = vrot.lane.b32.xlu0 %v667, 96
        %v3800 = vpop.permute.xlu0 %3799
        %3801 = vrot.lane.b32.xlu0 %v670, 96
        %v3802 = vpop.permute.xlu0 %3801
        %3803 = vrot.lane.b32.xlu0 %v673, 96
        %v3804 = vpop.permute.xlu0 %3803
        %3805 = vrot.lane.b32.xlu0 %v676, 96
        %v3806 = vpop.permute.xlu0 %3805
        %3807 = vrot.lane.b32.xlu0 %v679, 96
        %v3808 = vpop.permute.xlu0 %3807
        %3809 = vrot.lane.b32.xlu0 %v682, 96
        %v3810 = vpop.permute.xlu0 %3809
        %3811 = vrot.lane.b32.xlu0 %v685, 96
        %v3812 = vpop.permute.xlu0 %3811
        %3813 = vrot.lane.b32.xlu0 %v688, 96
        %v3814 = vpop.permute.xlu0 %3813
        %3815 = vrot.lane.b32.xlu0 %v691, 96
        %v3816 = vpop.permute.xlu0 %3815
        %3817 = vrot.lane.b32.xlu0 %v694, 96
        %v3818 = vpop.permute.xlu0 %3817
        %3819 = vrot.lane.b32.xlu0 %v697, 96
        %v3820 = vpop.permute.xlu0 %3819
        %3821 = vrot.lane.b32.xlu0 %v700, 96
        %v3822 = vpop.permute.xlu0 %3821
        %3823 = vrot.lane.b32.xlu0 %v703, 96
        %v3824 = vpop.permute.xlu0 %3823
        %3825 = vrot.lane.b32.xlu0 %v706, 96
        %v3826 = vpop.permute.xlu0 %3825
        %3827 = vrot.lane.b32.xlu0 %v709, 96
        %v3828 = vpop.permute.xlu0 %3827
        %3829 = vrot.lane.b32.xlu0 %v712, 96
        %v3830 = vpop.permute.xlu0 %3829
        %3831 = vrot.lane.b32.xlu0 %v715, 96
        %v3832 = vpop.permute.xlu0 %3831
        %3833 = vrot.lane.b32.xlu0 %v718, 96
        %v3834 = vpop.permute.xlu0 %3833
        %3867 = vmatpush.msra.mxu0 %v3802
        %3868 = vmatpush.msra.mxu0 %v3800
        %3869 = vmatpush.msra.mxu0 %v3798
        %3870 = vmatpush.msra.mxu0 %v3796
        %3871 = vmatpush.msra.mxu0 %v3794
        %3872 = vmatpush.msra.mxu0 %v3792
        %3873 = vmatpush.msra.mxu0 %v3790
        %3874 = vmatpush.msra.mxu0 %v3788
        %3875 = vmatpush.msra.mxu0 %v3786
        %3876 = vmatpush.msra.mxu0 %v3784
        %3877 = vmatpush.msra.mxu0 %v3782
        %3878 = vmatpush.msra.mxu0 %v3780
        %3879 = vmatpush.msra.mxu0 %v3778
        %3880 = vmatpush.msra.mxu0 %v3776
        %3881 = vmatpush.msra.mxu0 %v3774
        %3882 = vmatpush.msra.mxu0 %v3772
        %3883 = vmatmul.f32.gmra.mxu0 %v3675
        %v3884 = vpop.f32.mrf.mxu0
        %v3885 = vadd.f32 0.0, %v3884
        %3886 = vmatmul.f32.gmra.mxu0 %v3677
        %v3887 = vpop.f32.mrf.mxu0
        %v3888 = vadd.f32 0.0, %v3887
        %3889 = vmatmul.f32.gmra.mxu0 %v3679
        %v3890 = vpop.f32.mrf.mxu0
        %v3891 = vadd.f32 0.0, %v3890
        %3892 = vmatmul.f32.gmra.mxu0 %v3681
        %v3893 = vpop.f32.mrf.mxu0
        %v3894 = vadd.f32 0.0, %v3893
        %3895 = vmatmul.f32.gmra.mxu0 %v3683
        %v3896 = vpop.f32.mrf.mxu0
        %v3897 = vadd.f32 0.0, %v3896
        %3898 = vmatmul.f32.gmra.mxu0 %v3685
        %v3899 = vpop.f32.mrf.mxu0
        %v3900 = vadd.f32 0.0, %v3899
        %3901 = vmatmul.f32.gmra.mxu0 %v3687
        %v3902 = vpop.f32.mrf.mxu0
        %v3903 = vadd.f32 0.0, %v3902
        %3904 = vmatmul.f32.gmra.mxu0 %v3689
        %v3905 = vpop.f32.mrf.mxu0
        %v3906 = vadd.f32 0.0, %v3905
        %3907 = vmatmul.f32.gmra.mxu0 %v3691
        %v3908 = vpop.f32.mrf.mxu0
        %v3909 = vadd.f32 0.0, %v3908
        %3910 = vmatmul.f32.gmra.mxu0 %v3693
        %v3911 = vpop.f32.mrf.mxu0
        %v3912 = vadd.f32 0.0, %v3911
        %3913 = vmatmul.f32.gmra.mxu0 %v3695
        %v3914 = vpop.f32.mrf.mxu0
        %v3915 = vadd.f32 0.0, %v3914
        %3916 = vmatmul.f32.gmra.mxu0 %v3697
        %v3917 = vpop.f32.mrf.mxu0
        %v3918 = vadd.f32 0.0, %v3917
        %3919 = vmatmul.f32.gmra.mxu0 %v3699
        %v3920 = vpop.f32.mrf.mxu0
        %v3921 = vadd.f32 0.0, %v3920
        %3922 = vmatmul.f32.gmra.mxu0 %v3701
        %v3923 = vpop.f32.mrf.mxu0
        %v3924 = vadd.f32 0.0, %v3923
        %3925 = vmatmul.f32.gmra.mxu0 %v3703
        %v3926 = vpop.f32.mrf.mxu0
        %v3927 = vadd.f32 0.0, %v3926
        %3928 = vmatmul.f32.gmra.mxu0 %v3705
        %v3929 = vpop.f32.mrf.mxu0
        %v3930 = vadd.f32 0.0, %v3929
        %3931 = vmatmul.f32.gmra.mxu0 %v3707
        %v3932 = vpop.f32.mrf.mxu0
        %v3933 = vadd.f32 0.0, %v3932
        %3934 = vmatmul.f32.gmra.mxu0 %v3709
        %v3935 = vpop.f32.mrf.mxu0
        %v3936 = vadd.f32 0.0, %v3935
        %3937 = vmatmul.f32.gmra.mxu0 %v3711
        %v3938 = vpop.f32.mrf.mxu0
        %v3939 = vadd.f32 0.0, %v3938
        %3940 = vmatmul.f32.gmra.mxu0 %v3713
        %v3941 = vpop.f32.mrf.mxu0
        %v3942 = vadd.f32 0.0, %v3941
        %3943 = vmatmul.f32.gmra.mxu0 %v3715
        %v3944 = vpop.f32.mrf.mxu0
        %v3945 = vadd.f32 0.0, %v3944
        %3946 = vmatmul.f32.gmra.mxu0 %v3717
        %v3947 = vpop.f32.mrf.mxu0
        %v3948 = vadd.f32 0.0, %v3947
        %3949 = vmatmul.f32.gmra.mxu0 %v3719
        %v3950 = vpop.f32.mrf.mxu0
        %v3951 = vadd.f32 0.0, %v3950
        %3952 = vmatmul.f32.gmra.mxu0 %v3721
        %v3953 = vpop.f32.mrf.mxu0
        %v3954 = vadd.f32 0.0, %v3953
        %3955 = vmatmul.f32.gmra.mxu0 %v3723
        %v3956 = vpop.f32.mrf.mxu0
        %v3957 = vadd.f32 0.0, %v3956
        %3958 = vmatmul.f32.gmra.mxu0 %v3725
        %v3959 = vpop.f32.mrf.mxu0
        %v3960 = vadd.f32 0.0, %v3959
        %3961 = vmatmul.f32.gmra.mxu0 %v3727
        %v3962 = vpop.f32.mrf.mxu0
        %v3963 = vadd.f32 0.0, %v3962
        %3964 = vmatmul.f32.gmra.mxu0 %v3729
        %v3965 = vpop.f32.mrf.mxu0
        %v3966 = vadd.f32 0.0, %v3965
        %3967 = vmatmul.f32.gmra.mxu0 %v3731
        %v3968 = vpop.f32.mrf.mxu0
        %v3969 = vadd.f32 0.0, %v3968
        %3970 = vmatmul.f32.gmra.mxu0 %v3733
        %v3971 = vpop.f32.mrf.mxu0
        %v3972 = vadd.f32 0.0, %v3971
        %3973 = vmatmul.f32.gmra.mxu0 %v3735
        %v3974 = vpop.f32.mrf.mxu0
        %v3975 = vadd.f32 0.0, %v3974
        %3976 = vmatmul.f32.gmra.mxu0 %v3737
        %v3977 = vpop.f32.mrf.mxu0
        %v3978 = vadd.f32 0.0, %v3977
        %3979 = vdwg.mxu0
        %3980 = vmatpush.msra.mxu0 %v3834
        %3981 = vmatpush.msra.mxu0 %v3832
        %3982 = vmatpush.msra.mxu0 %v3830
        %3983 = vmatpush.msra.mxu0 %v3828
        %3984 = vmatpush.msra.mxu0 %v3826
        %3985 = vmatpush.msra.mxu0 %v3824
        %3986 = vmatpush.msra.mxu0 %v3822
        %3987 = vmatpush.msra.mxu0 %v3820
        %3988 = vmatpush.msra.mxu0 %v3818
        %3989 = vmatpush.msra.mxu0 %v3816
        %3990 = vmatpush.msra.mxu0 %v3814
        %3991 = vmatpush.msra.mxu0 %v3812
        %3992 = vmatpush.msra.mxu0 %v3810
        %3993 = vmatpush.msra.mxu0 %v3808
        %3994 = vmatpush.msra.mxu0 %v3806
        %3995 = vmatpush.msra.mxu0 %v3804
        %3996 = vmatmul.f32.gmra.mxu0 %v3676
        %v3997 = vpop.f32.mrf.mxu0
        %v3998 = vadd.f32 %v3885, %v3997
        %3999 = vmatmul.f32.gmra.mxu0 %v3678
        %v4000 = vpop.f32.mrf.mxu0
        %v4001 = vadd.f32 %v3888, %v4000
        %4002 = vmatmul.f32.gmra.mxu0 %v3680
        %v4003 = vpop.f32.mrf.mxu0
        %v4004 = vadd.f32 %v3891, %v4003
        %4005 = vmatmul.f32.gmra.mxu0 %v3682
        %v4006 = vpop.f32.mrf.mxu0
        %v4007 = vadd.f32 %v3894, %v4006
        %4008 = vmatmul.f32.gmra.mxu0 %v3684
        %v4009 = vpop.f32.mrf.mxu0
        %v4010 = vadd.f32 %v3897, %v4009
        %4011 = vmatmul.f32.gmra.mxu0 %v3686
        %v4012 = vpop.f32.mrf.mxu0
        %v4013 = vadd.f32 %v3900, %v4012
        %4014 = vmatmul.f32.gmra.mxu0 %v3688
        %v4015 = vpop.f32.mrf.mxu0
        %v4016 = vadd.f32 %v3903, %v4015
        %4017 = vmatmul.f32.gmra.mxu0 %v3690
        %v4018 = vpop.f32.mrf.mxu0
        %v4019 = vadd.f32 %v3906, %v4018
        %4020 = vmatmul.f32.gmra.mxu0 %v3692
        %v4021 = vpop.f32.mrf.mxu0
        %v4022 = vadd.f32 %v3909, %v4021
        %4023 = vmatmul.f32.gmra.mxu0 %v3694
        %v4024 = vpop.f32.mrf.mxu0
        %v4025 = vadd.f32 %v3912, %v4024
        %4026 = vmatmul.f32.gmra.mxu0 %v3696
        %v4027 = vpop.f32.mrf.mxu0
        %v4028 = vadd.f32 %v3915, %v4027
        %4029 = vmatmul.f32.gmra.mxu0 %v3698
        %v4030 = vpop.f32.mrf.mxu0
        %v4031 = vadd.f32 %v3918, %v4030
        %4032 = vmatmul.f32.gmra.mxu0 %v3700
        %v4033 = vpop.f32.mrf.mxu0
        %v4034 = vadd.f32 %v3921, %v4033
        %4035 = vmatmul.f32.gmra.mxu0 %v3702
        %v4036 = vpop.f32.mrf.mxu0
        %v4037 = vadd.f32 %v3924, %v4036
        %4038 = vmatmul.f32.gmra.mxu0 %v3704
        %v4039 = vpop.f32.mrf.mxu0
        %v4040 = vadd.f32 %v3927, %v4039
        %4041 = vmatmul.f32.gmra.mxu0 %v3706
        %v4042 = vpop.f32.mrf.mxu0
        %v4043 = vadd.f32 %v3930, %v4042
        %4044 = vmatmul.f32.gmra.mxu0 %v3708
        %v4045 = vpop.f32.mrf.mxu0
        %v4046 = vadd.f32 %v3933, %v4045
        %4047 = vmatmul.f32.gmra.mxu0 %v3710
        %v4048 = vpop.f32.mrf.mxu0
        %v4049 = vadd.f32 %v3936, %v4048
        %4050 = vmatmul.f32.gmra.mxu0 %v3712
        %v4051 = vpop.f32.mrf.mxu0
        %v4052 = vadd.f32 %v3939, %v4051
        %4053 = vmatmul.f32.gmra.mxu0 %v3714
        %v4054 = vpop.f32.mrf.mxu0
        %v4055 = vadd.f32 %v3942, %v4054
        %4056 = vmatmul.f32.gmra.mxu0 %v3716
        %v4057 = vpop.f32.mrf.mxu0
        %v4058 = vadd.f32 %v3945, %v4057
        %4059 = vmatmul.f32.gmra.mxu0 %v3718
        %v4060 = vpop.f32.mrf.mxu0
        %v4061 = vadd.f32 %v3948, %v4060
        %4062 = vmatmul.f32.gmra.mxu0 %v3720
        %v4063 = vpop.f32.mrf.mxu0
        %v4064 = vadd.f32 %v3951, %v4063
        %4065 = vmatmul.f32.gmra.mxu0 %v3722
        %v4066 = vpop.f32.mrf.mxu0
        %v4067 = vadd.f32 %v3954, %v4066
        %4068 = vmatmul.f32.gmra.mxu0 %v3724
        %v4069 = vpop.f32.mrf.mxu0
        %v4070 = vadd.f32 %v3957, %v4069
        %4071 = vmatmul.f32.gmra.mxu0 %v3726
        %v4072 = vpop.f32.mrf.mxu0
        %v4073 = vadd.f32 %v3960, %v4072
        %4074 = vmatmul.f32.gmra.mxu0 %v3728
        %v4075 = vpop.f32.mrf.mxu0
        %v4076 = vadd.f32 %v3963, %v4075
        %4077 = vmatmul.f32.gmra.mxu0 %v3730
        %v4078 = vpop.f32.mrf.mxu0
        %v4079 = vadd.f32 %v3966, %v4078
        %4080 = vmatmul.f32.gmra.mxu0 %v3732
        %v4081 = vpop.f32.mrf.mxu0
        %v4082 = vadd.f32 %v3969, %v4081
        %4083 = vmatmul.f32.gmra.mxu0 %v3734
        %v4084 = vpop.f32.mrf.mxu0
        %v4085 = vadd.f32 %v3972, %v4084
        %4086 = vmatmul.f32.gmra.mxu0 %v3736
        %v4087 = vpop.f32.mrf.mxu0
        %v4088 = vadd.f32 %v3975, %v4087
        %4089 = vmatmul.f32.gmra.mxu0 %v3738
        %v4090 = vpop.f32.mrf.mxu0
        %v4091 = vadd.f32 %v3978, %v4090
        %4092 = vdwg.mxu0
        %v4093 = vld [vmem:[#allocation8 + $0x20] sm:$0xff]
        %v4094 = vld [vmem:[#allocation8 + $0x28] sm:$0xff]
        %v4095 = vld [vmem:[#allocation8 + $0x30] sm:$0xff]
        %v4096 = vld [vmem:[#allocation8 + $0x38] sm:$0xff]
        %v4098 = vsel %vm752, %v3998, 0
        %v4101 = vsel %vm752, %v4001, 0
        %v4104 = vsel %vm752, %v4004, 0
        %v4107 = vsel %vm752, %v4007, 0
        %v4110 = vsel %vm752, %v4010, 0
        %v4113 = vsel %vm752, %v4013, 0
        %v4116 = vsel %vm752, %v4016, 0
        %v4119 = vsel %vm752, %v4019, 0
        %v4122 = vsel %vm752, %v4022, 0
        %v4125 = vsel %vm752, %v4025, 0
        %v4128 = vsel %vm752, %v4028, 0
        %v4131 = vsel %vm752, %v4031, 0
        %v4134 = vsel %vm752, %v4034, 0
        %v4137 = vsel %vm752, %v4037, 0
        %v4140 = vsel %vm752, %v4040, 0
        %v4143 = vsel %vm752, %v4043, 0
        %v4146 = vsel %vm752, %v4046, 0
        %v4149 = vsel %vm752, %v4049, 0
        %v4152 = vsel %vm752, %v4052, 0
        %v4155 = vsel %vm752, %v4055, 0
        %v4158 = vsel %vm752, %v4058, 0
        %v4161 = vsel %vm752, %v4061, 0
        %v4164 = vsel %vm752, %v4064, 0
        %v4167 = vsel %vm752, %v4067, 0
        %v4170 = vsel %vm752, %v4070, 0
        %v4173 = vsel %vm752, %v4073, 0
        %v4176 = vsel %vm752, %v4076, 0
        %v4179 = vsel %vm752, %v4079, 0
        %v4182 = vsel %vm752, %v4082, 0
        %v4185 = vsel %vm752, %v4085, 0
        %v4188 = vsel %vm752, %v4088, 0
        %v4191 = vsel %vm752, %v4091, 0
        %4193 = vmatpush.msra.mxu0 0.0
        %4194 = vmatpush.msra.mxu0 0.0
        %4195 = vmatpush.msra.mxu0 0.0
        %4196 = vmatpush.msra.mxu0 0.0
        %4197 = vmatpush.msra.mxu0 0.0
        %4198 = vmatpush.msra.mxu0 0.0
        %4199 = vmatpush.msra.mxu0 0.0
        %4200 = vmatpush.msra.mxu0 0.0
        %4201 = vmatpush.msra.mxu0 0.0
        %4202 = vmatpush.msra.mxu0 0.0
        %4203 = vmatpush.msra.mxu0 0.0
        %4204 = vmatpush.msra.mxu0 0.0
        %4205 = vmatpush.msra.mxu0 %v4096
        %4206 = vmatpush.msra.mxu0 %v4095
        %4207 = vmatpush.msra.mxu0 %v4094
        %4208 = vmatpush.msra.mxu0 %v4093
        %4209 = vmatmul.f32.gmra.mxu0 %v4098
        %v4210 = vpop.f32.mrf.mxu0
        %v4211 = vadd.f32 0.0, %v4210
        %4212 = vmatmul.f32.gmra.mxu0 %v4101
        %v4213 = vpop.f32.mrf.mxu0
        %v4214 = vadd.f32 0.0, %v4213
        %4215 = vmatmul.f32.gmra.mxu0 %v4104
        %v4216 = vpop.f32.mrf.mxu0
        %v4217 = vadd.f32 0.0, %v4216
        %4218 = vmatmul.f32.gmra.mxu0 %v4107
        %v4219 = vpop.f32.mrf.mxu0
        %v4220 = vadd.f32 0.0, %v4219
        %4221 = vmatmul.f32.gmra.mxu0 %v4110
        %v4222 = vpop.f32.mrf.mxu0
        %v4223 = vadd.f32 0.0, %v4222
        %4224 = vmatmul.f32.gmra.mxu0 %v4113
        %v4225 = vpop.f32.mrf.mxu0
        %v4226 = vadd.f32 0.0, %v4225
        %4227 = vmatmul.f32.gmra.mxu0 %v4116
        %v4228 = vpop.f32.mrf.mxu0
        %v4229 = vadd.f32 0.0, %v4228
        %4230 = vmatmul.f32.gmra.mxu0 %v4119
        %v4231 = vpop.f32.mrf.mxu0
        %v4232 = vadd.f32 0.0, %v4231
        %4233 = vmatmul.f32.gmra.mxu0 %v4122
        %v4234 = vpop.f32.mrf.mxu0
        %v4235 = vadd.f32 0.0, %v4234
        %4236 = vmatmul.f32.gmra.mxu0 %v4125
        %v4237 = vpop.f32.mrf.mxu0
        %v4238 = vadd.f32 0.0, %v4237
        %4239 = vmatmul.f32.gmra.mxu0 %v4128
        %v4240 = vpop.f32.mrf.mxu0
        %v4241 = vadd.f32 0.0, %v4240
        %4242 = vmatmul.f32.gmra.mxu0 %v4131
        %v4243 = vpop.f32.mrf.mxu0
        %v4244 = vadd.f32 0.0, %v4243
        %4245 = vmatmul.f32.gmra.mxu0 %v4134
        %v4246 = vpop.f32.mrf.mxu0
        %v4247 = vadd.f32 0.0, %v4246
        %4248 = vmatmul.f32.gmra.mxu0 %v4137
        %v4249 = vpop.f32.mrf.mxu0
        %v4250 = vadd.f32 0.0, %v4249
        %4251 = vmatmul.f32.gmra.mxu0 %v4140
        %v4252 = vpop.f32.mrf.mxu0
        %v4253 = vadd.f32 0.0, %v4252
        %4254 = vmatmul.f32.gmra.mxu0 %v4143
        %v4255 = vpop.f32.mrf.mxu0
        %v4256 = vadd.f32 0.0, %v4255
        %4257 = vmatmul.f32.gmra.mxu0 %v4146
        %v4258 = vpop.f32.mrf.mxu0
        %v4259 = vadd.f32 0.0, %v4258
        %4260 = vmatmul.f32.gmra.mxu0 %v4149
        %v4261 = vpop.f32.mrf.mxu0
        %v4262 = vadd.f32 0.0, %v4261
        %4263 = vmatmul.f32.gmra.mxu0 %v4152
        %v4264 = vpop.f32.mrf.mxu0
        %v4265 = vadd.f32 0.0, %v4264
        %4266 = vmatmul.f32.gmra.mxu0 %v4155
        %v4267 = vpop.f32.mrf.mxu0
        %v4268 = vadd.f32 0.0, %v4267
        %4269 = vmatmul.f32.gmra.mxu0 %v4158
        %v4270 = vpop.f32.mrf.mxu0
        %v4271 = vadd.f32 0.0, %v4270
        %4272 = vmatmul.f32.gmra.mxu0 %v4161
        %v4273 = vpop.f32.mrf.mxu0
        %v4274 = vadd.f32 0.0, %v4273
        %4275 = vmatmul.f32.gmra.mxu0 %v4164
        %v4276 = vpop.f32.mrf.mxu0
        %v4277 = vadd.f32 0.0, %v4276
        %4278 = vmatmul.f32.gmra.mxu0 %v4167
        %v4279 = vpop.f32.mrf.mxu0
        %v4280 = vadd.f32 0.0, %v4279
        %4281 = vmatmul.f32.gmra.mxu0 %v4170
        %v4282 = vpop.f32.mrf.mxu0
        %v4283 = vadd.f32 0.0, %v4282
        %4284 = vmatmul.f32.gmra.mxu0 %v4173
        %v4285 = vpop.f32.mrf.mxu0
        %v4286 = vadd.f32 0.0, %v4285
        %4287 = vmatmul.f32.gmra.mxu0 %v4176
        %v4288 = vpop.f32.mrf.mxu0
        %v4289 = vadd.f32 0.0, %v4288
        %4290 = vmatmul.f32.gmra.mxu0 %v4179
        %v4291 = vpop.f32.mrf.mxu0
        %v4292 = vadd.f32 0.0, %v4291
        %4293 = vmatmul.f32.gmra.mxu0 %v4182
        %v4294 = vpop.f32.mrf.mxu0
        %v4295 = vadd.f32 0.0, %v4294
        %4296 = vmatmul.f32.gmra.mxu0 %v4185
        %v4297 = vpop.f32.mrf.mxu0
        %v4298 = vadd.f32 0.0, %v4297
        %4299 = vmatmul.f32.gmra.mxu0 %v4188
        %v4300 = vpop.f32.mrf.mxu0
        %v4301 = vadd.f32 0.0, %v4300
        %4302 = vmatmul.f32.gmra.mxu0 %v4191
        %v4303 = vpop.f32.mrf.mxu0
        %v4304 = vadd.f32 0.0, %v4303
        %4305 = vdwg.mxu0
        %v4307 = vsel %vm752, %v2230, 0
        %v4310 = vsel %vm752, %v2233, 0
        %v4313 = vsel %vm752, %v2236, 0
        %v4316 = vsel %vm752, %v2239, 0
        %v4319 = vsel %vm752, %v2242, 0
        %v4322 = vsel %vm752, %v2245, 0
        %v4325 = vsel %vm752, %v2248, 0
        %v4328 = vsel %vm752, %v2251, 0
        %v4331 = vsel %vm752, %v2254, 0
        %v4334 = vsel %vm752, %v2257, 0
        %v4337 = vsel %vm752, %v2260, 0
        %v4340 = vsel %vm752, %v2263, 0
        %v4343 = vsel %vm752, %v2266, 0
        %v4346 = vsel %vm752, %v2269, 0
        %v4349 = vsel %vm752, %v2272, 0
        %v4352 = vsel %vm752, %v2275, 0
        %v4355 = vsel %vm752, %v2278, 0
        %v4358 = vsel %vm752, %v2281, 0
        %v4361 = vsel %vm752, %v2284, 0
        %v4364 = vsel %vm752, %v2287, 0
        %v4367 = vsel %vm752, %v2290, 0
        %v4370 = vsel %vm752, %v2293, 0
        %v4373 = vsel %vm752, %v2296, 0
        %v4376 = vsel %vm752, %v2299, 0
        %v4379 = vsel %vm752, %v2302, 0
        %v4382 = vsel %vm752, %v2305, 0
        %v4385 = vsel %vm752, %v2308, 0
        %v4388 = vsel %vm752, %v2311, 0
        %v4391 = vsel %vm752, %v2314, 0
        %v4394 = vsel %vm752, %v2317, 0
        %v4397 = vsel %vm752, %v2320, 0
        %v4400 = vsel %vm752, %v2323, 0
        %4402 = vmatpush.msra.mxu0 0.0
        %4403 = vmatpush.msra.mxu0 0.0
        %4404 = vmatpush.msra.mxu0 0.0
        %4405 = vmatpush.msra.mxu0 0.0
        %4406 = vmatpush.msra.mxu0 0.0
        %4407 = vmatpush.msra.mxu0 0.0
        %4408 = vmatpush.msra.mxu0 0.0
        %4409 = vmatpush.msra.mxu0 0.0
        %4410 = vmatpush.msra.mxu0 0.0
        %4411 = vmatpush.msra.mxu0 0.0
        %4412 = vmatpush.msra.mxu0 0.0
        %4413 = vmatpush.msra.mxu0 0.0
        %4414 = vmatpush.msra.mxu0 %v2328
        %4415 = vmatpush.msra.mxu0 %v2327
        %4416 = vmatpush.msra.mxu0 %v2326
        %4417 = vmatpush.msra.mxu0 %v2325
        %4418 = vmatmul.f32.gmra.mxu0 %v4307
        %v4419 = vpop.f32.mrf.mxu0
        %v4420 = vadd.f32 %v4211, %v4419
        %4421 = vmatmul.f32.gmra.mxu0 %v4310
        %v4422 = vpop.f32.mrf.mxu0
        %v4423 = vadd.f32 %v4214, %v4422
        %4424 = vmatmul.f32.gmra.mxu0 %v4313
        %v4425 = vpop.f32.mrf.mxu0
        %v4426 = vadd.f32 %v4217, %v4425
        %4427 = vmatmul.f32.gmra.mxu0 %v4316
        %v4428 = vpop.f32.mrf.mxu0
        %v4429 = vadd.f32 %v4220, %v4428
        %4430 = vmatmul.f32.gmra.mxu0 %v4319
        %v4431 = vpop.f32.mrf.mxu0
        %v4432 = vadd.f32 %v4223, %v4431
        %4433 = vmatmul.f32.gmra.mxu0 %v4322
        %v4434 = vpop.f32.mrf.mxu0
        %v4435 = vadd.f32 %v4226, %v4434
        %4436 = vmatmul.f32.gmra.mxu0 %v4325
        %v4437 = vpop.f32.mrf.mxu0
        %v4438 = vadd.f32 %v4229, %v4437
        %4439 = vmatmul.f32.gmra.mxu0 %v4328
        %v4440 = vpop.f32.mrf.mxu0
        %v4441 = vadd.f32 %v4232, %v4440
        %4442 = vmatmul.f32.gmra.mxu0 %v4331
        %v4443 = vpop.f32.mrf.mxu0
        %v4444 = vadd.f32 %v4235, %v4443
        %4445 = vmatmul.f32.gmra.mxu0 %v4334
        %v4446 = vpop.f32.mrf.mxu0
        %v4447 = vadd.f32 %v4238, %v4446
        %4448 = vmatmul.f32.gmra.mxu0 %v4337
        %v4449 = vpop.f32.mrf.mxu0
        %v4450 = vadd.f32 %v4241, %v4449
        %4451 = vmatmul.f32.gmra.mxu0 %v4340
        %v4452 = vpop.f32.mrf.mxu0
        %v4453 = vadd.f32 %v4244, %v4452
        %4454 = vmatmul.f32.gmra.mxu0 %v4343
        %v4455 = vpop.f32.mrf.mxu0
        %v4456 = vadd.f32 %v4247, %v4455
        %4457 = vmatmul.f32.gmra.mxu0 %v4346
        %v4458 = vpop.f32.mrf.mxu0
        %v4459 = vadd.f32 %v4250, %v4458
        %4460 = vmatmul.f32.gmra.mxu0 %v4349
        %v4461 = vpop.f32.mrf.mxu0
        %v4462 = vadd.f32 %v4253, %v4461
        %4463 = vmatmul.f32.gmra.mxu0 %v4352
        %v4464 = vpop.f32.mrf.mxu0
        %v4465 = vadd.f32 %v4256, %v4464
        %4466 = vmatmul.f32.gmra.mxu0 %v4355
        %v4467 = vpop.f32.mrf.mxu0
        %v4468 = vadd.f32 %v4259, %v4467
        %4469 = vmatmul.f32.gmra.mxu0 %v4358
        %v4470 = vpop.f32.mrf.mxu0
        %v4471 = vadd.f32 %v4262, %v4470
        %4472 = vmatmul.f32.gmra.mxu0 %v4361
        %v4473 = vpop.f32.mrf.mxu0
        %v4474 = vadd.f32 %v4265, %v4473
        %4475 = vmatmul.f32.gmra.mxu0 %v4364
        %v4476 = vpop.f32.mrf.mxu0
        %v4477 = vadd.f32 %v4268, %v4476
        %4478 = vmatmul.f32.gmra.mxu0 %v4367
        %v4479 = vpop.f32.mrf.mxu0
        %v4480 = vadd.f32 %v4271, %v4479
        %4481 = vmatmul.f32.gmra.mxu0 %v4370
        %v4482 = vpop.f32.mrf.mxu0
        %v4483 = vadd.f32 %v4274, %v4482
        %4484 = vmatmul.f32.gmra.mxu0 %v4373
        %v4485 = vpop.f32.mrf.mxu0
        %v4486 = vadd.f32 %v4277, %v4485
        %4487 = vmatmul.f32.gmra.mxu0 %v4376
        %v4488 = vpop.f32.mrf.mxu0
        %v4489 = vadd.f32 %v4280, %v4488
        %4490 = vmatmul.f32.gmra.mxu0 %v4379
        %v4491 = vpop.f32.mrf.mxu0
        %v4492 = vadd.f32 %v4283, %v4491
        %4493 = vmatmul.f32.gmra.mxu0 %v4382
        %v4494 = vpop.f32.mrf.mxu0
        %v4495 = vadd.f32 %v4286, %v4494
        %4496 = vmatmul.f32.gmra.mxu0 %v4385
        %v4497 = vpop.f32.mrf.mxu0
        %v4498 = vadd.f32 %v4289, %v4497
        %4499 = vmatmul.f32.gmra.mxu0 %v4388
        %v4500 = vpop.f32.mrf.mxu0
        %v4501 = vadd.f32 %v4292, %v4500
        %4502 = vmatmul.f32.gmra.mxu0 %v4391
        %v4503 = vpop.f32.mrf.mxu0
        %v4504 = vadd.f32 %v4295, %v4503
        %4505 = vmatmul.f32.gmra.mxu0 %v4394
        %v4506 = vpop.f32.mrf.mxu0
        %v4507 = vadd.f32 %v4298, %v4506
        %4508 = vmatmul.f32.gmra.mxu0 %v4397
        %v4509 = vpop.f32.mrf.mxu0
        %v4510 = vadd.f32 %v4301, %v4509
        %4511 = vmatmul.f32.gmra.mxu0 %v4400
        %v4512 = vpop.f32.mrf.mxu0
        %v4513 = vadd.f32 %v4304, %v4512
        %4514 = vdwg.mxu0
        %4515 = vrot.lane.b32.xlu0 %v720, 64
        %v4516 = vpop.permute.xlu0 %4515
        %4517 = vrot.lane.b32.xlu0 %v721, 64
        %v4518 = vpop.permute.xlu0 %4517
        %4519 = vrot.lane.b32.xlu0 %v722, 64
        %v4520 = vpop.permute.xlu0 %4519
        %4521 = vrot.lane.b32.xlu0 %v723, 64
        %v4522 = vpop.permute.xlu0 %4521
        %4523 = vrot.lane.b32.xlu0 %v724, 64
        %v4524 = vpop.permute.xlu0 %4523
        %4525 = vrot.lane.b32.xlu0 %v725, 64
        %v4526 = vpop.permute.xlu0 %4525
        %4527 = vrot.lane.b32.xlu0 %v726, 64
        %v4528 = vpop.permute.xlu0 %4527
        %4529 = vrot.lane.b32.xlu0 %v727, 64
        %v4530 = vpop.permute.xlu0 %4529
        %4531 = vrot.lane.b32.xlu0 %v728, 64
        %v4532 = vpop.permute.xlu0 %4531
        %4533 = vrot.lane.b32.xlu0 %v729, 64
        %v4534 = vpop.permute.xlu0 %4533
        %4535 = vrot.lane.b32.xlu0 %v730, 64
        %v4536 = vpop.permute.xlu0 %4535
        %4537 = vrot.lane.b32.xlu0 %v731, 64
        %v4538 = vpop.permute.xlu0 %4537
        %4539 = vrot.lane.b32.xlu0 %v732, 64
        %v4540 = vpop.permute.xlu0 %4539
        %4541 = vrot.lane.b32.xlu0 %v733, 64
        %v4542 = vpop.permute.xlu0 %4541
        %4543 = vrot.lane.b32.xlu0 %v734, 64
        %v4544 = vpop.permute.xlu0 %4543
        %4545 = vrot.lane.b32.xlu0 %v735, 64
        %v4546 = vpop.permute.xlu0 %4545
        %4547 = vrot.lane.b32.xlu0 %v736, 64
        %v4548 = vpop.permute.xlu0 %4547
        %4549 = vrot.lane.b32.xlu0 %v737, 64
        %v4550 = vpop.permute.xlu0 %4549
        %4551 = vrot.lane.b32.xlu0 %v738, 64
        %v4552 = vpop.permute.xlu0 %4551
        %4553 = vrot.lane.b32.xlu0 %v739, 64
        %v4554 = vpop.permute.xlu0 %4553
        %4555 = vrot.lane.b32.xlu0 %v740, 64
        %v4556 = vpop.permute.xlu0 %4555
        %4557 = vrot.lane.b32.xlu0 %v741, 64
        %v4558 = vpop.permute.xlu0 %4557
        %4559 = vrot.lane.b32.xlu0 %v742, 64
        %v4560 = vpop.permute.xlu0 %4559
        %4561 = vrot.lane.b32.xlu0 %v743, 64
        %v4562 = vpop.permute.xlu0 %4561
        %4563 = vrot.lane.b32.xlu0 %v744, 64
        %v4564 = vpop.permute.xlu0 %4563
        %4565 = vrot.lane.b32.xlu0 %v745, 64
        %v4566 = vpop.permute.xlu0 %4565
        %4567 = vrot.lane.b32.xlu0 %v746, 64
        %v4568 = vpop.permute.xlu0 %4567
        %4569 = vrot.lane.b32.xlu0 %v747, 64
        %v4570 = vpop.permute.xlu0 %4569
        %4571 = vrot.lane.b32.xlu0 %v748, 64
        %v4572 = vpop.permute.xlu0 %4571
        %4573 = vrot.lane.b32.xlu0 %v749, 64
        %v4574 = vpop.permute.xlu0 %4573
        %4575 = vrot.lane.b32.xlu0 %v750, 64
        %v4576 = vpop.permute.xlu0 %4575
        %4577 = vrot.lane.b32.xlu0 %v751, 64
        %v4578 = vpop.permute.xlu0 %4577
        %4579 = vrot.lane.b32.xlu0 %v512, 64
        %v4580 = vpop.permute.xlu0 %4579
        %4581 = vrot.lane.b32.xlu0 %v515, 64
        %v4582 = vpop.permute.xlu0 %4581
        %4583 = vrot.lane.b32.xlu0 %v518, 64
        %v4584 = vpop.permute.xlu0 %4583
        %4585 = vrot.lane.b32.xlu0 %v521, 64
        %v4586 = vpop.permute.xlu0 %4585
        %4587 = vrot.lane.b32.xlu0 %v524, 64
        %v4588 = vpop.permute.xlu0 %4587
        %4589 = vrot.lane.b32.xlu0 %v527, 64
        %v4590 = vpop.permute.xlu0 %4589
        %4591 = vrot.lane.b32.xlu0 %v530, 64
        %v4592 = vpop.permute.xlu0 %4591
        %4593 = vrot.lane.b32.xlu0 %v533, 64
        %v4594 = vpop.permute.xlu0 %4593
        %4595 = vrot.lane.b32.xlu0 %v536, 64
        %v4596 = vpop.permute.xlu0 %4595
        %4597 = vrot.lane.b32.xlu0 %v539, 64
        %v4598 = vpop.permute.xlu0 %4597
        %4599 = vrot.lane.b32.xlu0 %v542, 64
        %v4600 = vpop.permute.xlu0 %4599
        %4601 = vrot.lane.b32.xlu0 %v545, 64
        %v4602 = vpop.permute.xlu0 %4601
        %4603 = vrot.lane.b32.xlu0 %v548, 64
        %v4604 = vpop.permute.xlu0 %4603
        %4605 = vrot.lane.b32.xlu0 %v551, 64
        %v4606 = vpop.permute.xlu0 %4605
        %4607 = vrot.lane.b32.xlu0 %v554, 64
        %v4608 = vpop.permute.xlu0 %4607
        %4609 = vrot.lane.b32.xlu0 %v557, 64
        %v4610 = vpop.permute.xlu0 %4609
        %4611 = vrot.lane.b32.xlu0 %v560, 64
        %v4612 = vpop.permute.xlu0 %4611
        %4613 = vrot.lane.b32.xlu0 %v563, 64
        %v4614 = vpop.permute.xlu0 %4613
        %4615 = vrot.lane.b32.xlu0 %v566, 64
        %v4616 = vpop.permute.xlu0 %4615
        %4617 = vrot.lane.b32.xlu0 %v569, 64
        %v4618 = vpop.permute.xlu0 %4617
        %4619 = vrot.lane.b32.xlu0 %v572, 64
        %v4620 = vpop.permute.xlu0 %4619
        %4621 = vrot.lane.b32.xlu0 %v575, 64
        %v4622 = vpop.permute.xlu0 %4621
        %4623 = vrot.lane.b32.xlu0 %v578, 64
        %v4624 = vpop.permute.xlu0 %4623
        %4625 = vrot.lane.b32.xlu0 %v581, 64
        %v4626 = vpop.permute.xlu0 %4625
        %4627 = vrot.lane.b32.xlu0 %v584, 64
        %v4628 = vpop.permute.xlu0 %4627
        %4629 = vrot.lane.b32.xlu0 %v587, 64
        %v4630 = vpop.permute.xlu0 %4629
        %4631 = vrot.lane.b32.xlu0 %v590, 64
        %v4632 = vpop.permute.xlu0 %4631
        %4633 = vrot.lane.b32.xlu0 %v593, 64
        %v4634 = vpop.permute.xlu0 %4633
        %4635 = vrot.lane.b32.xlu0 %v596, 64
        %v4636 = vpop.permute.xlu0 %4635
        %4637 = vrot.lane.b32.xlu0 %v599, 64
        %v4638 = vpop.permute.xlu0 %4637
        %4639 = vrot.lane.b32.xlu0 %v602, 64
        %v4640 = vpop.permute.xlu0 %4639
        %4641 = vrot.lane.b32.xlu0 %v605, 64
        %v4642 = vpop.permute.xlu0 %4641
        %v4643 = vsel %vm752, %v4516, 0
        %v4645 = vsel %vm752, %v4518, 0
        %v4647 = vsel %vm752, %v4520, 0
        %v4649 = vsel %vm752, %v4522, 0
        %v4651 = vsel %vm752, %v4524, 0
        %v4653 = vsel %vm752, %v4526, 0
        %v4655 = vsel %vm752, %v4528, 0
        %v4657 = vsel %vm752, %v4530, 0
        %v4659 = vsel %vm752, %v4532, 0
        %v4661 = vsel %vm752, %v4534, 0
        %v4663 = vsel %vm752, %v4536, 0
        %v4665 = vsel %vm752, %v4538, 0
        %v4667 = vsel %vm752, %v4540, 0
        %v4669 = vsel %vm752, %v4542, 0
        %v4671 = vsel %vm752, %v4544, 0
        %v4673 = vsel %vm752, %v4546, 0
        %v4675 = vsel %vm752, %v4548, 0
        %v4677 = vsel %vm752, %v4550, 0
        %v4679 = vsel %vm752, %v4552, 0
        %v4681 = vsel %vm752, %v4554, 0
        %v4683 = vsel %vm752, %v4556, 0
        %v4685 = vsel %vm752, %v4558, 0
        %v4687 = vsel %vm752, %v4560, 0
        %v4689 = vsel %vm752, %v4562, 0
        %v4691 = vsel %vm752, %v4564, 0
        %v4693 = vsel %vm752, %v4566, 0
        %v4695 = vsel %vm752, %v4568, 0
        %v4697 = vsel %vm752, %v4570, 0
        %v4699 = vsel %vm752, %v4572, 0
        %v4701 = vsel %vm752, %v4574, 0
        %v4703 = vsel %vm752, %v4576, 0
        %v4705 = vsel %vm752, %v4578, 0
        %v4707 = vsel %vm752, %v4580, 0
        %v4709 = vsel %vm752, %v4582, 0
        %v4711 = vsel %vm752, %v4584, 0
        %v4713 = vsel %vm752, %v4586, 0
        %v4715 = vsel %vm752, %v4588, 0
        %v4717 = vsel %vm752, %v4590, 0
        %v4719 = vsel %vm752, %v4592, 0
        %v4721 = vsel %vm752, %v4594, 0
        %v4723 = vsel %vm752, %v4596, 0
        %v4725 = vsel %vm752, %v4598, 0
        %v4727 = vsel %vm752, %v4600, 0
        %v4729 = vsel %vm752, %v4602, 0
        %v4731 = vsel %vm752, %v4604, 0
        %v4733 = vsel %vm752, %v4606, 0
        %v4735 = vsel %vm752, %v4608, 0
        %v4737 = vsel %vm752, %v4610, 0
        %v4739 = vsel %vm752, %v4612, 0
        %v4741 = vsel %vm752, %v4614, 0
        %v4743 = vsel %vm752, %v4616, 0
        %v4745 = vsel %vm752, %v4618, 0
        %v4747 = vsel %vm752, %v4620, 0
        %v4749 = vsel %vm752, %v4622, 0
        %v4751 = vsel %vm752, %v4624, 0
        %v4753 = vsel %vm752, %v4626, 0
        %v4755 = vsel %vm752, %v4628, 0
        %v4757 = vsel %vm752, %v4630, 0
        %v4759 = vsel %vm752, %v4632, 0
        %v4761 = vsel %vm752, %v4634, 0
        %v4763 = vsel %vm752, %v4636, 0
        %v4765 = vsel %vm752, %v4638, 0
        %v4767 = vsel %vm752, %v4640, 0
        %v4769 = vsel %vm752, %v4642, 0
        %4771 = vmatpush.xpose.msra.mxu0 %v4737
        %4772 = vmatpush.xpose.msra.mxu0 %v4735
        %4773 = vmatpush.xpose.msra.mxu0 %v4733
        %4774 = vmatpush.xpose.msra.mxu0 %v4731
        %4775 = vmatpush.xpose.msra.mxu0 %v4729
        %4776 = vmatpush.xpose.msra.mxu0 %v4727
        %4777 = vmatpush.xpose.msra.mxu0 %v4725
        %4778 = vmatpush.xpose.msra.mxu0 %v4723
        %4779 = vmatpush.xpose.msra.mxu0 %v4721
        %4780 = vmatpush.xpose.msra.mxu0 %v4719
        %4781 = vmatpush.xpose.msra.mxu0 %v4717
        %4782 = vmatpush.xpose.msra.mxu0 %v4715
        %4783 = vmatpush.xpose.msra.mxu0 %v4713
        %4784 = vmatpush.xpose.msra.mxu0 %v4711
        %4785 = vmatpush.xpose.msra.mxu0 %v4709
        %4786 = vmatpush.xpose.msra.mxu0 %v4707
        %4787 = vmatmul.f32.gmra.mxu0 %v4643
        %v4788 = vpop.f32.mrf.mxu0
        %v4789 = vadd.f32 0.0, %v4788
        %4790 = vmatmul.f32.gmra.mxu0 %v4645
        %v4791 = vpop.f32.mrf.mxu0
        %v4792 = vadd.f32 0.0, %v4791
        %4793 = vmatmul.f32.gmra.mxu0 %v4647
        %v4794 = vpop.f32.mrf.mxu0
        %v4795 = vadd.f32 0.0, %v4794
        %4796 = vmatmul.f32.gmra.mxu0 %v4649
        %v4797 = vpop.f32.mrf.mxu0
        %v4798 = vadd.f32 0.0, %v4797
        %4799 = vmatmul.f32.gmra.mxu0 %v4651
        %v4800 = vpop.f32.mrf.mxu0
        %v4801 = vadd.f32 0.0, %v4800
        %4802 = vmatmul.f32.gmra.mxu0 %v4653
        %v4803 = vpop.f32.mrf.mxu0
        %v4804 = vadd.f32 0.0, %v4803
        %4805 = vmatmul.f32.gmra.mxu0 %v4655
        %v4806 = vpop.f32.mrf.mxu0
        %v4807 = vadd.f32 0.0, %v4806
        %4808 = vmatmul.f32.gmra.mxu0 %v4657
        %v4809 = vpop.f32.mrf.mxu0
        %v4810 = vadd.f32 0.0, %v4809
        %4811 = vmatmul.f32.gmra.mxu0 %v4659
        %v4812 = vpop.f32.mrf.mxu0
        %v4813 = vadd.f32 0.0, %v4812
        %4814 = vmatmul.f32.gmra.mxu0 %v4661
        %v4815 = vpop.f32.mrf.mxu0
        %v4816 = vadd.f32 0.0, %v4815
        %4817 = vmatmul.f32.gmra.mxu0 %v4663
        %v4818 = vpop.f32.mrf.mxu0
        %v4819 = vadd.f32 0.0, %v4818
        %4820 = vmatmul.f32.gmra.mxu0 %v4665
        %v4821 = vpop.f32.mrf.mxu0
        %v4822 = vadd.f32 0.0, %v4821
        %4823 = vmatmul.f32.gmra.mxu0 %v4667
        %v4824 = vpop.f32.mrf.mxu0
        %v4825 = vadd.f32 0.0, %v4824
        %4826 = vmatmul.f32.gmra.mxu0 %v4669
        %v4827 = vpop.f32.mrf.mxu0
        %v4828 = vadd.f32 0.0, %v4827
        %4829 = vmatmul.f32.gmra.mxu0 %v4671
        %v4830 = vpop.f32.mrf.mxu0
        %v4831 = vadd.f32 0.0, %v4830
        %4832 = vmatmul.f32.gmra.mxu0 %v4673
        %v4833 = vpop.f32.mrf.mxu0
        %v4834 = vadd.f32 0.0, %v4833
        %4835 = vmatmul.f32.gmra.mxu0 %v4675
        %v4836 = vpop.f32.mrf.mxu0
        %v4837 = vadd.f32 0.0, %v4836
        %4838 = vmatmul.f32.gmra.mxu0 %v4677
        %v4839 = vpop.f32.mrf.mxu0
        %v4840 = vadd.f32 0.0, %v4839
        %4841 = vmatmul.f32.gmra.mxu0 %v4679
        %v4842 = vpop.f32.mrf.mxu0
        %v4843 = vadd.f32 0.0, %v4842
        %4844 = vmatmul.f32.gmra.mxu0 %v4681
        %v4845 = vpop.f32.mrf.mxu0
        %v4846 = vadd.f32 0.0, %v4845
        %4847 = vmatmul.f32.gmra.mxu0 %v4683
        %v4848 = vpop.f32.mrf.mxu0
        %v4849 = vadd.f32 0.0, %v4848
        %4850 = vmatmul.f32.gmra.mxu0 %v4685
        %v4851 = vpop.f32.mrf.mxu0
        %v4852 = vadd.f32 0.0, %v4851
        %4853 = vmatmul.f32.gmra.mxu0 %v4687
        %v4854 = vpop.f32.mrf.mxu0
        %v4855 = vadd.f32 0.0, %v4854
        %4856 = vmatmul.f32.gmra.mxu0 %v4689
        %v4857 = vpop.f32.mrf.mxu0
        %v4858 = vadd.f32 0.0, %v4857
        %4859 = vmatmul.f32.gmra.mxu0 %v4691
        %v4860 = vpop.f32.mrf.mxu0
        %v4861 = vadd.f32 0.0, %v4860
        %4862 = vmatmul.f32.gmra.mxu0 %v4693
        %v4863 = vpop.f32.mrf.mxu0
        %v4864 = vadd.f32 0.0, %v4863
        %4865 = vmatmul.f32.gmra.mxu0 %v4695
        %v4866 = vpop.f32.mrf.mxu0
        %v4867 = vadd.f32 0.0, %v4866
        %4868 = vmatmul.f32.gmra.mxu0 %v4697
        %v4869 = vpop.f32.mrf.mxu0
        %v4870 = vadd.f32 0.0, %v4869
        %4871 = vmatmul.f32.gmra.mxu0 %v4699
        %v4872 = vpop.f32.mrf.mxu0
        %v4873 = vadd.f32 0.0, %v4872
        %4874 = vmatmul.f32.gmra.mxu0 %v4701
        %v4875 = vpop.f32.mrf.mxu0
        %v4876 = vadd.f32 0.0, %v4875
        %4877 = vmatmul.f32.gmra.mxu0 %v4703
        %v4878 = vpop.f32.mrf.mxu0
        %v4879 = vadd.f32 0.0, %v4878
        %4880 = vmatmul.f32.gmra.mxu0 %v4705
        %v4881 = vpop.f32.mrf.mxu0
        %v4882 = vadd.f32 0.0, %v4881
        %4883 = vdwg.mxu0
        %4884 = vmatpush.xpose.msra.mxu0 %v4769
        %4885 = vmatpush.xpose.msra.mxu0 %v4767
        %4886 = vmatpush.xpose.msra.mxu0 %v4765
        %4887 = vmatpush.xpose.msra.mxu0 %v4763
        %4888 = vmatpush.xpose.msra.mxu0 %v4761
        %4889 = vmatpush.xpose.msra.mxu0 %v4759
        %4890 = vmatpush.xpose.msra.mxu0 %v4757
        %4891 = vmatpush.xpose.msra.mxu0 %v4755
        %4892 = vmatpush.xpose.msra.mxu0 %v4753
        %4893 = vmatpush.xpose.msra.mxu0 %v4751
        %4894 = vmatpush.xpose.msra.mxu0 %v4749
        %4895 = vmatpush.xpose.msra.mxu0 %v4747
        %4896 = vmatpush.xpose.msra.mxu0 %v4745
        %4897 = vmatpush.xpose.msra.mxu0 %v4743
        %4898 = vmatpush.xpose.msra.mxu0 %v4741
        %4899 = vmatpush.xpose.msra.mxu0 %v4739
        %4900 = vmatmul.f32.gmra.mxu0 %v4643
        %v4901 = vpop.f32.mrf.mxu0
        %v4902 = vadd.f32 0.0, %v4901
        %4903 = vmatmul.f32.gmra.mxu0 %v4645
        %v4904 = vpop.f32.mrf.mxu0
        %v4905 = vadd.f32 0.0, %v4904
        %4906 = vmatmul.f32.gmra.mxu0 %v4647
        %v4907 = vpop.f32.mrf.mxu0
        %v4908 = vadd.f32 0.0, %v4907
        %4909 = vmatmul.f32.gmra.mxu0 %v4649
        %v4910 = vpop.f32.mrf.mxu0
        %v4911 = vadd.f32 0.0, %v4910
        %4912 = vmatmul.f32.gmra.mxu0 %v4651
        %v4913 = vpop.f32.mrf.mxu0
        %v4914 = vadd.f32 0.0, %v4913
        %4915 = vmatmul.f32.gmra.mxu0 %v4653
        %v4916 = vpop.f32.mrf.mxu0
        %v4917 = vadd.f32 0.0, %v4916
        %4918 = vmatmul.f32.gmra.mxu0 %v4655
        %v4919 = vpop.f32.mrf.mxu0
        %v4920 = vadd.f32 0.0, %v4919
        %4921 = vmatmul.f32.gmra.mxu0 %v4657
        %v4922 = vpop.f32.mrf.mxu0
        %v4923 = vadd.f32 0.0, %v4922
        %4924 = vmatmul.f32.gmra.mxu0 %v4659
        %v4925 = vpop.f32.mrf.mxu0
        %v4926 = vadd.f32 0.0, %v4925
        %4927 = vmatmul.f32.gmra.mxu0 %v4661
        %v4928 = vpop.f32.mrf.mxu0
        %v4929 = vadd.f32 0.0, %v4928
        %4930 = vmatmul.f32.gmra.mxu0 %v4663
        %v4931 = vpop.f32.mrf.mxu0
        %v4932 = vadd.f32 0.0, %v4931
        %4933 = vmatmul.f32.gmra.mxu0 %v4665
        %v4934 = vpop.f32.mrf.mxu0
        %v4935 = vadd.f32 0.0, %v4934
        %4936 = vmatmul.f32.gmra.mxu0 %v4667
        %v4937 = vpop.f32.mrf.mxu0
        %v4938 = vadd.f32 0.0, %v4937
        %4939 = vmatmul.f32.gmra.mxu0 %v4669
        %v4940 = vpop.f32.mrf.mxu0
        %v4941 = vadd.f32 0.0, %v4940
        %4942 = vmatmul.f32.gmra.mxu0 %v4671
        %v4943 = vpop.f32.mrf.mxu0
        %v4944 = vadd.f32 0.0, %v4943
        %4945 = vmatmul.f32.gmra.mxu0 %v4673
        %v4946 = vpop.f32.mrf.mxu0
        %v4947 = vadd.f32 0.0, %v4946
        %4948 = vmatmul.f32.gmra.mxu0 %v4675
        %v4949 = vpop.f32.mrf.mxu0
        %v4950 = vadd.f32 0.0, %v4949
        %4951 = vmatmul.f32.gmra.mxu0 %v4677
        %v4952 = vpop.f32.mrf.mxu0
        %v4953 = vadd.f32 0.0, %v4952
        %4954 = vmatmul.f32.gmra.mxu0 %v4679
        %v4955 = vpop.f32.mrf.mxu0
        %v4956 = vadd.f32 0.0, %v4955
        %4957 = vmatmul.f32.gmra.mxu0 %v4681
        %v4958 = vpop.f32.mrf.mxu0
        %v4959 = vadd.f32 0.0, %v4958
        %4960 = vmatmul.f32.gmra.mxu0 %v4683
        %v4961 = vpop.f32.mrf.mxu0
        %v4962 = vadd.f32 0.0, %v4961
        %4963 = vmatmul.f32.gmra.mxu0 %v4685
        %v4964 = vpop.f32.mrf.mxu0
        %v4965 = vadd.f32 0.0, %v4964
        %4966 = vmatmul.f32.gmra.mxu0 %v4687
        %v4967 = vpop.f32.mrf.mxu0
        %v4968 = vadd.f32 0.0, %v4967
        %4969 = vmatmul.f32.gmra.mxu0 %v4689
        %v4970 = vpop.f32.mrf.mxu0
        %v4971 = vadd.f32 0.0, %v4970
        %4972 = vmatmul.f32.gmra.mxu0 %v4691
        %v4973 = vpop.f32.mrf.mxu0
        %v4974 = vadd.f32 0.0, %v4973
        %4975 = vmatmul.f32.gmra.mxu0 %v4693
        %v4976 = vpop.f32.mrf.mxu0
        %v4977 = vadd.f32 0.0, %v4976
        %4978 = vmatmul.f32.gmra.mxu0 %v4695
        %v4979 = vpop.f32.mrf.mxu0
        %v4980 = vadd.f32 0.0, %v4979
        %4981 = vmatmul.f32.gmra.mxu0 %v4697
        %v4982 = vpop.f32.mrf.mxu0
        %v4983 = vadd.f32 0.0, %v4982
        %4984 = vmatmul.f32.gmra.mxu0 %v4699
        %v4985 = vpop.f32.mrf.mxu0
        %v4986 = vadd.f32 0.0, %v4985
        %4987 = vmatmul.f32.gmra.mxu0 %v4701
        %v4988 = vpop.f32.mrf.mxu0
        %v4989 = vadd.f32 0.0, %v4988
        %4990 = vmatmul.f32.gmra.mxu0 %v4703
        %v4991 = vpop.f32.mrf.mxu0
        %v4992 = vadd.f32 0.0, %v4991
        %4993 = vmatmul.f32.gmra.mxu0 %v4705
        %v4994 = vpop.f32.mrf.mxu0
        %v4995 = vadd.f32 0.0, %v4994
        %4996 = vdwg.mxu0
        %v4997 = vmax.f32 %v4789, %v4902
        %4998 = vmax.xlane.f32.xlu0 %v4997
        %v4999 = vpop.xlane.xlu0 %4998
        %v5000 = vmax.f32 %v4792, %v4905
        %5001 = vmax.xlane.f32.xlu0 %v5000
        %v5002 = vpop.xlane.xlu0 %5001
        %v5003 = vmax.f32 %v4795, %v4908
        %5004 = vmax.xlane.f32.xlu0 %v5003
        %v5005 = vpop.xlane.xlu0 %5004
        %v5006 = vmax.f32 %v4798, %v4911
        %5007 = vmax.xlane.f32.xlu0 %v5006
        %v5008 = vpop.xlane.xlu0 %5007
        %v5009 = vmax.f32 %v4801, %v4914
        %5010 = vmax.xlane.f32.xlu0 %v5009
        %v5011 = vpop.xlane.xlu0 %5010
        %v5012 = vmax.f32 %v4804, %v4917
        %5013 = vmax.xlane.f32.xlu0 %v5012
        %v5014 = vpop.xlane.xlu0 %5013
        %v5015 = vmax.f32 %v4807, %v4920
        %5016 = vmax.xlane.f32.xlu0 %v5015
        %v5017 = vpop.xlane.xlu0 %5016
        %v5018 = vmax.f32 %v4810, %v4923
        %5019 = vmax.xlane.f32.xlu0 %v5018
        %v5020 = vpop.xlane.xlu0 %5019
        %v5021 = vmax.f32 %v4813, %v4926
        %5022 = vmax.xlane.f32.xlu0 %v5021
        %v5023 = vpop.xlane.xlu0 %5022
        %v5024 = vmax.f32 %v4816, %v4929
        %5025 = vmax.xlane.f32.xlu0 %v5024
        %v5026 = vpop.xlane.xlu0 %5025
        %v5027 = vmax.f32 %v4819, %v4932
        %5028 = vmax.xlane.f32.xlu0 %v5027
        %v5029 = vpop.xlane.xlu0 %5028
        %v5030 = vmax.f32 %v4822, %v4935
        %5031 = vmax.xlane.f32.xlu0 %v5030
        %v5032 = vpop.xlane.xlu0 %5031
        %v5033 = vmax.f32 %v4825, %v4938
        %5034 = vmax.xlane.f32.xlu0 %v5033
        %v5035 = vpop.xlane.xlu0 %5034
        %v5036 = vmax.f32 %v4828, %v4941
        %5037 = vmax.xlane.f32.xlu0 %v5036
        %v5038 = vpop.xlane.xlu0 %5037
        %v5039 = vmax.f32 %v4831, %v4944
        %5040 = vmax.xlane.f32.xlu0 %v5039
        %v5041 = vpop.xlane.xlu0 %5040
        %v5042 = vmax.f32 %v4834, %v4947
        %5043 = vmax.xlane.f32.xlu0 %v5042
        %v5044 = vpop.xlane.xlu0 %5043
        %v5045 = vmax.f32 %v4837, %v4950
        %5046 = vmax.xlane.f32.xlu0 %v5045
        %v5047 = vpop.xlane.xlu0 %5046
        %v5048 = vmax.f32 %v4840, %v4953
        %5049 = vmax.xlane.f32.xlu0 %v5048
        %v5050 = vpop.xlane.xlu0 %5049
        %v5051 = vmax.f32 %v4843, %v4956
        %5052 = vmax.xlane.f32.xlu0 %v5051
        %v5053 = vpop.xlane.xlu0 %5052
        %v5054 = vmax.f32 %v4846, %v4959
        %5055 = vmax.xlane.f32.xlu0 %v5054
        %v5056 = vpop.xlane.xlu0 %5055
        %v5057 = vmax.f32 %v4849, %v4962
        %5058 = vmax.xlane.f32.xlu0 %v5057
        %v5059 = vpop.xlane.xlu0 %5058
        %v5060 = vmax.f32 %v4852, %v4965
        %5061 = vmax.xlane.f32.xlu0 %v5060
        %v5062 = vpop.xlane.xlu0 %5061
        %v5063 = vmax.f32 %v4855, %v4968
        %5064 = vmax.xlane.f32.xlu0 %v5063
        %v5065 = vpop.xlane.xlu0 %5064
        %v5066 = vmax.f32 %v4858, %v4971
        %5067 = vmax.xlane.f32.xlu0 %v5066
        %v5068 = vpop.xlane.xlu0 %5067
        %v5069 = vmax.f32 %v4861, %v4974
        %5070 = vmax.xlane.f32.xlu0 %v5069
        %v5071 = vpop.xlane.xlu0 %5070
        %v5072 = vmax.f32 %v4864, %v4977
        %5073 = vmax.xlane.f32.xlu0 %v5072
        %v5074 = vpop.xlane.xlu0 %5073
        %v5075 = vmax.f32 %v4867, %v4980
        %5076 = vmax.xlane.f32.xlu0 %v5075
        %v5077 = vpop.xlane.xlu0 %5076
        %v5078 = vmax.f32 %v4870, %v4983
        %5079 = vmax.xlane.f32.xlu0 %v5078
        %v5080 = vpop.xlane.xlu0 %5079
        %v5081 = vmax.f32 %v4873, %v4986
        %5082 = vmax.xlane.f32.xlu0 %v5081
        %v5083 = vpop.xlane.xlu0 %5082
        %v5084 = vmax.f32 %v4876, %v4989
        %5085 = vmax.xlane.f32.xlu0 %v5084
        %v5086 = vpop.xlane.xlu0 %5085
        %v5087 = vmax.f32 %v4879, %v4992
        %5088 = vmax.xlane.f32.xlu0 %v5087
        %v5089 = vpop.xlane.xlu0 %5088
        %v5090 = vmax.f32 %v4882, %v4995
        %5091 = vmax.xlane.f32.xlu0 %v5090
        %v5092 = vpop.xlane.xlu0 %5091
        %v5093 = vsub.f32 %v4789, %v4999
        %v5094 = vsub.f32 %v4902, %v4999
        %v5095 = vsub.f32 %v4792, %v5002
        %v5096 = vsub.f32 %v4905, %v5002
        %v5097 = vsub.f32 %v4795, %v5005
        %v5098 = vsub.f32 %v4908, %v5005
        %v5099 = vsub.f32 %v4798, %v5008
        %v5100 = vsub.f32 %v4911, %v5008
        %v5101 = vsub.f32 %v4801, %v5011
        %v5102 = vsub.f32 %v4914, %v5011
        %v5103 = vsub.f32 %v4804, %v5014
        %v5104 = vsub.f32 %v4917, %v5014
        %v5105 = vsub.f32 %v4807, %v5017
        %v5106 = vsub.f32 %v4920, %v5017
        %v5107 = vsub.f32 %v4810, %v5020
        %v5108 = vsub.f32 %v4923, %v5020
        %v5109 = vsub.f32 %v4813, %v5023
        %v5110 = vsub.f32 %v4926, %v5023
        %v5111 = vsub.f32 %v4816, %v5026
        %v5112 = vsub.f32 %v4929, %v5026
        %v5113 = vsub.f32 %v4819, %v5029
        %v5114 = vsub.f32 %v4932, %v5029
        %v5115 = vsub.f32 %v4822, %v5032
        %v5116 = vsub.f32 %v4935, %v5032
        %v5117 = vsub.f32 %v4825, %v5035
        %v5118 = vsub.f32 %v4938, %v5035
        %v5119 = vsub.f32 %v4828, %v5038
        %v5120 = vsub.f32 %v4941, %v5038
        %v5121 = vsub.f32 %v4831, %v5041
        %v5122 = vsub.f32 %v4944, %v5041
        %v5123 = vsub.f32 %v4834, %v5044
        %v5124 = vsub.f32 %v4947, %v5044
        %v5125 = vsub.f32 %v4837, %v5047
        %v5126 = vsub.f32 %v4950, %v5047
        %v5127 = vsub.f32 %v4840, %v5050
        %v5128 = vsub.f32 %v4953, %v5050
        %v5129 = vsub.f32 %v4843, %v5053
        %v5130 = vsub.f32 %v4956, %v5053
        %v5131 = vsub.f32 %v4846, %v5056
        %v5132 = vsub.f32 %v4959, %v5056
        %v5133 = vsub.f32 %v4849, %v5059
        %v5134 = vsub.f32 %v4962, %v5059
        %v5135 = vsub.f32 %v4852, %v5062
        %v5136 = vsub.f32 %v4965, %v5062
        %v5137 = vsub.f32 %v4855, %v5065
        %v5138 = vsub.f32 %v4968, %v5065
        %v5139 = vsub.f32 %v4858, %v5068
        %v5140 = vsub.f32 %v4971, %v5068
        %v5141 = vsub.f32 %v4861, %v5071
        %v5142 = vsub.f32 %v4974, %v5071
        %v5143 = vsub.f32 %v4864, %v5074
        %v5144 = vsub.f32 %v4977, %v5074
        %v5145 = vsub.f32 %v4867, %v5077
        %v5146 = vsub.f32 %v4980, %v5077
        %v5147 = vsub.f32 %v4870, %v5080
        %v5148 = vsub.f32 %v4983, %v5080
        %v5149 = vsub.f32 %v4873, %v5083
        %v5150 = vsub.f32 %v4986, %v5083
        %v5151 = vsub.f32 %v4876, %v5086
        %v5152 = vsub.f32 %v4989, %v5086
        %v5153 = vsub.f32 %v4879, %v5089
        %v5154 = vsub.f32 %v4992, %v5089
        %v5155 = vsub.f32 %v4882, %v5092
        %v5156 = vsub.f32 %v4995, %v5092
        %v5157 = vmul.f32 %v5093, 1.442695
        %v5158 = vpow.pop %v5157
        %v5159 = vmul.f32 %v5094, 1.442695
        %v5160 = vpow.pop %v5159
        %v5161 = vmul.f32 %v5095, 1.442695
        %v5162 = vpow.pop %v5161
        %v5163 = vmul.f32 %v5096, 1.442695
        %v5164 = vpow.pop %v5163
        %v5165 = vmul.f32 %v5097, 1.442695
        %v5166 = vpow.pop %v5165
        %v5167 = vmul.f32 %v5098, 1.442695
        %v5168 = vpow.pop %v5167
        %v5169 = vmul.f32 %v5099, 1.442695
        %v5170 = vpow.pop %v5169
        %v5171 = vmul.f32 %v5100, 1.442695
        %v5172 = vpow.pop %v5171
        %v5173 = vmul.f32 %v5101, 1.442695
        %v5174 = vpow.pop %v5173
        %v5175 = vmul.f32 %v5102, 1.442695
        %v5176 = vpow.pop %v5175
        %v5177 = vmul.f32 %v5103, 1.442695
        %v5178 = vpow.pop %v5177
        %v5179 = vmul.f32 %v5104, 1.442695
        %v5180 = vpow.pop %v5179
        %v5181 = vmul.f32 %v5105, 1.442695
        %v5182 = vpow.pop %v5181
        %v5183 = vmul.f32 %v5106, 1.442695
        %v5184 = vpow.pop %v5183
        %v5185 = vmul.f32 %v5107, 1.442695
        %v5186 = vpow.pop %v5185
        %v5187 = vmul.f32 %v5108, 1.442695
        %v5188 = vpow.pop %v5187
        %v5189 = vmul.f32 %v5109, 1.442695
        %v5190 = vpow.pop %v5189
        %v5191 = vmul.f32 %v5110, 1.442695
        %v5192 = vpow.pop %v5191
        %v5193 = vmul.f32 %v5111, 1.442695
        %v5194 = vpow.pop %v5193
        %v5195 = vmul.f32 %v5112, 1.442695
        %v5196 = vpow.pop %v5195
        %v5197 = vmul.f32 %v5113, 1.442695
        %v5198 = vpow.pop %v5197
        %v5199 = vmul.f32 %v5114, 1.442695
        %v5200 = vpow.pop %v5199
        %v5201 = vmul.f32 %v5115, 1.442695
        %v5202 = vpow.pop %v5201
        %v5203 = vmul.f32 %v5116, 1.442695
        %v5204 = vpow.pop %v5203
        %v5205 = vmul.f32 %v5117, 1.442695
        %v5206 = vpow.pop %v5205
        %v5207 = vmul.f32 %v5118, 1.442695
        %v5208 = vpow.pop %v5207
        %v5209 = vmul.f32 %v5119, 1.442695
        %v5210 = vpow.pop %v5209
        %v5211 = vmul.f32 %v5120, 1.442695
        %v5212 = vpow.pop %v5211
        %v5213 = vmul.f32 %v5121, 1.442695
        %v5214 = vpow.pop %v5213
        %v5215 = vmul.f32 %v5122, 1.442695
        %v5216 = vpow.pop %v5215
        %v5217 = vmul.f32 %v5123, 1.442695
        %v5218 = vpow.pop %v5217
        %v5219 = vmul.f32 %v5124, 1.442695
        %v5220 = vpow.pop %v5219
        %v5221 = vmul.f32 %v5125, 1.442695
        %v5222 = vpow.pop %v5221
        %v5223 = vmul.f32 %v5126, 1.442695
        %v5224 = vpow.pop %v5223
        %v5225 = vmul.f32 %v5127, 1.442695
        %v5226 = vpow.pop %v5225
        %v5227 = vmul.f32 %v5128, 1.442695
        %v5228 = vpow.pop %v5227
        %v5229 = vmul.f32 %v5129, 1.442695
        %v5230 = vpow.pop %v5229
        %v5231 = vmul.f32 %v5130, 1.442695
        %v5232 = vpow.pop %v5231
        %v5233 = vmul.f32 %v5131, 1.442695
        %v5234 = vpow.pop %v5233
        %v5235 = vmul.f32 %v5132, 1.442695
        %v5236 = vpow.pop %v5235
        %v5237 = vmul.f32 %v5133, 1.442695
        %v5238 = vpow.pop %v5237
        %v5239 = vmul.f32 %v5134, 1.442695
        %v5240 = vpow.pop %v5239
        %v5241 = vmul.f32 %v5135, 1.442695
        %v5242 = vpow.pop %v5241
        %v5243 = vmul.f32 %v5136, 1.442695
        %v5244 = vpow.pop %v5243
        %v5245 = vmul.f32 %v5137, 1.442695
        %v5246 = vpow.pop %v5245
        %v5247 = vmul.f32 %v5138, 1.442695
        %v5248 = vpow.pop %v5247
        %v5249 = vmul.f32 %v5139, 1.442695
        %v5250 = vpow.pop %v5249
        %v5251 = vmul.f32 %v5140, 1.442695
        %v5252 = vpow.pop %v5251
        %v5253 = vmul.f32 %v5141, 1.442695
        %v5254 = vpow.pop %v5253
        %v5255 = vmul.f32 %v5142, 1.442695
        %v5256 = vpow.pop %v5255
        %v5257 = vmul.f32 %v5143, 1.442695
        %v5258 = vpow.pop %v5257
        %v5259 = vmul.f32 %v5144, 1.442695
        %v5260 = vpow.pop %v5259
        %v5261 = vmul.f32 %v5145, 1.442695
        %v5262 = vpow.pop %v5261
        %v5263 = vmul.f32 %v5146, 1.442695
        %v5264 = vpow.pop %v5263
        %v5265 = vmul.f32 %v5147, 1.442695
        %v5266 = vpow.pop %v5265
        %v5267 = vmul.f32 %v5148, 1.442695
        %v5268 = vpow.pop %v5267
        %v5269 = vmul.f32 %v5149, 1.442695
        %v5270 = vpow.pop %v5269
        %v5271 = vmul.f32 %v5150, 1.442695
        %v5272 = vpow.pop %v5271
        %v5273 = vmul.f32 %v5151, 1.442695
        %v5274 = vpow.pop %v5273
        %v5275 = vmul.f32 %v5152, 1.442695
        %v5276 = vpow.pop %v5275
        %v5277 = vmul.f32 %v5153, 1.442695
        %v5278 = vpow.pop %v5277
        %v5279 = vmul.f32 %v5154, 1.442695
        %v5280 = vpow.pop %v5279
        %v5281 = vmul.f32 %v5155, 1.442695
        %v5282 = vpow.pop %v5281
        %v5283 = vmul.f32 %v5156, 1.442695
        %v5284 = vpow.pop %v5283
        %v5285 = vadd.f32 %v5158, %v5160
        %5286 = vadd.xlane.f32.xlu0 %v5285
        %v5287 = vpop.xlane.xlu0 %5286
        %v5288 = vadd.f32 %v5162, %v5164
        %5289 = vadd.xlane.f32.xlu0 %v5288
        %v5290 = vpop.xlane.xlu0 %5289
        %v5291 = vadd.f32 %v5166, %v5168
        %5292 = vadd.xlane.f32.xlu0 %v5291
        %v5293 = vpop.xlane.xlu0 %5292
        %v5294 = vadd.f32 %v5170, %v5172
        %5295 = vadd.xlane.f32.xlu0 %v5294
        %v5296 = vpop.xlane.xlu0 %5295
        %v5297 = vadd.f32 %v5174, %v5176
        %5298 = vadd.xlane.f32.xlu0 %v5297
        %v5299 = vpop.xlane.xlu0 %5298
        %v5300 = vadd.f32 %v5178, %v5180
        %5301 = vadd.xlane.f32.xlu0 %v5300
        %v5302 = vpop.xlane.xlu0 %5301
        %v5303 = vadd.f32 %v5182, %v5184
        %5304 = vadd.xlane.f32.xlu0 %v5303
        %v5305 = vpop.xlane.xlu0 %5304
        %v5306 = vadd.f32 %v5186, %v5188
        %5307 = vadd.xlane.f32.xlu0 %v5306
        %v5308 = vpop.xlane.xlu0 %5307
        %v5309 = vadd.f32 %v5190, %v5192
        %5310 = vadd.xlane.f32.xlu0 %v5309
        %v5311 = vpop.xlane.xlu0 %5310
        %v5312 = vadd.f32 %v5194, %v5196
        %5313 = vadd.xlane.f32.xlu0 %v5312
        %v5314 = vpop.xlane.xlu0 %5313
        %v5315 = vadd.f32 %v5198, %v5200
        %5316 = vadd.xlane.f32.xlu0 %v5315
        %v5317 = vpop.xlane.xlu0 %5316
        %v5318 = vadd.f32 %v5202, %v5204
        %5319 = vadd.xlane.f32.xlu0 %v5318
        %v5320 = vpop.xlane.xlu0 %5319
        %v5321 = vadd.f32 %v5206, %v5208
        %5322 = vadd.xlane.f32.xlu0 %v5321
        %v5323 = vpop.xlane.xlu0 %5322
        %v5324 = vadd.f32 %v5210, %v5212
        %5325 = vadd.xlane.f32.xlu0 %v5324
        %v5326 = vpop.xlane.xlu0 %5325
        %v5327 = vadd.f32 %v5214, %v5216
        %5328 = vadd.xlane.f32.xlu0 %v5327
        %v5329 = vpop.xlane.xlu0 %5328
        %v5330 = vadd.f32 %v5218, %v5220
        %5331 = vadd.xlane.f32.xlu0 %v5330
        %v5332 = vpop.xlane.xlu0 %5331
        %v5333 = vadd.f32 %v5222, %v5224
        %5334 = vadd.xlane.f32.xlu0 %v5333
        %v5335 = vpop.xlane.xlu0 %5334
        %v5336 = vadd.f32 %v5226, %v5228
        %5337 = vadd.xlane.f32.xlu0 %v5336
        %v5338 = vpop.xlane.xlu0 %5337
        %v5339 = vadd.f32 %v5230, %v5232
        %5340 = vadd.xlane.f32.xlu0 %v5339
        %v5341 = vpop.xlane.xlu0 %5340
        %v5342 = vadd.f32 %v5234, %v5236
        %5343 = vadd.xlane.f32.xlu0 %v5342
        %v5344 = vpop.xlane.xlu0 %5343
        %v5345 = vadd.f32 %v5238, %v5240
        %5346 = vadd.xlane.f32.xlu0 %v5345
        %v5347 = vpop.xlane.xlu0 %5346
        %v5348 = vadd.f32 %v5242, %v5244
        %5349 = vadd.xlane.f32.xlu0 %v5348
        %v5350 = vpop.xlane.xlu0 %5349
        %v5351 = vadd.f32 %v5246, %v5248
        %5352 = vadd.xlane.f32.xlu0 %v5351
        %v5353 = vpop.xlane.xlu0 %5352
        %v5354 = vadd.f32 %v5250, %v5252
        %5355 = vadd.xlane.f32.xlu0 %v5354
        %v5356 = vpop.xlane.xlu0 %5355
        %v5357 = vadd.f32 %v5254, %v5256
        %5358 = vadd.xlane.f32.xlu0 %v5357
        %v5359 = vpop.xlane.xlu0 %5358
        %v5360 = vadd.f32 %v5258, %v5260
        %5361 = vadd.xlane.f32.xlu0 %v5360
        %v5362 = vpop.xlane.xlu0 %5361
        %v5363 = vadd.f32 %v5262, %v5264
        %5364 = vadd.xlane.f32.xlu0 %v5363
        %v5365 = vpop.xlane.xlu0 %5364
        %v5366 = vadd.f32 %v5266, %v5268
        %5367 = vadd.xlane.f32.xlu0 %v5366
        %v5368 = vpop.xlane.xlu0 %5367
        %v5369 = vadd.f32 %v5270, %v5272
        %5370 = vadd.xlane.f32.xlu0 %v5369
        %v5371 = vpop.xlane.xlu0 %5370
        %v5372 = vadd.f32 %v5274, %v5276
        %5373 = vadd.xlane.f32.xlu0 %v5372
        %v5374 = vpop.xlane.xlu0 %5373
        %v5375 = vadd.f32 %v5278, %v5280
        %5376 = vadd.xlane.f32.xlu0 %v5375
        %v5377 = vpop.xlane.xlu0 %5376
        %v5378 = vadd.f32 %v5282, %v5284
        %5379 = vadd.xlane.f32.xlu0 %v5378
        %v5380 = vpop.xlane.xlu0 %5379
        %v5381 = vrcp.pop %v5287
        %v5382 = vmul.f32 %v5287, %v5381
        %v5383 = vsub.f32 1.0, %v5382
        %v5384 = vmul.f32 %v5381, %v5383
        %v5385 = vadd.f32 %v5381, %v5384
        %vm5386 = vweird.f32 %v5287
        %vm5387 = vweird.f32 %v5381
        %vm5388 = vmor %vm5386, %vm5387
        %v5389 = vsel %vm5388, %v5381, %v5385
        %v5390 = vand.u32 2147483647, %v5287
        %vm5391 = vcmp.eq.f32.partialorder %v5390, 8.507059e+37
        %v5392 = vand.u32 %v5287, 2147483648
        %v5393 = vor.u32 1.1754944e-38, %v5392
        %v5394 = vsel %vm5391, %v5393, %v5389
        %v5395 = vmul.f32 1.0, %v5394
        %v5396 = vrcp.pop %v5290
        %v5397 = vmul.f32 %v5290, %v5396
        %v5398 = vsub.f32 1.0, %v5397
        %v5399 = vmul.f32 %v5396, %v5398
        %v5400 = vadd.f32 %v5396, %v5399
        %vm5401 = vweird.f32 %v5290
        %vm5402 = vweird.f32 %v5396
        %vm5403 = vmor %vm5401, %vm5402
        %v5404 = vsel %vm5403, %v5396, %v5400
        %v5405 = vand.u32 2147483647, %v5290
        %vm5406 = vcmp.eq.f32.partialorder %v5405, 8.507059e+37
        %v5407 = vand.u32 %v5290, 2147483648
        %v5408 = vor.u32 1.1754944e-38, %v5407
        %v5409 = vsel %vm5406, %v5408, %v5404
        %v5410 = vmul.f32 1.0, %v5409
        %v5411 = vrcp.pop %v5293
        %v5412 = vmul.f32 %v5293, %v5411
        %v5413 = vsub.f32 1.0, %v5412
        %v5414 = vmul.f32 %v5411, %v5413
        %v5415 = vadd.f32 %v5411, %v5414
        %vm5416 = vweird.f32 %v5293
        %vm5417 = vweird.f32 %v5411
        %vm5418 = vmor %vm5416, %vm5417
        %v5419 = vsel %vm5418, %v5411, %v5415
        %v5420 = vand.u32 2147483647, %v5293
        %vm5421 = vcmp.eq.f32.partialorder %v5420, 8.507059e+37
        %v5422 = vand.u32 %v5293, 2147483648
        %v5423 = vor.u32 1.1754944e-38, %v5422
        %v5424 = vsel %vm5421, %v5423, %v5419
        %v5425 = vmul.f32 1.0, %v5424
        %v5426 = vrcp.pop %v5296
        %v5427 = vmul.f32 %v5296, %v5426
        %v5428 = vsub.f32 1.0, %v5427
        %v5429 = vmul.f32 %v5426, %v5428
        %v5430 = vadd.f32 %v5426, %v5429
        %vm5431 = vweird.f32 %v5296
        %vm5432 = vweird.f32 %v5426
        %vm5433 = vmor %vm5431, %vm5432
        %v5434 = vsel %vm5433, %v5426, %v5430
        %v5435 = vand.u32 2147483647, %v5296
        %vm5436 = vcmp.eq.f32.partialorder %v5435, 8.507059e+37
        %v5437 = vand.u32 %v5296, 2147483648
        %v5438 = vor.u32 1.1754944e-38, %v5437
        %v5439 = vsel %vm5436, %v5438, %v5434
        %v5440 = vmul.f32 1.0, %v5439
        %v5441 = vrcp.pop %v5299
        %v5442 = vmul.f32 %v5299, %v5441
        %v5443 = vsub.f32 1.0, %v5442
        %v5444 = vmul.f32 %v5441, %v5443
        %v5445 = vadd.f32 %v5441, %v5444
        %vm5446 = vweird.f32 %v5299
        %vm5447 = vweird.f32 %v5441
        %vm5448 = vmor %vm5446, %vm5447
        %v5449 = vsel %vm5448, %v5441, %v5445
        %v5450 = vand.u32 2147483647, %v5299
        %vm5451 = vcmp.eq.f32.partialorder %v5450, 8.507059e+37
        %v5452 = vand.u32 %v5299, 2147483648
        %v5453 = vor.u32 1.1754944e-38, %v5452
        %v5454 = vsel %vm5451, %v5453, %v5449
        %v5455 = vmul.f32 1.0, %v5454
        %v5456 = vrcp.pop %v5302
        %v5457 = vmul.f32 %v5302, %v5456
        %v5458 = vsub.f32 1.0, %v5457
        %v5459 = vmul.f32 %v5456, %v5458
        %v5460 = vadd.f32 %v5456, %v5459
        %vm5461 = vweird.f32 %v5302
        %vm5462 = vweird.f32 %v5456
        %vm5463 = vmor %vm5461, %vm5462
        %v5464 = vsel %vm5463, %v5456, %v5460
        %v5465 = vand.u32 2147483647, %v5302
        %vm5466 = vcmp.eq.f32.partialorder %v5465, 8.507059e+37
        %v5467 = vand.u32 %v5302, 2147483648
        %v5468 = vor.u32 1.1754944e-38, %v5467
        %v5469 = vsel %vm5466, %v5468, %v5464
        %v5470 = vmul.f32 1.0, %v5469
        %v5471 = vrcp.pop %v5305
        %v5472 = vmul.f32 %v5305, %v5471
        %v5473 = vsub.f32 1.0, %v5472
        %v5474 = vmul.f32 %v5471, %v5473
        %v5475 = vadd.f32 %v5471, %v5474
        %vm5476 = vweird.f32 %v5305
        %vm5477 = vweird.f32 %v5471
        %vm5478 = vmor %vm5476, %vm5477
        %v5479 = vsel %vm5478, %v5471, %v5475
        %v5480 = vand.u32 2147483647, %v5305
        %vm5481 = vcmp.eq.f32.partialorder %v5480, 8.507059e+37
        %v5482 = vand.u32 %v5305, 2147483648
        %v5483 = vor.u32 1.1754944e-38, %v5482
        %v5484 = vsel %vm5481, %v5483, %v5479
        %v5485 = vmul.f32 1.0, %v5484
        %v5486 = vrcp.pop %v5308
        %v5487 = vmul.f32 %v5308, %v5486
        %v5488 = vsub.f32 1.0, %v5487
        %v5489 = vmul.f32 %v5486, %v5488
        %v5490 = vadd.f32 %v5486, %v5489
        %vm5491 = vweird.f32 %v5308
        %vm5492 = vweird.f32 %v5486
        %vm5493 = vmor %vm5491, %vm5492
        %v5494 = vsel %vm5493, %v5486, %v5490
        %v5495 = vand.u32 2147483647, %v5308
        %vm5496 = vcmp.eq.f32.partialorder %v5495, 8.507059e+37
        %v5497 = vand.u32 %v5308, 2147483648
        %v5498 = vor.u32 1.1754944e-38, %v5497
        %v5499 = vsel %vm5496, %v5498, %v5494
        %v5500 = vmul.f32 1.0, %v5499
        %v5501 = vrcp.pop %v5311
        %v5502 = vmul.f32 %v5311, %v5501
        %v5503 = vsub.f32 1.0, %v5502
        %v5504 = vmul.f32 %v5501, %v5503
        %v5505 = vadd.f32 %v5501, %v5504
        %vm5506 = vweird.f32 %v5311
        %vm5507 = vweird.f32 %v5501
        %vm5508 = vmor %vm5506, %vm5507
        %v5509 = vsel %vm5508, %v5501, %v5505
        %v5510 = vand.u32 2147483647, %v5311
        %vm5511 = vcmp.eq.f32.partialorder %v5510, 8.507059e+37
        %v5512 = vand.u32 %v5311, 2147483648
        %v5513 = vor.u32 1.1754944e-38, %v5512
        %v5514 = vsel %vm5511, %v5513, %v5509
        %v5515 = vmul.f32 1.0, %v5514
        %v5516 = vrcp.pop %v5314
        %v5517 = vmul.f32 %v5314, %v5516
        %v5518 = vsub.f32 1.0, %v5517
        %v5519 = vmul.f32 %v5516, %v5518
        %v5520 = vadd.f32 %v5516, %v5519
        %vm5521 = vweird.f32 %v5314
        %vm5522 = vweird.f32 %v5516
        %vm5523 = vmor %vm5521, %vm5522
        %v5524 = vsel %vm5523, %v5516, %v5520
        %v5525 = vand.u32 2147483647, %v5314
        %vm5526 = vcmp.eq.f32.partialorder %v5525, 8.507059e+37
        %v5527 = vand.u32 %v5314, 2147483648
        %v5528 = vor.u32 1.1754944e-38, %v5527
        %v5529 = vsel %vm5526, %v5528, %v5524
        %v5530 = vmul.f32 1.0, %v5529
        %v5531 = vrcp.pop %v5317
        %v5532 = vmul.f32 %v5317, %v5531
        %v5533 = vsub.f32 1.0, %v5532
        %v5534 = vmul.f32 %v5531, %v5533
        %v5535 = vadd.f32 %v5531, %v5534
        %vm5536 = vweird.f32 %v5317
        %vm5537 = vweird.f32 %v5531
        %vm5538 = vmor %vm5536, %vm5537
        %v5539 = vsel %vm5538, %v5531, %v5535
        %v5540 = vand.u32 2147483647, %v5317
        %vm5541 = vcmp.eq.f32.partialorder %v5540, 8.507059e+37
        %v5542 = vand.u32 %v5317, 2147483648
        %v5543 = vor.u32 1.1754944e-38, %v5542
        %v5544 = vsel %vm5541, %v5543, %v5539
        %v5545 = vmul.f32 1.0, %v5544
        %v5546 = vrcp.pop %v5320
        %v5547 = vmul.f32 %v5320, %v5546
        %v5548 = vsub.f32 1.0, %v5547
        %v5549 = vmul.f32 %v5546, %v5548
        %v5550 = vadd.f32 %v5546, %v5549
        %vm5551 = vweird.f32 %v5320
        %vm5552 = vweird.f32 %v5546
        %vm5553 = vmor %vm5551, %vm5552
        %v5554 = vsel %vm5553, %v5546, %v5550
        %v5555 = vand.u32 2147483647, %v5320
        %vm5556 = vcmp.eq.f32.partialorder %v5555, 8.507059e+37
        %v5557 = vand.u32 %v5320, 2147483648
        %v5558 = vor.u32 1.1754944e-38, %v5557
        %v5559 = vsel %vm5556, %v5558, %v5554
        %v5560 = vmul.f32 1.0, %v5559
        %v5561 = vrcp.pop %v5323
        %v5562 = vmul.f32 %v5323, %v5561
        %v5563 = vsub.f32 1.0, %v5562
        %v5564 = vmul.f32 %v5561, %v5563
        %v5565 = vadd.f32 %v5561, %v5564
        %vm5566 = vweird.f32 %v5323
        %vm5567 = vweird.f32 %v5561
        %vm5568 = vmor %vm5566, %vm5567
        %v5569 = vsel %vm5568, %v5561, %v5565
        %v5570 = vand.u32 2147483647, %v5323
        %vm5571 = vcmp.eq.f32.partialorder %v5570, 8.507059e+37
        %v5572 = vand.u32 %v5323, 2147483648
        %v5573 = vor.u32 1.1754944e-38, %v5572
        %v5574 = vsel %vm5571, %v5573, %v5569
        %v5575 = vmul.f32 1.0, %v5574
        %v5576 = vrcp.pop %v5326
        %v5577 = vmul.f32 %v5326, %v5576
        %v5578 = vsub.f32 1.0, %v5577
        %v5579 = vmul.f32 %v5576, %v5578
        %v5580 = vadd.f32 %v5576, %v5579
        %vm5581 = vweird.f32 %v5326
        %vm5582 = vweird.f32 %v5576
        %vm5583 = vmor %vm5581, %vm5582
        %v5584 = vsel %vm5583, %v5576, %v5580
        %v5585 = vand.u32 2147483647, %v5326
        %vm5586 = vcmp.eq.f32.partialorder %v5585, 8.507059e+37
        %v5587 = vand.u32 %v5326, 2147483648
        %v5588 = vor.u32 1.1754944e-38, %v5587
        %v5589 = vsel %vm5586, %v5588, %v5584
        %v5590 = vmul.f32 1.0, %v5589
        %v5591 = vrcp.pop %v5329
        %v5592 = vmul.f32 %v5329, %v5591
        %v5593 = vsub.f32 1.0, %v5592
        %v5594 = vmul.f32 %v5591, %v5593
        %v5595 = vadd.f32 %v5591, %v5594
        %vm5596 = vweird.f32 %v5329
        %vm5597 = vweird.f32 %v5591
        %vm5598 = vmor %vm5596, %vm5597
        %v5599 = vsel %vm5598, %v5591, %v5595
        %v5600 = vand.u32 2147483647, %v5329
        %vm5601 = vcmp.eq.f32.partialorder %v5600, 8.507059e+37
        %v5602 = vand.u32 %v5329, 2147483648
        %v5603 = vor.u32 1.1754944e-38, %v5602
        %v5604 = vsel %vm5601, %v5603, %v5599
        %v5605 = vmul.f32 1.0, %v5604
        %v5606 = vrcp.pop %v5332
        %v5607 = vmul.f32 %v5332, %v5606
        %v5608 = vsub.f32 1.0, %v5607
        %v5609 = vmul.f32 %v5606, %v5608
        %v5610 = vadd.f32 %v5606, %v5609
        %vm5611 = vweird.f32 %v5332
        %vm5612 = vweird.f32 %v5606
        %vm5613 = vmor %vm5611, %vm5612
        %v5614 = vsel %vm5613, %v5606, %v5610
        %v5615 = vand.u32 2147483647, %v5332
        %vm5616 = vcmp.eq.f32.partialorder %v5615, 8.507059e+37
        %v5617 = vand.u32 %v5332, 2147483648
        %v5618 = vor.u32 1.1754944e-38, %v5617
        %v5619 = vsel %vm5616, %v5618, %v5614
        %v5620 = vmul.f32 1.0, %v5619
        %v5621 = vrcp.pop %v5335
        %v5622 = vmul.f32 %v5335, %v5621
        %v5623 = vsub.f32 1.0, %v5622
        %v5624 = vmul.f32 %v5621, %v5623
        %v5625 = vadd.f32 %v5621, %v5624
        %vm5626 = vweird.f32 %v5335
        %vm5627 = vweird.f32 %v5621
        %vm5628 = vmor %vm5626, %vm5627
        %v5629 = vsel %vm5628, %v5621, %v5625
        %v5630 = vand.u32 2147483647, %v5335
        %vm5631 = vcmp.eq.f32.partialorder %v5630, 8.507059e+37
        %v5632 = vand.u32 %v5335, 2147483648
        %v5633 = vor.u32 1.1754944e-38, %v5632
        %v5634 = vsel %vm5631, %v5633, %v5629
        %v5635 = vmul.f32 1.0, %v5634
        %v5636 = vrcp.pop %v5338
        %v5637 = vmul.f32 %v5338, %v5636
        %v5638 = vsub.f32 1.0, %v5637
        %v5639 = vmul.f32 %v5636, %v5638
        %v5640 = vadd.f32 %v5636, %v5639
        %vm5641 = vweird.f32 %v5338
        %vm5642 = vweird.f32 %v5636
        %vm5643 = vmor %vm5641, %vm5642
        %v5644 = vsel %vm5643, %v5636, %v5640
        %v5645 = vand.u32 2147483647, %v5338
        %vm5646 = vcmp.eq.f32.partialorder %v5645, 8.507059e+37
        %v5647 = vand.u32 %v5338, 2147483648
        %v5648 = vor.u32 1.1754944e-38, %v5647
        %v5649 = vsel %vm5646, %v5648, %v5644
        %v5650 = vmul.f32 1.0, %v5649
        %v5651 = vrcp.pop %v5341
        %v5652 = vmul.f32 %v5341, %v5651
        %v5653 = vsub.f32 1.0, %v5652
        %v5654 = vmul.f32 %v5651, %v5653
        %v5655 = vadd.f32 %v5651, %v5654
        %vm5656 = vweird.f32 %v5341
        %vm5657 = vweird.f32 %v5651
        %vm5658 = vmor %vm5656, %vm5657
        %v5659 = vsel %vm5658, %v5651, %v5655
        %v5660 = vand.u32 2147483647, %v5341
        %vm5661 = vcmp.eq.f32.partialorder %v5660, 8.507059e+37
        %v5662 = vand.u32 %v5341, 2147483648
        %v5663 = vor.u32 1.1754944e-38, %v5662
        %v5664 = vsel %vm5661, %v5663, %v5659
        %v5665 = vmul.f32 1.0, %v5664
        %v5666 = vrcp.pop %v5344
        %v5667 = vmul.f32 %v5344, %v5666
        %v5668 = vsub.f32 1.0, %v5667
        %v5669 = vmul.f32 %v5666, %v5668
        %v5670 = vadd.f32 %v5666, %v5669
        %vm5671 = vweird.f32 %v5344
        %vm5672 = vweird.f32 %v5666
        %vm5673 = vmor %vm5671, %vm5672
        %v5674 = vsel %vm5673, %v5666, %v5670
        %v5675 = vand.u32 2147483647, %v5344
        %vm5676 = vcmp.eq.f32.partialorder %v5675, 8.507059e+37
        %v5677 = vand.u32 %v5344, 2147483648
        %v5678 = vor.u32 1.1754944e-38, %v5677
        %v5679 = vsel %vm5676, %v5678, %v5674
        %v5680 = vmul.f32 1.0, %v5679
        %v5681 = vrcp.pop %v5347
        %v5682 = vmul.f32 %v5347, %v5681
        %v5683 = vsub.f32 1.0, %v5682
        %v5684 = vmul.f32 %v5681, %v5683
        %v5685 = vadd.f32 %v5681, %v5684
        %vm5686 = vweird.f32 %v5347
        %vm5687 = vweird.f32 %v5681
        %vm5688 = vmor %vm5686, %vm5687
        %v5689 = vsel %vm5688, %v5681, %v5685
        %v5690 = vand.u32 2147483647, %v5347
        %vm5691 = vcmp.eq.f32.partialorder %v5690, 8.507059e+37
        %v5692 = vand.u32 %v5347, 2147483648
        %v5693 = vor.u32 1.1754944e-38, %v5692
        %v5694 = vsel %vm5691, %v5693, %v5689
        %v5695 = vmul.f32 1.0, %v5694
        %v5696 = vrcp.pop %v5350
        %v5697 = vmul.f32 %v5350, %v5696
        %v5698 = vsub.f32 1.0, %v5697
        %v5699 = vmul.f32 %v5696, %v5698
        %v5700 = vadd.f32 %v5696, %v5699
        %vm5701 = vweird.f32 %v5350
        %vm5702 = vweird.f32 %v5696
        %vm5703 = vmor %vm5701, %vm5702
        %v5704 = vsel %vm5703, %v5696, %v5700
        %v5705 = vand.u32 2147483647, %v5350
        %vm5706 = vcmp.eq.f32.partialorder %v5705, 8.507059e+37
        %v5707 = vand.u32 %v5350, 2147483648
        %v5708 = vor.u32 1.1754944e-38, %v5707
        %v5709 = vsel %vm5706, %v5708, %v5704
        %v5710 = vmul.f32 1.0, %v5709
        %v5711 = vrcp.pop %v5353
        %v5712 = vmul.f32 %v5353, %v5711
        %v5713 = vsub.f32 1.0, %v5712
        %v5714 = vmul.f32 %v5711, %v5713
        %v5715 = vadd.f32 %v5711, %v5714
        %vm5716 = vweird.f32 %v5353
        %vm5717 = vweird.f32 %v5711
        %vm5718 = vmor %vm5716, %vm5717
        %v5719 = vsel %vm5718, %v5711, %v5715
        %v5720 = vand.u32 2147483647, %v5353
        %vm5721 = vcmp.eq.f32.partialorder %v5720, 8.507059e+37
        %v5722 = vand.u32 %v5353, 2147483648
        %v5723 = vor.u32 1.1754944e-38, %v5722
        %v5724 = vsel %vm5721, %v5723, %v5719
        %v5725 = vmul.f32 1.0, %v5724
        %v5726 = vrcp.pop %v5356
        %v5727 = vmul.f32 %v5356, %v5726
        %v5728 = vsub.f32 1.0, %v5727
        %v5729 = vmul.f32 %v5726, %v5728
        %v5730 = vadd.f32 %v5726, %v5729
        %vm5731 = vweird.f32 %v5356
        %vm5732 = vweird.f32 %v5726
        %vm5733 = vmor %vm5731, %vm5732
        %v5734 = vsel %vm5733, %v5726, %v5730
        %v5735 = vand.u32 2147483647, %v5356
        %vm5736 = vcmp.eq.f32.partialorder %v5735, 8.507059e+37
        %v5737 = vand.u32 %v5356, 2147483648
        %v5738 = vor.u32 1.1754944e-38, %v5737
        %v5739 = vsel %vm5736, %v5738, %v5734
        %v5740 = vmul.f32 1.0, %v5739
        %v5741 = vrcp.pop %v5359
        %v5742 = vmul.f32 %v5359, %v5741
        %v5743 = vsub.f32 1.0, %v5742
        %v5744 = vmul.f32 %v5741, %v5743
        %v5745 = vadd.f32 %v5741, %v5744
        %vm5746 = vweird.f32 %v5359
        %vm5747 = vweird.f32 %v5741
        %vm5748 = vmor %vm5746, %vm5747
        %v5749 = vsel %vm5748, %v5741, %v5745
        %v5750 = vand.u32 2147483647, %v5359
        %vm5751 = vcmp.eq.f32.partialorder %v5750, 8.507059e+37
        %v5752 = vand.u32 %v5359, 2147483648
        %v5753 = vor.u32 1.1754944e-38, %v5752
        %v5754 = vsel %vm5751, %v5753, %v5749
        %v5755 = vmul.f32 1.0, %v5754
        %v5756 = vrcp.pop %v5362
        %v5757 = vmul.f32 %v5362, %v5756
        %v5758 = vsub.f32 1.0, %v5757
        %v5759 = vmul.f32 %v5756, %v5758
        %v5760 = vadd.f32 %v5756, %v5759
        %vm5761 = vweird.f32 %v5362
        %vm5762 = vweird.f32 %v5756
        %vm5763 = vmor %vm5761, %vm5762
        %v5764 = vsel %vm5763, %v5756, %v5760
        %v5765 = vand.u32 2147483647, %v5362
        %vm5766 = vcmp.eq.f32.partialorder %v5765, 8.507059e+37
        %v5767 = vand.u32 %v5362, 2147483648
        %v5768 = vor.u32 1.1754944e-38, %v5767
        %v5769 = vsel %vm5766, %v5768, %v5764
        %v5770 = vmul.f32 1.0, %v5769
        %v5771 = vrcp.pop %v5365
        %v5772 = vmul.f32 %v5365, %v5771
        %v5773 = vsub.f32 1.0, %v5772
        %v5774 = vmul.f32 %v5771, %v5773
        %v5775 = vadd.f32 %v5771, %v5774
        %vm5776 = vweird.f32 %v5365
        %vm5777 = vweird.f32 %v5771
        %vm5778 = vmor %vm5776, %vm5777
        %v5779 = vsel %vm5778, %v5771, %v5775
        %v5780 = vand.u32 2147483647, %v5365
        %vm5781 = vcmp.eq.f32.partialorder %v5780, 8.507059e+37
        %v5782 = vand.u32 %v5365, 2147483648
        %v5783 = vor.u32 1.1754944e-38, %v5782
        %v5784 = vsel %vm5781, %v5783, %v5779
        %v5785 = vmul.f32 1.0, %v5784
        %v5786 = vrcp.pop %v5368
        %v5787 = vmul.f32 %v5368, %v5786
        %v5788 = vsub.f32 1.0, %v5787
        %v5789 = vmul.f32 %v5786, %v5788
        %v5790 = vadd.f32 %v5786, %v5789
        %vm5791 = vweird.f32 %v5368
        %vm5792 = vweird.f32 %v5786
        %vm5793 = vmor %vm5791, %vm5792
        %v5794 = vsel %vm5793, %v5786, %v5790
        %v5795 = vand.u32 2147483647, %v5368
        %vm5796 = vcmp.eq.f32.partialorder %v5795, 8.507059e+37
        %v5797 = vand.u32 %v5368, 2147483648
        %v5798 = vor.u32 1.1754944e-38, %v5797
        %v5799 = vsel %vm5796, %v5798, %v5794
        %v5800 = vmul.f32 1.0, %v5799
        %v5801 = vrcp.pop %v5371
        %v5802 = vmul.f32 %v5371, %v5801
        %v5803 = vsub.f32 1.0, %v5802
        %v5804 = vmul.f32 %v5801, %v5803
        %v5805 = vadd.f32 %v5801, %v5804
        %vm5806 = vweird.f32 %v5371
        %vm5807 = vweird.f32 %v5801
        %vm5808 = vmor %vm5806, %vm5807
        %v5809 = vsel %vm5808, %v5801, %v5805
        %v5810 = vand.u32 2147483647, %v5371
        %vm5811 = vcmp.eq.f32.partialorder %v5810, 8.507059e+37
        %v5812 = vand.u32 %v5371, 2147483648
        %v5813 = vor.u32 1.1754944e-38, %v5812
        %v5814 = vsel %vm5811, %v5813, %v5809
        %v5815 = vmul.f32 1.0, %v5814
        %v5816 = vrcp.pop %v5374
        %v5817 = vmul.f32 %v5374, %v5816
        %v5818 = vsub.f32 1.0, %v5817
        %v5819 = vmul.f32 %v5816, %v5818
        %v5820 = vadd.f32 %v5816, %v5819
        %vm5821 = vweird.f32 %v5374
        %vm5822 = vweird.f32 %v5816
        %vm5823 = vmor %vm5821, %vm5822
        %v5824 = vsel %vm5823, %v5816, %v5820
        %v5825 = vand.u32 2147483647, %v5374
        %vm5826 = vcmp.eq.f32.partialorder %v5825, 8.507059e+37
        %v5827 = vand.u32 %v5374, 2147483648
        %v5828 = vor.u32 1.1754944e-38, %v5827
        %v5829 = vsel %vm5826, %v5828, %v5824
        %v5830 = vmul.f32 1.0, %v5829
        %v5831 = vrcp.pop %v5377
        %v5832 = vmul.f32 %v5377, %v5831
        %v5833 = vsub.f32 1.0, %v5832
        %v5834 = vmul.f32 %v5831, %v5833
        %v5835 = vadd.f32 %v5831, %v5834
        %vm5836 = vweird.f32 %v5377
        %vm5837 = vweird.f32 %v5831
        %vm5838 = vmor %vm5836, %vm5837
        %v5839 = vsel %vm5838, %v5831, %v5835
        %v5840 = vand.u32 2147483647, %v5377
        %vm5841 = vcmp.eq.f32.partialorder %v5840, 8.507059e+37
        %v5842 = vand.u32 %v5377, 2147483648
        %v5843 = vor.u32 1.1754944e-38, %v5842
        %v5844 = vsel %vm5841, %v5843, %v5839
        %v5845 = vmul.f32 1.0, %v5844
        %v5846 = vrcp.pop %v5380
        %v5847 = vmul.f32 %v5380, %v5846
        %v5848 = vsub.f32 1.0, %v5847
        %v5849 = vmul.f32 %v5846, %v5848
        %v5850 = vadd.f32 %v5846, %v5849
        %vm5851 = vweird.f32 %v5380
        %vm5852 = vweird.f32 %v5846
        %vm5853 = vmor %vm5851, %vm5852
        %v5854 = vsel %vm5853, %v5846, %v5850
        %v5855 = vand.u32 2147483647, %v5380
        %vm5856 = vcmp.eq.f32.partialorder %v5855, 8.507059e+37
        %v5857 = vand.u32 %v5380, 2147483648
        %v5858 = vor.u32 1.1754944e-38, %v5857
        %v5859 = vsel %vm5856, %v5858, %v5854
        %v5860 = vmul.f32 1.0, %v5859
        %v5861 = vmul.f32 %v5158, %v5395
        %v5862 = vmul.f32 %v5160, %v5395
        %v5863 = vmul.f32 %v5162, %v5410
        %v5864 = vmul.f32 %v5164, %v5410
        %v5865 = vmul.f32 %v5166, %v5425
        %v5866 = vmul.f32 %v5168, %v5425
        %v5867 = vmul.f32 %v5170, %v5440
        %v5868 = vmul.f32 %v5172, %v5440
        %v5869 = vmul.f32 %v5174, %v5455
        %v5870 = vmul.f32 %v5176, %v5455
        %v5871 = vmul.f32 %v5178, %v5470
        %v5872 = vmul.f32 %v5180, %v5470
        %v5873 = vmul.f32 %v5182, %v5485
        %v5874 = vmul.f32 %v5184, %v5485
        %v5875 = vmul.f32 %v5186, %v5500
        %v5876 = vmul.f32 %v5188, %v5500
        %v5877 = vmul.f32 %v5190, %v5515
        %v5878 = vmul.f32 %v5192, %v5515
        %v5879 = vmul.f32 %v5194, %v5530
        %v5880 = vmul.f32 %v5196, %v5530
        %v5881 = vmul.f32 %v5198, %v5545
        %v5882 = vmul.f32 %v5200, %v5545
        %v5883 = vmul.f32 %v5202, %v5560
        %v5884 = vmul.f32 %v5204, %v5560
        %v5885 = vmul.f32 %v5206, %v5575
        %v5886 = vmul.f32 %v5208, %v5575
        %v5887 = vmul.f32 %v5210, %v5590
        %v5888 = vmul.f32 %v5212, %v5590
        %v5889 = vmul.f32 %v5214, %v5605
        %v5890 = vmul.f32 %v5216, %v5605
        %v5891 = vmul.f32 %v5218, %v5620
        %v5892 = vmul.f32 %v5220, %v5620
        %v5893 = vmul.f32 %v5222, %v5635
        %v5894 = vmul.f32 %v5224, %v5635
        %v5895 = vmul.f32 %v5226, %v5650
        %v5896 = vmul.f32 %v5228, %v5650
        %v5897 = vmul.f32 %v5230, %v5665
        %v5898 = vmul.f32 %v5232, %v5665
        %v5899 = vmul.f32 %v5234, %v5680
        %v5900 = vmul.f32 %v5236, %v5680
        %v5901 = vmul.f32 %v5238, %v5695
        %v5902 = vmul.f32 %v5240, %v5695
        %v5903 = vmul.f32 %v5242, %v5710
        %v5904 = vmul.f32 %v5244, %v5710
        %v5905 = vmul.f32 %v5246, %v5725
        %v5906 = vmul.f32 %v5248, %v5725
        %v5907 = vmul.f32 %v5250, %v5740
        %v5908 = vmul.f32 %v5252, %v5740
        %v5909 = vmul.f32 %v5254, %v5755
        %v5910 = vmul.f32 %v5256, %v5755
        %v5911 = vmul.f32 %v5258, %v5770
        %v5912 = vmul.f32 %v5260, %v5770
        %v5913 = vmul.f32 %v5262, %v5785
        %v5914 = vmul.f32 %v5264, %v5785
        %v5915 = vmul.f32 %v5266, %v5800
        %v5916 = vmul.f32 %v5268, %v5800
        %v5917 = vmul.f32 %v5270, %v5815
        %v5918 = vmul.f32 %v5272, %v5815
        %v5919 = vmul.f32 %v5274, %v5830
        %v5920 = vmul.f32 %v5276, %v5830
        %v5921 = vmul.f32 %v5278, %v5845
        %v5922 = vmul.f32 %v5280, %v5845
        %v5923 = vmul.f32 %v5282, %v5860
        %v5924 = vmul.f32 %v5284, %v5860
        %5925 = vrot.lane.b32.xlu0 %v625, 64
        %v5926 = vpop.permute.xlu0 %5925
        %5927 = vrot.lane.b32.xlu0 %v628, 64
        %v5928 = vpop.permute.xlu0 %5927
        %5929 = vrot.lane.b32.xlu0 %v631, 64
        %v5930 = vpop.permute.xlu0 %5929
        %5931 = vrot.lane.b32.xlu0 %v634, 64
        %v5932 = vpop.permute.xlu0 %5931
        %5933 = vrot.lane.b32.xlu0 %v637, 64
        %v5934 = vpop.permute.xlu0 %5933
        %5935 = vrot.lane.b32.xlu0 %v640, 64
        %v5936 = vpop.permute.xlu0 %5935
        %5937 = vrot.lane.b32.xlu0 %v643, 64
        %v5938 = vpop.permute.xlu0 %5937
        %5939 = vrot.lane.b32.xlu0 %v646, 64
        %v5940 = vpop.permute.xlu0 %5939
        %5941 = vrot.lane.b32.xlu0 %v649, 64
        %v5942 = vpop.permute.xlu0 %5941
        %5943 = vrot.lane.b32.xlu0 %v652, 64
        %v5944 = vpop.permute.xlu0 %5943
        %5945 = vrot.lane.b32.xlu0 %v655, 64
        %v5946 = vpop.permute.xlu0 %5945
        %5947 = vrot.lane.b32.xlu0 %v658, 64
        %v5948 = vpop.permute.xlu0 %5947
        %5949 = vrot.lane.b32.xlu0 %v661, 64
        %v5950 = vpop.permute.xlu0 %5949
        %5951 = vrot.lane.b32.xlu0 %v664, 64
        %v5952 = vpop.permute.xlu0 %5951
        %5953 = vrot.lane.b32.xlu0 %v667, 64
        %v5954 = vpop.permute.xlu0 %5953
        %5955 = vrot.lane.b32.xlu0 %v670, 64
        %v5956 = vpop.permute.xlu0 %5955
        %5957 = vrot.lane.b32.xlu0 %v673, 64
        %v5958 = vpop.permute.xlu0 %5957
        %5959 = vrot.lane.b32.xlu0 %v676, 64
        %v5960 = vpop.permute.xlu0 %5959
        %5961 = vrot.lane.b32.xlu0 %v679, 64
        %v5962 = vpop.permute.xlu0 %5961
        %5963 = vrot.lane.b32.xlu0 %v682, 64
        %v5964 = vpop.permute.xlu0 %5963
        %5965 = vrot.lane.b32.xlu0 %v685, 64
        %v5966 = vpop.permute.xlu0 %5965
        %5967 = vrot.lane.b32.xlu0 %v688, 64
        %v5968 = vpop.permute.xlu0 %5967
        %5969 = vrot.lane.b32.xlu0 %v691, 64
        %v5970 = vpop.permute.xlu0 %5969
        %5971 = vrot.lane.b32.xlu0 %v694, 64
        %v5972 = vpop.permute.xlu0 %5971
        %5973 = vrot.lane.b32.xlu0 %v697, 64
        %v5974 = vpop.permute.xlu0 %5973
        %5975 = vrot.lane.b32.xlu0 %v700, 64
        %v5976 = vpop.permute.xlu0 %5975
        %5977 = vrot.lane.b32.xlu0 %v703, 64
        %v5978 = vpop.permute.xlu0 %5977
        %5979 = vrot.lane.b32.xlu0 %v706, 64
        %v5980 = vpop.permute.xlu0 %5979
        %5981 = vrot.lane.b32.xlu0 %v709, 64
        %v5982 = vpop.permute.xlu0 %5981
        %5983 = vrot.lane.b32.xlu0 %v712, 64
        %v5984 = vpop.permute.xlu0 %5983
        %5985 = vrot.lane.b32.xlu0 %v715, 64
        %v5986 = vpop.permute.xlu0 %5985
        %5987 = vrot.lane.b32.xlu0 %v718, 64
        %v5988 = vpop.permute.xlu0 %5987
        %6021 = vmatpush.msra.mxu0 %v5956
        %6022 = vmatpush.msra.mxu0 %v5954
        %6023 = vmatpush.msra.mxu0 %v5952
        %6024 = vmatpush.msra.mxu0 %v5950
        %6025 = vmatpush.msra.mxu0 %v5948
        %6026 = vmatpush.msra.mxu0 %v5946
        %6027 = vmatpush.msra.mxu0 %v5944
        %6028 = vmatpush.msra.mxu0 %v5942
        %6029 = vmatpush.msra.mxu0 %v5940
        %6030 = vmatpush.msra.mxu0 %v5938
        %6031 = vmatpush.msra.mxu0 %v5936
        %6032 = vmatpush.msra.mxu0 %v5934
        %6033 = vmatpush.msra.mxu0 %v5932
        %6034 = vmatpush.msra.mxu0 %v5930
        %6035 = vmatpush.msra.mxu0 %v5928
        %6036 = vmatpush.msra.mxu0 %v5926
        %6037 = vmatmul.f32.gmra.mxu0 %v5861
        %v6038 = vpop.f32.mrf.mxu0
        %v6039 = vadd.f32 0.0, %v6038
        %6040 = vmatmul.f32.gmra.mxu0 %v5863
        %v6041 = vpop.f32.mrf.mxu0
        %v6042 = vadd.f32 0.0, %v6041
        %6043 = vmatmul.f32.gmra.mxu0 %v5865
        %v6044 = vpop.f32.mrf.mxu0
        %v6045 = vadd.f32 0.0, %v6044
        %6046 = vmatmul.f32.gmra.mxu0 %v5867
        %v6047 = vpop.f32.mrf.mxu0
        %v6048 = vadd.f32 0.0, %v6047
        %6049 = vmatmul.f32.gmra.mxu0 %v5869
        %v6050 = vpop.f32.mrf.mxu0
        %v6051 = vadd.f32 0.0, %v6050
        %6052 = vmatmul.f32.gmra.mxu0 %v5871
        %v6053 = vpop.f32.mrf.mxu0
        %v6054 = vadd.f32 0.0, %v6053
        %6055 = vmatmul.f32.gmra.mxu0 %v5873
        %v6056 = vpop.f32.mrf.mxu0
        %v6057 = vadd.f32 0.0, %v6056
        %6058 = vmatmul.f32.gmra.mxu0 %v5875
        %v6059 = vpop.f32.mrf.mxu0
        %v6060 = vadd.f32 0.0, %v6059
        %6061 = vmatmul.f32.gmra.mxu0 %v5877
        %v6062 = vpop.f32.mrf.mxu0
        %v6063 = vadd.f32 0.0, %v6062
        %6064 = vmatmul.f32.gmra.mxu0 %v5879
        %v6065 = vpop.f32.mrf.mxu0
        %v6066 = vadd.f32 0.0, %v6065
        %6067 = vmatmul.f32.gmra.mxu0 %v5881
        %v6068 = vpop.f32.mrf.mxu0
        %v6069 = vadd.f32 0.0, %v6068
        %6070 = vmatmul.f32.gmra.mxu0 %v5883
        %v6071 = vpop.f32.mrf.mxu0
        %v6072 = vadd.f32 0.0, %v6071
        %6073 = vmatmul.f32.gmra.mxu0 %v5885
        %v6074 = vpop.f32.mrf.mxu0
        %v6075 = vadd.f32 0.0, %v6074
        %6076 = vmatmul.f32.gmra.mxu0 %v5887
        %v6077 = vpop.f32.mrf.mxu0
        %v6078 = vadd.f32 0.0, %v6077
        %6079 = vmatmul.f32.gmra.mxu0 %v5889
        %v6080 = vpop.f32.mrf.mxu0
        %v6081 = vadd.f32 0.0, %v6080
        %6082 = vmatmul.f32.gmra.mxu0 %v5891
        %v6083 = vpop.f32.mrf.mxu0
        %v6084 = vadd.f32 0.0, %v6083
        %6085 = vmatmul.f32.gmra.mxu0 %v5893
        %v6086 = vpop.f32.mrf.mxu0
        %v6087 = vadd.f32 0.0, %v6086
        %6088 = vmatmul.f32.gmra.mxu0 %v5895
        %v6089 = vpop.f32.mrf.mxu0
        %v6090 = vadd.f32 0.0, %v6089
        %6091 = vmatmul.f32.gmra.mxu0 %v5897
        %v6092 = vpop.f32.mrf.mxu0
        %v6093 = vadd.f32 0.0, %v6092
        %6094 = vmatmul.f32.gmra.mxu0 %v5899
        %v6095 = vpop.f32.mrf.mxu0
        %v6096 = vadd.f32 0.0, %v6095
        %6097 = vmatmul.f32.gmra.mxu0 %v5901
        %v6098 = vpop.f32.mrf.mxu0
        %v6099 = vadd.f32 0.0, %v6098
        %6100 = vmatmul.f32.gmra.mxu0 %v5903
        %v6101 = vpop.f32.mrf.mxu0
        %v6102 = vadd.f32 0.0, %v6101
        %6103 = vmatmul.f32.gmra.mxu0 %v5905
        %v6104 = vpop.f32.mrf.mxu0
        %v6105 = vadd.f32 0.0, %v6104
        %6106 = vmatmul.f32.gmra.mxu0 %v5907
        %v6107 = vpop.f32.mrf.mxu0
        %v6108 = vadd.f32 0.0, %v6107
        %6109 = vmatmul.f32.gmra.mxu0 %v5909
        %v6110 = vpop.f32.mrf.mxu0
        %v6111 = vadd.f32 0.0, %v6110
        %6112 = vmatmul.f32.gmra.mxu0 %v5911
        %v6113 = vpop.f32.mrf.mxu0
        %v6114 = vadd.f32 0.0, %v6113
        %6115 = vmatmul.f32.gmra.mxu0 %v5913
        %v6116 = vpop.f32.mrf.mxu0
        %v6117 = vadd.f32 0.0, %v6116
        %6118 = vmatmul.f32.gmra.mxu0 %v5915
        %v6119 = vpop.f32.mrf.mxu0
        %v6120 = vadd.f32 0.0, %v6119
        %6121 = vmatmul.f32.gmra.mxu0 %v5917
        %v6122 = vpop.f32.mrf.mxu0
        %v6123 = vadd.f32 0.0, %v6122
        %6124 = vmatmul.f32.gmra.mxu0 %v5919
        %v6125 = vpop.f32.mrf.mxu0
        %v6126 = vadd.f32 0.0, %v6125
        %6127 = vmatmul.f32.gmra.mxu0 %v5921
        %v6128 = vpop.f32.mrf.mxu0
        %v6129 = vadd.f32 0.0, %v6128
        %6130 = vmatmul.f32.gmra.mxu0 %v5923
        %v6131 = vpop.f32.mrf.mxu0
        %v6132 = vadd.f32 0.0, %v6131
        %6133 = vdwg.mxu0
        %6134 = vmatpush.msra.mxu0 %v5988
        %6135 = vmatpush.msra.mxu0 %v5986
        %6136 = vmatpush.msra.mxu0 %v5984
        %6137 = vmatpush.msra.mxu0 %v5982
        %6138 = vmatpush.msra.mxu0 %v5980
        %6139 = vmatpush.msra.mxu0 %v5978
        %6140 = vmatpush.msra.mxu0 %v5976
        %6141 = vmatpush.msra.mxu0 %v5974
        %6142 = vmatpush.msra.mxu0 %v5972
        %6143 = vmatpush.msra.mxu0 %v5970
        %6144 = vmatpush.msra.mxu0 %v5968
        %6145 = vmatpush.msra.mxu0 %v5966
        %6146 = vmatpush.msra.mxu0 %v5964
        %6147 = vmatpush.msra.mxu0 %v5962
        %6148 = vmatpush.msra.mxu0 %v5960
        %6149 = vmatpush.msra.mxu0 %v5958
        %6150 = vmatmul.f32.gmra.mxu0 %v5862
        %v6151 = vpop.f32.mrf.mxu0
        %v6152 = vadd.f32 %v6039, %v6151
        %6153 = vmatmul.f32.gmra.mxu0 %v5864
        %v6154 = vpop.f32.mrf.mxu0
        %v6155 = vadd.f32 %v6042, %v6154
        %6156 = vmatmul.f32.gmra.mxu0 %v5866
        %v6157 = vpop.f32.mrf.mxu0
        %v6158 = vadd.f32 %v6045, %v6157
        %6159 = vmatmul.f32.gmra.mxu0 %v5868
        %v6160 = vpop.f32.mrf.mxu0
        %v6161 = vadd.f32 %v6048, %v6160
        %6162 = vmatmul.f32.gmra.mxu0 %v5870
        %v6163 = vpop.f32.mrf.mxu0
        %v6164 = vadd.f32 %v6051, %v6163
        %6165 = vmatmul.f32.gmra.mxu0 %v5872
        %v6166 = vpop.f32.mrf.mxu0
        %v6167 = vadd.f32 %v6054, %v6166
        %6168 = vmatmul.f32.gmra.mxu0 %v5874
        %v6169 = vpop.f32.mrf.mxu0
        %v6170 = vadd.f32 %v6057, %v6169
        %6171 = vmatmul.f32.gmra.mxu0 %v5876
        %v6172 = vpop.f32.mrf.mxu0
        %v6173 = vadd.f32 %v6060, %v6172
        %6174 = vmatmul.f32.gmra.mxu0 %v5878
        %v6175 = vpop.f32.mrf.mxu0
        %v6176 = vadd.f32 %v6063, %v6175
        %6177 = vmatmul.f32.gmra.mxu0 %v5880
        %v6178 = vpop.f32.mrf.mxu0
        %v6179 = vadd.f32 %v6066, %v6178
        %6180 = vmatmul.f32.gmra.mxu0 %v5882
        %v6181 = vpop.f32.mrf.mxu0
        %v6182 = vadd.f32 %v6069, %v6181
        %6183 = vmatmul.f32.gmra.mxu0 %v5884
        %v6184 = vpop.f32.mrf.mxu0
        %v6185 = vadd.f32 %v6072, %v6184
        %6186 = vmatmul.f32.gmra.mxu0 %v5886
        %v6187 = vpop.f32.mrf.mxu0
        %v6188 = vadd.f32 %v6075, %v6187
        %6189 = vmatmul.f32.gmra.mxu0 %v5888
        %v6190 = vpop.f32.mrf.mxu0
        %v6191 = vadd.f32 %v6078, %v6190
        %6192 = vmatmul.f32.gmra.mxu0 %v5890
        %v6193 = vpop.f32.mrf.mxu0
        %v6194 = vadd.f32 %v6081, %v6193
        %6195 = vmatmul.f32.gmra.mxu0 %v5892
        %v6196 = vpop.f32.mrf.mxu0
        %v6197 = vadd.f32 %v6084, %v6196
        %6198 = vmatmul.f32.gmra.mxu0 %v5894
        %v6199 = vpop.f32.mrf.mxu0
        %v6200 = vadd.f32 %v6087, %v6199
        %6201 = vmatmul.f32.gmra.mxu0 %v5896
        %v6202 = vpop.f32.mrf.mxu0
        %v6203 = vadd.f32 %v6090, %v6202
        %6204 = vmatmul.f32.gmra.mxu0 %v5898
        %v6205 = vpop.f32.mrf.mxu0
        %v6206 = vadd.f32 %v6093, %v6205
        %6207 = vmatmul.f32.gmra.mxu0 %v5900
        %v6208 = vpop.f32.mrf.mxu0
        %v6209 = vadd.f32 %v6096, %v6208
        %6210 = vmatmul.f32.gmra.mxu0 %v5902
        %v6211 = vpop.f32.mrf.mxu0
        %v6212 = vadd.f32 %v6099, %v6211
        %6213 = vmatmul.f32.gmra.mxu0 %v5904
        %v6214 = vpop.f32.mrf.mxu0
        %v6215 = vadd.f32 %v6102, %v6214
        %6216 = vmatmul.f32.gmra.mxu0 %v5906
        %v6217 = vpop.f32.mrf.mxu0
        %v6218 = vadd.f32 %v6105, %v6217
        %6219 = vmatmul.f32.gmra.mxu0 %v5908
        %v6220 = vpop.f32.mrf.mxu0
        %v6221 = vadd.f32 %v6108, %v6220
        %6222 = vmatmul.f32.gmra.mxu0 %v5910
        %v6223 = vpop.f32.mrf.mxu0
        %v6224 = vadd.f32 %v6111, %v6223
        %6225 = vmatmul.f32.gmra.mxu0 %v5912
        %v6226 = vpop.f32.mrf.mxu0
        %v6227 = vadd.f32 %v6114, %v6226
        %6228 = vmatmul.f32.gmra.mxu0 %v5914
        %v6229 = vpop.f32.mrf.mxu0
        %v6230 = vadd.f32 %v6117, %v6229
        %6231 = vmatmul.f32.gmra.mxu0 %v5916
        %v6232 = vpop.f32.mrf.mxu0
        %v6233 = vadd.f32 %v6120, %v6232
        %6234 = vmatmul.f32.gmra.mxu0 %v5918
        %v6235 = vpop.f32.mrf.mxu0
        %v6236 = vadd.f32 %v6123, %v6235
        %6237 = vmatmul.f32.gmra.mxu0 %v5920
        %v6238 = vpop.f32.mrf.mxu0
        %v6239 = vadd.f32 %v6126, %v6238
        %6240 = vmatmul.f32.gmra.mxu0 %v5922
        %v6241 = vpop.f32.mrf.mxu0
        %v6242 = vadd.f32 %v6129, %v6241
        %6243 = vmatmul.f32.gmra.mxu0 %v5924
        %v6244 = vpop.f32.mrf.mxu0
        %v6245 = vadd.f32 %v6132, %v6244
        %6246 = vdwg.mxu0
        %v6247 = vld [vmem:[#allocation8 + $0x40] sm:$0xff]
        %v6248 = vld [vmem:[#allocation8 + $0x48] sm:$0xff]
        %v6249 = vld [vmem:[#allocation8 + $0x50] sm:$0xff]
        %v6250 = vld [vmem:[#allocation8 + $0x58] sm:$0xff]
        %v6252 = vsel %vm752, %v6152, 0
        %v6255 = vsel %vm752, %v6155, 0
        %v6258 = vsel %vm752, %v6158, 0
        %v6261 = vsel %vm752, %v6161, 0
        %v6264 = vsel %vm752, %v6164, 0
        %v6267 = vsel %vm752, %v6167, 0
        %v6270 = vsel %vm752, %v6170, 0
        %v6273 = vsel %vm752, %v6173, 0
        %v6276 = vsel %vm752, %v6176, 0
        %v6279 = vsel %vm752, %v6179, 0
        %v6282 = vsel %vm752, %v6182, 0
        %v6285 = vsel %vm752, %v6185, 0
        %v6288 = vsel %vm752, %v6188, 0
        %v6291 = vsel %vm752, %v6191, 0
        %v6294 = vsel %vm752, %v6194, 0
        %v6297 = vsel %vm752, %v6197, 0
        %v6300 = vsel %vm752, %v6200, 0
        %v6303 = vsel %vm752, %v6203, 0
        %v6306 = vsel %vm752, %v6206, 0
        %v6309 = vsel %vm752, %v6209, 0
        %v6312 = vsel %vm752, %v6212, 0
        %v6315 = vsel %vm752, %v6215, 0
        %v6318 = vsel %vm752, %v6218, 0
        %v6321 = vsel %vm752, %v6221, 0
        %v6324 = vsel %vm752, %v6224, 0
        %v6327 = vsel %vm752, %v6227, 0
        %v6330 = vsel %vm752, %v6230, 0
        %v6333 = vsel %vm752, %v6233, 0
        %v6336 = vsel %vm752, %v6236, 0
        %v6339 = vsel %vm752, %v6239, 0
        %v6342 = vsel %vm752, %v6242, 0
        %v6345 = vsel %vm752, %v6245, 0
        %6347 = vmatpush.msra.mxu0 0.0
        %6348 = vmatpush.msra.mxu0 0.0
        %6349 = vmatpush.msra.mxu0 0.0
        %6350 = vmatpush.msra.mxu0 0.0
        %6351 = vmatpush.msra.mxu0 0.0
        %6352 = vmatpush.msra.mxu0 0.0
        %6353 = vmatpush.msra.mxu0 0.0
        %6354 = vmatpush.msra.mxu0 0.0
        %6355 = vmatpush.msra.mxu0 0.0
        %6356 = vmatpush.msra.mxu0 0.0
        %6357 = vmatpush.msra.mxu0 0.0
        %6358 = vmatpush.msra.mxu0 0.0
        %6359 = vmatpush.msra.mxu0 %v6250
        %6360 = vmatpush.msra.mxu0 %v6249
        %6361 = vmatpush.msra.mxu0 %v6248
        %6362 = vmatpush.msra.mxu0 %v6247
        %6363 = vmatmul.f32.gmra.mxu0 %v6252
        %v6364 = vpop.f32.mrf.mxu0
        %v6365 = vadd.f32 0.0, %v6364
        %6366 = vmatmul.f32.gmra.mxu0 %v6255
        %v6367 = vpop.f32.mrf.mxu0
        %v6368 = vadd.f32 0.0, %v6367
        %6369 = vmatmul.f32.gmra.mxu0 %v6258
        %v6370 = vpop.f32.mrf.mxu0
        %v6371 = vadd.f32 0.0, %v6370
        %6372 = vmatmul.f32.gmra.mxu0 %v6261
        %v6373 = vpop.f32.mrf.mxu0
        %v6374 = vadd.f32 0.0, %v6373
        %6375 = vmatmul.f32.gmra.mxu0 %v6264
        %v6376 = vpop.f32.mrf.mxu0
        %v6377 = vadd.f32 0.0, %v6376
        %6378 = vmatmul.f32.gmra.mxu0 %v6267
        %v6379 = vpop.f32.mrf.mxu0
        %v6380 = vadd.f32 0.0, %v6379
        %6381 = vmatmul.f32.gmra.mxu0 %v6270
        %v6382 = vpop.f32.mrf.mxu0
        %v6383 = vadd.f32 0.0, %v6382
        %6384 = vmatmul.f32.gmra.mxu0 %v6273
        %v6385 = vpop.f32.mrf.mxu0
        %v6386 = vadd.f32 0.0, %v6385
        %6387 = vmatmul.f32.gmra.mxu0 %v6276
        %v6388 = vpop.f32.mrf.mxu0
        %v6389 = vadd.f32 0.0, %v6388
        %6390 = vmatmul.f32.gmra.mxu0 %v6279
        %v6391 = vpop.f32.mrf.mxu0
        %v6392 = vadd.f32 0.0, %v6391
        %6393 = vmatmul.f32.gmra.mxu0 %v6282
        %v6394 = vpop.f32.mrf.mxu0
        %v6395 = vadd.f32 0.0, %v6394
        %6396 = vmatmul.f32.gmra.mxu0 %v6285
        %v6397 = vpop.f32.mrf.mxu0
        %v6398 = vadd.f32 0.0, %v6397
        %6399 = vmatmul.f32.gmra.mxu0 %v6288
        %v6400 = vpop.f32.mrf.mxu0
        %v6401 = vadd.f32 0.0, %v6400
        %6402 = vmatmul.f32.gmra.mxu0 %v6291
        %v6403 = vpop.f32.mrf.mxu0
        %v6404 = vadd.f32 0.0, %v6403
        %6405 = vmatmul.f32.gmra.mxu0 %v6294
        %v6406 = vpop.f32.mrf.mxu0
        %v6407 = vadd.f32 0.0, %v6406
        %6408 = vmatmul.f32.gmra.mxu0 %v6297
        %v6409 = vpop.f32.mrf.mxu0
        %v6410 = vadd.f32 0.0, %v6409
        %6411 = vmatmul.f32.gmra.mxu0 %v6300
        %v6412 = vpop.f32.mrf.mxu0
        %v6413 = vadd.f32 0.0, %v6412
        %6414 = vmatmul.f32.gmra.mxu0 %v6303
        %v6415 = vpop.f32.mrf.mxu0
        %v6416 = vadd.f32 0.0, %v6415
        %6417 = vmatmul.f32.gmra.mxu0 %v6306
        %v6418 = vpop.f32.mrf.mxu0
        %v6419 = vadd.f32 0.0, %v6418
        %6420 = vmatmul.f32.gmra.mxu0 %v6309
        %v6421 = vpop.f32.mrf.mxu0
        %v6422 = vadd.f32 0.0, %v6421
        %6423 = vmatmul.f32.gmra.mxu0 %v6312
        %v6424 = vpop.f32.mrf.mxu0
        %v6425 = vadd.f32 0.0, %v6424
        %6426 = vmatmul.f32.gmra.mxu0 %v6315
        %v6427 = vpop.f32.mrf.mxu0
        %v6428 = vadd.f32 0.0, %v6427
        %6429 = vmatmul.f32.gmra.mxu0 %v6318
        %v6430 = vpop.f32.mrf.mxu0
        %v6431 = vadd.f32 0.0, %v6430
        %6432 = vmatmul.f32.gmra.mxu0 %v6321
        %v6433 = vpop.f32.mrf.mxu0
        %v6434 = vadd.f32 0.0, %v6433
        %6435 = vmatmul.f32.gmra.mxu0 %v6324
        %v6436 = vpop.f32.mrf.mxu0
        %v6437 = vadd.f32 0.0, %v6436
        %6438 = vmatmul.f32.gmra.mxu0 %v6327
        %v6439 = vpop.f32.mrf.mxu0
        %v6440 = vadd.f32 0.0, %v6439
        %6441 = vmatmul.f32.gmra.mxu0 %v6330
        %v6442 = vpop.f32.mrf.mxu0
        %v6443 = vadd.f32 0.0, %v6442
        %6444 = vmatmul.f32.gmra.mxu0 %v6333
        %v6445 = vpop.f32.mrf.mxu0
        %v6446 = vadd.f32 0.0, %v6445
        %6447 = vmatmul.f32.gmra.mxu0 %v6336
        %v6448 = vpop.f32.mrf.mxu0
        %v6449 = vadd.f32 0.0, %v6448
        %6450 = vmatmul.f32.gmra.mxu0 %v6339
        %v6451 = vpop.f32.mrf.mxu0
        %v6452 = vadd.f32 0.0, %v6451
        %6453 = vmatmul.f32.gmra.mxu0 %v6342
        %v6454 = vpop.f32.mrf.mxu0
        %v6455 = vadd.f32 0.0, %v6454
        %6456 = vmatmul.f32.gmra.mxu0 %v6345
        %v6457 = vpop.f32.mrf.mxu0
        %v6458 = vadd.f32 0.0, %v6457
        %6459 = vdwg.mxu0
        %v6460 = vadd.f32 %v4420, %v6365
        %v6461 = vadd.f32 %v4423, %v6368
        %v6462 = vadd.f32 %v4426, %v6371
        %v6463 = vadd.f32 %v4429, %v6374
        %v6464 = vadd.f32 %v4432, %v6377
        %v6465 = vadd.f32 %v4435, %v6380
        %v6466 = vadd.f32 %v4438, %v6383
        %v6467 = vadd.f32 %v4441, %v6386
        %v6468 = vadd.f32 %v4444, %v6389
        %v6469 = vadd.f32 %v4447, %v6392
        %v6470 = vadd.f32 %v4450, %v6395
        %v6471 = vadd.f32 %v4453, %v6398
        %v6472 = vadd.f32 %v4456, %v6401
        %v6473 = vadd.f32 %v4459, %v6404
        %v6474 = vadd.f32 %v4462, %v6407
        %v6475 = vadd.f32 %v4465, %v6410
        %v6476 = vadd.f32 %v4468, %v6413
        %v6477 = vadd.f32 %v4471, %v6416
        %v6478 = vadd.f32 %v4474, %v6419
        %v6479 = vadd.f32 %v4477, %v6422
        %v6480 = vadd.f32 %v4480, %v6425
        %v6481 = vadd.f32 %v4483, %v6428
        %v6482 = vadd.f32 %v4486, %v6431
        %v6483 = vadd.f32 %v4489, %v6434
        %v6484 = vadd.f32 %v4492, %v6437
        %v6485 = vadd.f32 %v4495, %v6440
        %v6486 = vadd.f32 %v4498, %v6443
        %v6487 = vadd.f32 %v4501, %v6446
        %v6488 = vadd.f32 %v4504, %v6449
        %v6489 = vadd.f32 %v4507, %v6452
        %v6490 = vadd.f32 %v4510, %v6455
        %v6491 = vadd.f32 %v4513, %v6458
        %6492 = vrot.lane.b32.xlu0 %v720, 32
        %v6493 = vpop.permute.xlu0 %6492
        %6494 = vrot.lane.b32.xlu0 %v721, 32
        %v6495 = vpop.permute.xlu0 %6494
        %6496 = vrot.lane.b32.xlu0 %v722, 32
        %v6497 = vpop.permute.xlu0 %6496
        %6498 = vrot.lane.b32.xlu0 %v723, 32
        %v6499 = vpop.permute.xlu0 %6498
        %6500 = vrot.lane.b32.xlu0 %v724, 32
        %v6501 = vpop.permute.xlu0 %6500
        %6502 = vrot.lane.b32.xlu0 %v725, 32
        %v6503 = vpop.permute.xlu0 %6502
        %6504 = vrot.lane.b32.xlu0 %v726, 32
        %v6505 = vpop.permute.xlu0 %6504
        %6506 = vrot.lane.b32.xlu0 %v727, 32
        %v6507 = vpop.permute.xlu0 %6506
        %6508 = vrot.lane.b32.xlu0 %v728, 32
        %v6509 = vpop.permute.xlu0 %6508
        %6510 = vrot.lane.b32.xlu0 %v729, 32
        %v6511 = vpop.permute.xlu0 %6510
        %6512 = vrot.lane.b32.xlu0 %v730, 32
        %v6513 = vpop.permute.xlu0 %6512
        %6514 = vrot.lane.b32.xlu0 %v731, 32
        %v6515 = vpop.permute.xlu0 %6514
        %6516 = vrot.lane.b32.xlu0 %v732, 32
        %v6517 = vpop.permute.xlu0 %6516
        %6518 = vrot.lane.b32.xlu0 %v733, 32
        %v6519 = vpop.permute.xlu0 %6518
        %6520 = vrot.lane.b32.xlu0 %v734, 32
        %v6521 = vpop.permute.xlu0 %6520
        %6522 = vrot.lane.b32.xlu0 %v735, 32
        %v6523 = vpop.permute.xlu0 %6522
        %6524 = vrot.lane.b32.xlu0 %v736, 32
        %v6525 = vpop.permute.xlu0 %6524
        %6526 = vrot.lane.b32.xlu0 %v737, 32
        %v6527 = vpop.permute.xlu0 %6526
        %6528 = vrot.lane.b32.xlu0 %v738, 32
        %v6529 = vpop.permute.xlu0 %6528
        %6530 = vrot.lane.b32.xlu0 %v739, 32
        %v6531 = vpop.permute.xlu0 %6530
        %6532 = vrot.lane.b32.xlu0 %v740, 32
        %v6533 = vpop.permute.xlu0 %6532
        %6534 = vrot.lane.b32.xlu0 %v741, 32
        %v6535 = vpop.permute.xlu0 %6534
        %6536 = vrot.lane.b32.xlu0 %v742, 32
        %v6537 = vpop.permute.xlu0 %6536
        %6538 = vrot.lane.b32.xlu0 %v743, 32
        %v6539 = vpop.permute.xlu0 %6538
        %6540 = vrot.lane.b32.xlu0 %v744, 32
        %v6541 = vpop.permute.xlu0 %6540
        %6542 = vrot.lane.b32.xlu0 %v745, 32
        %v6543 = vpop.permute.xlu0 %6542
        %6544 = vrot.lane.b32.xlu0 %v746, 32
        %v6545 = vpop.permute.xlu0 %6544
        %6546 = vrot.lane.b32.xlu0 %v747, 32
        %v6547 = vpop.permute.xlu0 %6546
        %6548 = vrot.lane.b32.xlu0 %v748, 32
        %v6549 = vpop.permute.xlu0 %6548
        %6550 = vrot.lane.b32.xlu0 %v749, 32
        %v6551 = vpop.permute.xlu0 %6550
        %6552 = vrot.lane.b32.xlu0 %v750, 32
        %v6553 = vpop.permute.xlu0 %6552
        %6554 = vrot.lane.b32.xlu0 %v751, 32
        %v6555 = vpop.permute.xlu0 %6554
        %6556 = vrot.lane.b32.xlu0 %v512, 32
        %v6557 = vpop.permute.xlu0 %6556
        %6558 = vrot.lane.b32.xlu0 %v515, 32
        %v6559 = vpop.permute.xlu0 %6558
        %6560 = vrot.lane.b32.xlu0 %v518, 32
        %v6561 = vpop.permute.xlu0 %6560
        %6562 = vrot.lane.b32.xlu0 %v521, 32
        %v6563 = vpop.permute.xlu0 %6562
        %6564 = vrot.lane.b32.xlu0 %v524, 32
        %v6565 = vpop.permute.xlu0 %6564
        %6566 = vrot.lane.b32.xlu0 %v527, 32
        %v6567 = vpop.permute.xlu0 %6566
        %6568 = vrot.lane.b32.xlu0 %v530, 32
        %v6569 = vpop.permute.xlu0 %6568
        %6570 = vrot.lane.b32.xlu0 %v533, 32
        %v6571 = vpop.permute.xlu0 %6570
        %6572 = vrot.lane.b32.xlu0 %v536, 32
        %v6573 = vpop.permute.xlu0 %6572
        %6574 = vrot.lane.b32.xlu0 %v539, 32
        %v6575 = vpop.permute.xlu0 %6574
        %6576 = vrot.lane.b32.xlu0 %v542, 32
        %v6577 = vpop.permute.xlu0 %6576
        %6578 = vrot.lane.b32.xlu0 %v545, 32
        %v6579 = vpop.permute.xlu0 %6578
        %6580 = vrot.lane.b32.xlu0 %v548, 32
        %v6581 = vpop.permute.xlu0 %6580
        %6582 = vrot.lane.b32.xlu0 %v551, 32
        %v6583 = vpop.permute.xlu0 %6582
        %6584 = vrot.lane.b32.xlu0 %v554, 32
        %v6585 = vpop.permute.xlu0 %6584
        %6586 = vrot.lane.b32.xlu0 %v557, 32
        %v6587 = vpop.permute.xlu0 %6586
        %6588 = vrot.lane.b32.xlu0 %v560, 32
        %v6589 = vpop.permute.xlu0 %6588
        %6590 = vrot.lane.b32.xlu0 %v563, 32
        %v6591 = vpop.permute.xlu0 %6590
        %6592 = vrot.lane.b32.xlu0 %v566, 32
        %v6593 = vpop.permute.xlu0 %6592
        %6594 = vrot.lane.b32.xlu0 %v569, 32
        %v6595 = vpop.permute.xlu0 %6594
        %6596 = vrot.lane.b32.xlu0 %v572, 32
        %v6597 = vpop.permute.xlu0 %6596
        %6598 = vrot.lane.b32.xlu0 %v575, 32
        %v6599 = vpop.permute.xlu0 %6598
        %6600 = vrot.lane.b32.xlu0 %v578, 32
        %v6601 = vpop.permute.xlu0 %6600
        %6602 = vrot.lane.b32.xlu0 %v581, 32
        %v6603 = vpop.permute.xlu0 %6602
        %6604 = vrot.lane.b32.xlu0 %v584, 32
        %v6605 = vpop.permute.xlu0 %6604
        %6606 = vrot.lane.b32.xlu0 %v587, 32
        %v6607 = vpop.permute.xlu0 %6606
        %6608 = vrot.lane.b32.xlu0 %v590, 32
        %v6609 = vpop.permute.xlu0 %6608
        %6610 = vrot.lane.b32.xlu0 %v593, 32
        %v6611 = vpop.permute.xlu0 %6610
        %6612 = vrot.lane.b32.xlu0 %v596, 32
        %v6613 = vpop.permute.xlu0 %6612
        %6614 = vrot.lane.b32.xlu0 %v599, 32
        %v6615 = vpop.permute.xlu0 %6614
        %6616 = vrot.lane.b32.xlu0 %v602, 32
        %v6617 = vpop.permute.xlu0 %6616
        %6618 = vrot.lane.b32.xlu0 %v605, 32
        %v6619 = vpop.permute.xlu0 %6618
        %v6620 = vsel %vm752, %v6493, 0
        %v6622 = vsel %vm752, %v6495, 0
        %v6624 = vsel %vm752, %v6497, 0
        %v6626 = vsel %vm752, %v6499, 0
        %v6628 = vsel %vm752, %v6501, 0
        %v6630 = vsel %vm752, %v6503, 0
        %v6632 = vsel %vm752, %v6505, 0
        %v6634 = vsel %vm752, %v6507, 0
        %v6636 = vsel %vm752, %v6509, 0
        %v6638 = vsel %vm752, %v6511, 0
        %v6640 = vsel %vm752, %v6513, 0
        %v6642 = vsel %vm752, %v6515, 0
        %v6644 = vsel %vm752, %v6517, 0
        %v6646 = vsel %vm752, %v6519, 0
        %v6648 = vsel %vm752, %v6521, 0
        %v6650 = vsel %vm752, %v6523, 0
        %v6652 = vsel %vm752, %v6525, 0
        %v6654 = vsel %vm752, %v6527, 0
        %v6656 = vsel %vm752, %v6529, 0
        %v6658 = vsel %vm752, %v6531, 0
        %v6660 = vsel %vm752, %v6533, 0
        %v6662 = vsel %vm752, %v6535, 0
        %v6664 = vsel %vm752, %v6537, 0
        %v6666 = vsel %vm752, %v6539, 0
        %v6668 = vsel %vm752, %v6541, 0
        %v6670 = vsel %vm752, %v6543, 0
        %v6672 = vsel %vm752, %v6545, 0
        %v6674 = vsel %vm752, %v6547, 0
        %v6676 = vsel %vm752, %v6549, 0
        %v6678 = vsel %vm752, %v6551, 0
        %v6680 = vsel %vm752, %v6553, 0
        %v6682 = vsel %vm752, %v6555, 0
        %v6684 = vsel %vm752, %v6557, 0
        %v6686 = vsel %vm752, %v6559, 0
        %v6688 = vsel %vm752, %v6561, 0
        %v6690 = vsel %vm752, %v6563, 0
        %v6692 = vsel %vm752, %v6565, 0
        %v6694 = vsel %vm752, %v6567, 0
        %v6696 = vsel %vm752, %v6569, 0
        %v6698 = vsel %vm752, %v6571, 0
        %v6700 = vsel %vm752, %v6573, 0
        %v6702 = vsel %vm752, %v6575, 0
        %v6704 = vsel %vm752, %v6577, 0
        %v6706 = vsel %vm752, %v6579, 0
        %v6708 = vsel %vm752, %v6581, 0
        %v6710 = vsel %vm752, %v6583, 0
        %v6712 = vsel %vm752, %v6585, 0
        %v6714 = vsel %vm752, %v6587, 0
        %v6716 = vsel %vm752, %v6589, 0
        %v6718 = vsel %vm752, %v6591, 0
        %v6720 = vsel %vm752, %v6593, 0
        %v6722 = vsel %vm752, %v6595, 0
        %v6724 = vsel %vm752, %v6597, 0
        %v6726 = vsel %vm752, %v6599, 0
        %v6728 = vsel %vm752, %v6601, 0
        %v6730 = vsel %vm752, %v6603, 0
        %v6732 = vsel %vm752, %v6605, 0
        %v6734 = vsel %vm752, %v6607, 0
        %v6736 = vsel %vm752, %v6609, 0
        %v6738 = vsel %vm752, %v6611, 0
        %v6740 = vsel %vm752, %v6613, 0
        %v6742 = vsel %vm752, %v6615, 0
        %v6744 = vsel %vm752, %v6617, 0
        %v6746 = vsel %vm752, %v6619, 0
        %6748 = vmatpush.xpose.msra.mxu0 %v6714
        %6749 = vmatpush.xpose.msra.mxu0 %v6712
        %6750 = vmatpush.xpose.msra.mxu0 %v6710
        %6751 = vmatpush.xpose.msra.mxu0 %v6708
        %6752 = vmatpush.xpose.msra.mxu0 %v6706
        %6753 = vmatpush.xpose.msra.mxu0 %v6704
        %6754 = vmatpush.xpose.msra.mxu0 %v6702
        %6755 = vmatpush.xpose.msra.mxu0 %v6700
        %6756 = vmatpush.xpose.msra.mxu0 %v6698
        %6757 = vmatpush.xpose.msra.mxu0 %v6696
        %6758 = vmatpush.xpose.msra.mxu0 %v6694
        %6759 = vmatpush.xpose.msra.mxu0 %v6692
        %6760 = vmatpush.xpose.msra.mxu0 %v6690
        %6761 = vmatpush.xpose.msra.mxu0 %v6688
        %6762 = vmatpush.xpose.msra.mxu0 %v6686
        %6763 = vmatpush.xpose.msra.mxu0 %v6684
        %6764 = vmatmul.f32.gmra.mxu0 %v6620
        %v6765 = vpop.f32.mrf.mxu0
        %v6766 = vadd.f32 0.0, %v6765
        %6767 = vmatmul.f32.gmra.mxu0 %v6622
        %v6768 = vpop.f32.mrf.mxu0
        %v6769 = vadd.f32 0.0, %v6768
        %6770 = vmatmul.f32.gmra.mxu0 %v6624
        %v6771 = vpop.f32.mrf.mxu0
        %v6772 = vadd.f32 0.0, %v6771
        %6773 = vmatmul.f32.gmra.mxu0 %v6626
        %v6774 = vpop.f32.mrf.mxu0
        %v6775 = vadd.f32 0.0, %v6774
        %6776 = vmatmul.f32.gmra.mxu0 %v6628
        %v6777 = vpop.f32.mrf.mxu0
        %v6778 = vadd.f32 0.0, %v6777
        %6779 = vmatmul.f32.gmra.mxu0 %v6630
        %v6780 = vpop.f32.mrf.mxu0
        %v6781 = vadd.f32 0.0, %v6780
        %6782 = vmatmul.f32.gmra.mxu0 %v6632
        %v6783 = vpop.f32.mrf.mxu0
        %v6784 = vadd.f32 0.0, %v6783
        %6785 = vmatmul.f32.gmra.mxu0 %v6634
        %v6786 = vpop.f32.mrf.mxu0
        %v6787 = vadd.f32 0.0, %v6786
        %6788 = vmatmul.f32.gmra.mxu0 %v6636
        %v6789 = vpop.f32.mrf.mxu0
        %v6790 = vadd.f32 0.0, %v6789
        %6791 = vmatmul.f32.gmra.mxu0 %v6638
        %v6792 = vpop.f32.mrf.mxu0
        %v6793 = vadd.f32 0.0, %v6792
        %6794 = vmatmul.f32.gmra.mxu0 %v6640
        %v6795 = vpop.f32.mrf.mxu0
        %v6796 = vadd.f32 0.0, %v6795
        %6797 = vmatmul.f32.gmra.mxu0 %v6642
        %v6798 = vpop.f32.mrf.mxu0
        %v6799 = vadd.f32 0.0, %v6798
        %6800 = vmatmul.f32.gmra.mxu0 %v6644
        %v6801 = vpop.f32.mrf.mxu0
        %v6802 = vadd.f32 0.0, %v6801
        %6803 = vmatmul.f32.gmra.mxu0 %v6646
        %v6804 = vpop.f32.mrf.mxu0
        %v6805 = vadd.f32 0.0, %v6804
        %6806 = vmatmul.f32.gmra.mxu0 %v6648
        %v6807 = vpop.f32.mrf.mxu0
        %v6808 = vadd.f32 0.0, %v6807
        %6809 = vmatmul.f32.gmra.mxu0 %v6650
        %v6810 = vpop.f32.mrf.mxu0
        %v6811 = vadd.f32 0.0, %v6810
        %6812 = vmatmul.f32.gmra.mxu0 %v6652
        %v6813 = vpop.f32.mrf.mxu0
        %v6814 = vadd.f32 0.0, %v6813
        %6815 = vmatmul.f32.gmra.mxu0 %v6654
        %v6816 = vpop.f32.mrf.mxu0
        %v6817 = vadd.f32 0.0, %v6816
        %6818 = vmatmul.f32.gmra.mxu0 %v6656
        %v6819 = vpop.f32.mrf.mxu0
        %v6820 = vadd.f32 0.0, %v6819
        %6821 = vmatmul.f32.gmra.mxu0 %v6658
        %v6822 = vpop.f32.mrf.mxu0
        %v6823 = vadd.f32 0.0, %v6822
        %6824 = vmatmul.f32.gmra.mxu0 %v6660
        %v6825 = vpop.f32.mrf.mxu0
        %v6826 = vadd.f32 0.0, %v6825
        %6827 = vmatmul.f32.gmra.mxu0 %v6662
        %v6828 = vpop.f32.mrf.mxu0
        %v6829 = vadd.f32 0.0, %v6828
        %6830 = vmatmul.f32.gmra.mxu0 %v6664
        %v6831 = vpop.f32.mrf.mxu0
        %v6832 = vadd.f32 0.0, %v6831
        %6833 = vmatmul.f32.gmra.mxu0 %v6666
        %v6834 = vpop.f32.mrf.mxu0
        %v6835 = vadd.f32 0.0, %v6834
        %6836 = vmatmul.f32.gmra.mxu0 %v6668
        %v6837 = vpop.f32.mrf.mxu0
        %v6838 = vadd.f32 0.0, %v6837
        %6839 = vmatmul.f32.gmra.mxu0 %v6670
        %v6840 = vpop.f32.mrf.mxu0
        %v6841 = vadd.f32 0.0, %v6840
        %6842 = vmatmul.f32.gmra.mxu0 %v6672
        %v6843 = vpop.f32.mrf.mxu0
        %v6844 = vadd.f32 0.0, %v6843
        %6845 = vmatmul.f32.gmra.mxu0 %v6674
        %v6846 = vpop.f32.mrf.mxu0
        %v6847 = vadd.f32 0.0, %v6846
        %6848 = vmatmul.f32.gmra.mxu0 %v6676
        %v6849 = vpop.f32.mrf.mxu0
        %v6850 = vadd.f32 0.0, %v6849
        %6851 = vmatmul.f32.gmra.mxu0 %v6678
        %v6852 = vpop.f32.mrf.mxu0
        %v6853 = vadd.f32 0.0, %v6852
        %6854 = vmatmul.f32.gmra.mxu0 %v6680
        %v6855 = vpop.f32.mrf.mxu0
        %v6856 = vadd.f32 0.0, %v6855
        %6857 = vmatmul.f32.gmra.mxu0 %v6682
        %v6858 = vpop.f32.mrf.mxu0
        %v6859 = vadd.f32 0.0, %v6858
        %6860 = vdwg.mxu0
        %6861 = vmatpush.xpose.msra.mxu0 %v6746
        %6862 = vmatpush.xpose.msra.mxu0 %v6744
        %6863 = vmatpush.xpose.msra.mxu0 %v6742
        %6864 = vmatpush.xpose.msra.mxu0 %v6740
        %6865 = vmatpush.xpose.msra.mxu0 %v6738
        %6866 = vmatpush.xpose.msra.mxu0 %v6736
        %6867 = vmatpush.xpose.msra.mxu0 %v6734
        %6868 = vmatpush.xpose.msra.mxu0 %v6732
        %6869 = vmatpush.xpose.msra.mxu0 %v6730
        %6870 = vmatpush.xpose.msra.mxu0 %v6728
        %6871 = vmatpush.xpose.msra.mxu0 %v6726
        %6872 = vmatpush.xpose.msra.mxu0 %v6724
        %6873 = vmatpush.xpose.msra.mxu0 %v6722
        %6874 = vmatpush.xpose.msra.mxu0 %v6720
        %6875 = vmatpush.xpose.msra.mxu0 %v6718
        %6876 = vmatpush.xpose.msra.mxu0 %v6716
        %6877 = vmatmul.f32.gmra.mxu0 %v6620
        %v6878 = vpop.f32.mrf.mxu0
        %v6879 = vadd.f32 0.0, %v6878
        %6880 = vmatmul.f32.gmra.mxu0 %v6622
        %v6881 = vpop.f32.mrf.mxu0
        %v6882 = vadd.f32 0.0, %v6881
        %6883 = vmatmul.f32.gmra.mxu0 %v6624
        %v6884 = vpop.f32.mrf.mxu0
        %v6885 = vadd.f32 0.0, %v6884
        %6886 = vmatmul.f32.gmra.mxu0 %v6626
        %v6887 = vpop.f32.mrf.mxu0
        %v6888 = vadd.f32 0.0, %v6887
        %6889 = vmatmul.f32.gmra.mxu0 %v6628
        %v6890 = vpop.f32.mrf.mxu0
        %v6891 = vadd.f32 0.0, %v6890
        %6892 = vmatmul.f32.gmra.mxu0 %v6630
        %v6893 = vpop.f32.mrf.mxu0
        %v6894 = vadd.f32 0.0, %v6893
        %6895 = vmatmul.f32.gmra.mxu0 %v6632
        %v6896 = vpop.f32.mrf.mxu0
        %v6897 = vadd.f32 0.0, %v6896
        %6898 = vmatmul.f32.gmra.mxu0 %v6634
        %v6899 = vpop.f32.mrf.mxu0
        %v6900 = vadd.f32 0.0, %v6899
        %6901 = vmatmul.f32.gmra.mxu0 %v6636
        %v6902 = vpop.f32.mrf.mxu0
        %v6903 = vadd.f32 0.0, %v6902
        %6904 = vmatmul.f32.gmra.mxu0 %v6638
        %v6905 = vpop.f32.mrf.mxu0
        %v6906 = vadd.f32 0.0, %v6905
        %6907 = vmatmul.f32.gmra.mxu0 %v6640
        %v6908 = vpop.f32.mrf.mxu0
        %v6909 = vadd.f32 0.0, %v6908
        %6910 = vmatmul.f32.gmra.mxu0 %v6642
        %v6911 = vpop.f32.mrf.mxu0
        %v6912 = vadd.f32 0.0, %v6911
        %6913 = vmatmul.f32.gmra.mxu0 %v6644
        %v6914 = vpop.f32.mrf.mxu0
        %v6915 = vadd.f32 0.0, %v6914
        %6916 = vmatmul.f32.gmra.mxu0 %v6646
        %v6917 = vpop.f32.mrf.mxu0
        %v6918 = vadd.f32 0.0, %v6917
        %6919 = vmatmul.f32.gmra.mxu0 %v6648
        %v6920 = vpop.f32.mrf.mxu0
        %v6921 = vadd.f32 0.0, %v6920
        %6922 = vmatmul.f32.gmra.mxu0 %v6650
        %v6923 = vpop.f32.mrf.mxu0
        %v6924 = vadd.f32 0.0, %v6923
        %6925 = vmatmul.f32.gmra.mxu0 %v6652
        %v6926 = vpop.f32.mrf.mxu0
        %v6927 = vadd.f32 0.0, %v6926
        %6928 = vmatmul.f32.gmra.mxu0 %v6654
        %v6929 = vpop.f32.mrf.mxu0
        %v6930 = vadd.f32 0.0, %v6929
        %6931 = vmatmul.f32.gmra.mxu0 %v6656
        %v6932 = vpop.f32.mrf.mxu0
        %v6933 = vadd.f32 0.0, %v6932
        %6934 = vmatmul.f32.gmra.mxu0 %v6658
        %v6935 = vpop.f32.mrf.mxu0
        %v6936 = vadd.f32 0.0, %v6935
        %6937 = vmatmul.f32.gmra.mxu0 %v6660
        %v6938 = vpop.f32.mrf.mxu0
        %v6939 = vadd.f32 0.0, %v6938
        %6940 = vmatmul.f32.gmra.mxu0 %v6662
        %v6941 = vpop.f32.mrf.mxu0
        %v6942 = vadd.f32 0.0, %v6941
        %6943 = vmatmul.f32.gmra.mxu0 %v6664
        %v6944 = vpop.f32.mrf.mxu0
        %v6945 = vadd.f32 0.0, %v6944
        %6946 = vmatmul.f32.gmra.mxu0 %v6666
        %v6947 = vpop.f32.mrf.mxu0
        %v6948 = vadd.f32 0.0, %v6947
        %6949 = vmatmul.f32.gmra.mxu0 %v6668
        %v6950 = vpop.f32.mrf.mxu0
        %v6951 = vadd.f32 0.0, %v6950
        %6952 = vmatmul.f32.gmra.mxu0 %v6670
        %v6953 = vpop.f32.mrf.mxu0
        %v6954 = vadd.f32 0.0, %v6953
        %6955 = vmatmul.f32.gmra.mxu0 %v6672
        %v6956 = vpop.f32.mrf.mxu0
        %v6957 = vadd.f32 0.0, %v6956
        %6958 = vmatmul.f32.gmra.mxu0 %v6674
        %v6959 = vpop.f32.mrf.mxu0
        %v6960 = vadd.f32 0.0, %v6959
        %6961 = vmatmul.f32.gmra.mxu0 %v6676
        %v6962 = vpop.f32.mrf.mxu0
        %v6963 = vadd.f32 0.0, %v6962
        %6964 = vmatmul.f32.gmra.mxu0 %v6678
        %v6965 = vpop.f32.mrf.mxu0
        %v6966 = vadd.f32 0.0, %v6965
        %6967 = vmatmul.f32.gmra.mxu0 %v6680
        %v6968 = vpop.f32.mrf.mxu0
        %v6969 = vadd.f32 0.0, %v6968
        %6970 = vmatmul.f32.gmra.mxu0 %v6682
        %v6971 = vpop.f32.mrf.mxu0
        %v6972 = vadd.f32 0.0, %v6971
        %6973 = vdwg.mxu0
        %v6974 = vmax.f32 %v6766, %v6879
        %6975 = vmax.xlane.f32.xlu0 %v6974
        %v6976 = vpop.xlane.xlu0 %6975
        %v6977 = vmax.f32 %v6769, %v6882
        %6978 = vmax.xlane.f32.xlu0 %v6977
        %v6979 = vpop.xlane.xlu0 %6978
        %v6980 = vmax.f32 %v6772, %v6885
        %6981 = vmax.xlane.f32.xlu0 %v6980
        %v6982 = vpop.xlane.xlu0 %6981
        %v6983 = vmax.f32 %v6775, %v6888
        %6984 = vmax.xlane.f32.xlu0 %v6983
        %v6985 = vpop.xlane.xlu0 %6984
        %v6986 = vmax.f32 %v6778, %v6891
        %6987 = vmax.xlane.f32.xlu0 %v6986
        %v6988 = vpop.xlane.xlu0 %6987
        %v6989 = vmax.f32 %v6781, %v6894
        %6990 = vmax.xlane.f32.xlu0 %v6989
        %v6991 = vpop.xlane.xlu0 %6990
        %v6992 = vmax.f32 %v6784, %v6897
        %6993 = vmax.xlane.f32.xlu0 %v6992
        %v6994 = vpop.xlane.xlu0 %6993
        %v6995 = vmax.f32 %v6787, %v6900
        %6996 = vmax.xlane.f32.xlu0 %v6995
        %v6997 = vpop.xlane.xlu0 %6996
        %v6998 = vmax.f32 %v6790, %v6903
        %6999 = vmax.xlane.f32.xlu0 %v6998
        %v7000 = vpop.xlane.xlu0 %6999
        %v7001 = vmax.f32 %v6793, %v6906
        %7002 = vmax.xlane.f32.xlu0 %v7001
        %v7003 = vpop.xlane.xlu0 %7002
        %v7004 = vmax.f32 %v6796, %v6909
        %7005 = vmax.xlane.f32.xlu0 %v7004
        %v7006 = vpop.xlane.xlu0 %7005
        %v7007 = vmax.f32 %v6799, %v6912
        %7008 = vmax.xlane.f32.xlu0 %v7007
        %v7009 = vpop.xlane.xlu0 %7008
        %v7010 = vmax.f32 %v6802, %v6915
        %7011 = vmax.xlane.f32.xlu0 %v7010
        %v7012 = vpop.xlane.xlu0 %7011
        %v7013 = vmax.f32 %v6805, %v6918
        %7014 = vmax.xlane.f32.xlu0 %v7013
        %v7015 = vpop.xlane.xlu0 %7014
        %v7016 = vmax.f32 %v6808, %v6921
        %7017 = vmax.xlane.f32.xlu0 %v7016
        %v7018 = vpop.xlane.xlu0 %7017
        %v7019 = vmax.f32 %v6811, %v6924
        %7020 = vmax.xlane.f32.xlu0 %v7019
        %v7021 = vpop.xlane.xlu0 %7020
        %v7022 = vmax.f32 %v6814, %v6927
        %7023 = vmax.xlane.f32.xlu0 %v7022
        %v7024 = vpop.xlane.xlu0 %7023
        %v7025 = vmax.f32 %v6817, %v6930
        %7026 = vmax.xlane.f32.xlu0 %v7025
        %v7027 = vpop.xlane.xlu0 %7026
        %v7028 = vmax.f32 %v6820, %v6933
        %7029 = vmax.xlane.f32.xlu0 %v7028
        %v7030 = vpop.xlane.xlu0 %7029
        %v7031 = vmax.f32 %v6823, %v6936
        %7032 = vmax.xlane.f32.xlu0 %v7031
        %v7033 = vpop.xlane.xlu0 %7032
        %v7034 = vmax.f32 %v6826, %v6939
        %7035 = vmax.xlane.f32.xlu0 %v7034
        %v7036 = vpop.xlane.xlu0 %7035
        %v7037 = vmax.f32 %v6829, %v6942
        %7038 = vmax.xlane.f32.xlu0 %v7037
        %v7039 = vpop.xlane.xlu0 %7038
        %v7040 = vmax.f32 %v6832, %v6945
        %7041 = vmax.xlane.f32.xlu0 %v7040
        %v7042 = vpop.xlane.xlu0 %7041
        %v7043 = vmax.f32 %v6835, %v6948
        %7044 = vmax.xlane.f32.xlu0 %v7043
        %v7045 = vpop.xlane.xlu0 %7044
        %v7046 = vmax.f32 %v6838, %v6951
        %7047 = vmax.xlane.f32.xlu0 %v7046
        %v7048 = vpop.xlane.xlu0 %7047
        %v7049 = vmax.f32 %v6841, %v6954
        %7050 = vmax.xlane.f32.xlu0 %v7049
        %v7051 = vpop.xlane.xlu0 %7050
        %v7052 = vmax.f32 %v6844, %v6957
        %7053 = vmax.xlane.f32.xlu0 %v7052
        %v7054 = vpop.xlane.xlu0 %7053
        %v7055 = vmax.f32 %v6847, %v6960
        %7056 = vmax.xlane.f32.xlu0 %v7055
        %v7057 = vpop.xlane.xlu0 %7056
        %v7058 = vmax.f32 %v6850, %v6963
        %7059 = vmax.xlane.f32.xlu0 %v7058
        %v7060 = vpop.xlane.xlu0 %7059
        %v7061 = vmax.f32 %v6853, %v6966
        %7062 = vmax.xlane.f32.xlu0 %v7061
        %v7063 = vpop.xlane.xlu0 %7062
        %v7064 = vmax.f32 %v6856, %v6969
        %7065 = vmax.xlane.f32.xlu0 %v7064
        %v7066 = vpop.xlane.xlu0 %7065
        %v7067 = vmax.f32 %v6859, %v6972
        %7068 = vmax.xlane.f32.xlu0 %v7067
        %v7069 = vpop.xlane.xlu0 %7068
        %v7070 = vsub.f32 %v6766, %v6976
        %v7071 = vsub.f32 %v6879, %v6976
        %v7072 = vsub.f32 %v6769, %v6979
        %v7073 = vsub.f32 %v6882, %v6979
        %v7074 = vsub.f32 %v6772, %v6982
        %v7075 = vsub.f32 %v6885, %v6982
        %v7076 = vsub.f32 %v6775, %v6985
        %v7077 = vsub.f32 %v6888, %v6985
        %v7078 = vsub.f32 %v6778, %v6988
        %v7079 = vsub.f32 %v6891, %v6988
        %v7080 = vsub.f32 %v6781, %v6991
        %v7081 = vsub.f32 %v6894, %v6991
        %v7082 = vsub.f32 %v6784, %v6994
        %v7083 = vsub.f32 %v6897, %v6994
        %v7084 = vsub.f32 %v6787, %v6997
        %v7085 = vsub.f32 %v6900, %v6997
        %v7086 = vsub.f32 %v6790, %v7000
        %v7087 = vsub.f32 %v6903, %v7000
        %v7088 = vsub.f32 %v6793, %v7003
        %v7089 = vsub.f32 %v6906, %v7003
        %v7090 = vsub.f32 %v6796, %v7006
        %v7091 = vsub.f32 %v6909, %v7006
        %v7092 = vsub.f32 %v6799, %v7009
        %v7093 = vsub.f32 %v6912, %v7009
        %v7094 = vsub.f32 %v6802, %v7012
        %v7095 = vsub.f32 %v6915, %v7012
        %v7096 = vsub.f32 %v6805, %v7015
        %v7097 = vsub.f32 %v6918, %v7015
        %v7098 = vsub.f32 %v6808, %v7018
        %v7099 = vsub.f32 %v6921, %v7018
        %v7100 = vsub.f32 %v6811, %v7021
        %v7101 = vsub.f32 %v6924, %v7021
        %v7102 = vsub.f32 %v6814, %v7024
        %v7103 = vsub.f32 %v6927, %v7024
        %v7104 = vsub.f32 %v6817, %v7027
        %v7105 = vsub.f32 %v6930, %v7027
        %v7106 = vsub.f32 %v6820, %v7030
        %v7107 = vsub.f32 %v6933, %v7030
        %v7108 = vsub.f32 %v6823, %v7033
        %v7109 = vsub.f32 %v6936, %v7033
        %v7110 = vsub.f32 %v6826, %v7036
        %v7111 = vsub.f32 %v6939, %v7036
        %v7112 = vsub.f32 %v6829, %v7039
        %v7113 = vsub.f32 %v6942, %v7039
        %v7114 = vsub.f32 %v6832, %v7042
        %v7115 = vsub.f32 %v6945, %v7042
        %v7116 = vsub.f32 %v6835, %v7045
        %v7117 = vsub.f32 %v6948, %v7045
        %v7118 = vsub.f32 %v6838, %v7048
        %v7119 = vsub.f32 %v6951, %v7048
        %v7120 = vsub.f32 %v6841, %v7051
        %v7121 = vsub.f32 %v6954, %v7051
        %v7122 = vsub.f32 %v6844, %v7054
        %v7123 = vsub.f32 %v6957, %v7054
        %v7124 = vsub.f32 %v6847, %v7057
        %v7125 = vsub.f32 %v6960, %v7057
        %v7126 = vsub.f32 %v6850, %v7060
        %v7127 = vsub.f32 %v6963, %v7060
        %v7128 = vsub.f32 %v6853, %v7063
        %v7129 = vsub.f32 %v6966, %v7063
        %v7130 = vsub.f32 %v6856, %v7066
        %v7131 = vsub.f32 %v6969, %v7066
        %v7132 = vsub.f32 %v6859, %v7069
        %v7133 = vsub.f32 %v6972, %v7069
        %v7134 = vmul.f32 %v7070, 1.442695
        %v7135 = vpow.pop %v7134
        %v7136 = vmul.f32 %v7071, 1.442695
        %v7137 = vpow.pop %v7136
        %v7138 = vmul.f32 %v7072, 1.442695
        %v7139 = vpow.pop %v7138
        %v7140 = vmul.f32 %v7073, 1.442695
        %v7141 = vpow.pop %v7140
        %v7142 = vmul.f32 %v7074, 1.442695
        %v7143 = vpow.pop %v7142
        %v7144 = vmul.f32 %v7075, 1.442695
        %v7145 = vpow.pop %v7144
        %v7146 = vmul.f32 %v7076, 1.442695
        %v7147 = vpow.pop %v7146
        %v7148 = vmul.f32 %v7077, 1.442695
        %v7149 = vpow.pop %v7148
        %v7150 = vmul.f32 %v7078, 1.442695
        %v7151 = vpow.pop %v7150
        %v7152 = vmul.f32 %v7079, 1.442695
        %v7153 = vpow.pop %v7152
        %v7154 = vmul.f32 %v7080, 1.442695
        %v7155 = vpow.pop %v7154
        %v7156 = vmul.f32 %v7081, 1.442695
        %v7157 = vpow.pop %v7156
        %v7158 = vmul.f32 %v7082, 1.442695
        %v7159 = vpow.pop %v7158
        %v7160 = vmul.f32 %v7083, 1.442695
        %v7161 = vpow.pop %v7160
        %v7162 = vmul.f32 %v7084, 1.442695
        %v7163 = vpow.pop %v7162
        %v7164 = vmul.f32 %v7085, 1.442695
        %v7165 = vpow.pop %v7164
        %v7166 = vmul.f32 %v7086, 1.442695
        %v7167 = vpow.pop %v7166
        %v7168 = vmul.f32 %v7087, 1.442695
        %v7169 = vpow.pop %v7168
        %v7170 = vmul.f32 %v7088, 1.442695
        %v7171 = vpow.pop %v7170
        %v7172 = vmul.f32 %v7089, 1.442695
        %v7173 = vpow.pop %v7172
        %v7174 = vmul.f32 %v7090, 1.442695
        %v7175 = vpow.pop %v7174
        %v7176 = vmul.f32 %v7091, 1.442695
        %v7177 = vpow.pop %v7176
        %v7178 = vmul.f32 %v7092, 1.442695
        %v7179 = vpow.pop %v7178
        %v7180 = vmul.f32 %v7093, 1.442695
        %v7181 = vpow.pop %v7180
        %v7182 = vmul.f32 %v7094, 1.442695
        %v7183 = vpow.pop %v7182
        %v7184 = vmul.f32 %v7095, 1.442695
        %v7185 = vpow.pop %v7184
        %v7186 = vmul.f32 %v7096, 1.442695
        %v7187 = vpow.pop %v7186
        %v7188 = vmul.f32 %v7097, 1.442695
        %v7189 = vpow.pop %v7188
        %v7190 = vmul.f32 %v7098, 1.442695
        %v7191 = vpow.pop %v7190
        %v7192 = vmul.f32 %v7099, 1.442695
        %v7193 = vpow.pop %v7192
        %v7194 = vmul.f32 %v7100, 1.442695
        %v7195 = vpow.pop %v7194
        %v7196 = vmul.f32 %v7101, 1.442695
        %v7197 = vpow.pop %v7196
        %v7198 = vmul.f32 %v7102, 1.442695
        %v7199 = vpow.pop %v7198
        %v7200 = vmul.f32 %v7103, 1.442695
        %v7201 = vpow.pop %v7200
        %v7202 = vmul.f32 %v7104, 1.442695
        %v7203 = vpow.pop %v7202
        %v7204 = vmul.f32 %v7105, 1.442695
        %v7205 = vpow.pop %v7204
        %v7206 = vmul.f32 %v7106, 1.442695
        %v7207 = vpow.pop %v7206
        %v7208 = vmul.f32 %v7107, 1.442695
        %v7209 = vpow.pop %v7208
        %v7210 = vmul.f32 %v7108, 1.442695
        %v7211 = vpow.pop %v7210
        %v7212 = vmul.f32 %v7109, 1.442695
        %v7213 = vpow.pop %v7212
        %v7214 = vmul.f32 %v7110, 1.442695
        %v7215 = vpow.pop %v7214
        %v7216 = vmul.f32 %v7111, 1.442695
        %v7217 = vpow.pop %v7216
        %v7218 = vmul.f32 %v7112, 1.442695
        %v7219 = vpow.pop %v7218
        %v7220 = vmul.f32 %v7113, 1.442695
        %v7221 = vpow.pop %v7220
        %v7222 = vmul.f32 %v7114, 1.442695
        %v7223 = vpow.pop %v7222
        %v7224 = vmul.f32 %v7115, 1.442695
        %v7225 = vpow.pop %v7224
        %v7226 = vmul.f32 %v7116, 1.442695
        %v7227 = vpow.pop %v7226
        %v7228 = vmul.f32 %v7117, 1.442695
        %v7229 = vpow.pop %v7228
        %v7230 = vmul.f32 %v7118, 1.442695
        %v7231 = vpow.pop %v7230
        %v7232 = vmul.f32 %v7119, 1.442695
        %v7233 = vpow.pop %v7232
        %v7234 = vmul.f32 %v7120, 1.442695
        %v7235 = vpow.pop %v7234
        %v7236 = vmul.f32 %v7121, 1.442695
        %v7237 = vpow.pop %v7236
        %v7238 = vmul.f32 %v7122, 1.442695
        %v7239 = vpow.pop %v7238
        %v7240 = vmul.f32 %v7123, 1.442695
        %v7241 = vpow.pop %v7240
        %v7242 = vmul.f32 %v7124, 1.442695
        %v7243 = vpow.pop %v7242
        %v7244 = vmul.f32 %v7125, 1.442695
        %v7245 = vpow.pop %v7244
        %v7246 = vmul.f32 %v7126, 1.442695
        %v7247 = vpow.pop %v7246
        %v7248 = vmul.f32 %v7127, 1.442695
        %v7249 = vpow.pop %v7248
        %v7250 = vmul.f32 %v7128, 1.442695
        %v7251 = vpow.pop %v7250
        %v7252 = vmul.f32 %v7129, 1.442695
        %v7253 = vpow.pop %v7252
        %v7254 = vmul.f32 %v7130, 1.442695
        %v7255 = vpow.pop %v7254
        %v7256 = vmul.f32 %v7131, 1.442695
        %v7257 = vpow.pop %v7256
        %v7258 = vmul.f32 %v7132, 1.442695
        %v7259 = vpow.pop %v7258
        %v7260 = vmul.f32 %v7133, 1.442695
        %v7261 = vpow.pop %v7260
        %v7262 = vadd.f32 %v7135, %v7137
        %7263 = vadd.xlane.f32.xlu0 %v7262
        %v7264 = vpop.xlane.xlu0 %7263
        %v7265 = vadd.f32 %v7139, %v7141
        %7266 = vadd.xlane.f32.xlu0 %v7265
        %v7267 = vpop.xlane.xlu0 %7266
        %v7268 = vadd.f32 %v7143, %v7145
        %7269 = vadd.xlane.f32.xlu0 %v7268
        %v7270 = vpop.xlane.xlu0 %7269
        %v7271 = vadd.f32 %v7147, %v7149
        %7272 = vadd.xlane.f32.xlu0 %v7271
        %v7273 = vpop.xlane.xlu0 %7272
        %v7274 = vadd.f32 %v7151, %v7153
        %7275 = vadd.xlane.f32.xlu0 %v7274
        %v7276 = vpop.xlane.xlu0 %7275
        %v7277 = vadd.f32 %v7155, %v7157
        %7278 = vadd.xlane.f32.xlu0 %v7277
        %v7279 = vpop.xlane.xlu0 %7278
        %v7280 = vadd.f32 %v7159, %v7161
        %7281 = vadd.xlane.f32.xlu0 %v7280
        %v7282 = vpop.xlane.xlu0 %7281
        %v7283 = vadd.f32 %v7163, %v7165
        %7284 = vadd.xlane.f32.xlu0 %v7283
        %v7285 = vpop.xlane.xlu0 %7284
        %v7286 = vadd.f32 %v7167, %v7169
        %7287 = vadd.xlane.f32.xlu0 %v7286
        %v7288 = vpop.xlane.xlu0 %7287
        %v7289 = vadd.f32 %v7171, %v7173
        %7290 = vadd.xlane.f32.xlu0 %v7289
        %v7291 = vpop.xlane.xlu0 %7290
        %v7292 = vadd.f32 %v7175, %v7177
        %7293 = vadd.xlane.f32.xlu0 %v7292
        %v7294 = vpop.xlane.xlu0 %7293
        %v7295 = vadd.f32 %v7179, %v7181
        %7296 = vadd.xlane.f32.xlu0 %v7295
        %v7297 = vpop.xlane.xlu0 %7296
        %v7298 = vadd.f32 %v7183, %v7185
        %7299 = vadd.xlane.f32.xlu0 %v7298
        %v7300 = vpop.xlane.xlu0 %7299
        %v7301 = vadd.f32 %v7187, %v7189
        %7302 = vadd.xlane.f32.xlu0 %v7301
        %v7303 = vpop.xlane.xlu0 %7302
        %v7304 = vadd.f32 %v7191, %v7193
        %7305 = vadd.xlane.f32.xlu0 %v7304
        %v7306 = vpop.xlane.xlu0 %7305
        %v7307 = vadd.f32 %v7195, %v7197
        %7308 = vadd.xlane.f32.xlu0 %v7307
        %v7309 = vpop.xlane.xlu0 %7308
        %v7310 = vadd.f32 %v7199, %v7201
        %7311 = vadd.xlane.f32.xlu0 %v7310
        %v7312 = vpop.xlane.xlu0 %7311
        %v7313 = vadd.f32 %v7203, %v7205
        %7314 = vadd.xlane.f32.xlu0 %v7313
        %v7315 = vpop.xlane.xlu0 %7314
        %v7316 = vadd.f32 %v7207, %v7209
        %7317 = vadd.xlane.f32.xlu0 %v7316
        %v7318 = vpop.xlane.xlu0 %7317
        %v7319 = vadd.f32 %v7211, %v7213
        %7320 = vadd.xlane.f32.xlu0 %v7319
        %v7321 = vpop.xlane.xlu0 %7320
        %v7322 = vadd.f32 %v7215, %v7217
        %7323 = vadd.xlane.f32.xlu0 %v7322
        %v7324 = vpop.xlane.xlu0 %7323
        %v7325 = vadd.f32 %v7219, %v7221
        %7326 = vadd.xlane.f32.xlu0 %v7325
        %v7327 = vpop.xlane.xlu0 %7326
        %v7328 = vadd.f32 %v7223, %v7225
        %7329 = vadd.xlane.f32.xlu0 %v7328
        %v7330 = vpop.xlane.xlu0 %7329
        %v7331 = vadd.f32 %v7227, %v7229
        %7332 = vadd.xlane.f32.xlu0 %v7331
        %v7333 = vpop.xlane.xlu0 %7332
        %v7334 = vadd.f32 %v7231, %v7233
        %7335 = vadd.xlane.f32.xlu0 %v7334
        %v7336 = vpop.xlane.xlu0 %7335
        %v7337 = vadd.f32 %v7235, %v7237
        %7338 = vadd.xlane.f32.xlu0 %v7337
        %v7339 = vpop.xlane.xlu0 %7338
        %v7340 = vadd.f32 %v7239, %v7241
        %7341 = vadd.xlane.f32.xlu0 %v7340
        %v7342 = vpop.xlane.xlu0 %7341
        %v7343 = vadd.f32 %v7243, %v7245
        %7344 = vadd.xlane.f32.xlu0 %v7343
        %v7345 = vpop.xlane.xlu0 %7344
        %v7346 = vadd.f32 %v7247, %v7249
        %7347 = vadd.xlane.f32.xlu0 %v7346
        %v7348 = vpop.xlane.xlu0 %7347
        %v7349 = vadd.f32 %v7251, %v7253
        %7350 = vadd.xlane.f32.xlu0 %v7349
        %v7351 = vpop.xlane.xlu0 %7350
        %v7352 = vadd.f32 %v7255, %v7257
        %7353 = vadd.xlane.f32.xlu0 %v7352
        %v7354 = vpop.xlane.xlu0 %7353
        %v7355 = vadd.f32 %v7259, %v7261
        %7356 = vadd.xlane.f32.xlu0 %v7355
        %v7357 = vpop.xlane.xlu0 %7356
        %v7358 = vrcp.pop %v7264
        %v7359 = vmul.f32 %v7264, %v7358
        %v7360 = vsub.f32 1.0, %v7359
        %v7361 = vmul.f32 %v7358, %v7360
        %v7362 = vadd.f32 %v7358, %v7361
        %vm7363 = vweird.f32 %v7264
        %vm7364 = vweird.f32 %v7358
        %vm7365 = vmor %vm7363, %vm7364
        %v7366 = vsel %vm7365, %v7358, %v7362
        %v7367 = vand.u32 2147483647, %v7264
        %vm7368 = vcmp.eq.f32.partialorder %v7367, 8.507059e+37
        %v7369 = vand.u32 %v7264, 2147483648
        %v7370 = vor.u32 1.1754944e-38, %v7369
        %v7371 = vsel %vm7368, %v7370, %v7366
        %v7372 = vmul.f32 1.0, %v7371
        %v7373 = vrcp.pop %v7267
        %v7374 = vmul.f32 %v7267, %v7373
        %v7375 = vsub.f32 1.0, %v7374
        %v7376 = vmul.f32 %v7373, %v7375
        %v7377 = vadd.f32 %v7373, %v7376
        %vm7378 = vweird.f32 %v7267
        %vm7379 = vweird.f32 %v7373
        %vm7380 = vmor %vm7378, %vm7379
        %v7381 = vsel %vm7380, %v7373, %v7377
        %v7382 = vand.u32 2147483647, %v7267
        %vm7383 = vcmp.eq.f32.partialorder %v7382, 8.507059e+37
        %v7384 = vand.u32 %v7267, 2147483648
        %v7385 = vor.u32 1.1754944e-38, %v7384
        %v7386 = vsel %vm7383, %v7385, %v7381
        %v7387 = vmul.f32 1.0, %v7386
        %v7388 = vrcp.pop %v7270
        %v7389 = vmul.f32 %v7270, %v7388
        %v7390 = vsub.f32 1.0, %v7389
        %v7391 = vmul.f32 %v7388, %v7390
        %v7392 = vadd.f32 %v7388, %v7391
        %vm7393 = vweird.f32 %v7270
        %vm7394 = vweird.f32 %v7388
        %vm7395 = vmor %vm7393, %vm7394
        %v7396 = vsel %vm7395, %v7388, %v7392
        %v7397 = vand.u32 2147483647, %v7270
        %vm7398 = vcmp.eq.f32.partialorder %v7397, 8.507059e+37
        %v7399 = vand.u32 %v7270, 2147483648
        %v7400 = vor.u32 1.1754944e-38, %v7399
        %v7401 = vsel %vm7398, %v7400, %v7396
        %v7402 = vmul.f32 1.0, %v7401
        %v7403 = vrcp.pop %v7273
        %v7404 = vmul.f32 %v7273, %v7403
        %v7405 = vsub.f32 1.0, %v7404
        %v7406 = vmul.f32 %v7403, %v7405
        %v7407 = vadd.f32 %v7403, %v7406
        %vm7408 = vweird.f32 %v7273
        %vm7409 = vweird.f32 %v7403
        %vm7410 = vmor %vm7408, %vm7409
        %v7411 = vsel %vm7410, %v7403, %v7407
        %v7412 = vand.u32 2147483647, %v7273
        %vm7413 = vcmp.eq.f32.partialorder %v7412, 8.507059e+37
        %v7414 = vand.u32 %v7273, 2147483648
        %v7415 = vor.u32 1.1754944e-38, %v7414
        %v7416 = vsel %vm7413, %v7415, %v7411
        %v7417 = vmul.f32 1.0, %v7416
        %v7418 = vrcp.pop %v7276
        %v7419 = vmul.f32 %v7276, %v7418
        %v7420 = vsub.f32 1.0, %v7419
        %v7421 = vmul.f32 %v7418, %v7420
        %v7422 = vadd.f32 %v7418, %v7421
        %vm7423 = vweird.f32 %v7276
        %vm7424 = vweird.f32 %v7418
        %vm7425 = vmor %vm7423, %vm7424
        %v7426 = vsel %vm7425, %v7418, %v7422
        %v7427 = vand.u32 2147483647, %v7276
        %vm7428 = vcmp.eq.f32.partialorder %v7427, 8.507059e+37
        %v7429 = vand.u32 %v7276, 2147483648
        %v7430 = vor.u32 1.1754944e-38, %v7429
        %v7431 = vsel %vm7428, %v7430, %v7426
        %v7432 = vmul.f32 1.0, %v7431
        %v7433 = vrcp.pop %v7279
        %v7434 = vmul.f32 %v7279, %v7433
        %v7435 = vsub.f32 1.0, %v7434
        %v7436 = vmul.f32 %v7433, %v7435
        %v7437 = vadd.f32 %v7433, %v7436
        %vm7438 = vweird.f32 %v7279
        %vm7439 = vweird.f32 %v7433
        %vm7440 = vmor %vm7438, %vm7439
        %v7441 = vsel %vm7440, %v7433, %v7437
        %v7442 = vand.u32 2147483647, %v7279
        %vm7443 = vcmp.eq.f32.partialorder %v7442, 8.507059e+37
        %v7444 = vand.u32 %v7279, 2147483648
        %v7445 = vor.u32 1.1754944e-38, %v7444
        %v7446 = vsel %vm7443, %v7445, %v7441
        %v7447 = vmul.f32 1.0, %v7446
        %v7448 = vrcp.pop %v7282
        %v7449 = vmul.f32 %v7282, %v7448
        %v7450 = vsub.f32 1.0, %v7449
        %v7451 = vmul.f32 %v7448, %v7450
        %v7452 = vadd.f32 %v7448, %v7451
        %vm7453 = vweird.f32 %v7282
        %vm7454 = vweird.f32 %v7448
        %vm7455 = vmor %vm7453, %vm7454
        %v7456 = vsel %vm7455, %v7448, %v7452
        %v7457 = vand.u32 2147483647, %v7282
        %vm7458 = vcmp.eq.f32.partialorder %v7457, 8.507059e+37
        %v7459 = vand.u32 %v7282, 2147483648
        %v7460 = vor.u32 1.1754944e-38, %v7459
        %v7461 = vsel %vm7458, %v7460, %v7456
        %v7462 = vmul.f32 1.0, %v7461
        %v7463 = vrcp.pop %v7285
        %v7464 = vmul.f32 %v7285, %v7463
        %v7465 = vsub.f32 1.0, %v7464
        %v7466 = vmul.f32 %v7463, %v7465
        %v7467 = vadd.f32 %v7463, %v7466
        %vm7468 = vweird.f32 %v7285
        %vm7469 = vweird.f32 %v7463
        %vm7470 = vmor %vm7468, %vm7469
        %v7471 = vsel %vm7470, %v7463, %v7467
        %v7472 = vand.u32 2147483647, %v7285
        %vm7473 = vcmp.eq.f32.partialorder %v7472, 8.507059e+37
        %v7474 = vand.u32 %v7285, 2147483648
        %v7475 = vor.u32 1.1754944e-38, %v7474
        %v7476 = vsel %vm7473, %v7475, %v7471
        %v7477 = vmul.f32 1.0, %v7476
        %v7478 = vrcp.pop %v7288
        %v7479 = vmul.f32 %v7288, %v7478
        %v7480 = vsub.f32 1.0, %v7479
        %v7481 = vmul.f32 %v7478, %v7480
        %v7482 = vadd.f32 %v7478, %v7481
        %vm7483 = vweird.f32 %v7288
        %vm7484 = vweird.f32 %v7478
        %vm7485 = vmor %vm7483, %vm7484
        %v7486 = vsel %vm7485, %v7478, %v7482
        %v7487 = vand.u32 2147483647, %v7288
        %vm7488 = vcmp.eq.f32.partialorder %v7487, 8.507059e+37
        %v7489 = vand.u32 %v7288, 2147483648
        %v7490 = vor.u32 1.1754944e-38, %v7489
        %v7491 = vsel %vm7488, %v7490, %v7486
        %v7492 = vmul.f32 1.0, %v7491
        %v7493 = vrcp.pop %v7291
        %v7494 = vmul.f32 %v7291, %v7493
        %v7495 = vsub.f32 1.0, %v7494
        %v7496 = vmul.f32 %v7493, %v7495
        %v7497 = vadd.f32 %v7493, %v7496
        %vm7498 = vweird.f32 %v7291
        %vm7499 = vweird.f32 %v7493
        %vm7500 = vmor %vm7498, %vm7499
        %v7501 = vsel %vm7500, %v7493, %v7497
        %v7502 = vand.u32 2147483647, %v7291
        %vm7503 = vcmp.eq.f32.partialorder %v7502, 8.507059e+37
        %v7504 = vand.u32 %v7291, 2147483648
        %v7505 = vor.u32 1.1754944e-38, %v7504
        %v7506 = vsel %vm7503, %v7505, %v7501
        %v7507 = vmul.f32 1.0, %v7506
        %v7508 = vrcp.pop %v7294
        %v7509 = vmul.f32 %v7294, %v7508
        %v7510 = vsub.f32 1.0, %v7509
        %v7511 = vmul.f32 %v7508, %v7510
        %v7512 = vadd.f32 %v7508, %v7511
        %vm7513 = vweird.f32 %v7294
        %vm7514 = vweird.f32 %v7508
        %vm7515 = vmor %vm7513, %vm7514
        %v7516 = vsel %vm7515, %v7508, %v7512
        %v7517 = vand.u32 2147483647, %v7294
        %vm7518 = vcmp.eq.f32.partialorder %v7517, 8.507059e+37
        %v7519 = vand.u32 %v7294, 2147483648
        %v7520 = vor.u32 1.1754944e-38, %v7519
        %v7521 = vsel %vm7518, %v7520, %v7516
        %v7522 = vmul.f32 1.0, %v7521
        %v7523 = vrcp.pop %v7297
        %v7524 = vmul.f32 %v7297, %v7523
        %v7525 = vsub.f32 1.0, %v7524
        %v7526 = vmul.f32 %v7523, %v7525
        %v7527 = vadd.f32 %v7523, %v7526
        %vm7528 = vweird.f32 %v7297
        %vm7529 = vweird.f32 %v7523
        %vm7530 = vmor %vm7528, %vm7529
        %v7531 = vsel %vm7530, %v7523, %v7527
        %v7532 = vand.u32 2147483647, %v7297
        %vm7533 = vcmp.eq.f32.partialorder %v7532, 8.507059e+37
        %v7534 = vand.u32 %v7297, 2147483648
        %v7535 = vor.u32 1.1754944e-38, %v7534
        %v7536 = vsel %vm7533, %v7535, %v7531
        %v7537 = vmul.f32 1.0, %v7536
        %v7538 = vrcp.pop %v7300
        %v7539 = vmul.f32 %v7300, %v7538
        %v7540 = vsub.f32 1.0, %v7539
        %v7541 = vmul.f32 %v7538, %v7540
        %v7542 = vadd.f32 %v7538, %v7541
        %vm7543 = vweird.f32 %v7300
        %vm7544 = vweird.f32 %v7538
        %vm7545 = vmor %vm7543, %vm7544
        %v7546 = vsel %vm7545, %v7538, %v7542
        %v7547 = vand.u32 2147483647, %v7300
        %vm7548 = vcmp.eq.f32.partialorder %v7547, 8.507059e+37
        %v7549 = vand.u32 %v7300, 2147483648
        %v7550 = vor.u32 1.1754944e-38, %v7549
        %v7551 = vsel %vm7548, %v7550, %v7546
        %v7552 = vmul.f32 1.0, %v7551
        %v7553 = vrcp.pop %v7303
        %v7554 = vmul.f32 %v7303, %v7553
        %v7555 = vsub.f32 1.0, %v7554
        %v7556 = vmul.f32 %v7553, %v7555
        %v7557 = vadd.f32 %v7553, %v7556
        %vm7558 = vweird.f32 %v7303
        %vm7559 = vweird.f32 %v7553
        %vm7560 = vmor %vm7558, %vm7559
        %v7561 = vsel %vm7560, %v7553, %v7557
        %v7562 = vand.u32 2147483647, %v7303
        %vm7563 = vcmp.eq.f32.partialorder %v7562, 8.507059e+37
        %v7564 = vand.u32 %v7303, 2147483648
        %v7565 = vor.u32 1.1754944e-38, %v7564
        %v7566 = vsel %vm7563, %v7565, %v7561
        %v7567 = vmul.f32 1.0, %v7566
        %v7568 = vrcp.pop %v7306
        %v7569 = vmul.f32 %v7306, %v7568
        %v7570 = vsub.f32 1.0, %v7569
        %v7571 = vmul.f32 %v7568, %v7570
        %v7572 = vadd.f32 %v7568, %v7571
        %vm7573 = vweird.f32 %v7306
        %vm7574 = vweird.f32 %v7568
        %vm7575 = vmor %vm7573, %vm7574
        %v7576 = vsel %vm7575, %v7568, %v7572
        %v7577 = vand.u32 2147483647, %v7306
        %vm7578 = vcmp.eq.f32.partialorder %v7577, 8.507059e+37
        %v7579 = vand.u32 %v7306, 2147483648
        %v7580 = vor.u32 1.1754944e-38, %v7579
        %v7581 = vsel %vm7578, %v7580, %v7576
        %v7582 = vmul.f32 1.0, %v7581
        %v7583 = vrcp.pop %v7309
        %v7584 = vmul.f32 %v7309, %v7583
        %v7585 = vsub.f32 1.0, %v7584
        %v7586 = vmul.f32 %v7583, %v7585
        %v7587 = vadd.f32 %v7583, %v7586
        %vm7588 = vweird.f32 %v7309
        %vm7589 = vweird.f32 %v7583
        %vm7590 = vmor %vm7588, %vm7589
        %v7591 = vsel %vm7590, %v7583, %v7587
        %v7592 = vand.u32 2147483647, %v7309
        %vm7593 = vcmp.eq.f32.partialorder %v7592, 8.507059e+37
        %v7594 = vand.u32 %v7309, 2147483648
        %v7595 = vor.u32 1.1754944e-38, %v7594
        %v7596 = vsel %vm7593, %v7595, %v7591
        %v7597 = vmul.f32 1.0, %v7596
        %v7598 = vrcp.pop %v7312
        %v7599 = vmul.f32 %v7312, %v7598
        %v7600 = vsub.f32 1.0, %v7599
        %v7601 = vmul.f32 %v7598, %v7600
        %v7602 = vadd.f32 %v7598, %v7601
        %vm7603 = vweird.f32 %v7312
        %vm7604 = vweird.f32 %v7598
        %vm7605 = vmor %vm7603, %vm7604
        %v7606 = vsel %vm7605, %v7598, %v7602
        %v7607 = vand.u32 2147483647, %v7312
        %vm7608 = vcmp.eq.f32.partialorder %v7607, 8.507059e+37
        %v7609 = vand.u32 %v7312, 2147483648
        %v7610 = vor.u32 1.1754944e-38, %v7609
        %v7611 = vsel %vm7608, %v7610, %v7606
        %v7612 = vmul.f32 1.0, %v7611
        %v7613 = vrcp.pop %v7315
        %v7614 = vmul.f32 %v7315, %v7613
        %v7615 = vsub.f32 1.0, %v7614
        %v7616 = vmul.f32 %v7613, %v7615
        %v7617 = vadd.f32 %v7613, %v7616
        %vm7618 = vweird.f32 %v7315
        %vm7619 = vweird.f32 %v7613
        %vm7620 = vmor %vm7618, %vm7619
        %v7621 = vsel %vm7620, %v7613, %v7617
        %v7622 = vand.u32 2147483647, %v7315
        %vm7623 = vcmp.eq.f32.partialorder %v7622, 8.507059e+37
        %v7624 = vand.u32 %v7315, 2147483648
        %v7625 = vor.u32 1.1754944e-38, %v7624
        %v7626 = vsel %vm7623, %v7625, %v7621
        %v7627 = vmul.f32 1.0, %v7626
        %v7628 = vrcp.pop %v7318
        %v7629 = vmul.f32 %v7318, %v7628
        %v7630 = vsub.f32 1.0, %v7629
        %v7631 = vmul.f32 %v7628, %v7630
        %v7632 = vadd.f32 %v7628, %v7631
        %vm7633 = vweird.f32 %v7318
        %vm7634 = vweird.f32 %v7628
        %vm7635 = vmor %vm7633, %vm7634
        %v7636 = vsel %vm7635, %v7628, %v7632
        %v7637 = vand.u32 2147483647, %v7318
        %vm7638 = vcmp.eq.f32.partialorder %v7637, 8.507059e+37
        %v7639 = vand.u32 %v7318, 2147483648
        %v7640 = vor.u32 1.1754944e-38, %v7639
        %v7641 = vsel %vm7638, %v7640, %v7636
        %v7642 = vmul.f32 1.0, %v7641
        %v7643 = vrcp.pop %v7321
        %v7644 = vmul.f32 %v7321, %v7643
        %v7645 = vsub.f32 1.0, %v7644
        %v7646 = vmul.f32 %v7643, %v7645
        %v7647 = vadd.f32 %v7643, %v7646
        %vm7648 = vweird.f32 %v7321
        %vm7649 = vweird.f32 %v7643
        %vm7650 = vmor %vm7648, %vm7649
        %v7651 = vsel %vm7650, %v7643, %v7647
        %v7652 = vand.u32 2147483647, %v7321
        %vm7653 = vcmp.eq.f32.partialorder %v7652, 8.507059e+37
        %v7654 = vand.u32 %v7321, 2147483648
        %v7655 = vor.u32 1.1754944e-38, %v7654
        %v7656 = vsel %vm7653, %v7655, %v7651
        %v7657 = vmul.f32 1.0, %v7656
        %v7658 = vrcp.pop %v7324
        %v7659 = vmul.f32 %v7324, %v7658
        %v7660 = vsub.f32 1.0, %v7659
        %v7661 = vmul.f32 %v7658, %v7660
        %v7662 = vadd.f32 %v7658, %v7661
        %vm7663 = vweird.f32 %v7324
        %vm7664 = vweird.f32 %v7658
        %vm7665 = vmor %vm7663, %vm7664
        %v7666 = vsel %vm7665, %v7658, %v7662
        %v7667 = vand.u32 2147483647, %v7324
        %vm7668 = vcmp.eq.f32.partialorder %v7667, 8.507059e+37
        %v7669 = vand.u32 %v7324, 2147483648
        %v7670 = vor.u32 1.1754944e-38, %v7669
        %v7671 = vsel %vm7668, %v7670, %v7666
        %v7672 = vmul.f32 1.0, %v7671
        %v7673 = vrcp.pop %v7327
        %v7674 = vmul.f32 %v7327, %v7673
        %v7675 = vsub.f32 1.0, %v7674
        %v7676 = vmul.f32 %v7673, %v7675
        %v7677 = vadd.f32 %v7673, %v7676
        %vm7678 = vweird.f32 %v7327
        %vm7679 = vweird.f32 %v7673
        %vm7680 = vmor %vm7678, %vm7679
        %v7681 = vsel %vm7680, %v7673, %v7677
        %v7682 = vand.u32 2147483647, %v7327
        %vm7683 = vcmp.eq.f32.partialorder %v7682, 8.507059e+37
        %v7684 = vand.u32 %v7327, 2147483648
        %v7685 = vor.u32 1.1754944e-38, %v7684
        %v7686 = vsel %vm7683, %v7685, %v7681
        %v7687 = vmul.f32 1.0, %v7686
        %v7688 = vrcp.pop %v7330
        %v7689 = vmul.f32 %v7330, %v7688
        %v7690 = vsub.f32 1.0, %v7689
        %v7691 = vmul.f32 %v7688, %v7690
        %v7692 = vadd.f32 %v7688, %v7691
        %vm7693 = vweird.f32 %v7330
        %vm7694 = vweird.f32 %v7688
        %vm7695 = vmor %vm7693, %vm7694
        %v7696 = vsel %vm7695, %v7688, %v7692
        %v7697 = vand.u32 2147483647, %v7330
        %vm7698 = vcmp.eq.f32.partialorder %v7697, 8.507059e+37
        %v7699 = vand.u32 %v7330, 2147483648
        %v7700 = vor.u32 1.1754944e-38, %v7699
        %v7701 = vsel %vm7698, %v7700, %v7696
        %v7702 = vmul.f32 1.0, %v7701
        %v7703 = vrcp.pop %v7333
        %v7704 = vmul.f32 %v7333, %v7703
        %v7705 = vsub.f32 1.0, %v7704
        %v7706 = vmul.f32 %v7703, %v7705
        %v7707 = vadd.f32 %v7703, %v7706
        %vm7708 = vweird.f32 %v7333
        %vm7709 = vweird.f32 %v7703
        %vm7710 = vmor %vm7708, %vm7709
        %v7711 = vsel %vm7710, %v7703, %v7707
        %v7712 = vand.u32 2147483647, %v7333
        %vm7713 = vcmp.eq.f32.partialorder %v7712, 8.507059e+37
        %v7714 = vand.u32 %v7333, 2147483648
        %v7715 = vor.u32 1.1754944e-38, %v7714
        %v7716 = vsel %vm7713, %v7715, %v7711
        %v7717 = vmul.f32 1.0, %v7716
        %v7718 = vrcp.pop %v7336
        %v7719 = vmul.f32 %v7336, %v7718
        %v7720 = vsub.f32 1.0, %v7719
        %v7721 = vmul.f32 %v7718, %v7720
        %v7722 = vadd.f32 %v7718, %v7721
        %vm7723 = vweird.f32 %v7336
        %vm7724 = vweird.f32 %v7718
        %vm7725 = vmor %vm7723, %vm7724
        %v7726 = vsel %vm7725, %v7718, %v7722
        %v7727 = vand.u32 2147483647, %v7336
        %vm7728 = vcmp.eq.f32.partialorder %v7727, 8.507059e+37
        %v7729 = vand.u32 %v7336, 2147483648
        %v7730 = vor.u32 1.1754944e-38, %v7729
        %v7731 = vsel %vm7728, %v7730, %v7726
        %v7732 = vmul.f32 1.0, %v7731
        %v7733 = vrcp.pop %v7339
        %v7734 = vmul.f32 %v7339, %v7733
        %v7735 = vsub.f32 1.0, %v7734
        %v7736 = vmul.f32 %v7733, %v7735
        %v7737 = vadd.f32 %v7733, %v7736
        %vm7738 = vweird.f32 %v7339
        %vm7739 = vweird.f32 %v7733
        %vm7740 = vmor %vm7738, %vm7739
        %v7741 = vsel %vm7740, %v7733, %v7737
        %v7742 = vand.u32 2147483647, %v7339
        %vm7743 = vcmp.eq.f32.partialorder %v7742, 8.507059e+37
        %v7744 = vand.u32 %v7339, 2147483648
        %v7745 = vor.u32 1.1754944e-38, %v7744
        %v7746 = vsel %vm7743, %v7745, %v7741
        %v7747 = vmul.f32 1.0, %v7746
        %v7748 = vrcp.pop %v7342
        %v7749 = vmul.f32 %v7342, %v7748
        %v7750 = vsub.f32 1.0, %v7749
        %v7751 = vmul.f32 %v7748, %v7750
        %v7752 = vadd.f32 %v7748, %v7751
        %vm7753 = vweird.f32 %v7342
        %vm7754 = vweird.f32 %v7748
        %vm7755 = vmor %vm7753, %vm7754
        %v7756 = vsel %vm7755, %v7748, %v7752
        %v7757 = vand.u32 2147483647, %v7342
        %vm7758 = vcmp.eq.f32.partialorder %v7757, 8.507059e+37
        %v7759 = vand.u32 %v7342, 2147483648
        %v7760 = vor.u32 1.1754944e-38, %v7759
        %v7761 = vsel %vm7758, %v7760, %v7756
        %v7762 = vmul.f32 1.0, %v7761
        %v7763 = vrcp.pop %v7345
        %v7764 = vmul.f32 %v7345, %v7763
        %v7765 = vsub.f32 1.0, %v7764
        %v7766 = vmul.f32 %v7763, %v7765
        %v7767 = vadd.f32 %v7763, %v7766
        %vm7768 = vweird.f32 %v7345
        %vm7769 = vweird.f32 %v7763
        %vm7770 = vmor %vm7768, %vm7769
        %v7771 = vsel %vm7770, %v7763, %v7767
        %v7772 = vand.u32 2147483647, %v7345
        %vm7773 = vcmp.eq.f32.partialorder %v7772, 8.507059e+37
        %v7774 = vand.u32 %v7345, 2147483648
        %v7775 = vor.u32 1.1754944e-38, %v7774
        %v7776 = vsel %vm7773, %v7775, %v7771
        %v7777 = vmul.f32 1.0, %v7776
        %v7778 = vrcp.pop %v7348
        %v7779 = vmul.f32 %v7348, %v7778
        %v7780 = vsub.f32 1.0, %v7779
        %v7781 = vmul.f32 %v7778, %v7780
        %v7782 = vadd.f32 %v7778, %v7781
        %vm7783 = vweird.f32 %v7348
        %vm7784 = vweird.f32 %v7778
        %vm7785 = vmor %vm7783, %vm7784
        %v7786 = vsel %vm7785, %v7778, %v7782
        %v7787 = vand.u32 2147483647, %v7348
        %vm7788 = vcmp.eq.f32.partialorder %v7787, 8.507059e+37
        %v7789 = vand.u32 %v7348, 2147483648
        %v7790 = vor.u32 1.1754944e-38, %v7789
        %v7791 = vsel %vm7788, %v7790, %v7786
        %v7792 = vmul.f32 1.0, %v7791
        %v7793 = vrcp.pop %v7351
        %v7794 = vmul.f32 %v7351, %v7793
        %v7795 = vsub.f32 1.0, %v7794
        %v7796 = vmul.f32 %v7793, %v7795
        %v7797 = vadd.f32 %v7793, %v7796
        %vm7798 = vweird.f32 %v7351
        %vm7799 = vweird.f32 %v7793
        %vm7800 = vmor %vm7798, %vm7799
        %v7801 = vsel %vm7800, %v7793, %v7797
        %v7802 = vand.u32 2147483647, %v7351
        %vm7803 = vcmp.eq.f32.partialorder %v7802, 8.507059e+37
        %v7804 = vand.u32 %v7351, 2147483648
        %v7805 = vor.u32 1.1754944e-38, %v7804
        %v7806 = vsel %vm7803, %v7805, %v7801
        %v7807 = vmul.f32 1.0, %v7806
        %v7808 = vrcp.pop %v7354
        %v7809 = vmul.f32 %v7354, %v7808
        %v7810 = vsub.f32 1.0, %v7809
        %v7811 = vmul.f32 %v7808, %v7810
        %v7812 = vadd.f32 %v7808, %v7811
        %vm7813 = vweird.f32 %v7354
        %vm7814 = vweird.f32 %v7808
        %vm7815 = vmor %vm7813, %vm7814
        %v7816 = vsel %vm7815, %v7808, %v7812
        %v7817 = vand.u32 2147483647, %v7354
        %vm7818 = vcmp.eq.f32.partialorder %v7817, 8.507059e+37
        %v7819 = vand.u32 %v7354, 2147483648
        %v7820 = vor.u32 1.1754944e-38, %v7819
        %v7821 = vsel %vm7818, %v7820, %v7816
        %v7822 = vmul.f32 1.0, %v7821
        %v7823 = vrcp.pop %v7357
        %v7824 = vmul.f32 %v7357, %v7823
        %v7825 = vsub.f32 1.0, %v7824
        %v7826 = vmul.f32 %v7823, %v7825
        %v7827 = vadd.f32 %v7823, %v7826
        %vm7828 = vweird.f32 %v7357
        %vm7829 = vweird.f32 %v7823
        %vm7830 = vmor %vm7828, %vm7829
        %v7831 = vsel %vm7830, %v7823, %v7827
        %v7832 = vand.u32 2147483647, %v7357
        %vm7833 = vcmp.eq.f32.partialorder %v7832, 8.507059e+37
        %v7834 = vand.u32 %v7357, 2147483648
        %v7835 = vor.u32 1.1754944e-38, %v7834
        %v7836 = vsel %vm7833, %v7835, %v7831
        %v7837 = vmul.f32 1.0, %v7836
        %v7838 = vmul.f32 %v7135, %v7372
        %v7839 = vmul.f32 %v7137, %v7372
        %v7840 = vmul.f32 %v7139, %v7387
        %v7841 = vmul.f32 %v7141, %v7387
        %v7842 = vmul.f32 %v7143, %v7402
        %v7843 = vmul.f32 %v7145, %v7402
        %v7844 = vmul.f32 %v7147, %v7417
        %v7845 = vmul.f32 %v7149, %v7417
        %v7846 = vmul.f32 %v7151, %v7432
        %v7847 = vmul.f32 %v7153, %v7432
        %v7848 = vmul.f32 %v7155, %v7447
        %v7849 = vmul.f32 %v7157, %v7447
        %v7850 = vmul.f32 %v7159, %v7462
        %v7851 = vmul.f32 %v7161, %v7462
        %v7852 = vmul.f32 %v7163, %v7477
        %v7853 = vmul.f32 %v7165, %v7477
        %v7854 = vmul.f32 %v7167, %v7492
        %v7855 = vmul.f32 %v7169, %v7492
        %v7856 = vmul.f32 %v7171, %v7507
        %v7857 = vmul.f32 %v7173, %v7507
        %v7858 = vmul.f32 %v7175, %v7522
        %v7859 = vmul.f32 %v7177, %v7522
        %v7860 = vmul.f32 %v7179, %v7537
        %v7861 = vmul.f32 %v7181, %v7537
        %v7862 = vmul.f32 %v7183, %v7552
        %v7863 = vmul.f32 %v7185, %v7552
        %v7864 = vmul.f32 %v7187, %v7567
        %v7865 = vmul.f32 %v7189, %v7567
        %v7866 = vmul.f32 %v7191, %v7582
        %v7867 = vmul.f32 %v7193, %v7582
        %v7868 = vmul.f32 %v7195, %v7597
        %v7869 = vmul.f32 %v7197, %v7597
        %v7870 = vmul.f32 %v7199, %v7612
        %v7871 = vmul.f32 %v7201, %v7612
        %v7872 = vmul.f32 %v7203, %v7627
        %v7873 = vmul.f32 %v7205, %v7627
        %v7874 = vmul.f32 %v7207, %v7642
        %v7875 = vmul.f32 %v7209, %v7642
        %v7876 = vmul.f32 %v7211, %v7657
        %v7877 = vmul.f32 %v7213, %v7657
        %v7878 = vmul.f32 %v7215, %v7672
        %v7879 = vmul.f32 %v7217, %v7672
        %v7880 = vmul.f32 %v7219, %v7687
        %v7881 = vmul.f32 %v7221, %v7687
        %v7882 = vmul.f32 %v7223, %v7702
        %v7883 = vmul.f32 %v7225, %v7702
        %v7884 = vmul.f32 %v7227, %v7717
        %v7885 = vmul.f32 %v7229, %v7717
        %v7886 = vmul.f32 %v7231, %v7732
        %v7887 = vmul.f32 %v7233, %v7732
        %v7888 = vmul.f32 %v7235, %v7747
        %v7889 = vmul.f32 %v7237, %v7747
        %v7890 = vmul.f32 %v7239, %v7762
        %v7891 = vmul.f32 %v7241, %v7762
        %v7892 = vmul.f32 %v7243, %v7777
        %v7893 = vmul.f32 %v7245, %v7777
        %v7894 = vmul.f32 %v7247, %v7792
        %v7895 = vmul.f32 %v7249, %v7792
        %v7896 = vmul.f32 %v7251, %v7807
        %v7897 = vmul.f32 %v7253, %v7807
        %v7898 = vmul.f32 %v7255, %v7822
        %v7899 = vmul.f32 %v7257, %v7822
        %v7900 = vmul.f32 %v7259, %v7837
        %v7901 = vmul.f32 %v7261, %v7837
        %7902 = vrot.lane.b32.xlu0 %v625, 32
        %v7903 = vpop.permute.xlu0 %7902
        %7904 = vrot.lane.b32.xlu0 %v628, 32
        %v7905 = vpop.permute.xlu0 %7904
        %7906 = vrot.lane.b32.xlu0 %v631, 32
        %v7907 = vpop.permute.xlu0 %7906
        %7908 = vrot.lane.b32.xlu0 %v634, 32
        %v7909 = vpop.permute.xlu0 %7908
        %7910 = vrot.lane.b32.xlu0 %v637, 32
        %v7911 = vpop.permute.xlu0 %7910
        %7912 = vrot.lane.b32.xlu0 %v640, 32
        %v7913 = vpop.permute.xlu0 %7912
        %7914 = vrot.lane.b32.xlu0 %v643, 32
        %v7915 = vpop.permute.xlu0 %7914
        %7916 = vrot.lane.b32.xlu0 %v646, 32
        %v7917 = vpop.permute.xlu0 %7916
        %7918 = vrot.lane.b32.xlu0 %v649, 32
        %v7919 = vpop.permute.xlu0 %7918
        %7920 = vrot.lane.b32.xlu0 %v652, 32
        %v7921 = vpop.permute.xlu0 %7920
        %7922 = vrot.lane.b32.xlu0 %v655, 32
        %v7923 = vpop.permute.xlu0 %7922
        %7924 = vrot.lane.b32.xlu0 %v658, 32
        %v7925 = vpop.permute.xlu0 %7924
        %7926 = vrot.lane.b32.xlu0 %v661, 32
        %v7927 = vpop.permute.xlu0 %7926
        %7928 = vrot.lane.b32.xlu0 %v664, 32
        %v7929 = vpop.permute.xlu0 %7928
        %7930 = vrot.lane.b32.xlu0 %v667, 32
        %v7931 = vpop.permute.xlu0 %7930
        %7932 = vrot.lane.b32.xlu0 %v670, 32
        %v7933 = vpop.permute.xlu0 %7932
        %7934 = vrot.lane.b32.xlu0 %v673, 32
        %v7935 = vpop.permute.xlu0 %7934
        %7936 = vrot.lane.b32.xlu0 %v676, 32
        %v7937 = vpop.permute.xlu0 %7936
        %7938 = vrot.lane.b32.xlu0 %v679, 32
        %v7939 = vpop.permute.xlu0 %7938
        %7940 = vrot.lane.b32.xlu0 %v682, 32
        %v7941 = vpop.permute.xlu0 %7940
        %7942 = vrot.lane.b32.xlu0 %v685, 32
        %v7943 = vpop.permute.xlu0 %7942
        %7944 = vrot.lane.b32.xlu0 %v688, 32
        %v7945 = vpop.permute.xlu0 %7944
        %7946 = vrot.lane.b32.xlu0 %v691, 32
        %v7947 = vpop.permute.xlu0 %7946
        %7948 = vrot.lane.b32.xlu0 %v694, 32
        %v7949 = vpop.permute.xlu0 %7948
        %7950 = vrot.lane.b32.xlu0 %v697, 32
        %v7951 = vpop.permute.xlu0 %7950
        %7952 = vrot.lane.b32.xlu0 %v700, 32
        %v7953 = vpop.permute.xlu0 %7952
        %7954 = vrot.lane.b32.xlu0 %v703, 32
        %v7955 = vpop.permute.xlu0 %7954
        %7956 = vrot.lane.b32.xlu0 %v706, 32
        %v7957 = vpop.permute.xlu0 %7956
        %7958 = vrot.lane.b32.xlu0 %v709, 32
        %v7959 = vpop.permute.xlu0 %7958
        %7960 = vrot.lane.b32.xlu0 %v712, 32
        %v7961 = vpop.permute.xlu0 %7960
        %7962 = vrot.lane.b32.xlu0 %v715, 32
        %v7963 = vpop.permute.xlu0 %7962
        %7964 = vrot.lane.b32.xlu0 %v718, 32
        %v7965 = vpop.permute.xlu0 %7964
        %7998 = vmatpush.msra.mxu0 %v7933
        %7999 = vmatpush.msra.mxu0 %v7931
        %8000 = vmatpush.msra.mxu0 %v7929
        %8001 = vmatpush.msra.mxu0 %v7927
        %8002 = vmatpush.msra.mxu0 %v7925
        %8003 = vmatpush.msra.mxu0 %v7923
        %8004 = vmatpush.msra.mxu0 %v7921
        %8005 = vmatpush.msra.mxu0 %v7919
        %8006 = vmatpush.msra.mxu0 %v7917
        %8007 = vmatpush.msra.mxu0 %v7915
        %8008 = vmatpush.msra.mxu0 %v7913
        %8009 = vmatpush.msra.mxu0 %v7911
        %8010 = vmatpush.msra.mxu0 %v7909
        %8011 = vmatpush.msra.mxu0 %v7907
        %8012 = vmatpush.msra.mxu0 %v7905
        %8013 = vmatpush.msra.mxu0 %v7903
        %8014 = vmatmul.f32.gmra.mxu0 %v7838
        %v8015 = vpop.f32.mrf.mxu0
        %v8016 = vadd.f32 0.0, %v8015
        %8017 = vmatmul.f32.gmra.mxu0 %v7840
        %v8018 = vpop.f32.mrf.mxu0
        %v8019 = vadd.f32 0.0, %v8018
        %8020 = vmatmul.f32.gmra.mxu0 %v7842
        %v8021 = vpop.f32.mrf.mxu0
        %v8022 = vadd.f32 0.0, %v8021
        %8023 = vmatmul.f32.gmra.mxu0 %v7844
        %v8024 = vpop.f32.mrf.mxu0
        %v8025 = vadd.f32 0.0, %v8024
        %8026 = vmatmul.f32.gmra.mxu0 %v7846
        %v8027 = vpop.f32.mrf.mxu0
        %v8028 = vadd.f32 0.0, %v8027
        %8029 = vmatmul.f32.gmra.mxu0 %v7848
        %v8030 = vpop.f32.mrf.mxu0
        %v8031 = vadd.f32 0.0, %v8030
        %8032 = vmatmul.f32.gmra.mxu0 %v7850
        %v8033 = vpop.f32.mrf.mxu0
        %v8034 = vadd.f32 0.0, %v8033
        %8035 = vmatmul.f32.gmra.mxu0 %v7852
        %v8036 = vpop.f32.mrf.mxu0
        %v8037 = vadd.f32 0.0, %v8036
        %8038 = vmatmul.f32.gmra.mxu0 %v7854
        %v8039 = vpop.f32.mrf.mxu0
        %v8040 = vadd.f32 0.0, %v8039
        %8041 = vmatmul.f32.gmra.mxu0 %v7856
        %v8042 = vpop.f32.mrf.mxu0
        %v8043 = vadd.f32 0.0, %v8042
        %8044 = vmatmul.f32.gmra.mxu0 %v7858
        %v8045 = vpop.f32.mrf.mxu0
        %v8046 = vadd.f32 0.0, %v8045
        %8047 = vmatmul.f32.gmra.mxu0 %v7860
        %v8048 = vpop.f32.mrf.mxu0
        %v8049 = vadd.f32 0.0, %v8048
        %8050 = vmatmul.f32.gmra.mxu0 %v7862
        %v8051 = vpop.f32.mrf.mxu0
        %v8052 = vadd.f32 0.0, %v8051
        %8053 = vmatmul.f32.gmra.mxu0 %v7864
        %v8054 = vpop.f32.mrf.mxu0
        %v8055 = vadd.f32 0.0, %v8054
        %8056 = vmatmul.f32.gmra.mxu0 %v7866
        %v8057 = vpop.f32.mrf.mxu0
        %v8058 = vadd.f32 0.0, %v8057
        %8059 = vmatmul.f32.gmra.mxu0 %v7868
        %v8060 = vpop.f32.mrf.mxu0
        %v8061 = vadd.f32 0.0, %v8060
        %8062 = vmatmul.f32.gmra.mxu0 %v7870
        %v8063 = vpop.f32.mrf.mxu0
        %v8064 = vadd.f32 0.0, %v8063
        %8065 = vmatmul.f32.gmra.mxu0 %v7872
        %v8066 = vpop.f32.mrf.mxu0
        %v8067 = vadd.f32 0.0, %v8066
        %8068 = vmatmul.f32.gmra.mxu0 %v7874
        %v8069 = vpop.f32.mrf.mxu0
        %v8070 = vadd.f32 0.0, %v8069
        %8071 = vmatmul.f32.gmra.mxu0 %v7876
        %v8072 = vpop.f32.mrf.mxu0
        %v8073 = vadd.f32 0.0, %v8072
        %8074 = vmatmul.f32.gmra.mxu0 %v7878
        %v8075 = vpop.f32.mrf.mxu0
        %v8076 = vadd.f32 0.0, %v8075
        %8077 = vmatmul.f32.gmra.mxu0 %v7880
        %v8078 = vpop.f32.mrf.mxu0
        %v8079 = vadd.f32 0.0, %v8078
        %8080 = vmatmul.f32.gmra.mxu0 %v7882
        %v8081 = vpop.f32.mrf.mxu0
        %v8082 = vadd.f32 0.0, %v8081
        %8083 = vmatmul.f32.gmra.mxu0 %v7884
        %v8084 = vpop.f32.mrf.mxu0
        %v8085 = vadd.f32 0.0, %v8084
        %8086 = vmatmul.f32.gmra.mxu0 %v7886
        %v8087 = vpop.f32.mrf.mxu0
        %v8088 = vadd.f32 0.0, %v8087
        %8089 = vmatmul.f32.gmra.mxu0 %v7888
        %v8090 = vpop.f32.mrf.mxu0
        %v8091 = vadd.f32 0.0, %v8090
        %8092 = vmatmul.f32.gmra.mxu0 %v7890
        %v8093 = vpop.f32.mrf.mxu0
        %v8094 = vadd.f32 0.0, %v8093
        %8095 = vmatmul.f32.gmra.mxu0 %v7892
        %v8096 = vpop.f32.mrf.mxu0
        %v8097 = vadd.f32 0.0, %v8096
        %8098 = vmatmul.f32.gmra.mxu0 %v7894
        %v8099 = vpop.f32.mrf.mxu0
        %v8100 = vadd.f32 0.0, %v8099
        %8101 = vmatmul.f32.gmra.mxu0 %v7896
        %v8102 = vpop.f32.mrf.mxu0
        %v8103 = vadd.f32 0.0, %v8102
        %8104 = vmatmul.f32.gmra.mxu0 %v7898
        %v8105 = vpop.f32.mrf.mxu0
        %v8106 = vadd.f32 0.0, %v8105
        %8107 = vmatmul.f32.gmra.mxu0 %v7900
        %v8108 = vpop.f32.mrf.mxu0
        %v8109 = vadd.f32 0.0, %v8108
        %8110 = vdwg.mxu0
        %8111 = vmatpush.msra.mxu0 %v7965
        %8112 = vmatpush.msra.mxu0 %v7963
        %8113 = vmatpush.msra.mxu0 %v7961
        %8114 = vmatpush.msra.mxu0 %v7959
        %8115 = vmatpush.msra.mxu0 %v7957
        %8116 = vmatpush.msra.mxu0 %v7955
        %8117 = vmatpush.msra.mxu0 %v7953
        %8118 = vmatpush.msra.mxu0 %v7951
        %8119 = vmatpush.msra.mxu0 %v7949
        %8120 = vmatpush.msra.mxu0 %v7947
        %8121 = vmatpush.msra.mxu0 %v7945
        %8122 = vmatpush.msra.mxu0 %v7943
        %8123 = vmatpush.msra.mxu0 %v7941
        %8124 = vmatpush.msra.mxu0 %v7939
        %8125 = vmatpush.msra.mxu0 %v7937
        %8126 = vmatpush.msra.mxu0 %v7935
        %8127 = vmatmul.f32.gmra.mxu0 %v7839
        %v8128 = vpop.f32.mrf.mxu0
        %v8129 = vadd.f32 %v8016, %v8128
        %8130 = vmatmul.f32.gmra.mxu0 %v7841
        %v8131 = vpop.f32.mrf.mxu0
        %v8132 = vadd.f32 %v8019, %v8131
        %8133 = vmatmul.f32.gmra.mxu0 %v7843
        %v8134 = vpop.f32.mrf.mxu0
        %v8135 = vadd.f32 %v8022, %v8134
        %8136 = vmatmul.f32.gmra.mxu0 %v7845
        %v8137 = vpop.f32.mrf.mxu0
        %v8138 = vadd.f32 %v8025, %v8137
        %8139 = vmatmul.f32.gmra.mxu0 %v7847
        %v8140 = vpop.f32.mrf.mxu0
        %v8141 = vadd.f32 %v8028, %v8140
        %8142 = vmatmul.f32.gmra.mxu0 %v7849
        %v8143 = vpop.f32.mrf.mxu0
        %v8144 = vadd.f32 %v8031, %v8143
        %8145 = vmatmul.f32.gmra.mxu0 %v7851
        %v8146 = vpop.f32.mrf.mxu0
        %v8147 = vadd.f32 %v8034, %v8146
        %8148 = vmatmul.f32.gmra.mxu0 %v7853
        %v8149 = vpop.f32.mrf.mxu0
        %v8150 = vadd.f32 %v8037, %v8149
        %8151 = vmatmul.f32.gmra.mxu0 %v7855
        %v8152 = vpop.f32.mrf.mxu0
        %v8153 = vadd.f32 %v8040, %v8152
        %8154 = vmatmul.f32.gmra.mxu0 %v7857
        %v8155 = vpop.f32.mrf.mxu0
        %v8156 = vadd.f32 %v8043, %v8155
        %8157 = vmatmul.f32.gmra.mxu0 %v7859
        %v8158 = vpop.f32.mrf.mxu0
        %v8159 = vadd.f32 %v8046, %v8158
        %8160 = vmatmul.f32.gmra.mxu0 %v7861
        %v8161 = vpop.f32.mrf.mxu0
        %v8162 = vadd.f32 %v8049, %v8161
        %8163 = vmatmul.f32.gmra.mxu0 %v7863
        %v8164 = vpop.f32.mrf.mxu0
        %v8165 = vadd.f32 %v8052, %v8164
        %8166 = vmatmul.f32.gmra.mxu0 %v7865
        %v8167 = vpop.f32.mrf.mxu0
        %v8168 = vadd.f32 %v8055, %v8167
        %8169 = vmatmul.f32.gmra.mxu0 %v7867
        %v8170 = vpop.f32.mrf.mxu0
        %v8171 = vadd.f32 %v8058, %v8170
        %8172 = vmatmul.f32.gmra.mxu0 %v7869
        %v8173 = vpop.f32.mrf.mxu0
        %v8174 = vadd.f32 %v8061, %v8173
        %8175 = vmatmul.f32.gmra.mxu0 %v7871
        %v8176 = vpop.f32.mrf.mxu0
        %v8177 = vadd.f32 %v8064, %v8176
        %8178 = vmatmul.f32.gmra.mxu0 %v7873
        %v8179 = vpop.f32.mrf.mxu0
        %v8180 = vadd.f32 %v8067, %v8179
        %8181 = vmatmul.f32.gmra.mxu0 %v7875
        %v8182 = vpop.f32.mrf.mxu0
        %v8183 = vadd.f32 %v8070, %v8182
        %8184 = vmatmul.f32.gmra.mxu0 %v7877
        %v8185 = vpop.f32.mrf.mxu0
        %v8186 = vadd.f32 %v8073, %v8185
        %8187 = vmatmul.f32.gmra.mxu0 %v7879
        %v8188 = vpop.f32.mrf.mxu0
        %v8189 = vadd.f32 %v8076, %v8188
        %8190 = vmatmul.f32.gmra.mxu0 %v7881
        %v8191 = vpop.f32.mrf.mxu0
        %v8192 = vadd.f32 %v8079, %v8191
        %8193 = vmatmul.f32.gmra.mxu0 %v7883
        %v8194 = vpop.f32.mrf.mxu0
        %v8195 = vadd.f32 %v8082, %v8194
        %8196 = vmatmul.f32.gmra.mxu0 %v7885
        %v8197 = vpop.f32.mrf.mxu0
        %v8198 = vadd.f32 %v8085, %v8197
        %8199 = vmatmul.f32.gmra.mxu0 %v7887
        %v8200 = vpop.f32.mrf.mxu0
        %v8201 = vadd.f32 %v8088, %v8200
        %8202 = vmatmul.f32.gmra.mxu0 %v7889
        %v8203 = vpop.f32.mrf.mxu0
        %v8204 = vadd.f32 %v8091, %v8203
        %8205 = vmatmul.f32.gmra.mxu0 %v7891
        %v8206 = vpop.f32.mrf.mxu0
        %v8207 = vadd.f32 %v8094, %v8206
        %8208 = vmatmul.f32.gmra.mxu0 %v7893
        %v8209 = vpop.f32.mrf.mxu0
        %v8210 = vadd.f32 %v8097, %v8209
        %8211 = vmatmul.f32.gmra.mxu0 %v7895
        %v8212 = vpop.f32.mrf.mxu0
        %v8213 = vadd.f32 %v8100, %v8212
        %8214 = vmatmul.f32.gmra.mxu0 %v7897
        %v8215 = vpop.f32.mrf.mxu0
        %v8216 = vadd.f32 %v8103, %v8215
        %8217 = vmatmul.f32.gmra.mxu0 %v7899
        %v8218 = vpop.f32.mrf.mxu0
        %v8219 = vadd.f32 %v8106, %v8218
        %8220 = vmatmul.f32.gmra.mxu0 %v7901
        %v8221 = vpop.f32.mrf.mxu0
        %v8222 = vadd.f32 %v8109, %v8221
        %8223 = vdwg.mxu0
        %v8224 = vld [vmem:[#allocation8 + $0x60] sm:$0xff]
        %v8225 = vld [vmem:[#allocation8 + $0x68] sm:$0xff]
        %v8226 = vld [vmem:[#allocation8 + $0x70] sm:$0xff]
        %v8227 = vld [vmem:[#allocation8 + $0x78] sm:$0xff]
        %v8229 = vsel %vm752, %v8129, 0
        %v8232 = vsel %vm752, %v8132, 0
        %v8235 = vsel %vm752, %v8135, 0
        %v8238 = vsel %vm752, %v8138, 0
        %v8241 = vsel %vm752, %v8141, 0
        %v8244 = vsel %vm752, %v8144, 0
        %v8247 = vsel %vm752, %v8147, 0
        %v8250 = vsel %vm752, %v8150, 0
        %v8253 = vsel %vm752, %v8153, 0
        %v8256 = vsel %vm752, %v8156, 0
        %v8259 = vsel %vm752, %v8159, 0
        %v8262 = vsel %vm752, %v8162, 0
        %v8265 = vsel %vm752, %v8165, 0
        %v8268 = vsel %vm752, %v8168, 0
        %v8271 = vsel %vm752, %v8171, 0
        %v8274 = vsel %vm752, %v8174, 0
        %v8277 = vsel %vm752, %v8177, 0
        %v8280 = vsel %vm752, %v8180, 0
        %v8283 = vsel %vm752, %v8183, 0
        %v8286 = vsel %vm752, %v8186, 0
        %v8289 = vsel %vm752, %v8189, 0
        %v8292 = vsel %vm752, %v8192, 0
        %v8295 = vsel %vm752, %v8195, 0
        %v8298 = vsel %vm752, %v8198, 0
        %v8301 = vsel %vm752, %v8201, 0
        %v8304 = vsel %vm752, %v8204, 0
        %v8307 = vsel %vm752, %v8207, 0
        %v8310 = vsel %vm752, %v8210, 0
        %v8313 = vsel %vm752, %v8213, 0
        %v8316 = vsel %vm752, %v8216, 0
        %v8319 = vsel %vm752, %v8219, 0
        %v8322 = vsel %vm752, %v8222, 0
        %8324 = vmatpush.msra.mxu0 0.0
        %8325 = vmatpush.msra.mxu0 0.0
        %8326 = vmatpush.msra.mxu0 0.0
        %8327 = vmatpush.msra.mxu0 0.0
        %8328 = vmatpush.msra.mxu0 0.0
        %8329 = vmatpush.msra.mxu0 0.0
        %8330 = vmatpush.msra.mxu0 0.0
        %8331 = vmatpush.msra.mxu0 0.0
        %8332 = vmatpush.msra.mxu0 0.0
        %8333 = vmatpush.msra.mxu0 0.0
        %8334 = vmatpush.msra.mxu0 0.0
        %8335 = vmatpush.msra.mxu0 0.0
        %8336 = vmatpush.msra.mxu0 %v8227
        %8337 = vmatpush.msra.mxu0 %v8226
        %8338 = vmatpush.msra.mxu0 %v8225
        %8339 = vmatpush.msra.mxu0 %v8224
        %8340 = vmatmul.f32.gmra.mxu0 %v8229
        %v8341 = vpop.f32.mrf.mxu0
        %v8342 = vadd.f32 0.0, %v8341
        %8343 = vmatmul.f32.gmra.mxu0 %v8232
        %v8344 = vpop.f32.mrf.mxu0
        %v8345 = vadd.f32 0.0, %v8344
        %8346 = vmatmul.f32.gmra.mxu0 %v8235
        %v8347 = vpop.f32.mrf.mxu0
        %v8348 = vadd.f32 0.0, %v8347
        %8349 = vmatmul.f32.gmra.mxu0 %v8238
        %v8350 = vpop.f32.mrf.mxu0
        %v8351 = vadd.f32 0.0, %v8350
        %8352 = vmatmul.f32.gmra.mxu0 %v8241
        %v8353 = vpop.f32.mrf.mxu0
        %v8354 = vadd.f32 0.0, %v8353
        %8355 = vmatmul.f32.gmra.mxu0 %v8244
        %v8356 = vpop.f32.mrf.mxu0
        %v8357 = vadd.f32 0.0, %v8356
        %8358 = vmatmul.f32.gmra.mxu0 %v8247
        %v8359 = vpop.f32.mrf.mxu0
        %v8360 = vadd.f32 0.0, %v8359
        %8361 = vmatmul.f32.gmra.mxu0 %v8250
        %v8362 = vpop.f32.mrf.mxu0
        %v8363 = vadd.f32 0.0, %v8362
        %8364 = vmatmul.f32.gmra.mxu0 %v8253
        %v8365 = vpop.f32.mrf.mxu0
        %v8366 = vadd.f32 0.0, %v8365
        %8367 = vmatmul.f32.gmra.mxu0 %v8256
        %v8368 = vpop.f32.mrf.mxu0
        %v8369 = vadd.f32 0.0, %v8368
        %8370 = vmatmul.f32.gmra.mxu0 %v8259
        %v8371 = vpop.f32.mrf.mxu0
        %v8372 = vadd.f32 0.0, %v8371
        %8373 = vmatmul.f32.gmra.mxu0 %v8262
        %v8374 = vpop.f32.mrf.mxu0
        %v8375 = vadd.f32 0.0, %v8374
        %8376 = vmatmul.f32.gmra.mxu0 %v8265
        %v8377 = vpop.f32.mrf.mxu0
        %v8378 = vadd.f32 0.0, %v8377
        %8379 = vmatmul.f32.gmra.mxu0 %v8268
        %v8380 = vpop.f32.mrf.mxu0
        %v8381 = vadd.f32 0.0, %v8380
        %8382 = vmatmul.f32.gmra.mxu0 %v8271
        %v8383 = vpop.f32.mrf.mxu0
        %v8384 = vadd.f32 0.0, %v8383
        %8385 = vmatmul.f32.gmra.mxu0 %v8274
        %v8386 = vpop.f32.mrf.mxu0
        %v8387 = vadd.f32 0.0, %v8386
        %8388 = vmatmul.f32.gmra.mxu0 %v8277
        %v8389 = vpop.f32.mrf.mxu0
        %v8390 = vadd.f32 0.0, %v8389
        %8391 = vmatmul.f32.gmra.mxu0 %v8280
        %v8392 = vpop.f32.mrf.mxu0
        %v8393 = vadd.f32 0.0, %v8392
        %8394 = vmatmul.f32.gmra.mxu0 %v8283
        %v8395 = vpop.f32.mrf.mxu0
        %v8396 = vadd.f32 0.0, %v8395
        %8397 = vmatmul.f32.gmra.mxu0 %v8286
        %v8398 = vpop.f32.mrf.mxu0
        %v8399 = vadd.f32 0.0, %v8398
        %8400 = vmatmul.f32.gmra.mxu0 %v8289
        %v8401 = vpop.f32.mrf.mxu0
        %v8402 = vadd.f32 0.0, %v8401
        %8403 = vmatmul.f32.gmra.mxu0 %v8292
        %v8404 = vpop.f32.mrf.mxu0
        %v8405 = vadd.f32 0.0, %v8404
        %8406 = vmatmul.f32.gmra.mxu0 %v8295
        %v8407 = vpop.f32.mrf.mxu0
        %v8408 = vadd.f32 0.0, %v8407
        %8409 = vmatmul.f32.gmra.mxu0 %v8298
        %v8410 = vpop.f32.mrf.mxu0
        %v8411 = vadd.f32 0.0, %v8410
        %8412 = vmatmul.f32.gmra.mxu0 %v8301
        %v8413 = vpop.f32.mrf.mxu0
        %v8414 = vadd.f32 0.0, %v8413
        %8415 = vmatmul.f32.gmra.mxu0 %v8304
        %v8416 = vpop.f32.mrf.mxu0
        %v8417 = vadd.f32 0.0, %v8416
        %8418 = vmatmul.f32.gmra.mxu0 %v8307
        %v8419 = vpop.f32.mrf.mxu0
        %v8420 = vadd.f32 0.0, %v8419
        %8421 = vmatmul.f32.gmra.mxu0 %v8310
        %v8422 = vpop.f32.mrf.mxu0
        %v8423 = vadd.f32 0.0, %v8422
        %8424 = vmatmul.f32.gmra.mxu0 %v8313
        %v8425 = vpop.f32.mrf.mxu0
        %v8426 = vadd.f32 0.0, %v8425
        %8427 = vmatmul.f32.gmra.mxu0 %v8316
        %v8428 = vpop.f32.mrf.mxu0
        %v8429 = vadd.f32 0.0, %v8428
        %8430 = vmatmul.f32.gmra.mxu0 %v8319
        %v8431 = vpop.f32.mrf.mxu0
        %v8432 = vadd.f32 0.0, %v8431
        %8433 = vmatmul.f32.gmra.mxu0 %v8322
        %v8434 = vpop.f32.mrf.mxu0
        %v8435 = vadd.f32 0.0, %v8434
        %8436 = vdwg.mxu0
        %v8437 = vadd.f32 %v6460, %v8342
        %v8438 = vadd.f32 %v6461, %v8345
        %v8439 = vadd.f32 %v6462, %v8348
        %v8440 = vadd.f32 %v6463, %v8351
        %v8441 = vadd.f32 %v6464, %v8354
        %v8442 = vadd.f32 %v6465, %v8357
        %v8443 = vadd.f32 %v6466, %v8360
        %v8444 = vadd.f32 %v6467, %v8363
        %v8445 = vadd.f32 %v6468, %v8366
        %v8446 = vadd.f32 %v6469, %v8369
        %v8447 = vadd.f32 %v6470, %v8372
        %v8448 = vadd.f32 %v6471, %v8375
        %v8449 = vadd.f32 %v6472, %v8378
        %v8450 = vadd.f32 %v6473, %v8381
        %v8451 = vadd.f32 %v6474, %v8384
        %v8452 = vadd.f32 %v6475, %v8387
        %v8453 = vadd.f32 %v6476, %v8390
        %v8454 = vadd.f32 %v6477, %v8393
        %v8455 = vadd.f32 %v6478, %v8396
        %v8456 = vadd.f32 %v6479, %v8399
        %v8457 = vadd.f32 %v6480, %v8402
        %v8458 = vadd.f32 %v6481, %v8405
        %v8459 = vadd.f32 %v6482, %v8408
        %v8460 = vadd.f32 %v6483, %v8411
        %v8461 = vadd.f32 %v6484, %v8414
        %v8462 = vadd.f32 %v6485, %v8417
        %v8463 = vadd.f32 %v6486, %v8420
        %v8464 = vadd.f32 %v6487, %v8423
        %v8465 = vadd.f32 %v6488, %v8426
        %v8466 = vadd.f32 %v6489, %v8429
        %v8467 = vadd.f32 %v6490, %v8432
        %v8468 = vadd.f32 %v6491, %v8435
        %v8469 = vld [vmem:[%s4] sm:$0x1]
        %v8471 = vperm.slane %v8469, 0
        %v8473 = vadd.f32 %v8437, %v8471
        %v8474 = vadd.f32 %v8438, %v8471
        %v8475 = vadd.f32 %v8439, %v8471
        %v8476 = vadd.f32 %v8440, %v8471
        %v8477 = vadd.f32 %v8441, %v8471
        %v8478 = vadd.f32 %v8442, %v8471
        %v8479 = vadd.f32 %v8443, %v8471
        %v8480 = vadd.f32 %v8444, %v8471
        %v8481 = vadd.f32 %v8445, %v8471
        %v8482 = vadd.f32 %v8446, %v8471
        %v8483 = vadd.f32 %v8447, %v8471
        %v8484 = vadd.f32 %v8448, %v8471
        %v8485 = vadd.f32 %v8449, %v8471
        %v8486 = vadd.f32 %v8450, %v8471
        %v8487 = vadd.f32 %v8451, %v8471
        %v8488 = vadd.f32 %v8452, %v8471
        %v8489 = vadd.f32 %v8453, %v8471
        %v8490 = vadd.f32 %v8454, %v8471
        %v8491 = vadd.f32 %v8455, %v8471
        %v8492 = vadd.f32 %v8456, %v8471
        %v8493 = vadd.f32 %v8457, %v8471
        %v8494 = vadd.f32 %v8458, %v8471
        %v8495 = vadd.f32 %v8459, %v8471
        %v8496 = vadd.f32 %v8460, %v8471
        %v8497 = vadd.f32 %v8461, %v8471
        %v8498 = vadd.f32 %v8462, %v8471
        %v8499 = vadd.f32 %v8463, %v8471
        %v8500 = vadd.f32 %v8464, %v8471
        %v8501 = vadd.f32 %v8465, %v8471
        %v8502 = vadd.f32 %v8466, %v8471
        %v8503 = vadd.f32 %v8467, %v8471
        %v8504 = vadd.f32 %v8468, %v8471
        %8505 = vst [vmem:[%s292] sm:$0xff] %v8473
        %8506 = vst [vmem:[%s292 + $0x8] sm:$0xff] %v8474
        %8507 = vst [vmem:[%s292 + $0x10] sm:$0xff] %v8475
        %8508 = vst [vmem:[%s292 + $0x18] sm:$0xff] %v8476
        %8509 = vst [vmem:[%s292 + $0x20] sm:$0xff] %v8477
        %8510 = vst [vmem:[%s292 + $0x28] sm:$0xff] %v8478
        %8511 = vst [vmem:[%s292 + $0x30] sm:$0xff] %v8479
        %8512 = vst [vmem:[%s292 + $0x38] sm:$0xff] %v8480
        %8513 = vst [vmem:[%s292 + $0x40] sm:$0xff] %v8481
        %8514 = vst [vmem:[%s292 + $0x48] sm:$0xff] %v8482
        %8515 = vst [vmem:[%s292 + $0x50] sm:$0xff] %v8483
        %8516 = vst [vmem:[%s292 + $0x58] sm:$0xff] %v8484
        %8517 = vst [vmem:[%s292 + $0x60] sm:$0xff] %v8485
        %8518 = vst [vmem:[%s292 + $0x68] sm:$0xff] %v8486
        %8519 = vst [vmem:[%s292 + $0x70] sm:$0xff] %v8487
        %8520 = vst [vmem:[%s292 + $0x78] sm:$0xff] %v8488
        %8521 = vst [vmem:[%s292 + $0x80] sm:$0xff] %v8489
        %8522 = vst [vmem:[%s292 + $0x88] sm:$0xff] %v8490
        %8523 = vst [vmem:[%s292 + $0x90] sm:$0xff] %v8491
        %8524 = vst [vmem:[%s292 + $0x98] sm:$0xff] %v8492
        %8525 = vst [vmem:[%s292 + $0xa0] sm:$0xff] %v8493
        %8526 = vst [vmem:[%s292 + $0xa8] sm:$0xff] %v8494
        %8527 = vst [vmem:[%s292 + $0xb0] sm:$0xff] %v8495
        %8528 = vst [vmem:[%s292 + $0xb8] sm:$0xff] %v8496
        %8529 = vst [vmem:[%s292 + $0xc0] sm:$0xff] %v8497
        %8530 = vst [vmem:[%s292 + $0xc8] sm:$0xff] %v8498
        %8531 = vst [vmem:[%s292 + $0xd0] sm:$0xff] %v8499
        %8532 = vst [vmem:[%s292 + $0xd8] sm:$0xff] %v8500
        %8533 = vst [vmem:[%s292 + $0xe0] sm:$0xff] %v8501
        %8534 = vst [vmem:[%s292 + $0xe8] sm:$0xff] %v8502
        %8535 = vst [vmem:[%s292 + $0xf0] sm:$0xff] %v8503
        %8536 = vst [vmem:[%s292 + $0xf8] sm:$0xff] %v8504
        %s8537 = sand.u32 %s142, 1
        %s8538 = scalar_lea.sflag [#allocation4], %s8537
        %s8539 = sand.u32 %s142, 1
        %s8540 = smul.addr %s8539, 256
        %s8541 = scalar_lea.vmem [#allocation10], %s8540
        // Predicated region
        $region57: #{tpu_custom_call.1} parent=39 // pred_check
          %p8542 = pneg %p152
        $region58: #{tpu_custom_call.1} parent=39 // pred_check_branch
          %8544 = sbr.rel (%p8542) target = $region60
        $region59: #{tpu_custom_call.1} parent=39 // pred_region
          %8546 = vsyncadd %s8538, 0
          %s8547 = smul.addr %s24, 32
          %s8548 = smul.addr %s8547, 8
          %s8549 = scalar_lea.hbm %s5, %s8548
          %s8550 = sshll.u32 %s8541, 4
          %s8551 = int_to_ptr.vmem [resolvable:$true] %s8550
          %s8552 = sshll.u32 %s8549, 4
          %s8553 = int_to_ptr.hbm [resolvable:$true] %s8552
          %8558 = dma.vmem_to_hbm [thread:$0]  %s8551, 4096, %s8553, %s8538, 128, 128, 8
        $region60: #{tpu_custom_call.1} parent=39 // pred_fallthru
          _
      $region40: #{tpu_custom_call.1} parent=5 // pred_fallthru
        _
      %p8559 = scmp.le.s32.totalorder 2, %s19
      // Predicated region
      $region61: #{tpu_custom_call.1} parent=5 // pred_check
        %p8560 = pneg %p8559
      $region62: #{tpu_custom_call.1} parent=5 // pred_check_branch
        %8562 = sbr.rel (%p8560) target = $region64
      $region63: #{tpu_custom_call.1} parent=5 // pred_region
        %s8563 = ssub.s32 %s19, 2
        // Predicated region
        $region65: #{tpu_custom_call.1} parent=63 // pred_check
          %p8564 = pneg %p158
        $region66: #{tpu_custom_call.1} parent=63 // pred_check_branch
          %8566 = sbr.rel (%p8564) target = $region68
        $region67: #{tpu_custom_call.1} parent=63 // pred_region
          %s8567 = sand.u32 %s143, 1
          %s8568 = scalar_lea.sflag [#allocation4], %s8567
          %s8569 = sand.u32 %s143, 1
          %s8570 = smul.addr %s8569, 256
          %s8571 = scalar_lea.vmem [#allocation10], %s8570
          %8573 = dma.done %s8568, 4096
        $region68: #{tpu_custom_call.1} parent=63 // pred_fallthru
          _
      $region64: #{tpu_custom_call.1} parent=5 // pred_fallthru
        _
    $region6: #{tpu_custom_call.1} parent=1 // loop_footer
      %s23 = sadd.s32 1, %s19
    $region7: #{tpu_custom_call.1} parent=1 // loop_footer_branch
      %18 = sbr.rel target = $region3
    $region8: #{tpu_custom_call.1} parent=1 // loop_exit
      _
    %8574 = vsyncpa [#allocation3], 1
    %s8575 = scalar_lea.sflag [#allocation3], 1
    %8576 = vsyncpa %s8575, 1
    %8577 = vsyncpa [#allocation6], 1
    %8578 = vsyncpa [#allocation9], 1
    %8579 = vsyncpa [#allocation4], 1
    %s8580 = scalar_lea.sflag [#allocation4], 1
    %8581 = vsyncpa %s8580, 1

</llo_original>
